<compile_context>
chip_gen: v7x
topology: tpu7x:2x2x1
jax: 0.10.0
libtpu: 0.0.40
codegen_flags: <defaults>
</compile_context>

<pallas_src>
import functools
import math

import numpy as np
import jax
import jax.numpy as jnp
from jax.experimental import pallas as pl
from jax.experimental.pallas import tpu as pltpu


def _round_up(x, m):
    return ((x + m - 1) // m) * m


_CONV_TARGET_COLS = 8192          # per-step streamed columns target (review: 2048-8192)


# ----------------------------------------------------------------------------
# Pallas kernel: |STFT| via one fused, window-folded [cos | sin] basis matmul
# ----------------------------------------------------------------------------
def _stft_mag_kernel(fr_ref, basis_ref, o_ref, *, nb_pad):
    re = jnp.dot(fr_ref[...], basis_ref[:, :nb_pad], preferred_element_type=jnp.float32)
    im = jnp.dot(fr_ref[...], basis_ref[:, nb_pad:], preferred_element_type=jnp.float32)
    # NOTE: exact torch.norm forward semantics (no eps under the sqrt).
    o_ref[...] = jnp.sqrt(re * re + im * im)


def _stft_mag_call(frames_p, basis, tm, nb_pad):
    m_p, span = frames_p.shape
    # double-buffered footprint (basis + frame tile + out tile); v5e default is 16 MiB,
    # so pass the limit explicitly (kept well under v7x's 64 MiB physical VMEM).
    footprint = 2 * (basis.size * 2 + tm * span * 2 + tm * nb_pad * 4)
    vmem_lim = int(min(max(footprint + (8 << 20), 32 << 20), 56 << 20))
    kernel = functools.partial(_stft_mag_kernel, nb_pad=nb_pad)
    return pl.pallas_call(
        kernel,
        out_shape=jax.ShapeDtypeStruct((m_p, nb_pad), jnp.float32),
        grid=(m_p // tm,),
        in_specs=[
            pl.BlockSpec((tm, span), lambda i: (i, 0)),           # streamed frame tiles
            pl.BlockSpec((span, 2 * nb_pad), lambda i: (0, 0)),   # resident fused basis
        ],
        out_specs=pl.BlockSpec((tm, nb_pad), lambda i: (i, 0)),
        compiler_params=pltpu.CompilerParams(
            dimension_semantics=("parallel",),
            vmem_limit_bytes=vmem_lim),
    )(frames_p, basis)


# ----------------------------------------------------------------------------
# Pallas kernel: conv2d with the KW taps folded in-kernel
#   xflat rows = (kh, c_in) taps, columns = flattened (b, h_out, padded width);
#   for each kw:   o += roll(W_kw @ x, -kw)   (wrap garbage only hits discarded
#   tail columns of each tile, tiles always end on a padded row boundary).
# ----------------------------------------------------------------------------
def _conv_kw_kernel(w_ref, x_ref, b_ref, o_ref, *, kw_count, slope):
    cols = o_ref.shape[-1]
    # kw = 0 tap initialises the accumulator (held in the output VMEM block).
    o_ref[...] = jnp.dot(w_ref[0], x_ref[...], preferred_element_type=jnp.float32)
    for kw in range(1, kw_count):
        t = jnp.dot(w_ref[kw], x_ref[...], preferred_element_type=jnp.float32)
        # left-shift by kw columns (rotation; wrapped tail columns are discarded later)
        o_ref[...] += pltpu.roll(t, shift=cols - kw, axis=1)
    y = o_ref[...] + b_ref[...]
    if slope is not None:
        y = jnp.where(y >= 0.0, y, slope * y)
    o_ref[...] = y


def _conv_kw_call(w_mats, xflat, bias, slope, tile_cols):
    kw_count, c_out, kp = w_mats.shape
    _, L = xflat.shape
    footprint = 2 * tile_cols * (kp * 2 + c_out * 4) + w_mats.size * 2 + c_out * 4
    vmem_lim = int(min(max(footprint + (8 << 20), 32 << 20), 56 << 20))
    kernel = functools.partial(_conv_kw_kernel, kw_count=kw_count, slope=slope)
    return pl.pallas_call(
        kernel,
        out_shape=jax.ShapeDtypeStruct((c_out, L), jnp.float32),
        grid=(L // tile_cols,),
        in_specs=[
            pl.BlockSpec((kw_count, c_out, kp), lambda i: (0, 0, 0)),  # resident weights
            pl.BlockSpec((kp, tile_cols), lambda i: (0, i)),           # streamed slab
            pl.BlockSpec((c_out, 1), lambda i: (0, 0)),                # bias
        ],
        out_specs=pl.BlockSpec((c_out, tile_cols), lambda i: (0, i)),
        compiler_params=pltpu.CompilerParams(
            dimension_semantics=("parallel",),
            vmem_limit_bytes=vmem_lim),
    )(w_mats, xflat, bias)


# ----------------------------------------------------------------------------
# Spectrogram (torch.stft, window=None, center=False) -> magnitude
# ----------------------------------------------------------------------------
@functools.lru_cache(maxsize=None)
def _dft_basis(n_fft, win_length, start, span, nb_pad):
    """Window-folded, win_length-trimmed, lane-padded [cos | sin] DFT basis (bf16)."""
    n_bins = n_fft // 2 + 1
    wpad = (n_fft - win_length) // 2
    j = np.arange(start, start + span, dtype=np.float64)
    window = ((j >= wpad) & (j < wpad + win_length)).astype(np.float64)
    f = np.arange(n_bins, dtype=np.float64)[None, :]
    ang = 2.0 * np.pi * j[:, None] * f / float(n_fft)
    basis = np.zeros((span, 2 * nb_pad), np.float32)
    basis[:, :n_bins] = np.cos(ang) * window[:, None]
    basis[:, nb_pad:nb_pad + n_bins] = np.sin(ang) * window[:, None]
    return jnp.asarray(basis, dtype=jnp.bfloat16)


def spectrogram(x, n_fft, hop_length, win_length):
    """x: (B, 1, T) -> magnitude spectrogram (B, n_fft//2+1, n_frames)."""
    pad = int((n_fft - hop_length) / 2)
    xpad = jnp.pad(x, ((0, 0), (0, 0), (pad, pad)), mode="reflect")[:, 0, :]
    B, Tp = xpad.shape
    n_frames = (Tp - n_fft) // hop_length + 1

    # trim the contraction to a hop-aligned span around the rectangular-window support
    wpad = (n_fft - win_length) // 2
    start = (wpad // hop_length) * hop_length
    span = _round_up(wpad + win_length - start, hop_length)

    # gather-free framing: hop-sized blocks + span//hop contiguous slices (works for
    # every hop/n_fft combination; the trim made the frame start hop-aligned).
    total_needed = (n_frames - 1) * hop_length + start + span
    Tb = _round_up(max(Tp, total_needed), hop_length)
    xz = jnp.pad(xpad, ((0, 0), (0, Tb - Tp))).astype(jnp.bfloat16)
    blocks = xz.reshape(B, Tb // hop_length, hop_length)
    s0 = start // hop_length
    frames = jnp.concatenate(
        [blocks[:, s0 + i: s0 + i + n_frames, :] for i in range(span // hop_length)],
        axis=-1)                                             # (B, n_frames, span) bf16

    n_bins = n_fft // 2 + 1
    nb_pad = _round_up(n_bins, 128)
    basis = _dft_basis(n_fft, win_length, start, span, nb_pad)

    M = B * n_frames
    basis_bytes = basis.size * 2
    tm = 1024                                                 # v6e/v7x: 512-1024 rows
    while tm > 128 and 2 * (basis_bytes + tm * (span * 2 + nb_pad * 4)) > (26 << 20):
        tm //= 2
    if M < tm:
        tm = max(128, _round_up(M, 128))
    m_p = _round_up(M, tm)

    fr = jnp.pad(frames.reshape(M, span), ((0, m_p - M), (0, 0)))
    mag = _stft_mag_call(fr, basis, tm, nb_pad)               # (m_p, nb_pad) f32
    mag = mag[:M, :n_bins].reshape(B, n_frames, n_bins)
    return jnp.transpose(mag, (0, 2, 1))                      # (B, n_bins, n_frames)


# ----------------------------------------------------------------------------
# Conv2d (+ fused leaky_relu) in a single internal (C, B, H, W) layout
# ----------------------------------------------------------------------------
def conv2d_cbhw(x, w, b, stride, padding, slope):
    """PyTorch-Conv2d semantics.  x: (C_in, B, H, W); w: (C_out, C_in, KH, KW);
    b: (C_out,).  Returns (C_out, B, H_out, W_out) f32."""
    c_in, B, H, W = x.shape
    c_out, _, KH, KW = w.shape
    sh, sw = stride
    ph, pw = padding
    h_out = (H + 2 * ph - KH) // sh + 1
    w_out = (W + 2 * pw - KW) // sw + 1
    wp = W + 2 * pw
    w_out1 = wp - KW + 1                       # stride-1 width outputs (subsampled later)
    wp8 = _round_up(max(wp, KW), 8)

    # cast BEFORE any expansion, then materialize only the KH-folded (3x) row-im2col
    x_bf = x.astype(jnp.bfloat16)
    xp = jnp.pad(x_bf, ((0, 0), (0, 0), (ph, ph), (pw, wp8 - W - pw)))
    rows = [xp[:, :, kh:kh + sh * h_out:sh, :] for kh in range(KH)]
    xrow = jnp.concatenate(rows, axis=0)       # (KH*C_in, B, H_out, wp8), kh-major rows
    kp = _round_up(KH * c_in, 8)
    bh = B * h_out

    # r (b,h) rows per grid step; r*wp8 must be a multiple of 128 lanes
    q = 128 // math.gcd(wp8, 128)
    r = max(q, (max(1, _CONV_TARGET_COLS // wp8) // q) * q)
    r = min(r, _round_up(bh, q))                           # don't exceed the problem
    r = min(r, max(q, _round_up(-(-bh // 8), q)))          # keep >= ~8 grid steps
    per_r = 2 * wp8 * (kp * 2 + c_out * 4)                 # double-buffered bytes per row
    while r > q and r * per_r > (20 << 20):
        r -= q
    bh_p = _round_up(bh, r)
    tile_cols = r * wp8

    xrow = jnp.pad(xrow.reshape(KH * c_in, bh, wp8),
                   ((0, kp - KH * c_in), (0, bh_p - bh), (0, 0)))
    xflat = xrow.reshape(kp, bh_p * wp8)

    wm = jnp.transpose(w, (3, 0, 2, 1)).reshape(KW, c_out, KH * c_in)   # (kw, co, kh*ci)
    wm = jnp.pad(wm, ((0, 0), (0, 0), (0, kp - KH * c_in))).astype(jnp.bfloat16)
    bias = b.reshape(c_out, 1).astype(jnp.float32)

    y = _conv_kw_call(wm, xflat, bias, slope, tile_cols)    # (C_out, bh_p*wp8) f32
    y = y.reshape(c_out, bh_p, wp8)[:, :bh, :w_out1].reshape(c_out, B, h_out, w_out1)
    if sw > 1:
        y = y[:, :, :, ::sw]                                # width stride via subsample
    return y[:, :, :, :w_out]


# ----------------------------------------------------------------------------
# DiscriminatorR forward
# ----------------------------------------------------------------------------
def init_params(key, d_mult=0.25):
    """Deterministic parameter init matching DiscriminatorR conv shapes."""
    ch = int(32 * d_mult)
    shapes = [
        (ch, 1, 3, 9),
        (ch, ch, 3, 9),
        (ch, ch, 3, 9),
        (ch, ch, 3, 9),
        (ch, ch, 3, 3),
    ]
    params = {}
    for i, shp in enumerate(shapes):
        key, kw_, kb_ = jax.random.split(key, 3)
        params[f"conv{i}"] = (
            0.1 * jax.random.normal(kw_, shp, jnp.float32),
            0.01 * jax.random.normal(kb_, (shp[0],), jnp.float32),
        )
    key, kw_, kb_ = jax.random.split(key, 3)
    params["conv_post"] = (
        0.1 * jax.random.normal(kw_, (1, ch, 3, 3), jnp.float32),
        0.01 * jax.random.normal(kb_, (1,), jnp.float32),
    )
    return params


_CONV_CFGS = [
    ((1, 1), (1, 4)),
    ((1, 2), (1, 4)),
    ((1, 2), (1, 4)),
    ((1, 2), (1, 4)),
    ((1, 1), (1, 1)),
]


def discriminator_r_forward(x, params, resolution, lrelu_slope=0.1):
    """x: (B, 1, T) raw waveform.  Returns (logits (B, H*W), fmap list in NCHW)."""
    n_fft, hop_length, win_length = resolution
    mag = spectrogram(x, n_fft, hop_length, win_length)     # (B, F, T_frames)
    h = mag[None]                                           # (1, B, F, T) = (C,B,H,W)

    fmap_cbhw = []
    for i, (stride, padding) in enumerate(_CONV_CFGS):
        w, b = params[f"conv{i}"]
        h = conv2d_cbhw(h, w, b, stride, padding, lrelu_slope)     # conv + lrelu fused
        fmap_cbhw.append(h)

    w, b = params["conv_post"]
    h = conv2d_cbhw(h, w, b, (1, 1), (1, 1), None)                 # no activation
    fmap_cbhw.append(h)

    # single layout conversion to PyTorch NCHW, only at the end
    fmap = [jnp.transpose(f, (1, 0, 2, 3)) for f in fmap_cbhw]
    out = fmap[-1].reshape(fmap[-1].shape[0], -1)                  # flatten(x, 1, -1)
    return out, fmap


# ----------------------------------------------------------------------------
# Pure-JAX f32 reference (for the in-script tolerance self-check only)
# ----------------------------------------------------------------------------
def _reference_forward(x, params, resolution, lrelu_slope=0.1):
    n_fft, hop, win = resolution
    pad = int((n_fft - hop) / 2)
    xp = jnp.pad(x, ((0, 0), (0, 0), (pad, pad)), mode="reflect")[:, 0, :]
    B, Tp = xp.shape
    nfr = (Tp - n_fft) // hop + 1
    idx = jnp.arange(nfr)[:, None] * hop + jnp.arange(n_fft)[None, :]
    frames = xp[:, idx]
    wpad = (n_fft - win) // 2
    window = jnp.zeros((n_fft,), jnp.float32).at[wpad:wpad + win].set(1.0)
    n = jnp.arange(n_fft, dtype=jnp.float32)[:, None]
    f = jnp.arange(n_fft // 2 + 1, dtype=jnp.float32)[None, :]
    ang = 2.0 * np.pi * n * f / float(n_fft)
    fw = frames * window[None, None, :]
    re = jnp.einsum("btn,nf->btf", fw, jnp.cos(ang))
    im = jnp.einsum("btn,nf->btf", fw, jnp.sin(ang))
    mag = jnp.sqrt(re * re + im * im)
    h = jnp.transpose(mag, (0, 2, 1))[:, None]                     # (B,1,F,T)
    fmap = []
    for i, (st, pd) in enumerate(_CONV_CFGS):
        w, b = params[f"conv{i}"]
        h = jax.lax.conv_general_dilated(
            h, w, st, [(pd[0], pd[0]), (pd[1], pd[1])],
            dimension_numbers=("NCHW", "OIHW", "NCHW"))
        h = h + b[None, :, None, None]
        h = jnp.where(h >= 0, h, lrelu_slope * h)
        fmap.append(h)
    w, b = params["conv_post"]
    h = jax.lax.conv_general_dilated(
        h, w, (1, 1), [(1, 1), (1, 1)],
        dimension_numbers=("NCHW", "OIHW", "NCHW"))
    h = h + b[None, :, None, None]
    fmap.append(h)
    return h.reshape(h.shape[0], -1), fmap


def _rel_err(a, b):
    a = np.asarray(a, np.float64)
    b = np.asarray(b, np.float64)
    return float(np.linalg.norm(a - b) / (np.linalg.norm(b) + 1e-12))


# ----------------------------------------------------------------------------
if __name__ == "__main__":
    key = jax.random.PRNGKey(0)
    key, kx, kparam = jax.random.split(key, 3)

    # small but representative sizes
    resolution = (64, 16, 32)          # (n_fft, hop_length, win_length)
    B, T = 2, 256
    x = jax.random.normal(kx, (B, 1, T), jnp.float32)
    params = init_params(kparam, d_mult=0.25)      # 8 channels

    fwd = jax.jit(functools.partial(discriminator_r_forward, resolution=resolution))
    out, fmap = fwd(x, params)

    out = jax.block_until_ready(out)
    for f in fmap:
        jax.block_until_ready(f)

    # structural sanity: final conv has 1 out-channel; freq bins = n_fft//2+1 = 33
    assert out.ndim == 2 and out.shape[0] == B
    assert len(fmap) == 6
    assert fmap[-1].shape[1] == 1 and fmap[-1].shape[2] == 33
    assert bool(jnp.all(jnp.isfinite(out)))

    # numeric self-check against an f32 pure-JAX reference (generous bf16 tolerance)
    out_ref, fmap_ref = _reference_forward(x, params, resolution)
    assert _rel_err(fmap[0], fmap_ref[0]) < 0.10, _rel_err(fmap[0], fmap_ref[0])
    assert _rel_err(out, out_ref) < 0.15, _rel_err(out, out_ref)

    print("KERNEL_OK")
</pallas_src>

<mosaic_0001>
module attributes {stable_mosaic.version = 11 : i64} {
  func.func @_stft_mag_kernel(%arg0: i32, %arg1: memref<128x32xbf16, #tpu.memory_space<vmem>>, %arg2: memref<32x256xbf16, #tpu.memory_space<vmem>>, %arg3: memref<128x128xf32, #tpu.memory_space<vmem>>) attributes {dimension_semantics = [#tpu.dimension_semantics<parallel>], iteration_bounds = array<i64: 1>, scalar_prefetch = 0 : i64, scratch_operands = 0 : i64, tpu.core_type = #tpu.core_type<tc>, window_params = [{transform_indices = @transform_0, window_bounds = array<i64: 128, 32>}, {pipeline_mode = #tpu.pipeline_mode<synchronous>, transform_indices = @transform_1, window_bounds = array<i64: 32, 256>}, {transform_indices = @transform_2, window_bounds = array<i64: 128, 128>}]} {
    %c0 = arith.constant 0 : index
    %c0_0 = arith.constant 0 : index
    %0 = vector.load %arg1[%c0, %c0_0] : memref<128x32xbf16, #tpu.memory_space<vmem>>, vector<128x32xbf16>
    %c0_1 = arith.constant 0 : index
    %c0_2 = arith.constant 0 : index
    %1 = vector.load %arg2[%c0_1, %c0_2] : memref<32x256xbf16, #tpu.memory_space<vmem>>, vector<32x128xbf16>
    %cst = arith.constant dense<0.000000e+00> : vector<128x128xf32>
    %2 = tpu.matmul %0, %1, %cst {dimension_numbers = #tpu.dot_dimension_numbers<[1], [0], [0], [1], [0, 0, 1, 1], [], []>} : vector<128x32xbf16>, vector<32x128xbf16>, vector<128x128xf32> -> vector<128x128xf32>
    %c0_3 = arith.constant 0 : index
    %c0_4 = arith.constant 0 : index
    %3 = vector.load %arg1[%c0_3, %c0_4] : memref<128x32xbf16, #tpu.memory_space<vmem>>, vector<128x32xbf16>
    %c0_5 = arith.constant 0 : index
    %c128 = arith.constant 128 : index
    %4 = vector.load %arg2[%c0_5, %c128] : memref<32x256xbf16, #tpu.memory_space<vmem>>, vector<32x128xbf16>
    %cst_6 = arith.constant dense<0.000000e+00> : vector<128x128xf32>
    %5 = tpu.matmul %3, %4, %cst_6 {dimension_numbers = #tpu.dot_dimension_numbers<[1], [0], [0], [1], [0, 0, 1, 1], [], []>} : vector<128x32xbf16>, vector<32x128xbf16>, vector<128x128xf32> -> vector<128x128xf32>
    %6 = arith.mulf %2, %2 : vector<128x128xf32>
    %7 = arith.mulf %5, %5 : vector<128x128xf32>
    %8 = arith.addf %6, %7 : vector<128x128xf32>
    %9 = math.sqrt %8 : vector<128x128xf32>
    %c0_7 = arith.constant 0 : index
    %c0_8 = arith.constant 0 : index
    %10 = vector.load %arg3[%c0_7, %c0_8] : memref<128x128xf32, #tpu.memory_space<vmem>>, vector<128x128xf32>
    tpu.vector_store %arg3[%c0_7, %c0_8], %9 {strides = array<i32>} : memref<128x128xf32, #tpu.memory_space<vmem>>, vector<128x128xf32>,
    return
  }
  func.func @transform_0(%arg0: i32) -> (i32, i32) {
    %c0_i32 = arith.constant 0 : i32
    %c0_i32_0 = arith.constant 0 : i32
    return %arg0, %c0_i32 : i32, i32
  }
  func.func @transform_1(%arg0: i32) -> (i32, i32) {
    %c0_i32 = arith.constant 0 : i32
    %c0_i32_0 = arith.constant 0 : i32
    %c0_i32_1 = arith.constant 0 : i32
    return %c0_i32, %c0_i32_0 : i32, i32
  }
  func.func @transform_2(%arg0: i32) -> (i32, i32) {
    %c0_i32 = arith.constant 0 : i32
    %c0_i32_0 = arith.constant 0 : i32
    return %arg0, %c0_i32 : i32, i32
  }
}

module attributes {stable_mosaic.version = 11 : i64} {
  func.func @_conv_kw_kernel(%arg0: i32, %arg1: memref<9x8x8xbf16, #tpu.memory_space<vmem>>, %arg2: memref<8x384xbf16, #tpu.memory_space<vmem>>, %arg3: memref<8x1xf32, #tpu.memory_space<vmem>>, %arg4: memref<8x384xf32, #tpu.memory_space<vmem>>) attributes {dimension_semantics = [#tpu.dimension_semantics<parallel>], iteration_bounds = array<i64: 5>, scalar_prefetch = 0 : i64, scratch_operands = 0 : i64, tpu.core_type = #tpu.core_type<tc>, window_params = [{pipeline_mode = #tpu.pipeline_mode<synchronous>, transform_indices = @transform_0, window_bounds = array<i64: 9, 8, 8>}, {transform_indices = @transform_1, window_bounds = array<i64: 8, 384>}, {pipeline_mode = #tpu.pipeline_mode<synchronous>, transform_indices = @transform_2, window_bounds = array<i64: 8, 1>}, {transform_indices = @transform_3, window_bounds = array<i64: 8, 384>}]} {
    %c0 = arith.constant 0 : index
    %c0_0 = arith.constant 0 : index
    %c0_1 = arith.constant 0 : index
    %0 = vector.load %arg1[%c0, %c0_0, %c0_1] : memref<9x8x8xbf16, #tpu.memory_space<vmem>>, vector<1x8x8xbf16>
    %1 = vector.shape_cast %0 : vector<1x8x8xbf16> to vector<8x8xbf16>
    %c0_2 = arith.constant 0 : index
    %c0_3 = arith.constant 0 : index
    %2 = vector.load %arg2[%c0_2, %c0_3] : memref<8x384xbf16, #tpu.memory_space<vmem>>, vector<8x384xbf16>
    %cst = arith.constant dense<0.000000e+00> : vector<8x384xf32>
    %3 = tpu.matmul %1, %2, %cst {dimension_numbers = #tpu.dot_dimension_numbers<[1], [0], [0], [1], [0, 0, 1, 1], [], []>} : vector<8x8xbf16>, vector<8x384xbf16>, vector<8x384xf32> -> vector<8x384xf32>
    %c0_4 = arith.constant 0 : index
    %c0_5 = arith.constant 0 : index
    %4 = vector.load %arg4[%c0_4, %c0_5] : memref<8x384xf32, #tpu.memory_space<vmem>>, vector<8x384xf32>
    tpu.vector_store %arg4[%c0_4, %c0_5], %3 {strides = array<i32>} : memref<8x384xf32, #tpu.memory_space<vmem>>, vector<8x384xf32>,
    %c1 = arith.constant 1 : index
    %c0_6 = arith.constant 0 : index
    %c0_7 = arith.constant 0 : index
    %5 = vector.load %arg1[%c1, %c0_6, %c0_7] : memref<9x8x8xbf16, #tpu.memory_space<vmem>>, vector<1x8x8xbf16>
    %6 = vector.shape_cast %5 : vector<1x8x8xbf16> to vector<8x8xbf16>
    %c0_8 = arith.constant 0 : index
    %c0_9 = arith.constant 0 : index
    %7 = vector.load %arg2[%c0_8, %c0_9] : memref<8x384xbf16, #tpu.memory_space<vmem>>, vector<8x384xbf16>
    %cst_10 = arith.constant dense<0.000000e+00> : vector<8x384xf32>
    %8 = tpu.matmul %6, %7, %cst_10 {dimension_numbers = #tpu.dot_dimension_numbers<[1], [0], [0], [1], [0, 0, 1, 1], [], []>} : vector<8x8xbf16>, vector<8x384xbf16>, vector<8x384xf32> -> vector<8x384xf32>
    %c0_11 = arith.constant 0 : index
    %c0_12 = arith.constant 0 : index
    %9 = vector.load %arg4[%c0_11, %c0_12] : memref<8x384xf32, #tpu.memory_space<vmem>>, vector<8x384xf32>
    %c383_i32 = arith.constant 383 : i32
    %10 = tpu.dynamic_rotate %8 by %c383_i32 dim 1 : vector<8x384xf32>, i32 -> vector<8x384xf32>
    %11 = arith.addf %9, %10 : vector<8x384xf32>
    %c0_13 = arith.constant 0 : index
    %c0_14 = arith.constant 0 : index
    %12 = vector.load %arg4[%c0_13, %c0_14] : memref<8x384xf32, #tpu.memory_space<vmem>>, vector<8x384xf32>
    tpu.vector_store %arg4[%c0_13, %c0_14], %11 {strides = array<i32>} : memref<8x384xf32, #tpu.memory_space<vmem>>, vector<8x384xf32>,
    %c2 = arith.constant 2 : index
    %c0_15 = arith.constant 0 : index
    %c0_16 = arith.constant 0 : index
    %13 = vector.load %arg1[%c2, %c0_15, %c0_16] : memref<9x8x8xbf16, #tpu.memory_space<vmem>>, vector<1x8x8xbf16>
    %14 = vector.shape_cast %13 : vector<1x8x8xbf16> to vector<8x8xbf16>
    %c0_17 = arith.constant 0 : index
    %c0_18 = arith.constant 0 : index
    %15 = vector.load %arg2[%c0_17, %c0_18] : memref<8x384xbf16, #tpu.memory_space<vmem>>, vector<8x384xbf16>
    %cst_19 = arith.constant dense<0.000000e+00> : vector<8x384xf32>
    %16 = tpu.matmul %14, %15, %cst_19 {dimension_numbers = #tpu.dot_dimension_numbers<[1], [0], [0], [1], [0, 0, 1, 1], [], []>} : vector<8x8xbf16>, vector<8x384xbf16>, vector<8x384xf32> -> vector<8x384xf32>
    %c0_20 = arith.constant 0 : index
    %c0_21 = arith.constant 0 : index
    %17 = vector.load %arg4[%c0_20, %c0_21] : memref<8x384xf32, #tpu.memory_space<vmem>>, vector<8x384xf32>
    %c382_i32 = arith.constant 382 : i32
    %18 = tpu.dynamic_rotate %16 by %c382_i32 dim 1 : vector<8x384xf32>, i32 -> vector<8x384xf32>
    %19 = arith.addf %17, %18 : vector<8x384xf32>
    %c0_22 = arith.constant 0 : index
    %c0_23 = arith.constant 0 : index
    %20 = vector.load %arg4[%c0_22, %c0_23] : memref<8x384xf32, #tpu.memory_space<vmem>>, vector<8x384xf32>
    tpu.vector_store %arg4[%c0_22, %c0_23], %19 {strides = array<i32>} : memref<8x384xf32, #tpu.memory_space<vmem>>, vector<8x384xf32>,
    %c3 = arith.constant 3 : index
    %c0_24 = arith.constant 0 : index
    %c0_25 = arith.constant 0 : index
    %21 = vector.load %arg1[%c3, %c0_24, %c0_25] : memref<9x8x8xbf16, #tpu.memory_space<vmem>>, vector<1x8x8xbf16>
    %22 = vector.shape_cast %21 : vector<1x8x8xbf16> to vector<8x8xbf16>
    %c0_26 = arith.constant 0 : index
    %c0_27 = arith.constant 0 : index
    %23 = vector.load %arg2[%c0_26, %c0_27] : memref<8x384xbf16, #tpu.memory_space<vmem>>, vector<8x384xbf16>
    %cst_28 = arith.constant dense<0.000000e+00> : vector<8x384xf32>
    %24 = tpu.matmul %22, %23, %cst_28 {dimension_numbers = #tpu.dot_dimension_numbers<[1], [0], [0], [1], [0, 0, 1, 1], [], []>} : vector<8x8xbf16>, vector<8x384xbf16>, vector<8x384xf32> -> vector<8x384xf32>
    %c0_29 = arith.constant 0 : index
    %c0_30 = arith.constant 0 : index
    %25 = vector.load %arg4[%c0_29, %c0_30] : memref<8x384xf32, #tpu.memory_space<vmem>>, vector<8x384xf32>
    %c381_i32 = arith.constant 381 : i32
    %26 = tpu.dynamic_rotate %24 by %c381_i32 dim 1 : vector<8x384xf32>, i32 -> vector<8x384xf32>
    %27 = arith.addf %25, %26 : vector<8x384xf32>
    %c0_31 = arith.constant 0 : index
    %c0_32 = arith.constant 0 : index
    %28 = vector.load %arg4[%c0_31, %c0_32] : memref<8x384xf32, #tpu.memory_space<vmem>>, vector<8x384xf32>
    tpu.vector_store %arg4[%c0_31, %c0_32], %27 {strides = array<i32>} : memref<8x384xf32, #tpu.memory_space<vmem>>, vector<8x384xf32>,
    %c4 = arith.constant 4 : index
    %c0_33 = arith.constant 0 : index
    %c0_34 = arith.constant 0 : index
    %29 = vector.load %arg1[%c4, %c0_33, %c0_34] : memref<9x8x8xbf16, #tpu.memory_space<vmem>>, vector<1x8x8xbf16>
    %30 = vector.shape_cast %29 : vector<1x8x8xbf16> to vector<8x8xbf16>
    %c0_35 = arith.constant 0 : index
    %c0_36 = arith.constant 0 : index
    %31 = vector.load %arg2[%c0_35, %c0_36] : memref<8x384xbf16, #tpu.memory_space<vmem>>, vector<8x384xbf16>
    %cst_37 = arith.constant dense<0.000000e+00> : vector<8x384xf32>
    %32 = tpu.matmul %30, %31, %cst_37 {dimension_numbers = #tpu.dot_dimension_numbers<[1], [0], [0], [1], [0, 0, 1, 1], [], []>} : vector<8x8xbf16>, vector<8x384xbf16>, vector<8x384xf32> -> vector<8x384xf32>
    %c0_38 = arith.constant 0 : index
    %c0_39 = arith.constant 0 : index
    %33 = vector.load %arg4[%c0_38, %c0_39] : memref<8x384xf32, #tpu.memory_space<vmem>>, vector<8x384xf32>
    %c380_i32 = arith.constant 380 : i32
    %34 = tpu.dynamic_rotate %32 by %c380_i32 dim 1 : vector<8x384xf32>, i32 -> vector<8x384xf32>
    %35 = arith.addf %33, %34 : vector<8x384xf32>
    %c0_40 = arith.constant 0 : index
    %c0_41 = arith.constant 0 : index
    %36 = vector.load %arg4[%c0_40, %c0_41] : memref<8x384xf32, #tpu.memory_space<vmem>>, vector<8x384xf32>
    tpu.vector_store %arg4[%c0_40, %c0_41], %35 {strides = array<i32>} : memref<8x384xf32, #tpu.memory_space<vmem>>, vector<8x384xf32>,
    %c5 = arith.constant 5 : index
    %c0_42 = arith.constant 0 : index
    %c0_43 = arith.constant 0 : index
    %37 = vector.load %arg1[%c5, %c0_42, %c0_43] : memref<9x8x8xbf16, #tpu.memory_space<vmem>>, vector<1x8x8xbf16>
    %38 = vector.shape_cast %37 : vector<1x8x8xbf16> to vector<8x8xbf16>
    %c0_44 = arith.constant 0 : index
    %c0_45 = arith.constant 0 : index
    %39 = vector.load %arg2[%c0_44, %c0_45] : memref<8x384xbf16, #tpu.memory_space<vmem>>, vector<8x384xbf16>
    %cst_46 = arith.constant dense<0.000000e+00> : vector<8x384xf32>
    %40 = tpu.matmul %38, %39, %cst_46 {dimension_numbers = #tpu.dot_dimension_numbers<[1], [0], [0], [1], [0, 0, 1, 1], [], []>} : vector<8x8xbf16>, vector<8x384xbf16>, vector<8x384xf32> -> vector<8x384xf32>
    %c0_47 = arith.constant 0 : index
    %c0_48 = arith.constant 0 : index
    %41 = vector.load %arg4[%c0_47, %c0_48] : memref<8x384xf32, #tpu.memory_space<vmem>>, vector<8x384xf32>
    %c379_i32 = arith.constant 379 : i32
    %42 = tpu.dynamic_rotate %40 by %c379_i32 dim 1 : vector<8x384xf32>, i32 -> vector<8x384xf32>
    %43 = arith.addf %41, %42 : vector<8x384xf32>
    %c0_49 = arith.constant 0 : index
    %c0_50 = arith.constant 0 : index
    %44 = vector.load %arg4[%c0_49, %c0_50] : memref<8x384xf32, #tpu.memory_space<vmem>>, vector<8x384xf32>
    tpu.vector_store %arg4[%c0_49, %c0_50], %43 {strides = array<i32>} : memref<8x384xf32, #tpu.memory_space<vmem>>, vector<8x384xf32>,
    %c6 = arith.constant 6 : index
    %c0_51 = arith.constant 0 : index
    %c0_52 = arith.constant 0 : index
    %45 = vector.load %arg1[%c6, %c0_51, %c0_52] : memref<9x8x8xbf16, #tpu.memory_space<vmem>>, vector<1x8x8xbf16>
    %46 = vector.shape_cast %45 : vector<1x8x8xbf16> to vector<8x8xbf16>
    %c0_53 = arith.constant 0 : index
    %c0_54 = arith.constant 0 : index
    %47 = vector.load %arg2[%c0_53, %c0_54] : memref<8x384xbf16, #tpu.memory_space<vmem>>, vector<8x384xbf16>
    %cst_55 = arith.constant dense<0.000000e+00> : vector<8x384xf32>
    %48 = tpu.matmul %46, %47, %cst_55 {dimension_numbers = #tpu.dot_dimension_numbers<[1], [0], [0], [1], [0, 0, 1, 1], [], []>} : vector<8x8xbf16>, vector<8x384xbf16>, vector<8x384xf32> -> vector<8x384xf32>
    %c0_56 = arith.constant 0 : index
    %c0_57 = arith.constant 0 : index
    %49 = vector.load %arg4[%c0_56, %c0_57] : memref<8x384xf32, #tpu.memory_space<vmem>>, vector<8x384xf32>
    %c378_i32 = arith.constant 378 : i32
    %50 = tpu.dynamic_rotate %48 by %c378_i32 dim 1 : vector<8x384xf32>, i32 -> vector<8x384xf32>
    %51 = arith.addf %49, %50 : vector<8x384xf32>
    %c0_58 = arith.constant 0 : index
    %c0_59 = arith.constant 0 : index
    %52 = vector.load %arg4[%c0_58, %c0_59] : memref<8x384xf32, #tpu.memory_space<vmem>>, vector<8x384xf32>
    tpu.vector_store %arg4[%c0_58, %c0_59], %51 {strides = array<i32>} : memref<8x384xf32, #tpu.memory_space<vmem>>, vector<8x384xf32>,
    %c7 = arith.constant 7 : index
    %c0_60 = arith.constant 0 : index
    %c0_61 = arith.constant 0 : index
    %53 = vector.load %arg1[%c7, %c0_60, %c0_61] : memref<9x8x8xbf16, #tpu.memory_space<vmem>>, vector<1x8x8xbf16>
    %54 = vector.shape_cast %53 : vector<1x8x8xbf16> to vector<8x8xbf16>
    %c0_62 = arith.constant 0 : index
    %c0_63 = arith.constant 0 : index
    %55 = vector.load %arg2[%c0_62, %c0_63] : memref<8x384xbf16, #tpu.memory_space<vmem>>, vector<8x384xbf16>
    %cst_64 = arith.constant dense<0.000000e+00> : vector<8x384xf32>
    %56 = tpu.matmul %54, %55, %cst_64 {dimension_numbers = #tpu.dot_dimension_numbers<[1], [0], [0], [1], [0, 0, 1, 1], [], []>} : vector<8x8xbf16>, vector<8x384xbf16>, vector<8x384xf32> -> vector<8x384xf32>
    %c0_65 = arith.constant 0 : index
    %c0_66 = arith.constant 0 : index
    %57 = vector.load %arg4[%c0_65, %c0_66] : memref<8x384xf32, #tpu.memory_space<vmem>>, vector<8x384xf32>
    %c377_i32 = arith.constant 377 : i32
    %58 = tpu.dynamic_rotate %56 by %c377_i32 dim 1 : vector<8x384xf32>, i32 -> vector<8x384xf32>
    %59 = arith.addf %57, %58 : vector<8x384xf32>
    %c0_67 = arith.constant 0 : index
    %c0_68 = arith.constant 0 : index
    %60 = vector.load %arg4[%c0_67, %c0_68] : memref<8x384xf32, #tpu.memory_space<vmem>>, vector<8x384xf32>
    tpu.vector_store %arg4[%c0_67, %c0_68], %59 {strides = array<i32>} : memref<8x384xf32, #tpu.memory_space<vmem>>, vector<8x384xf32>,
    %c8 = arith.constant 8 : index
    %c0_69 = arith.constant 0 : index
    %c0_70 = arith.constant 0 : index
    %61 = vector.load %arg1[%c8, %c0_69, %c0_70] : memref<9x8x8xbf16, #tpu.memory_space<vmem>>, vector<1x8x8xbf16>
    %62 = vector.shape_cast %61 : vector<1x8x8xbf16> to vector<8x8xbf16>
    %c0_71 = arith.constant 0 : index
    %c0_72 = arith.constant 0 : index
    %63 = vector.load %arg2[%c0_71, %c0_72] : memref<8x384xbf16, #tpu.memory_space<vmem>>, vector<8x384xbf16>
    %cst_73 = arith.constant dense<0.000000e+00> : vector<8x384xf32>
    %64 = tpu.matmul %62, %63, %cst_73 {dimension_numbers = #tpu.dot_dimension_numbers<[1], [0], [0], [1], [0, 0, 1, 1], [], []>} : vector<8x8xbf16>, vector<8x384xbf16>, vector<8x384xf32> -> vector<8x384xf32>
    %c0_74 = arith.constant 0 : index
    %c0_75 = arith.constant 0 : index
    %65 = vector.load %arg4[%c0_74, %c0_75] : memref<8x384xf32, #tpu.memory_space<vmem>>, vector<8x384xf32>
    %c376_i32 = arith.constant 376 : i32
    %66 = tpu.dynamic_rotate %64 by %c376_i32 dim 1 : vector<8x384xf32>, i32 -> vector<8x384xf32>
    %67 = arith.addf %65, %66 : vector<8x384xf32>
    %c0_76 = arith.constant 0 : index
    %c0_77 = arith.constant 0 : index
    %68 = vector.load %arg4[%c0_76, %c0_77] : memref<8x384xf32, #tpu.memory_space<vmem>>, vector<8x384xf32>
    tpu.vector_store %arg4[%c0_76, %c0_77], %67 {strides = array<i32>} : memref<8x384xf32, #tpu.memory_space<vmem>>, vector<8x384xf32>,
    %c0_78 = arith.constant 0 : index
    %c0_79 = arith.constant 0 : index
    %69 = vector.load %arg4[%c0_78, %c0_79] : memref<8x384xf32, #tpu.memory_space<vmem>>, vector<8x384xf32>
    %c0_80 = arith.constant 0 : index
    %c0_81 = arith.constant 0 : index
    %70 = vector.load %arg3[%c0_80, %c0_81] : memref<8x1xf32, #tpu.memory_space<vmem>>, vector<8x1xf32>
    %71 = vector.broadcast %70 : vector<8x1xf32> to vector<8x384xf32>
    %72 = arith.addf %69, %71 : vector<8x384xf32>
    %cst_82 = arith.constant 0.000000e+00 : f32
    %73 = vector.broadcast %cst_82 : f32 to vector<8x384xf32>
    %74 = arith.cmpf oge, %72, %73 : vector<8x384xf32>
    %cst_83 = arith.constant 1.000000e-01 : f32
    %75 = vector.broadcast %cst_83 : f32 to vector<8x384xf32>
    %76 = arith.mulf %75, %72 : vector<8x384xf32>
    %77 = arith.select %74, %72, %76 : vector<8x384xi1>, vector<8x384xf32>
    %c0_84 = arith.constant 0 : index
    %c0_85 = arith.constant 0 : index
    %78 = vector.load %arg4[%c0_84, %c0_85] : memref<8x384xf32, #tpu.memory_space<vmem>>, vector<8x384xf32>
    tpu.vector_store %arg4[%c0_84, %c0_85], %77 {strides = array<i32>} : memref<8x384xf32, #tpu.memory_space<vmem>>, vector<8x384xf32>,
    return
  }
  func.func @transform_0(%arg0: i32) -> (i32, i32, i32) {
    %c0_i32 = arith.constant 0 : i32
    %c0_i32_0 = arith.constant 0 : i32
    %c0_i32_1 = arith.constant 0 : i32
    %c0_i32_2 = arith.constant 0 : i32
    return %c0_i32, %c0_i32_0, %c0_i32_1 : i32, i32, i32
  }
  func.func @transform_1(%arg0: i32) -> (i32, i32) {
    %c0_i32 = arith.constant 0 : i32
    %c0_i32_0 = arith.constant 0 : i32
    return %c0_i32, %arg0 : i32, i32
  }
  func.func @transform_2(%arg0: i32) -> (i32, i32) {
    %c0_i32 = arith.constant 0 : i32
    %c0_i32_0 = arith.constant 0 : i32
    %c0_i32_1 = arith.constant 0 : i32
    return %c0_i32, %c0_i32_0 : i32, i32
  }
  func.func @transform_3(%arg0: i32) -> (i32, i32) {
    %c0_i32 = arith.constant 0 : i32
    %c0_i32_0 = arith.constant 0 : i32
    return %c0_i32, %arg0 : i32, i32
  }
}

module attributes {stable_mosaic.version = 11 : i64} {
  func.func @_conv_kw_kernel(%arg0: i32, %arg1: memref<9x8x24xbf16, #tpu.memory_space<vmem>>, %arg2: memref<24x384xbf16, #tpu.memory_space<vmem>>, %arg3: memref<8x1xf32, #tpu.memory_space<vmem>>, %arg4: memref<8x384xf32, #tpu.memory_space<vmem>>) attributes {dimension_semantics = [#tpu.dimension_semantics<parallel>], iteration_bounds = array<i64: 5>, scalar_prefetch = 0 : i64, scratch_operands = 0 : i64, tpu.core_type = #tpu.core_type<tc>, window_params = [{pipeline_mode = #tpu.pipeline_mode<synchronous>, transform_indices = @transform_0, window_bounds = array<i64: 9, 8, 24>}, {transform_indices = @transform_1, window_bounds = array<i64: 24, 384>}, {pipeline_mode = #tpu.pipeline_mode<synchronous>, transform_indices = @transform_2, window_bounds = array<i64: 8, 1>}, {transform_indices = @transform_3, window_bounds = array<i64: 8, 384>}]} {
    %c0 = arith.constant 0 : index
    %c0_0 = arith.constant 0 : index
    %c0_1 = arith.constant 0 : index
    %0 = vector.load %arg1[%c0, %c0_0, %c0_1] : memref<9x8x24xbf16, #tpu.memory_space<vmem>>, vector<1x8x24xbf16>
    %1 = vector.shape_cast %0 : vector<1x8x24xbf16> to vector<8x24xbf16>
    %c0_2 = arith.constant 0 : index
    %c0_3 = arith.constant 0 : index
    %2 = vector.load %arg2[%c0_2, %c0_3] : memref<24x384xbf16, #tpu.memory_space<vmem>>, vector<24x384xbf16>
    %cst = arith.constant dense<0.000000e+00> : vector<8x384xf32>
    %3 = tpu.matmul %1, %2, %cst {dimension_numbers = #tpu.dot_dimension_numbers<[1], [0], [0], [1], [0, 0, 1, 1], [], []>} : vector<8x24xbf16>, vector<24x384xbf16>, vector<8x384xf32> -> vector<8x384xf32>
    %c0_4 = arith.constant 0 : index
    %c0_5 = arith.constant 0 : index
    %4 = vector.load %arg4[%c0_4, %c0_5] : memref<8x384xf32, #tpu.memory_space<vmem>>, vector<8x384xf32>
    tpu.vector_store %arg4[%c0_4, %c0_5], %3 {strides = array<i32>} : memref<8x384xf32, #tpu.memory_space<vmem>>, vector<8x384xf32>,
    %c1 = arith.constant 1 : index
    %c0_6 = arith.constant 0 : index
    %c0_7 = arith.constant 0 : index
    %5 = vector.load %arg1[%c1, %c0_6, %c0_7] : memref<9x8x24xbf16, #tpu.memory_space<vmem>>, vector<1x8x24xbf16>
    %6 = vector.shape_cast %5 : vector<1x8x24xbf16> to vector<8x24xbf16>
    %c0_8 = arith.constant 0 : index
    %c0_9 = arith.constant 0 : index
    %7 = vector.load %arg2[%c0_8, %c0_9] : memref<24x384xbf16, #tpu.memory_space<vmem>>, vector<24x384xbf16>
    %cst_10 = arith.constant dense<0.000000e+00> : vector<8x384xf32>
    %8 = tpu.matmul %6, %7, %cst_10 {dimension_numbers = #tpu.dot_dimension_numbers<[1], [0], [0], [1], [0, 0, 1, 1], [], []>} : vector<8x24xbf16>, vector<24x384xbf16>, vector<8x384xf32> -> vector<8x384xf32>
    %c0_11 = arith.constant 0 : index
    %c0_12 = arith.constant 0 : index
    %9 = vector.load %arg4[%c0_11, %c0_12] : memref<8x384xf32, #tpu.memory_space<vmem>>, vector<8x384xf32>
    %c383_i32 = arith.constant 383 : i32
    %10 = tpu.dynamic_rotate %8 by %c383_i32 dim 1 : vector<8x384xf32>, i32 -> vector<8x384xf32>
    %11 = arith.addf %9, %10 : vector<8x384xf32>
    %c0_13 = arith.constant 0 : index
    %c0_14 = arith.constant 0 : index
    %12 = vector.load %arg4[%c0_13, %c0_14] : memref<8x384xf32, #tpu.memory_space<vmem>>, vector<8x384xf32>
    tpu.vector_store %arg4[%c0_13, %c0_14], %11 {strides = array<i32>} : memref<8x384xf32, #tpu.memory_space<vmem>>, vector<8x384xf32>,
    %c2 = arith.constant 2 : index
    %c0_15 = arith.constant 0 : index
    %c0_16 = arith.constant 0 : index
    %13 = vector.load %arg1[%c2, %c0_15, %c0_16] : memref<9x8x24xbf16, #tpu.memory_space<vmem>>, vector<1x8x24xbf16>
    %14 = vector.shape_cast %13 : vector<1x8x24xbf16> to vector<8x24xbf16>
    %c0_17 = arith.constant 0 : index
    %c0_18 = arith.constant 0 : index
    %15 = vector.load %arg2[%c0_17, %c0_18] : memref<24x384xbf16, #tpu.memory_space<vmem>>, vector<24x384xbf16>
    %cst_19 = arith.constant dense<0.000000e+00> : vector<8x384xf32>
    %16 = tpu.matmul %14, %15, %cst_19 {dimension_numbers = #tpu.dot_dimension_numbers<[1], [0], [0], [1], [0, 0, 1, 1], [], []>} : vector<8x24xbf16>, vector<24x384xbf16>, vector<8x384xf32> -> vector<8x384xf32>
    %c0_20 = arith.constant 0 : index
    %c0_21 = arith.constant 0 : index
    %17 = vector.load %arg4[%c0_20, %c0_21] : memref<8x384xf32, #tpu.memory_space<vmem>>, vector<8x384xf32>
    %c382_i32 = arith.constant 382 : i32
    %18 = tpu.dynamic_rotate %16 by %c382_i32 dim 1 : vector<8x384xf32>, i32 -> vector<8x384xf32>
    %19 = arith.addf %17, %18 : vector<8x384xf32>
    %c0_22 = arith.constant 0 : index
    %c0_23 = arith.constant 0 : index
    %20 = vector.load %arg4[%c0_22, %c0_23] : memref<8x384xf32, #tpu.memory_space<vmem>>, vector<8x384xf32>
    tpu.vector_store %arg4[%c0_22, %c0_23], %19 {strides = array<i32>} : memref<8x384xf32, #tpu.memory_space<vmem>>, vector<8x384xf32>,
    %c3 = arith.constant 3 : index
    %c0_24 = arith.constant 0 : index
    %c0_25 = arith.constant 0 : index
    %21 = vector.load %arg1[%c3, %c0_24, %c0_25] : memref<9x8x24xbf16, #tpu.memory_space<vmem>>, vector<1x8x24xbf16>
    %22 = vector.shape_cast %21 : vector<1x8x24xbf16> to vector<8x24xbf16>
    %c0_26 = arith.constant 0 : index
    %c0_27 = arith.constant 0 : index
    %23 = vector.load %arg2[%c0_26, %c0_27] : memref<24x384xbf16, #tpu.memory_space<vmem>>, vector<24x384xbf16>
    %cst_28 = arith.constant dense<0.000000e+00> : vector<8x384xf32>
    %24 = tpu.matmul %22, %23, %cst_28 {dimension_numbers = #tpu.dot_dimension_numbers<[1], [0], [0], [1], [0, 0, 1, 1], [], []>} : vector<8x24xbf16>, vector<24x384xbf16>, vector<8x384xf32> -> vector<8x384xf32>
    %c0_29 = arith.constant 0 : index
    %c0_30 = arith.constant 0 : index
    %25 = vector.load %arg4[%c0_29, %c0_30] : memref<8x384xf32, #tpu.memory_space<vmem>>, vector<8x384xf32>
    %c381_i32 = arith.constant 381 : i32
    %26 = tpu.dynamic_rotate %24 by %c381_i32 dim 1 : vector<8x384xf32>, i32 -> vector<8x384xf32>
    %27 = arith.addf %25, %26 : vector<8x384xf32>
    %c0_31 = arith.constant 0 : index
    %c0_32 = arith.constant 0 : index
    %28 = vector.load %arg4[%c0_31, %c0_32] : memref<8x384xf32, #tpu.memory_space<vmem>>, vector<8x384xf32>
    tpu.vector_store %arg4[%c0_31, %c0_32], %27 {strides = array<i32>} : memref<8x384xf32, #tpu.memory_space<vmem>>, vector<8x384xf32>,
    %c4 = arith.constant 4 : index
    %c0_33 = arith.constant 0 : index
    %c0_34 = arith.constant 0 : index
    %29 = vector.load %arg1[%c4, %c0_33, %c0_34] : memref<9x8x24xbf16, #tpu.memory_space<vmem>>, vector<1x8x24xbf16>
    %30 = vector.shape_cast %29 : vector<1x8x24xbf16> to vector<8x24xbf16>
    %c0_35 = arith.constant 0 : index
    %c0_36 = arith.constant 0 : index
    %31 = vector.load %arg2[%c0_35, %c0_36] : memref<24x384xbf16, #tpu.memory_space<vmem>>, vector<24x384xbf16>
    %cst_37 = arith.constant dense<0.000000e+00> : vector<8x384xf32>
    %32 = tpu.matmul %30, %31, %cst_37 {dimension_numbers = #tpu.dot_dimension_numbers<[1], [0], [0], [1], [0, 0, 1, 1], [], []>} : vector<8x24xbf16>, vector<24x384xbf16>, vector<8x384xf32> -> vector<8x384xf32>
    %c0_38 = arith.constant 0 : index
    %c0_39 = arith.constant 0 : index
    %33 = vector.load %arg4[%c0_38, %c0_39] : memref<8x384xf32, #tpu.memory_space<vmem>>, vector<8x384xf32>
    %c380_i32 = arith.constant 380 : i32
    %34 = tpu.dynamic_rotate %32 by %c380_i32 dim 1 : vector<8x384xf32>, i32 -> vector<8x384xf32>
    %35 = arith.addf %33, %34 : vector<8x384xf32>
    %c0_40 = arith.constant 0 : index
    %c0_41 = arith.constant 0 : index
    %36 = vector.load %arg4[%c0_40, %c0_41] : memref<8x384xf32, #tpu.memory_space<vmem>>, vector<8x384xf32>
    tpu.vector_store %arg4[%c0_40, %c0_41], %35 {strides = array<i32>} : memref<8x384xf32, #tpu.memory_space<vmem>>, vector<8x384xf32>,
    %c5 = arith.constant 5 : index
    %c0_42 = arith.constant 0 : index
    %c0_43 = arith.constant 0 : index
    %37 = vector.load %arg1[%c5, %c0_42, %c0_43] : memref<9x8x24xbf16, #tpu.memory_space<vmem>>, vector<1x8x24xbf16>
    %38 = vector.shape_cast %37 : vector<1x8x24xbf16> to vector<8x24xbf16>
    %c0_44 = arith.constant 0 : index
    %c0_45 = arith.constant 0 : index
    %39 = vector.load %arg2[%c0_44, %c0_45] : memref<24x384xbf16, #tpu.memory_space<vmem>>, vector<24x384xbf16>
    %cst_46 = arith.constant dense<0.000000e+00> : vector<8x384xf32>
    %40 = tpu.matmul %38, %39, %cst_46 {dimension_numbers = #tpu.dot_dimension_numbers<[1], [0], [0], [1], [0, 0, 1, 1], [], []>} : vector<8x24xbf16>, vector<24x384xbf16>, vector<8x384xf32> -> vector<8x384xf32>
    %c0_47 = arith.constant 0 : index
    %c0_48 = arith.constant 0 : index
    %41 = vector.load %arg4[%c0_47, %c0_48] : memref<8x384xf32, #tpu.memory_space<vmem>>, vector<8x384xf32>
    %c379_i32 = arith.constant 379 : i32
    %42 = tpu.dynamic_rotate %40 by %c379_i32 dim 1 : vector<8x384xf32>, i32 -> vector<8x384xf32>
    %43 = arith.addf %41, %42 : vector<8x384xf32>
    %c0_49 = arith.constant 0 : index
    %c0_50 = arith.constant 0 : index
    %44 = vector.load %arg4[%c0_49, %c0_50] : memref<8x384xf32, #tpu.memory_space<vmem>>, vector<8x384xf32>
    tpu.vector_store %arg4[%c0_49, %c0_50], %43 {strides = array<i32>} : memref<8x384xf32, #tpu.memory_space<vmem>>, vector<8x384xf32>,
    %c6 = arith.constant 6 : index
    %c0_51 = arith.constant 0 : index
    %c0_52 = arith.constant 0 : index
    %45 = vector.load %arg1[%c6, %c0_51, %c0_52] : memref<9x8x24xbf16, #tpu.memory_space<vmem>>, vector<1x8x24xbf16>
    %46 = vector.shape_cast %45 : vector<1x8x24xbf16> to vector<8x24xbf16>
    %c0_53 = arith.constant 0 : index
    %c0_54 = arith.constant 0 : index
    %47 = vector.load %arg2[%c0_53, %c0_54] : memref<24x384xbf16, #tpu.memory_space<vmem>>, vector<24x384xbf16>
    %cst_55 = arith.constant dense<0.000000e+00> : vector<8x384xf32>
    %48 = tpu.matmul %46, %47, %cst_55 {dimension_numbers = #tpu.dot_dimension_numbers<[1], [0], [0], [1], [0, 0, 1, 1], [], []>} : vector<8x24xbf16>, vector<24x384xbf16>, vector<8x384xf32> -> vector<8x384xf32>
    %c0_56 = arith.constant 0 : index
    %c0_57 = arith.constant 0 : index
    %49 = vector.load %arg4[%c0_56, %c0_57] : memref<8x384xf32, #tpu.memory_space<vmem>>, vector<8x384xf32>
    %c378_i32 = arith.constant 378 : i32
    %50 = tpu.dynamic_rotate %48 by %c378_i32 dim 1 : vector<8x384xf32>, i32 -> vector<8x384xf32>
    %51 = arith.addf %49, %50 : vector<8x384xf32>
    %c0_58 = arith.constant 0 : index
    %c0_59 = arith.constant 0 : index
    %52 = vector.load %arg4[%c0_58, %c0_59] : memref<8x384xf32, #tpu.memory_space<vmem>>, vector<8x384xf32>
    tpu.vector_store %arg4[%c0_58, %c0_59], %51 {strides = array<i32>} : memref<8x384xf32, #tpu.memory_space<vmem>>, vector<8x384xf32>,
    %c7 = arith.constant 7 : index
    %c0_60 = arith.constant 0 : index
    %c0_61 = arith.constant 0 : index
    %53 = vector.load %arg1[%c7, %c0_60, %c0_61] : memref<9x8x24xbf16, #tpu.memory_space<vmem>>, vector<1x8x24xbf16>
    %54 = vector.shape_cast %53 : vector<1x8x24xbf16> to vector<8x24xbf16>
    %c0_62 = arith.constant 0 : index
    %c0_63 = arith.constant 0 : index
    %55 = vector.load %arg2[%c0_62, %c0_63] : memref<24x384xbf16, #tpu.memory_space<vmem>>, vector<24x384xbf16>
    %cst_64 = arith.constant dense<0.000000e+00> : vector<8x384xf32>
    %56 = tpu.matmul %54, %55, %cst_64 {dimension_numbers = #tpu.dot_dimension_numbers<[1], [0], [0], [1], [0, 0, 1, 1], [], []>} : vector<8x24xbf16>, vector<24x384xbf16>, vector<8x384xf32> -> vector<8x384xf32>
    %c0_65 = arith.constant 0 : index
    %c0_66 = arith.constant 0 : index
    %57 = vector.load %arg4[%c0_65, %c0_66] : memref<8x384xf32, #tpu.memory_space<vmem>>, vector<8x384xf32>
    %c377_i32 = arith.constant 377 : i32
    %58 = tpu.dynamic_rotate %56 by %c377_i32 dim 1 : vector<8x384xf32>, i32 -> vector<8x384xf32>
    %59 = arith.addf %57, %58 : vector<8x384xf32>
    %c0_67 = arith.constant 0 : index
    %c0_68 = arith.constant 0 : index
    %60 = vector.load %arg4[%c0_67, %c0_68] : memref<8x384xf32, #tpu.memory_space<vmem>>, vector<8x384xf32>
    tpu.vector_store %arg4[%c0_67, %c0_68], %59 {strides = array<i32>} : memref<8x384xf32, #tpu.memory_space<vmem>>, vector<8x384xf32>,
    %c8 = arith.constant 8 : index
    %c0_69 = arith.constant 0 : index
    %c0_70 = arith.constant 0 : index
    %61 = vector.load %arg1[%c8, %c0_69, %c0_70] : memref<9x8x24xbf16, #tpu.memory_space<vmem>>, vector<1x8x24xbf16>
    %62 = vector.shape_cast %61 : vector<1x8x24xbf16> to vector<8x24xbf16>
    %c0_71 = arith.constant 0 : index
    %c0_72 = arith.constant 0 : index
    %63 = vector.load %arg2[%c0_71, %c0_72] : memref<24x384xbf16, #tpu.memory_space<vmem>>, vector<24x384xbf16>
    %cst_73 = arith.constant dense<0.000000e+00> : vector<8x384xf32>
    %64 = tpu.matmul %62, %63, %cst_73 {dimension_numbers = #tpu.dot_dimension_numbers<[1], [0], [0], [1], [0, 0, 1, 1], [], []>} : vector<8x24xbf16>, vector<24x384xbf16>, vector<8x384xf32> -> vector<8x384xf32>
    %c0_74 = arith.constant 0 : index
    %c0_75 = arith.constant 0 : index
    %65 = vector.load %arg4[%c0_74, %c0_75] : memref<8x384xf32, #tpu.memory_space<vmem>>, vector<8x384xf32>
    %c376_i32 = arith.constant 376 : i32
    %66 = tpu.dynamic_rotate %64 by %c376_i32 dim 1 : vector<8x384xf32>, i32 -> vector<8x384xf32>
    %67 = arith.addf %65, %66 : vector<8x384xf32>
    %c0_76 = arith.constant 0 : index
    %c0_77 = arith.constant 0 : index
    %68 = vector.load %arg4[%c0_76, %c0_77] : memref<8x384xf32, #tpu.memory_space<vmem>>, vector<8x384xf32>
    tpu.vector_store %arg4[%c0_76, %c0_77], %67 {strides = array<i32>} : memref<8x384xf32, #tpu.memory_space<vmem>>, vector<8x384xf32>,
    %c0_78 = arith.constant 0 : index
    %c0_79 = arith.constant 0 : index
    %69 = vector.load %arg4[%c0_78, %c0_79] : memref<8x384xf32, #tpu.memory_space<vmem>>, vector<8x384xf32>
    %c0_80 = arith.constant 0 : index
    %c0_81 = arith.constant 0 : index
    %70 = vector.load %arg3[%c0_80, %c0_81] : memref<8x1xf32, #tpu.memory_space<vmem>>, vector<8x1xf32>
    %71 = vector.broadcast %70 : vector<8x1xf32> to vector<8x384xf32>
    %72 = arith.addf %69, %71 : vector<8x384xf32>
    %cst_82 = arith.constant 0.000000e+00 : f32
    %73 = vector.broadcast %cst_82 : f32 to vector<8x384xf32>
    %74 = arith.cmpf oge, %72, %73 : vector<8x384xf32>
    %cst_83 = arith.constant 1.000000e-01 : f32
    %75 = vector.broadcast %cst_83 : f32 to vector<8x384xf32>
    %76 = arith.mulf %75, %72 : vector<8x384xf32>
    %77 = arith.select %74, %72, %76 : vector<8x384xi1>, vector<8x384xf32>
    %c0_84 = arith.constant 0 : index
    %c0_85 = arith.constant 0 : index
    %78 = vector.load %arg4[%c0_84, %c0_85] : memref<8x384xf32, #tpu.memory_space<vmem>>, vector<8x384xf32>
    tpu.vector_store %arg4[%c0_84, %c0_85], %77 {strides = array<i32>} : memref<8x384xf32, #tpu.memory_space<vmem>>, vector<8x384xf32>,
    return
  }
  func.func @transform_0(%arg0: i32) -> (i32, i32, i32) {
    %c0_i32 = arith.constant 0 : i32
    %c0_i32_0 = arith.constant 0 : i32
    %c0_i32_1 = arith.constant 0 : i32
    %c0_i32_2 = arith.constant 0 : i32
    return %c0_i32, %c0_i32_0, %c0_i32_1 : i32, i32, i32
  }
  func.func @transform_1(%arg0: i32) -> (i32, i32) {
    %c0_i32 = arith.constant 0 : i32
    %c0_i32_0 = arith.constant 0 : i32
    return %c0_i32, %arg0 : i32, i32
  }
  func.func @transform_2(%arg0: i32) -> (i32, i32) {
    %c0_i32 = arith.constant 0 : i32
    %c0_i32_0 = arith.constant 0 : i32
    %c0_i32_1 = arith.constant 0 : i32
    return %c0_i32, %c0_i32_0 : i32, i32
  }
  func.func @transform_3(%arg0: i32) -> (i32, i32) {
    %c0_i32 = arith.constant 0 : i32
    %c0_i32_0 = arith.constant 0 : i32
    return %c0_i32, %arg0 : i32, i32
  }
}

module attributes {stable_mosaic.version = 11 : i64} {
  func.func @_conv_kw_kernel(%arg0: i32, %arg1: memref<9x8x24xbf16, #tpu.memory_space<vmem>>, %arg2: memref<24x256xbf16, #tpu.memory_space<vmem>>, %arg3: memref<8x1xf32, #tpu.memory_space<vmem>>, %arg4: memref<8x256xf32, #tpu.memory_space<vmem>>) attributes {dimension_semantics = [#tpu.dimension_semantics<parallel>], iteration_bounds = array<i64: 5>, scalar_prefetch = 0 : i64, scratch_operands = 0 : i64, tpu.core_type = #tpu.core_type<tc>, window_params = [{pipeline_mode = #tpu.pipeline_mode<synchronous>, transform_indices = @transform_0, window_bounds = array<i64: 9, 8, 24>}, {transform_indices = @transform_1, window_bounds = array<i64: 24, 256>}, {pipeline_mode = #tpu.pipeline_mode<synchronous>, transform_indices = @transform_2, window_bounds = array<i64: 8, 1>}, {transform_indices = @transform_3, window_bounds = array<i64: 8, 256>}]} {
    %c0 = arith.constant 0 : index
    %c0_0 = arith.constant 0 : index
    %c0_1 = arith.constant 0 : index
    %0 = vector.load %arg1[%c0, %c0_0, %c0_1] : memref<9x8x24xbf16, #tpu.memory_space<vmem>>, vector<1x8x24xbf16>
    %1 = vector.shape_cast %0 : vector<1x8x24xbf16> to vector<8x24xbf16>
    %c0_2 = arith.constant 0 : index
    %c0_3 = arith.constant 0 : index
    %2 = vector.load %arg2[%c0_2, %c0_3] : memref<24x256xbf16, #tpu.memory_space<vmem>>, vector<24x256xbf16>
    %cst = arith.constant dense<0.000000e+00> : vector<8x256xf32>
    %3 = tpu.matmul %1, %2, %cst {dimension_numbers = #tpu.dot_dimension_numbers<[1], [0], [0], [1], [0, 0, 1, 1], [], []>} : vector<8x24xbf16>, vector<24x256xbf16>, vector<8x256xf32> -> vector<8x256xf32>
    %c0_4 = arith.constant 0 : index
    %c0_5 = arith.constant 0 : index
    %4 = vector.load %arg4[%c0_4, %c0_5] : memref<8x256xf32, #tpu.memory_space<vmem>>, vector<8x256xf32>
    tpu.vector_store %arg4[%c0_4, %c0_5], %3 {strides = array<i32>} : memref<8x256xf32, #tpu.memory_space<vmem>>, vector<8x256xf32>,
    %c1 = arith.constant 1 : index
    %c0_6 = arith.constant 0 : index
    %c0_7 = arith.constant 0 : index
    %5 = vector.load %arg1[%c1, %c0_6, %c0_7] : memref<9x8x24xbf16, #tpu.memory_space<vmem>>, vector<1x8x24xbf16>
    %6 = vector.shape_cast %5 : vector<1x8x24xbf16> to vector<8x24xbf16>
    %c0_8 = arith.constant 0 : index
    %c0_9 = arith.constant 0 : index
    %7 = vector.load %arg2[%c0_8, %c0_9] : memref<24x256xbf16, #tpu.memory_space<vmem>>, vector<24x256xbf16>
    %cst_10 = arith.constant dense<0.000000e+00> : vector<8x256xf32>
    %8 = tpu.matmul %6, %7, %cst_10 {dimension_numbers = #tpu.dot_dimension_numbers<[1], [0], [0], [1], [0, 0, 1, 1], [], []>} : vector<8x24xbf16>, vector<24x256xbf16>, vector<8x256xf32> -> vector<8x256xf32>
    %c0_11 = arith.constant 0 : index
    %c0_12 = arith.constant 0 : index
    %9 = vector.load %arg4[%c0_11, %c0_12] : memref<8x256xf32, #tpu.memory_space<vmem>>, vector<8x256xf32>
    %c255_i32 = arith.constant 255 : i32
    %10 = tpu.dynamic_rotate %8 by %c255_i32 dim 1 : vector<8x256xf32>, i32 -> vector<8x256xf32>
    %11 = arith.addf %9, %10 : vector<8x256xf32>
    %c0_13 = arith.constant 0 : index
    %c0_14 = arith.constant 0 : index
    %12 = vector.load %arg4[%c0_13, %c0_14] : memref<8x256xf32, #tpu.memory_space<vmem>>, vector<8x256xf32>
    tpu.vector_store %arg4[%c0_13, %c0_14], %11 {strides = array<i32>} : memref<8x256xf32, #tpu.memory_space<vmem>>, vector<8x256xf32>,
    %c2 = arith.constant 2 : index
    %c0_15 = arith.constant 0 : index
    %c0_16 = arith.constant 0 : index
    %13 = vector.load %arg1[%c2, %c0_15, %c0_16] : memref<9x8x24xbf16, #tpu.memory_space<vmem>>, vector<1x8x24xbf16>
    %14 = vector.shape_cast %13 : vector<1x8x24xbf16> to vector<8x24xbf16>
    %c0_17 = arith.constant 0 : index
    %c0_18 = arith.constant 0 : index
    %15 = vector.load %arg2[%c0_17, %c0_18] : memref<24x256xbf16, #tpu.memory_space<vmem>>, vector<24x256xbf16>
    %cst_19 = arith.constant dense<0.000000e+00> : vector<8x256xf32>
    %16 = tpu.matmul %14, %15, %cst_19 {dimension_numbers = #tpu.dot_dimension_numbers<[1], [0], [0], [1], [0, 0, 1, 1], [], []>} : vector<8x24xbf16>, vector<24x256xbf16>, vector<8x256xf32> -> vector<8x256xf32>
    %c0_20 = arith.constant 0 : index
    %c0_21 = arith.constant 0 : index
    %17 = vector.load %arg4[%c0_20, %c0_21] : memref<8x256xf32, #tpu.memory_space<vmem>>, vector<8x256xf32>
    %c254_i32 = arith.constant 254 : i32
    %18 = tpu.dynamic_rotate %16 by %c254_i32 dim 1 : vector<8x256xf32>, i32 -> vector<8x256xf32>
    %19 = arith.addf %17, %18 : vector<8x256xf32>
    %c0_22 = arith.constant 0 : index
    %c0_23 = arith.constant 0 : index
    %20 = vector.load %arg4[%c0_22, %c0_23] : memref<8x256xf32, #tpu.memory_space<vmem>>, vector<8x256xf32>
    tpu.vector_store %arg4[%c0_22, %c0_23], %19 {strides = array<i32>} : memref<8x256xf32, #tpu.memory_space<vmem>>, vector<8x256xf32>,
    %c3 = arith.constant 3 : index
    %c0_24 = arith.constant 0 : index
    %c0_25 = arith.constant 0 : index
    %21 = vector.load %arg1[%c3, %c0_24, %c0_25] : memref<9x8x24xbf16, #tpu.memory_space<vmem>>, vector<1x8x24xbf16>
    %22 = vector.shape_cast %21 : vector<1x8x24xbf16> to vector<8x24xbf16>
    %c0_26 = arith.constant 0 : index
    %c0_27 = arith.constant 0 : index
    %23 = vector.load %arg2[%c0_26, %c0_27] : memref<24x256xbf16, #tpu.memory_space<vmem>>, vector<24x256xbf16>
    %cst_28 = arith.constant dense<0.000000e+00> : vector<8x256xf32>
    %24 = tpu.matmul %22, %23, %cst_28 {dimension_numbers = #tpu.dot_dimension_numbers<[1], [0], [0], [1], [0, 0, 1, 1], [], []>} : vector<8x24xbf16>, vector<24x256xbf16>, vector<8x256xf32> -> vector<8x256xf32>
    %c0_29 = arith.constant 0 : index
    %c0_30 = arith.constant 0 : index
    %25 = vector.load %arg4[%c0_29, %c0_30] : memref<8x256xf32, #tpu.memory_space<vmem>>, vector<8x256xf32>
    %c253_i32 = arith.constant 253 : i32
    %26 = tpu.dynamic_rotate %24 by %c253_i32 dim 1 : vector<8x256xf32>, i32 -> vector<8x256xf32>
    %27 = arith.addf %25, %26 : vector<8x256xf32>
    %c0_31 = arith.constant 0 : index
    %c0_32 = arith.constant 0 : index
    %28 = vector.load %arg4[%c0_31, %c0_32] : memref<8x256xf32, #tpu.memory_space<vmem>>, vector<8x256xf32>
    tpu.vector_store %arg4[%c0_31, %c0_32], %27 {strides = array<i32>} : memref<8x256xf32, #tpu.memory_space<vmem>>, vector<8x256xf32>,
    %c4 = arith.constant 4 : index
    %c0_33 = arith.constant 0 : index
    %c0_34 = arith.constant 0 : index
    %29 = vector.load %arg1[%c4, %c0_33, %c0_34] : memref<9x8x24xbf16, #tpu.memory_space<vmem>>, vector<1x8x24xbf16>
    %30 = vector.shape_cast %29 : vector<1x8x24xbf16> to vector<8x24xbf16>
    %c0_35 = arith.constant 0 : index
    %c0_36 = arith.constant 0 : index
    %31 = vector.load %arg2[%c0_35, %c0_36] : memref<24x256xbf16, #tpu.memory_space<vmem>>, vector<24x256xbf16>
    %cst_37 = arith.constant dense<0.000000e+00> : vector<8x256xf32>
    %32 = tpu.matmul %30, %31, %cst_37 {dimension_numbers = #tpu.dot_dimension_numbers<[1], [0], [0], [1], [0, 0, 1, 1], [], []>} : vector<8x24xbf16>, vector<24x256xbf16>, vector<8x256xf32> -> vector<8x256xf32>
    %c0_38 = arith.constant 0 : index
    %c0_39 = arith.constant 0 : index
    %33 = vector.load %arg4[%c0_38, %c0_39] : memref<8x256xf32, #tpu.memory_space<vmem>>, vector<8x256xf32>
    %c252_i32 = arith.constant 252 : i32
    %34 = tpu.dynamic_rotate %32 by %c252_i32 dim 1 : vector<8x256xf32>, i32 -> vector<8x256xf32>
    %35 = arith.addf %33, %34 : vector<8x256xf32>
    %c0_40 = arith.constant 0 : index
    %c0_41 = arith.constant 0 : index
    %36 = vector.load %arg4[%c0_40, %c0_41] : memref<8x256xf32, #tpu.memory_space<vmem>>, vector<8x256xf32>
    tpu.vector_store %arg4[%c0_40, %c0_41], %35 {strides = array<i32>} : memref<8x256xf32, #tpu.memory_space<vmem>>, vector<8x256xf32>,
    %c5 = arith.constant 5 : index
    %c0_42 = arith.constant 0 : index
    %c0_43 = arith.constant 0 : index
    %37 = vector.load %arg1[%c5, %c0_42, %c0_43] : memref<9x8x24xbf16, #tpu.memory_space<vmem>>, vector<1x8x24xbf16>
    %38 = vector.shape_cast %37 : vector<1x8x24xbf16> to vector<8x24xbf16>
    %c0_44 = arith.constant 0 : index
    %c0_45 = arith.constant 0 : index
    %39 = vector.load %arg2[%c0_44, %c0_45] : memref<24x256xbf16, #tpu.memory_space<vmem>>, vector<24x256xbf16>
    %cst_46 = arith.constant dense<0.000000e+00> : vector<8x256xf32>
    %40 = tpu.matmul %38, %39, %cst_46 {dimension_numbers = #tpu.dot_dimension_numbers<[1], [0], [0], [1], [0, 0, 1, 1], [], []>} : vector<8x24xbf16>, vector<24x256xbf16>, vector<8x256xf32> -> vector<8x256xf32>
    %c0_47 = arith.constant 0 : index
    %c0_48 = arith.constant 0 : index
    %41 = vector.load %arg4[%c0_47, %c0_48] : memref<8x256xf32, #tpu.memory_space<vmem>>, vector<8x256xf32>
    %c251_i32 = arith.constant 251 : i32
    %42 = tpu.dynamic_rotate %40 by %c251_i32 dim 1 : vector<8x256xf32>, i32 -> vector<8x256xf32>
    %43 = arith.addf %41, %42 : vector<8x256xf32>
    %c0_49 = arith.constant 0 : index
    %c0_50 = arith.constant 0 : index
    %44 = vector.load %arg4[%c0_49, %c0_50] : memref<8x256xf32, #tpu.memory_space<vmem>>, vector<8x256xf32>
    tpu.vector_store %arg4[%c0_49, %c0_50], %43 {strides = array<i32>} : memref<8x256xf32, #tpu.memory_space<vmem>>, vector<8x256xf32>,
    %c6 = arith.constant 6 : index
    %c0_51 = arith.constant 0 : index
    %c0_52 = arith.constant 0 : index
    %45 = vector.load %arg1[%c6, %c0_51, %c0_52] : memref<9x8x24xbf16, #tpu.memory_space<vmem>>, vector<1x8x24xbf16>
    %46 = vector.shape_cast %45 : vector<1x8x24xbf16> to vector<8x24xbf16>
    %c0_53 = arith.constant 0 : index
    %c0_54 = arith.constant 0 : index
    %47 = vector.load %arg2[%c0_53, %c0_54] : memref<24x256xbf16, #tpu.memory_space<vmem>>, vector<24x256xbf16>
    %cst_55 = arith.constant dense<0.000000e+00> : vector<8x256xf32>
    %48 = tpu.matmul %46, %47, %cst_55 {dimension_numbers = #tpu.dot_dimension_numbers<[1], [0], [0], [1], [0, 0, 1, 1], [], []>} : vector<8x24xbf16>, vector<24x256xbf16>, vector<8x256xf32> -> vector<8x256xf32>
    %c0_56 = arith.constant 0 : index
    %c0_57 = arith.constant 0 : index
    %49 = vector.load %arg4[%c0_56, %c0_57] : memref<8x256xf32, #tpu.memory_space<vmem>>, vector<8x256xf32>
    %c250_i32 = arith.constant 250 : i32
    %50 = tpu.dynamic_rotate %48 by %c250_i32 dim 1 : vector<8x256xf32>, i32 -> vector<8x256xf32>
    %51 = arith.addf %49, %50 : vector<8x256xf32>
    %c0_58 = arith.constant 0 : index
    %c0_59 = arith.constant 0 : index
    %52 = vector.load %arg4[%c0_58, %c0_59] : memref<8x256xf32, #tpu.memory_space<vmem>>, vector<8x256xf32>
    tpu.vector_store %arg4[%c0_58, %c0_59], %51 {strides = array<i32>} : memref<8x256xf32, #tpu.memory_space<vmem>>, vector<8x256xf32>,
    %c7 = arith.constant 7 : index
    %c0_60 = arith.constant 0 : index
    %c0_61 = arith.constant 0 : index
    %53 = vector.load %arg1[%c7, %c0_60, %c0_61] : memref<9x8x24xbf16, #tpu.memory_space<vmem>>, vector<1x8x24xbf16>
    %54 = vector.shape_cast %53 : vector<1x8x24xbf16> to vector<8x24xbf16>
    %c0_62 = arith.constant 0 : index
    %c0_63 = arith.constant 0 : index
    %55 = vector.load %arg2[%c0_62, %c0_63] : memref<24x256xbf16, #tpu.memory_space<vmem>>, vector<24x256xbf16>
    %cst_64 = arith.constant dense<0.000000e+00> : vector<8x256xf32>
    %56 = tpu.matmul %54, %55, %cst_64 {dimension_numbers = #tpu.dot_dimension_numbers<[1], [0], [0], [1], [0, 0, 1, 1], [], []>} : vector<8x24xbf16>, vector<24x256xbf16>, vector<8x256xf32> -> vector<8x256xf32>
    %c0_65 = arith.constant 0 : index
    %c0_66 = arith.constant 0 : index
    %57 = vector.load %arg4[%c0_65, %c0_66] : memref<8x256xf32, #tpu.memory_space<vmem>>, vector<8x256xf32>
    %c249_i32 = arith.constant 249 : i32
    %58 = tpu.dynamic_rotate %56 by %c249_i32 dim 1 : vector<8x256xf32>, i32 -> vector<8x256xf32>
    %59 = arith.addf %57, %58 : vector<8x256xf32>
    %c0_67 = arith.constant 0 : index
    %c0_68 = arith.constant 0 : index
    %60 = vector.load %arg4[%c0_67, %c0_68] : memref<8x256xf32, #tpu.memory_space<vmem>>, vector<8x256xf32>
    tpu.vector_store %arg4[%c0_67, %c0_68], %59 {strides = array<i32>} : memref<8x256xf32, #tpu.memory_space<vmem>>, vector<8x256xf32>,
    %c8 = arith.constant 8 : index
    %c0_69 = arith.constant 0 : index
    %c0_70 = arith.constant 0 : index
    %61 = vector.load %arg1[%c8, %c0_69, %c0_70] : memref<9x8x24xbf16, #tpu.memory_space<vmem>>, vector<1x8x24xbf16>
    %62 = vector.shape_cast %61 : vector<1x8x24xbf16> to vector<8x24xbf16>
    %c0_71 = arith.constant 0 : index
    %c0_72 = arith.constant 0 : index
    %63 = vector.load %arg2[%c0_71, %c0_72] : memref<24x256xbf16, #tpu.memory_space<vmem>>, vector<24x256xbf16>
    %cst_73 = arith.constant dense<0.000000e+00> : vector<8x256xf32>
    %64 = tpu.matmul %62, %63, %cst_73 {dimension_numbers = #tpu.dot_dimension_numbers<[1], [0], [0], [1], [0, 0, 1, 1], [], []>} : vector<8x24xbf16>, vector<24x256xbf16>, vector<8x256xf32> -> vector<8x256xf32>
    %c0_74 = arith.constant 0 : index
    %c0_75 = arith.constant 0 : index
    %65 = vector.load %arg4[%c0_74, %c0_75] : memref<8x256xf32, #tpu.memory_space<vmem>>, vector<8x256xf32>
    %c248_i32 = arith.constant 248 : i32
    %66 = tpu.dynamic_rotate %64 by %c248_i32 dim 1 : vector<8x256xf32>, i32 -> vector<8x256xf32>
    %67 = arith.addf %65, %66 : vector<8x256xf32>
    %c0_76 = arith.constant 0 : index
    %c0_77 = arith.constant 0 : index
    %68 = vector.load %arg4[%c0_76, %c0_77] : memref<8x256xf32, #tpu.memory_space<vmem>>, vector<8x256xf32>
    tpu.vector_store %arg4[%c0_76, %c0_77], %67 {strides = array<i32>} : memref<8x256xf32, #tpu.memory_space<vmem>>, vector<8x256xf32>,
    %c0_78 = arith.constant 0 : index
    %c0_79 = arith.constant 0 : index
    %69 = vector.load %arg4[%c0_78, %c0_79] : memref<8x256xf32, #tpu.memory_space<vmem>>, vector<8x256xf32>
    %c0_80 = arith.constant 0 : index
    %c0_81 = arith.constant 0 : index
    %70 = vector.load %arg3[%c0_80, %c0_81] : memref<8x1xf32, #tpu.memory_space<vmem>>, vector<8x1xf32>
    %71 = vector.broadcast %70 : vector<8x1xf32> to vector<8x256xf32>
    %72 = arith.addf %69, %71 : vector<8x256xf32>
    %cst_82 = arith.constant 0.000000e+00 : f32
    %73 = vector.broadcast %cst_82 : f32 to vector<8x256xf32>
    %74 = arith.cmpf oge, %72, %73 : vector<8x256xf32>
    %cst_83 = arith.constant 1.000000e-01 : f32
    %75 = vector.broadcast %cst_83 : f32 to vector<8x256xf32>
    %76 = arith.mulf %75, %72 : vector<8x256xf32>
    %77 = arith.select %74, %72, %76 : vector<8x256xi1>, vector<8x256xf32>
    %c0_84 = arith.constant 0 : index
    %c0_85 = arith.constant 0 : index
    %78 = vector.load %arg4[%c0_84, %c0_85] : memref<8x256xf32, #tpu.memory_space<vmem>>, vector<8x256xf32>
    tpu.vector_store %arg4[%c0_84, %c0_85], %77 {strides = array<i32>} : memref<8x256xf32, #tpu.memory_space<vmem>>, vector<8x256xf32>,
    return
  }
  func.func @transform_0(%arg0: i32) -> (i32, i32, i32) {
    %c0_i32 = arith.constant 0 : i32
    %c0_i32_0 = arith.constant 0 : i32
    %c0_i32_1 = arith.constant 0 : i32
    %c0_i32_2 = arith.constant 0 : i32
    return %c0_i32, %c0_i32_0, %c0_i32_1 : i32, i32, i32
  }
  func.func @transform_1(%arg0: i32) -> (i32, i32) {
    %c0_i32 = arith.constant 0 : i32
    %c0_i32_0 = arith.constant 0 : i32
    return %c0_i32, %arg0 : i32, i32
  }
  func.func @transform_2(%arg0: i32) -> (i32, i32) {
    %c0_i32 = arith.constant 0 : i32
    %c0_i32_0 = arith.constant 0 : i32
    %c0_i32_1 = arith.constant 0 : i32
    return %c0_i32, %c0_i32_0 : i32, i32
  }
  func.func @transform_3(%arg0: i32) -> (i32, i32) {
    %c0_i32 = arith.constant 0 : i32
    %c0_i32_0 = arith.constant 0 : i32
    return %c0_i32, %arg0 : i32, i32
  }
}

module attributes {stable_mosaic.version = 11 : i64} {
  func.func @_conv_kw_kernel(%arg0: i32, %arg1: memref<3x8x24xbf16, #tpu.memory_space<vmem>>, %arg2: memref<24x128xbf16, #tpu.memory_space<vmem>>, %arg3: memref<8x1xf32, #tpu.memory_space<vmem>>, %arg4: memref<8x128xf32, #tpu.memory_space<vmem>>) attributes {dimension_semantics = [#tpu.dimension_semantics<parallel>], iteration_bounds = array<i64: 5>, scalar_prefetch = 0 : i64, scratch_operands = 0 : i64, tpu.core_type = #tpu.core_type<tc>, window_params = [{pipeline_mode = #tpu.pipeline_mode<synchronous>, transform_indices = @transform_0, window_bounds = array<i64: 3, 8, 24>}, {transform_indices = @transform_1, window_bounds = array<i64: 24, 128>}, {pipeline_mode = #tpu.pipeline_mode<synchronous>, transform_indices = @transform_2, window_bounds = array<i64: 8, 1>}, {transform_indices = @transform_3, window_bounds = array<i64: 8, 128>}]} {
    %c0 = arith.constant 0 : index
    %c0_0 = arith.constant 0 : index
    %c0_1 = arith.constant 0 : index
    %0 = vector.load %arg1[%c0, %c0_0, %c0_1] : memref<3x8x24xbf16, #tpu.memory_space<vmem>>, vector<1x8x24xbf16>
    %1 = vector.shape_cast %0 : vector<1x8x24xbf16> to vector<8x24xbf16>
    %c0_2 = arith.constant 0 : index
    %c0_3 = arith.constant 0 : index
    %2 = vector.load %arg2[%c0_2, %c0_3] : memref<24x128xbf16, #tpu.memory_space<vmem>>, vector<24x128xbf16>
    %cst = arith.constant dense<0.000000e+00> : vector<8x128xf32>
    %3 = tpu.matmul %1, %2, %cst {dimension_numbers = #tpu.dot_dimension_numbers<[1], [0], [0], [1], [0, 0, 1, 1], [], []>} : vector<8x24xbf16>, vector<24x128xbf16>, vector<8x128xf32> -> vector<8x128xf32>
    %c0_4 = arith.constant 0 : index
    %c0_5 = arith.constant 0 : index
    %4 = vector.load %arg4[%c0_4, %c0_5] : memref<8x128xf32, #tpu.memory_space<vmem>>, vector<8x128xf32>
    tpu.vector_store %arg4[%c0_4, %c0_5], %3 {strides = array<i32>} : memref<8x128xf32, #tpu.memory_space<vmem>>, vector<8x128xf32>,
    %c1 = arith.constant 1 : index
    %c0_6 = arith.constant 0 : index
    %c0_7 = arith.constant 0 : index
    %5 = vector.load %arg1[%c1, %c0_6, %c0_7] : memref<3x8x24xbf16, #tpu.memory_space<vmem>>, vector<1x8x24xbf16>
    %6 = vector.shape_cast %5 : vector<1x8x24xbf16> to vector<8x24xbf16>
    %c0_8 = arith.constant 0 : index
    %c0_9 = arith.constant 0 : index
    %7 = vector.load %arg2[%c0_8, %c0_9] : memref<24x128xbf16, #tpu.memory_space<vmem>>, vector<24x128xbf16>
    %cst_10 = arith.constant dense<0.000000e+00> : vector<8x128xf32>
    %8 = tpu.matmul %6, %7, %cst_10 {dimension_numbers = #tpu.dot_dimension_numbers<[1], [0], [0], [1], [0, 0, 1, 1], [], []>} : vector<8x24xbf16>, vector<24x128xbf16>, vector<8x128xf32> -> vector<8x128xf32>
    %c0_11 = arith.constant 0 : index
    %c0_12 = arith.constant 0 : index
    %9 = vector.load %arg4[%c0_11, %c0_12] : memref<8x128xf32, #tpu.memory_space<vmem>>, vector<8x128xf32>
    %c127_i32 = arith.constant 127 : i32
    %10 = tpu.dynamic_rotate %8 by %c127_i32 dim 1 : vector<8x128xf32>, i32 -> vector<8x128xf32>
    %11 = arith.addf %9, %10 : vector<8x128xf32>
    %c0_13 = arith.constant 0 : index
    %c0_14 = arith.constant 0 : index
    %12 = vector.load %arg4[%c0_13, %c0_14] : memref<8x128xf32, #tpu.memory_space<vmem>>, vector<8x128xf32>
    tpu.vector_store %arg4[%c0_13, %c0_14], %11 {strides = array<i32>} : memref<8x128xf32, #tpu.memory_space<vmem>>, vector<8x128xf32>,
    %c2 = arith.constant 2 : index
    %c0_15 = arith.constant 0 : index
    %c0_16 = arith.constant 0 : index
    %13 = vector.load %arg1[%c2, %c0_15, %c0_16] : memref<3x8x24xbf16, #tpu.memory_space<vmem>>, vector<1x8x24xbf16>
    %14 = vector.shape_cast %13 : vector<1x8x24xbf16> to vector<8x24xbf16>
    %c0_17 = arith.constant 0 : index
    %c0_18 = arith.constant 0 : index
    %15 = vector.load %arg2[%c0_17, %c0_18] : memref<24x128xbf16, #tpu.memory_space<vmem>>, vector<24x128xbf16>
    %cst_19 = arith.constant dense<0.000000e+00> : vector<8x128xf32>
    %16 = tpu.matmul %14, %15, %cst_19 {dimension_numbers = #tpu.dot_dimension_numbers<[1], [0], [0], [1], [0, 0, 1, 1], [], []>} : vector<8x24xbf16>, vector<24x128xbf16>, vector<8x128xf32> -> vector<8x128xf32>
    %c0_20 = arith.constant 0 : index
    %c0_21 = arith.constant 0 : index
    %17 = vector.load %arg4[%c0_20, %c0_21] : memref<8x128xf32, #tpu.memory_space<vmem>>, vector<8x128xf32>
    %c126_i32 = arith.constant 126 : i32
    %18 = tpu.dynamic_rotate %16 by %c126_i32 dim 1 : vector<8x128xf32>, i32 -> vector<8x128xf32>
    %19 = arith.addf %17, %18 : vector<8x128xf32>
    %c0_22 = arith.constant 0 : index
    %c0_23 = arith.constant 0 : index
    %20 = vector.load %arg4[%c0_22, %c0_23] : memref<8x128xf32, #tpu.memory_space<vmem>>, vector<8x128xf32>
    tpu.vector_store %arg4[%c0_22, %c0_23], %19 {strides = array<i32>} : memref<8x128xf32, #tpu.memory_space<vmem>>, vector<8x128xf32>,
    %c0_24 = arith.constant 0 : index
    %c0_25 = arith.constant 0 : index
    %21 = vector.load %arg4[%c0_24, %c0_25] : memref<8x128xf32, #tpu.memory_space<vmem>>, vector<8x128xf32>
    %c0_26 = arith.constant 0 : index
    %c0_27 = arith.constant 0 : index
    %22 = vector.load %arg3[%c0_26, %c0_27] : memref<8x1xf32, #tpu.memory_space<vmem>>, vector<8x1xf32>
    %23 = vector.broadcast %22 : vector<8x1xf32> to vector<8x128xf32>
    %24 = arith.addf %21, %23 : vector<8x128xf32>
    %cst_28 = arith.constant 0.000000e+00 : f32
    %25 = vector.broadcast %cst_28 : f32 to vector<8x128xf32>
    %26 = arith.cmpf oge, %24, %25 : vector<8x128xf32>
    %cst_29 = arith.constant 1.000000e-01 : f32
    %27 = vector.broadcast %cst_29 : f32 to vector<8x128xf32>
    %28 = arith.mulf %27, %24 : vector<8x128xf32>
    %29 = arith.select %26, %24, %28 : vector<8x128xi1>, vector<8x128xf32>
    %c0_30 = arith.constant 0 : index
    %c0_31 = arith.constant 0 : index
    %30 = vector.load %arg4[%c0_30, %c0_31] : memref<8x128xf32, #tpu.memory_space<vmem>>, vector<8x128xf32>
    tpu.vector_store %arg4[%c0_30, %c0_31], %29 {strides = array<i32>} : memref<8x128xf32, #tpu.memory_space<vmem>>, vector<8x128xf32>,
    return
  }
  func.func @transform_0(%arg0: i32) -> (i32, i32, i32) {
    %c0_i32 = arith.constant 0 : i32
    %c0_i32_0 = arith.constant 0 : i32
    %c0_i32_1 = arith.constant 0 : i32
    %c0_i32_2 = arith.constant 0 : i32
    return %c0_i32, %c0_i32_0, %c0_i32_1 : i32, i32, i32
  }
  func.func @transform_1(%arg0: i32) -> (i32, i32) {
    %c0_i32 = arith.constant 0 : i32
    %c0_i32_0 = arith.constant 0 : i32
    return %c0_i32, %arg0 : i32, i32
  }
  func.func @transform_2(%arg0: i32) -> (i32, i32) {
    %c0_i32 = arith.constant 0 : i32
    %c0_i32_0 = arith.constant 0 : i32
    %c0_i32_1 = arith.constant 0 : i32
    return %c0_i32, %c0_i32_0 : i32, i32
  }
  func.func @transform_3(%arg0: i32) -> (i32, i32) {
    %c0_i32 = arith.constant 0 : i32
    %c0_i32_0 = arith.constant 0 : i32
    return %c0_i32, %arg0 : i32, i32
  }
}

module attributes {stable_mosaic.version = 11 : i64} {
  func.func @_conv_kw_kernel(%arg0: i32, %arg1: memref<3x1x24xbf16, #tpu.memory_space<vmem>>, %arg2: memref<24x128xbf16, #tpu.memory_space<vmem>>, %arg3: memref<1x1xf32, #tpu.memory_space<vmem>>, %arg4: memref<1x128xf32, #tpu.memory_space<vmem>>) attributes {dimension_semantics = [#tpu.dimension_semantics<parallel>], iteration_bounds = array<i64: 5>, scalar_prefetch = 0 : i64, scratch_operands = 0 : i64, tpu.core_type = #tpu.core_type<tc>, window_params = [{pipeline_mode = #tpu.pipeline_mode<synchronous>, transform_indices = @transform_0, window_bounds = array<i64: 3, 1, 24>}, {transform_indices = @transform_1, window_bounds = array<i64: 24, 128>}, {pipeline_mode = #tpu.pipeline_mode<synchronous>, transform_indices = @transform_2, window_bounds = array<i64: 1, 1>}, {transform_indices = @transform_3, window_bounds = array<i64: 1, 128>}]} {
    %c0 = arith.constant 0 : index
    %c0_0 = arith.constant 0 : index
    %c0_1 = arith.constant 0 : index
    %0 = vector.load %arg1[%c0, %c0_0, %c0_1] : memref<3x1x24xbf16, #tpu.memory_space<vmem>>, vector<1x1x24xbf16>
    %1 = vector.shape_cast %0 : vector<1x1x24xbf16> to vector<1x24xbf16>
    %c0_2 = arith.constant 0 : index
    %c0_3 = arith.constant 0 : index
    %2 = vector.load %arg2[%c0_2, %c0_3] : memref<24x128xbf16, #tpu.memory_space<vmem>>, vector<24x128xbf16>
    %cst = arith.constant dense<0.000000e+00> : vector<1x128xf32>
    %3 = tpu.matmul %1, %2, %cst {dimension_numbers = #tpu.dot_dimension_numbers<[1], [0], [0], [1], [0, 0, 1, 1], [], []>} : vector<1x24xbf16>, vector<24x128xbf16>, vector<1x128xf32> -> vector<1x128xf32>
    %c0_4 = arith.constant 0 : index
    %c0_5 = arith.constant 0 : index
    %4 = vector.load %arg4[%c0_4, %c0_5] : memref<1x128xf32, #tpu.memory_space<vmem>>, vector<1x128xf32>
    tpu.vector_store %arg4[%c0_4, %c0_5], %3 {strides = array<i32>} : memref<1x128xf32, #tpu.memory_space<vmem>>, vector<1x128xf32>,
    %c1 = arith.constant 1 : index
    %c0_6 = arith.constant 0 : index
    %c0_7 = arith.constant 0 : index
    %5 = vector.load %arg1[%c1, %c0_6, %c0_7] : memref<3x1x24xbf16, #tpu.memory_space<vmem>>, vector<1x1x24xbf16>
    %6 = vector.shape_cast %5 : vector<1x1x24xbf16> to vector<1x24xbf16>
    %c0_8 = arith.constant 0 : index
    %c0_9 = arith.constant 0 : index
    %7 = vector.load %arg2[%c0_8, %c0_9] : memref<24x128xbf16, #tpu.memory_space<vmem>>, vector<24x128xbf16>
    %cst_10 = arith.constant dense<0.000000e+00> : vector<1x128xf32>
    %8 = tpu.matmul %6, %7, %cst_10 {dimension_numbers = #tpu.dot_dimension_numbers<[1], [0], [0], [1], [0, 0, 1, 1], [], []>} : vector<1x24xbf16>, vector<24x128xbf16>, vector<1x128xf32> -> vector<1x128xf32>
    %c0_11 = arith.constant 0 : index
    %c0_12 = arith.constant 0 : index
    %9 = vector.load %arg4[%c0_11, %c0_12] : memref<1x128xf32, #tpu.memory_space<vmem>>, vector<1x128xf32>
    %c127_i32 = arith.constant 127 : i32
    %10 = tpu.dynamic_rotate %8 by %c127_i32 dim 1 : vector<1x128xf32>, i32 -> vector<1x128xf32>
    %11 = arith.addf %9, %10 : vector<1x128xf32>
    %c0_13 = arith.constant 0 : index
    %c0_14 = arith.constant 0 : index
    %12 = vector.load %arg4[%c0_13, %c0_14] : memref<1x128xf32, #tpu.memory_space<vmem>>, vector<1x128xf32>
    tpu.vector_store %arg4[%c0_13, %c0_14], %11 {strides = array<i32>} : memref<1x128xf32, #tpu.memory_space<vmem>>, vector<1x128xf32>,
    %c2 = arith.constant 2 : index
    %c0_15 = arith.constant 0 : index
    %c0_16 = arith.constant 0 : index
    %13 = vector.load %arg1[%c2, %c0_15, %c0_16] : memref<3x1x24xbf16, #tpu.memory_space<vmem>>, vector<1x1x24xbf16>
    %14 = vector.shape_cast %13 : vector<1x1x24xbf16> to vector<1x24xbf16>
    %c0_17 = arith.constant 0 : index
    %c0_18 = arith.constant 0 : index
    %15 = vector.load %arg2[%c0_17, %c0_18] : memref<24x128xbf16, #tpu.memory_space<vmem>>, vector<24x128xbf16>
    %cst_19 = arith.constant dense<0.000000e+00> : vector<1x128xf32>
    %16 = tpu.matmul %14, %15, %cst_19 {dimension_numbers = #tpu.dot_dimension_numbers<[1], [0], [0], [1], [0, 0, 1, 1], [], []>} : vector<1x24xbf16>, vector<24x128xbf16>, vector<1x128xf32> -> vector<1x128xf32>
    %c0_20 = arith.constant 0 : index
    %c0_21 = arith.constant 0 : index
    %17 = vector.load %arg4[%c0_20, %c0_21] : memref<1x128xf32, #tpu.memory_space<vmem>>, vector<1x128xf32>
    %c126_i32 = arith.constant 126 : i32
    %18 = tpu.dynamic_rotate %16 by %c126_i32 dim 1 : vector<1x128xf32>, i32 -> vector<1x128xf32>
    %19 = arith.addf %17, %18 : vector<1x128xf32>
    %c0_22 = arith.constant 0 : index
    %c0_23 = arith.constant 0 : index
    %20 = vector.load %arg4[%c0_22, %c0_23] : memref<1x128xf32, #tpu.memory_space<vmem>>, vector<1x128xf32>
    tpu.vector_store %arg4[%c0_22, %c0_23], %19 {strides = array<i32>} : memref<1x128xf32, #tpu.memory_space<vmem>>, vector<1x128xf32>,
    %c0_24 = arith.constant 0 : index
    %c0_25 = arith.constant 0 : index
    %21 = vector.load %arg4[%c0_24, %c0_25] : memref<1x128xf32, #tpu.memory_space<vmem>>, vector<1x128xf32>
    %c0_26 = arith.constant 0 : index
    %c0_27 = arith.constant 0 : index
    %22 = vector.load %arg3[%c0_26, %c0_27] : memref<1x1xf32, #tpu.memory_space<vmem>>, vector<1x1xf32>
    %23 = vector.broadcast %22 : vector<1x1xf32> to vector<1x128xf32>
    %24 = arith.addf %21, %23 : vector<1x128xf32>
    %c0_28 = arith.constant 0 : index
    %c0_29 = arith.constant 0 : index
    %25 = vector.load %arg4[%c0_28, %c0_29] : memref<1x128xf32, #tpu.memory_space<vmem>>, vector<1x128xf32>
    tpu.vector_store %arg4[%c0_28, %c0_29], %24 {strides = array<i32>} : memref<1x128xf32, #tpu.memory_space<vmem>>, vector<1x128xf32>,
    return
  }
  func.func @transform_0(%arg0: i32) -> (i32, i32, i32) {
    %c0_i32 = arith.constant 0 : i32
    %c0_i32_0 = arith.constant 0 : i32
    %c0_i32_1 = arith.constant 0 : i32
    %c0_i32_2 = arith.constant 0 : i32
    return %c0_i32, %c0_i32_0, %c0_i32_1 : i32, i32, i32
  }
  func.func @transform_1(%arg0: i32) -> (i32, i32) {
    %c0_i32 = arith.constant 0 : i32
    %c0_i32_0 = arith.constant 0 : i32
    return %c0_i32, %arg0 : i32, i32
  }
  func.func @transform_2(%arg0: i32) -> (i32, i32) {
    %c0_i32 = arith.constant 0 : i32
    %c0_i32_0 = arith.constant 0 : i32
    %c0_i32_1 = arith.constant 0 : i32
    return %c0_i32, %c0_i32_0 : i32, i32
  }
  func.func @transform_3(%arg0: i32) -> (i32, i32) {
    %c0_i32 = arith.constant 0 : i32
    %c0_i32_0 = arith.constant 0 : i32
    return %c0_i32, %arg0 : i32, i32
  }
}

</mosaic_0001>

<llo_original>
// kernel: discriminator_r_forward.7
$region0: #{discriminator_r_forward.7}
  #allocation0 [shape = 'u32[]', space=smem, size = 0x4, offset = 0x4, fixed_abs, tag = 'smem constant byte address 0x4 - core index']
  #allocation1 [shape = 'u32[144,128]{1,0:T(1,128)}', space=vmem, size = 0x12000, scoped, tag = 'internal scratch']
  %s0 = inlined_call_operand.vmem [shape: bf16[128,32], index: 0, kind: input, shape index: {}]
  %s1 = inlined_call_operand.vmem [shape: bf16[32,256], index: 1, kind: input, shape index: {}]
  %s2 = inlined_call_operand.vmem [shape: f32[128,128], index: 2, kind: output, shape index: {}]
  %s3 = sld [smem:[#allocation0]]
  $region18: #{discriminator_r_forward.7} parent=0
    _
  %s5 = ssub.s32 1, %s3
  %s6 = scalar_select 0, %s5, %s3
  // Predicated region
  $region2: #{discriminator_r_forward.7} parent=0 // pred_check
    _
  $region3: #{discriminator_r_forward.7} parent=0 // pred_check_branch
    %8 = sbr.rel (0) target = $region5
  $region4: #{discriminator_r_forward.7} parent=0 // pred_region
    _
  $region5: #{discriminator_r_forward.7} parent=0 // pred_fallthru
    _
  // Predicated region
  $region6: #{discriminator_r_forward.7} parent=0 // pred_check
    _
  $region7: #{discriminator_r_forward.7} parent=0 // pred_check_branch
    %10 = sbr.rel (0) target = $region9
  $region8: #{discriminator_r_forward.7} parent=0 // pred_region
    _
  $region9: #{discriminator_r_forward.7} parent=0 // pred_fallthru
    _
  %v12 = vld [vmem:[%s0] sm:$0xf]
  %v13 = vld [vmem:[%s0 + $0x4] sm:$0xf]
  %v14 = vld [vmem:[%s0 + $0x8] sm:$0xf]
  %v15 = vld [vmem:[%s0 + $0xc] sm:$0xf]
  %v16 = vld [vmem:[%s0 + $0x10] sm:$0xf]
  %v17 = vld [vmem:[%s0 + $0x14] sm:$0xf]
  %v18 = vld [vmem:[%s0 + $0x18] sm:$0xf]
  %v19 = vld [vmem:[%s0 + $0x1c] sm:$0xf]
  %v20 = vld [vmem:[%s0 + $0x20] sm:$0xf]
  %v21 = vld [vmem:[%s0 + $0x24] sm:$0xf]
  %v22 = vld [vmem:[%s0 + $0x28] sm:$0xf]
  %v23 = vld [vmem:[%s0 + $0x2c] sm:$0xf]
  %v24 = vld [vmem:[%s0 + $0x30] sm:$0xf]
  %v25 = vld [vmem:[%s0 + $0x34] sm:$0xf]
  %v26 = vld [vmem:[%s0 + $0x38] sm:$0xf]
  %v27 = vld [vmem:[%s0 + $0x3c] sm:$0xf]
  %v28 = vld [vmem:[%s1] sm:$0xf]
  %v29 = vld [vmem:[%s1 + $0x8] sm:$0xf]
  %v30 = vld [vmem:[%s1 + $0x10] sm:$0xf]
  %v31 = vld [vmem:[%s1 + $0x18] sm:$0xf]
  %v48 = vunpack.c.l.b16 %v12
  %v49 = vunpack.c.l.b16 %v13
  %v50 = vunpack.c.l.b16 %v14
  %v51 = vunpack.c.l.b16 %v15
  %v52 = vunpack.c.l.b16 %v16
  %v53 = vunpack.c.l.b16 %v17
  %v54 = vunpack.c.l.b16 %v18
  %v55 = vunpack.c.l.b16 %v19
  %v56 = vunpack.c.l.b16 %v20
  %v57 = vunpack.c.l.b16 %v21
  %v58 = vunpack.c.l.b16 %v22
  %v59 = vunpack.c.l.b16 %v23
  %v60 = vunpack.c.l.b16 %v24
  %v61 = vunpack.c.l.b16 %v25
  %v62 = vunpack.c.l.b16 %v26
  %v63 = vunpack.c.l.b16 %v27
  %v64 = vpack.c.b16 %v49, %v48
  %v65 = vpack.c.b16 %v51, %v50
  %v66 = vpack.c.b16 %v53, %v52
  %v67 = vpack.c.b16 %v55, %v54
  %v68 = vpack.c.b16 %v57, %v56
  %v69 = vpack.c.b16 %v59, %v58
  %v70 = vpack.c.b16 %v61, %v60
  %v71 = vpack.c.b16 %v63, %v62
  %v76 = vunpack.c.l.b16 %v28
  %v77 = vunpack.c.l.b16 %v29
  %v78 = vunpack.c.l.b16 %v30
  %v79 = vunpack.c.l.b16 %v31
  %v80 = vpack.c.b16 %v77, %v76
  %v81 = vpack.c.b16 %v79, %v78
  %vm84 = vcmask 261120
  %v86 = vsel %vm84, %v64, 0
  %v89 = vsel %vm84, %v65, 0
  %v92 = vsel %vm84, %v66, 0
  %v95 = vsel %vm84, %v67, 0
  %v98 = vsel %vm84, %v68, 0
  %v101 = vsel %vm84, %v69, 0
  %v104 = vsel %vm84, %v70, 0
  %v107 = vsel %vm84, %v71, 0
  %109 = vmatprep.subr.bf16.mxu0 0
  %110 = vmatpush1.bf16.msra.mxu0 %v80
  %111 = vmatprep.subr.bf16.mxu0 0
  %112 = vmatpush1.bf16.msra.mxu0 %v81
  %113 = vmatprep.subr.bf16.mxu0 0
  %114 = vmatpush1.bf16.msra.mxu0 0
  %115 = vmatprep.subr.bf16.mxu0 0
  %116 = vmatpush1.bf16.msra.mxu0 0
  %117 = vmatprep.subr.bf16.mxu0 0
  %118 = vmatpush1.bf16.msra.mxu0 0
  %119 = vmatprep.subr.bf16.mxu0 0
  %120 = vmatpush1.bf16.msra.mxu0 0
  %121 = vmatprep.subr.bf16.mxu0 0
  %122 = vmatpush1.bf16.msra.mxu0 0
  %123 = vmatprep.subr.bf16.mxu0 0
  %124 = vmatpush1.bf16.msra.mxu0 0
  %125 = vmatprep.subr.bf16.mxu0 0
  %126 = vmatpush1.bf16.msra.mxu0 0
  %127 = vmatprep.subr.bf16.mxu0 0
  %128 = vmatpush1.bf16.msra.mxu0 0
  %129 = vmatprep.subr.bf16.mxu0 0
  %130 = vmatpush1.bf16.msra.mxu0 0
  %131 = vmatprep.subr.bf16.mxu0 0
  %132 = vmatpush1.bf16.msra.mxu0 0
  %133 = vmatprep.subr.bf16.mxu0 0
  %134 = vmatpush1.bf16.msra.mxu0 0
  %135 = vmatprep.subr.bf16.mxu0 0
  %136 = vmatpush1.bf16.msra.mxu0 0
  %137 = vmatprep.subr.bf16.mxu0 0
  %138 = vmatpush1.bf16.msra.mxu0 0
  %139 = vmatprep.subr.bf16.mxu0 0
  %140 = vmatpush1.bf16.msra.mxu0 0
  %141 = vmatprep.mubr.bf16.mxu0 0
  %142 = vmatmul.mubr.bf16.gmra.mrb[0].mxu0 %v86
  %v143 = vpop.f32.mrb[0].mxu0
  %v144 = vadd.f32 0.0, %v143
  %v145 = vpop.f32.mrb[0].mxu0
  %v146 = vpop.f32.mrb[0].mxu0
  %v147 = vadd.f32 0.0, %v146
  %v148 = vpop.f32.mrb[0].mxu0
  %149 = vmatprep.mubr.bf16.mxu0 0
  %150 = vmatmul.mubr.bf16.gmra.mrb[0].mxu0 %v89
  %v151 = vpop.f32.mrb[0].mxu0
  %v152 = vadd.f32 0.0, %v151
  %v153 = vpop.f32.mrb[0].mxu0
  %v154 = vpop.f32.mrb[0].mxu0
  %v155 = vadd.f32 0.0, %v154
  %v156 = vpop.f32.mrb[0].mxu0
  %157 = vmatprep.mubr.bf16.mxu0 0
  %158 = vmatmul.mubr.bf16.gmra.mrb[0].mxu0 %v92
  %v159 = vpop.f32.mrb[0].mxu0
  %v160 = vadd.f32 0.0, %v159
  %v161 = vpop.f32.mrb[0].mxu0
  %v162 = vpop.f32.mrb[0].mxu0
  %v163 = vadd.f32 0.0, %v162
  %v164 = vpop.f32.mrb[0].mxu0
  %165 = vmatprep.mubr.bf16.mxu0 0
  %166 = vmatmul.mubr.bf16.gmra.mrb[0].mxu0 %v95
  %v167 = vpop.f32.mrb[0].mxu0
  %v168 = vadd.f32 0.0, %v167
  %v169 = vpop.f32.mrb[0].mxu0
  %v170 = vpop.f32.mrb[0].mxu0
  %v171 = vadd.f32 0.0, %v170
  %v172 = vpop.f32.mrb[0].mxu0
  %173 = vmatprep.mubr.bf16.mxu0 0
  %174 = vmatmul.mubr.bf16.gmra.mrb[0].mxu0 %v98
  %v175 = vpop.f32.mrb[0].mxu0
  %v176 = vadd.f32 0.0, %v175
  %v177 = vpop.f32.mrb[0].mxu0
  %v178 = vpop.f32.mrb[0].mxu0
  %v179 = vadd.f32 0.0, %v178
  %v180 = vpop.f32.mrb[0].mxu0
  %181 = vmatprep.mubr.bf16.mxu0 0
  %182 = vmatmul.mubr.bf16.gmra.mrb[0].mxu0 %v101
  %v183 = vpop.f32.mrb[0].mxu0
  %v184 = vadd.f32 0.0, %v183
  %v185 = vpop.f32.mrb[0].mxu0
  %v186 = vpop.f32.mrb[0].mxu0
  %v187 = vadd.f32 0.0, %v186
  %v188 = vpop.f32.mrb[0].mxu0
  %189 = vmatprep.mubr.bf16.mxu0 0
  %190 = vmatmul.mubr.bf16.gmra.mrb[0].mxu0 %v104
  %v191 = vpop.f32.mrb[0].mxu0
  %v192 = vadd.f32 0.0, %v191
  %v193 = vpop.f32.mrb[0].mxu0
  %v194 = vpop.f32.mrb[0].mxu0
  %v195 = vadd.f32 0.0, %v194
  %v196 = vpop.f32.mrb[0].mxu0
  %197 = vmatprep.mubr.bf16.mxu0 0
  %198 = vmatmul.mubr.bf16.gmra.mrb[0].mxu0 %v107
  %v199 = vpop.f32.mrb[0].mxu0
  %v200 = vadd.f32 0.0, %v199
  %v201 = vpop.f32.mrb[0].mxu0
  %v202 = vpop.f32.mrb[0].mxu0
  %v203 = vadd.f32 0.0, %v202
  %v204 = vpop.f32.mrb[0].mxu0
  %205 = vdwg.mxu0
  %v206 = vld [vmem:[%s1 + $0x4] sm:$0xf]
  %v207 = vld [vmem:[%s1 + $0xc] sm:$0xf]
  %v208 = vld [vmem:[%s1 + $0x14] sm:$0xf]
  %v209 = vld [vmem:[%s1 + $0x1c] sm:$0xf]
  %v214 = vunpack.c.l.b16 %v206
  %v215 = vunpack.c.l.b16 %v207
  %v216 = vunpack.c.l.b16 %v208
  %v217 = vunpack.c.l.b16 %v209
  %v218 = vpack.c.b16 %v215, %v214
  %v219 = vpack.c.b16 %v217, %v216
  %222 = vmatprep.subr.bf16.mxu0 0
  %223 = vmatpush1.bf16.msra.mxu0 %v218
  %224 = vmatprep.subr.bf16.mxu0 0
  %225 = vmatpush1.bf16.msra.mxu0 %v219
  %226 = vmatprep.subr.bf16.mxu0 0
  %227 = vmatpush1.bf16.msra.mxu0 0
  %228 = vmatprep.subr.bf16.mxu0 0
  %229 = vmatpush1.bf16.msra.mxu0 0
  %230 = vmatprep.subr.bf16.mxu0 0
  %231 = vmatpush1.bf16.msra.mxu0 0
  %232 = vmatprep.subr.bf16.mxu0 0
  %233 = vmatpush1.bf16.msra.mxu0 0
  %234 = vmatprep.subr.bf16.mxu0 0
  %235 = vmatpush1.bf16.msra.mxu0 0
  %236 = vmatprep.subr.bf16.mxu0 0
  %237 = vmatpush1.bf16.msra.mxu0 0
  %238 = vmatprep.subr.bf16.mxu0 0
  %239 = vmatpush1.bf16.msra.mxu0 0
  %240 = vmatprep.subr.bf16.mxu0 0
  %241 = vmatpush1.bf16.msra.mxu0 0
  %242 = vmatprep.subr.bf16.mxu0 0
  %243 = vmatpush1.bf16.msra.mxu0 0
  %244 = vmatprep.subr.bf16.mxu0 0
  %245 = vmatpush1.bf16.msra.mxu0 0
  %246 = vmatprep.subr.bf16.mxu0 0
  %247 = vmatpush1.bf16.msra.mxu0 0
  %248 = vmatprep.subr.bf16.mxu0 0
  %249 = vmatpush1.bf16.msra.mxu0 0
  %250 = vmatprep.subr.bf16.mxu0 0
  %251 = vmatpush1.bf16.msra.mxu0 0
  %252 = vmatprep.subr.bf16.mxu0 0
  %253 = vmatpush1.bf16.msra.mxu0 0
  %254 = vmatprep.mubr.bf16.mxu0 0
  %255 = vmatmul.mubr.bf16.gmra.mrb[0].mxu0 %v86
  %v256 = vpop.f32.mrb[0].mxu0
  %v257 = vadd.f32 0.0, %v256
  %v258 = vpop.f32.mrb[0].mxu0
  %v259 = vpop.f32.mrb[0].mxu0
  %v260 = vadd.f32 0.0, %v259
  %v261 = vpop.f32.mrb[0].mxu0
  %262 = vmatprep.mubr.bf16.mxu0 0
  %263 = vmatmul.mubr.bf16.gmra.mrb[0].mxu0 %v89
  %v264 = vpop.f32.mrb[0].mxu0
  %v265 = vadd.f32 0.0, %v264
  %v266 = vpop.f32.mrb[0].mxu0
  %v267 = vpop.f32.mrb[0].mxu0
  %v268 = vadd.f32 0.0, %v267
  %v269 = vpop.f32.mrb[0].mxu0
  %270 = vmatprep.mubr.bf16.mxu0 0
  %271 = vmatmul.mubr.bf16.gmra.mrb[0].mxu0 %v92
  %v272 = vpop.f32.mrb[0].mxu0
  %v273 = vadd.f32 0.0, %v272
  %v274 = vpop.f32.mrb[0].mxu0
  %v275 = vpop.f32.mrb[0].mxu0
  %v276 = vadd.f32 0.0, %v275
  %v277 = vpop.f32.mrb[0].mxu0
  %278 = vmatprep.mubr.bf16.mxu0 0
  %279 = vmatmul.mubr.bf16.gmra.mrb[0].mxu0 %v95
  %v280 = vpop.f32.mrb[0].mxu0
  %v281 = vadd.f32 0.0, %v280
  %v282 = vpop.f32.mrb[0].mxu0
  %v283 = vpop.f32.mrb[0].mxu0
  %v284 = vadd.f32 0.0, %v283
  %v285 = vpop.f32.mrb[0].mxu0
  %286 = vmatprep.mubr.bf16.mxu0 0
  %287 = vmatmul.mubr.bf16.gmra.mrb[0].mxu0 %v98
  %v288 = vpop.f32.mrb[0].mxu0
  %v289 = vadd.f32 0.0, %v288
  %v290 = vpop.f32.mrb[0].mxu0
  %v291 = vpop.f32.mrb[0].mxu0
  %v292 = vadd.f32 0.0, %v291
  %v293 = vpop.f32.mrb[0].mxu0
  %294 = vmatprep.mubr.bf16.mxu0 0
  %295 = vmatmul.mubr.bf16.gmra.mrb[0].mxu0 %v101
  %v296 = vpop.f32.mrb[0].mxu0
  %v297 = vadd.f32 0.0, %v296
  %v298 = vpop.f32.mrb[0].mxu0
  %v299 = vpop.f32.mrb[0].mxu0
  %v300 = vadd.f32 0.0, %v299
  %v301 = vpop.f32.mrb[0].mxu0
  %302 = vmatprep.mubr.bf16.mxu0 0
  %303 = vmatmul.mubr.bf16.gmra.mrb[0].mxu0 %v104
  %v304 = vpop.f32.mrb[0].mxu0
  %v305 = vadd.f32 0.0, %v304
  %v306 = vpop.f32.mrb[0].mxu0
  %v307 = vpop.f32.mrb[0].mxu0
  %v308 = vadd.f32 0.0, %v307
  %v309 = vpop.f32.mrb[0].mxu0
  %310 = vmatprep.mubr.bf16.mxu0 0
  %311 = vmatmul.mubr.bf16.gmra.mrb[0].mxu0 %v107
  %v312 = vpop.f32.mrb[0].mxu0
  %v313 = vadd.f32 0.0, %v312
  %v314 = vpop.f32.mrb[0].mxu0
  %v315 = vpop.f32.mrb[0].mxu0
  %v316 = vadd.f32 0.0, %v315
  %v317 = vpop.f32.mrb[0].mxu0
  %318 = vdwg.mxu0
  %v319 = vmul.f32 %v144, %v144
  %v320 = vmul.f32 %v147, %v147
  %v321 = vmul.f32 %v152, %v152
  %v322 = vmul.f32 %v155, %v155
  %v323 = vmul.f32 %v160, %v160
  %v324 = vmul.f32 %v163, %v163
  %v325 = vmul.f32 %v168, %v168
  %v326 = vmul.f32 %v171, %v171
  %v327 = vmul.f32 %v176, %v176
  %v328 = vmul.f32 %v179, %v179
  %v329 = vmul.f32 %v184, %v184
  %v330 = vmul.f32 %v187, %v187
  %v331 = vmul.f32 %v192, %v192
  %v332 = vmul.f32 %v195, %v195
  %v333 = vmul.f32 %v200, %v200
  %v334 = vmul.f32 %v203, %v203
  %v335 = vmul.f32 %v257, %v257
  %v336 = vmul.f32 %v260, %v260
  %v337 = vmul.f32 %v265, %v265
  %v338 = vmul.f32 %v268, %v268
  %v339 = vmul.f32 %v273, %v273
  %v340 = vmul.f32 %v276, %v276
  %v341 = vmul.f32 %v281, %v281
  %v342 = vmul.f32 %v284, %v284
  %v343 = vmul.f32 %v289, %v289
  %v344 = vmul.f32 %v292, %v292
  %v345 = vmul.f32 %v297, %v297
  %v346 = vmul.f32 %v300, %v300
  %v347 = vmul.f32 %v305, %v305
  %v348 = vmul.f32 %v308, %v308
  %v349 = vmul.f32 %v313, %v313
  %v350 = vmul.f32 %v316, %v316
  %v351 = vadd.f32 %v319, %v335
  %v352 = vadd.f32 %v320, %v336
  %v353 = vadd.f32 %v321, %v337
  %v354 = vadd.f32 %v322, %v338
  %v355 = vadd.f32 %v323, %v339
  %v356 = vadd.f32 %v324, %v340
  %v357 = vadd.f32 %v325, %v341
  %v358 = vadd.f32 %v326, %v342
  %v359 = vadd.f32 %v327, %v343
  %v360 = vadd.f32 %v328, %v344
  %v361 = vadd.f32 %v329, %v345
  %v362 = vadd.f32 %v330, %v346
  %v363 = vadd.f32 %v331, %v347
  %v364 = vadd.f32 %v332, %v348
  %v365 = vadd.f32 %v333, %v349
  %v366 = vadd.f32 %v334, %v350
  %v367 = vrsqrt.pop %v351
  %v368 = vmul.f32 %v351, %v367
  %vm369 = vcmp.eq.f32.partialorder %v351, inf
  %v370 = vsel %vm369, %v351, %v368
  %vm371 = vcmp.eq.f32.partialorder %v351, 0.0
  %v372 = vand.u32 %v351, 2147483648
  %v373 = vsel %vm371, %v372, %v370
  %v374 = vrsqrt.pop %v352
  %v375 = vmul.f32 %v352, %v374
  %vm376 = vcmp.eq.f32.partialorder %v352, inf
  %v377 = vsel %vm376, %v352, %v375
  %vm378 = vcmp.eq.f32.partialorder %v352, 0.0
  %v379 = vand.u32 %v352, 2147483648
  %v380 = vsel %vm378, %v379, %v377
  %v381 = vrsqrt.pop %v353
  %v382 = vmul.f32 %v353, %v381
  %vm383 = vcmp.eq.f32.partialorder %v353, inf
  %v384 = vsel %vm383, %v353, %v382
  %vm385 = vcmp.eq.f32.partialorder %v353, 0.0
  %v386 = vand.u32 %v353, 2147483648
  %v387 = vsel %vm385, %v386, %v384
  %v388 = vrsqrt.pop %v354
  %v389 = vmul.f32 %v354, %v388
  %vm390 = vcmp.eq.f32.partialorder %v354, inf
  %v391 = vsel %vm390, %v354, %v389
  %vm392 = vcmp.eq.f32.partialorder %v354, 0.0
  %v393 = vand.u32 %v354, 2147483648
  %v394 = vsel %vm392, %v393, %v391
  %v395 = vrsqrt.pop %v355
  %v396 = vmul.f32 %v355, %v395
  %vm397 = vcmp.eq.f32.partialorder %v355, inf
  %v398 = vsel %vm397, %v355, %v396
  %vm399 = vcmp.eq.f32.partialorder %v355, 0.0
  %v400 = vand.u32 %v355, 2147483648
  %v401 = vsel %vm399, %v400, %v398
  %v402 = vrsqrt.pop %v356
  %v403 = vmul.f32 %v356, %v402
  %vm404 = vcmp.eq.f32.partialorder %v356, inf
  %v405 = vsel %vm404, %v356, %v403
  %vm406 = vcmp.eq.f32.partialorder %v356, 0.0
  %v407 = vand.u32 %v356, 2147483648
  %v408 = vsel %vm406, %v407, %v405
  %v409 = vrsqrt.pop %v357
  %v410 = vmul.f32 %v357, %v409
  %vm411 = vcmp.eq.f32.partialorder %v357, inf
  %v412 = vsel %vm411, %v357, %v410
  %vm413 = vcmp.eq.f32.partialorder %v357, 0.0
  %v414 = vand.u32 %v357, 2147483648
  %v415 = vsel %vm413, %v414, %v412
  %v416 = vrsqrt.pop %v358
  %v417 = vmul.f32 %v358, %v416
  %vm418 = vcmp.eq.f32.partialorder %v358, inf
  %v419 = vsel %vm418, %v358, %v417
  %vm420 = vcmp.eq.f32.partialorder %v358, 0.0
  %v421 = vand.u32 %v358, 2147483648
  %v422 = vsel %vm420, %v421, %v419
  %v423 = vrsqrt.pop %v359
  %v424 = vmul.f32 %v359, %v423
  %vm425 = vcmp.eq.f32.partialorder %v359, inf
  %v426 = vsel %vm425, %v359, %v424
  %vm427 = vcmp.eq.f32.partialorder %v359, 0.0
  %v428 = vand.u32 %v359, 2147483648
  %v429 = vsel %vm427, %v428, %v426
  %v430 = vrsqrt.pop %v360
  %v431 = vmul.f32 %v360, %v430
  %vm432 = vcmp.eq.f32.partialorder %v360, inf
  %v433 = vsel %vm432, %v360, %v431
  %vm434 = vcmp.eq.f32.partialorder %v360, 0.0
  %v435 = vand.u32 %v360, 2147483648
  %v436 = vsel %vm434, %v435, %v433
  %v437 = vrsqrt.pop %v361
  %v438 = vmul.f32 %v361, %v437
  %vm439 = vcmp.eq.f32.partialorder %v361, inf
  %v440 = vsel %vm439, %v361, %v438
  %vm441 = vcmp.eq.f32.partialorder %v361, 0.0
  %v442 = vand.u32 %v361, 2147483648
  %v443 = vsel %vm441, %v442, %v440
  %v444 = vrsqrt.pop %v362
  %v445 = vmul.f32 %v362, %v444
  %vm446 = vcmp.eq.f32.partialorder %v362, inf
  %v447 = vsel %vm446, %v362, %v445
  %vm448 = vcmp.eq.f32.partialorder %v362, 0.0
  %v449 = vand.u32 %v362, 2147483648
  %v450 = vsel %vm448, %v449, %v447
  %v451 = vrsqrt.pop %v363
  %v452 = vmul.f32 %v363, %v451
  %vm453 = vcmp.eq.f32.partialorder %v363, inf
  %v454 = vsel %vm453, %v363, %v452
  %vm455 = vcmp.eq.f32.partialorder %v363, 0.0
  %v456 = vand.u32 %v363, 2147483648
  %v457 = vsel %vm455, %v456, %v454
  %v458 = vrsqrt.pop %v364
  %v459 = vmul.f32 %v364, %v458
  %vm460 = vcmp.eq.f32.partialorder %v364, inf
  %v461 = vsel %vm460, %v364, %v459
  %vm462 = vcmp.eq.f32.partialorder %v364, 0.0
  %v463 = vand.u32 %v364, 2147483648
  %v464 = vsel %vm462, %v463, %v461
  %v465 = vrsqrt.pop %v365
  %v466 = vmul.f32 %v365, %v465
  %vm467 = vcmp.eq.f32.partialorder %v365, inf
  %v468 = vsel %vm467, %v365, %v466
  %vm469 = vcmp.eq.f32.partialorder %v365, 0.0
  %v470 = vand.u32 %v365, 2147483648
  %v471 = vsel %vm469, %v470, %v468
  %v472 = vrsqrt.pop %v366
  %v473 = vmul.f32 %v366, %v472
  %vm474 = vcmp.eq.f32.partialorder %v366, inf
  %v475 = vsel %vm474, %v366, %v473
  %vm476 = vcmp.eq.f32.partialorder %v366, 0.0
  %v477 = vand.u32 %v366, 2147483648
  %v478 = vsel %vm476, %v477, %v475
  %479 = vst [vmem:[%s2] sm:$0xff] %v373
  %480 = vst [vmem:[%s2 + $0x8] sm:$0xff] %v380
  %481 = vst [vmem:[%s2 + $0x10] sm:$0xff] %v387
  %482 = vst [vmem:[%s2 + $0x18] sm:$0xff] %v394
  %483 = vst [vmem:[%s2 + $0x20] sm:$0xff] %v401
  %484 = vst [vmem:[%s2 + $0x28] sm:$0xff] %v408
  %485 = vst [vmem:[%s2 + $0x30] sm:$0xff] %v415
  %486 = vst [vmem:[%s2 + $0x38] sm:$0xff] %v422
  %487 = vst [vmem:[%s2 + $0x40] sm:$0xff] %v429
  %488 = vst [vmem:[%s2 + $0x48] sm:$0xff] %v436
  %489 = vst [vmem:[%s2 + $0x50] sm:$0xff] %v443
  %490 = vst [vmem:[%s2 + $0x58] sm:$0xff] %v450
  %491 = vst [vmem:[%s2 + $0x60] sm:$0xff] %v457
  %492 = vst [vmem:[%s2 + $0x68] sm:$0xff] %v464
  %493 = vst [vmem:[%s2 + $0x70] sm:$0xff] %v471
  %494 = vst [vmem:[%s2 + $0x78] sm:$0xff] %v478
  // Predicated region
  $region10: #{discriminator_r_forward.7} parent=0 // pred_check
    _
  $region11: #{discriminator_r_forward.7} parent=0 // pred_check_branch
    %496 = sbr.rel (0) target = $region13
  $region12: #{discriminator_r_forward.7} parent=0 // pred_region
    _
  $region13: #{discriminator_r_forward.7} parent=0 // pred_fallthru
    _
  // Predicated region
  $region14: #{discriminator_r_forward.7} parent=0 // pred_check
    _
  $region15: #{discriminator_r_forward.7} parent=0 // pred_check_branch
    %498 = sbr.rel (0) target = $region17
  $region16: #{discriminator_r_forward.7} parent=0 // pred_region
    _
  $region17: #{discriminator_r_forward.7} parent=0 // pred_fallthru
    _

// kernel: discriminator_r_forward.8
$region0: #{discriminator_r_forward.8}
  #allocation0 [shape = 'u32[]', space=smem, size = 0x4, offset = 0x4, fixed_abs, tag = 'smem constant byte address 0x4 - core index']
  #allocation1 [shape = 'u32[144,128]{1,0:T(1,128)}', space=vmem, size = 0x12000, scoped, tag = 'internal scratch']
  %s0 = inlined_call_operand.vmem [shape: bf16[9,8,8], index: 0, kind: input, shape index: {}]
  %s1 = inlined_call_operand.vmem [shape: bf16[8,1920], index: 1, kind: input, shape index: {}]
  %s2 = inlined_call_operand.vmem [shape: f32[8,1], index: 2, kind: input, shape index: {}]
  %s3 = inlined_call_operand.vmem [shape: f32[8,1920], index: 3, kind: output, shape index: {}]
  %s4 = sld [smem:[#allocation0]]
  $region45: #{discriminator_r_forward.8} parent=0
    _
  %s6 = ssub.s32 1, %s4
  %s7 = scalar_select 0, %s6, %s4
  loop: start=0, step=1, limit=7
  $region2: #{discriminator_r_forward.8} parent=0 // loop_pre_header
    _
  $region3: #{discriminator_r_forward.8} parent=0 // loop_header
    %s9 = sphi 0, %s13
    %p10 = scmp.ge.s32.totalorder %s9, 7
    %s17 = sphi 0, %s17
    %s19 = sphi 0, %s17
    %s20 = sphi 0, %s19
    %s34 = sphi 0, %s20
    %s40 = sphi 0, %s42
    %s43 = sphi 0, %s40
    %s44 = sphi 0, %s43
    %s60 = sphi 0, %s44
    %s64 = sphi 0, %s64
    %s66 = sphi 0, %s64
    %s67 = sphi 0, %s66
    %s81 = sphi 0, %s67
    %s87 = sphi 0, %s89
    %s90 = sphi 0, %s87
    %s91 = sphi 0, %s90
    %s107 = sphi 0, %s91
  $region4: #{discriminator_r_forward.8} parent=0 // loop_header_branch
    %12 = sbr.rel (%p10) target = $region8
  $region5: #{discriminator_r_forward.8} parent=0 // loop_body
    %s14 = ssub.s32 %s9, 1
    %s15 = ssub.s32 %s9, 2
    %s16 = sadd.s32 %s9, 1
    %s18 = sadd.s32 %s17, 1
    %p21 = scmp.eq.s32.totalorder %s9, 4
    %p22 = scmp.ne.s32.totalorder %s17, %s19
    %p23 = scmp.eq.s32.totalorder %s9, 0
    %p24 = por %p22, %p23
    %p25 = scmp.ne.s32.totalorder %s17, %s19
    %p26 = scmp.eq.s32.totalorder %s14, 4
    %p27 = por %p25, %p26
    %p28 = scmp.ne.s32.totalorder %s19, %s20
    %p29 = scmp.eq.s32.totalorder %s14, 0
    %p30 = por %p28, %p29
    %p31 = scmp.ne.s32.totalorder %s19, %s20
    %p32 = scmp.eq.s32.totalorder %s15, 4
    %p33 = por %p31, %p32
    %p35 = scmp.ne.s32.totalorder %s20, %s34
    %p36 = scmp.eq.s32.totalorder %s15, 0
    %p37 = por %p35, %p36
    %s38 = ssub.s32 %s9, %s16
    %p39 = scmp.eq.s32.totalorder %s38, 0
    %s41 = sadd.s32 %s40, 1
    %s42 = scalar_select %p39, %s40, %s41
    %p45 = pneg %p39
    %p46 = scmp.eq.s32.totalorder %s9, 4
    %p47 = por %p45, %p46
    %p48 = scmp.ne.s32.totalorder %s40, %s43
    %p49 = scmp.eq.s32.totalorder %s9, 0
    %p50 = por %p48, %p49
    %p51 = scmp.ne.s32.totalorder %s40, %s43
    %p52 = scmp.eq.s32.totalorder %s14, 4
    %p53 = por %p51, %p52
    %p54 = scmp.ne.s32.totalorder %s43, %s44
    %p55 = scmp.eq.s32.totalorder %s14, 0
    %p56 = por %p54, %p55
    %p57 = scmp.ne.s32.totalorder %s43, %s44
    %p58 = scmp.eq.s32.totalorder %s15, 4
    %p59 = por %p57, %p58
    %p61 = scmp.ne.s32.totalorder %s44, %s60
    %p62 = scmp.eq.s32.totalorder %s15, 0
    %p63 = por %p61, %p62
    %s65 = sadd.s32 %s64, 1
    %p68 = scmp.eq.s32.totalorder %s9, 4
    %p69 = scmp.ne.s32.totalorder %s64, %s66
    %p70 = scmp.eq.s32.totalorder %s9, 0
    %p71 = por %p69, %p70
    %p72 = scmp.ne.s32.totalorder %s64, %s66
    %p73 = scmp.eq.s32.totalorder %s14, 4
    %p74 = por %p72, %p73
    %p75 = scmp.ne.s32.totalorder %s66, %s67
    %p76 = scmp.eq.s32.totalorder %s14, 0
    %p77 = por %p75, %p76
    %p78 = scmp.ne.s32.totalorder %s66, %s67
    %p79 = scmp.eq.s32.totalorder %s15, 4
    %p80 = por %p78, %p79
    %p82 = scmp.ne.s32.totalorder %s67, %s81
    %p83 = scmp.eq.s32.totalorder %s15, 0
    %p84 = por %p82, %p83
    %s85 = ssub.s32 %s9, %s16
    %p86 = scmp.eq.s32.totalorder %s85, 0
    %s88 = sadd.s32 %s87, 1
    %s89 = scalar_select %p86, %s87, %s88
    %p92 = pneg %p86
    %p93 = scmp.eq.s32.totalorder %s9, 4
    %p94 = por %p92, %p93
    %p95 = scmp.ne.s32.totalorder %s87, %s90
    %p96 = scmp.eq.s32.totalorder %s9, 0
    %p97 = por %p95, %p96
    %p98 = scmp.ne.s32.totalorder %s87, %s90
    %p99 = scmp.eq.s32.totalorder %s14, 4
    %p100 = por %p98, %p99
    %p101 = scmp.ne.s32.totalorder %s90, %s91
    %p102 = scmp.eq.s32.totalorder %s14, 0
    %p103 = por %p101, %p102
    %p104 = scmp.ne.s32.totalorder %s90, %s91
    %p105 = scmp.eq.s32.totalorder %s15, 4
    %p106 = por %p104, %p105
    %p108 = scmp.ne.s32.totalorder %s91, %s107
    %p109 = scmp.eq.s32.totalorder %s15, 0
    %p110 = por %p108, %p109
    %p111 = scmp.le.s32.totalorder 1, %s9
    %p112 = scmp.lt.s32.totalorder %s9, 6
    %p113 = pnand %p111, %p112
    %p114 = pneg %p113
    // Predicated region
    $region9: #{discriminator_r_forward.8} parent=5 // pred_check
      _
    $region10: #{discriminator_r_forward.8} parent=5 // pred_check_branch
      %116 = sbr.rel (%p113) target = $region12
    $region11: #{discriminator_r_forward.8} parent=5 // pred_region
      %s117 = ssub.s32 %s9, 1
      // Predicated region
      $region13: #{discriminator_r_forward.8} parent=11 // pred_check
        %p118 = pneg %p30
      $region14: #{discriminator_r_forward.8} parent=11 // pred_check_branch
        %120 = sbr.rel (%p118) target = $region16
      $region15: #{discriminator_r_forward.8} parent=11 // pred_region
        _
      $region16: #{discriminator_r_forward.8} parent=11 // pred_fallthru
        _
      // Predicated region
      $region17: #{discriminator_r_forward.8} parent=11 // pred_check
        %p121 = pneg %p77
      $region18: #{discriminator_r_forward.8} parent=11 // pred_check_branch
        %123 = sbr.rel (%p121) target = $region20
      $region19: #{discriminator_r_forward.8} parent=11 // pred_region
        _
      $region20: #{discriminator_r_forward.8} parent=11 // pred_fallthru
        _
    $region12: #{discriminator_r_forward.8} parent=5 // pred_fallthru
      _
    %p124 = scmp.lt.s32.totalorder %s9, 5
    // Predicated region
    $region21: #{discriminator_r_forward.8} parent=5 // pred_check
      %p125 = pneg %p124
    $region22: #{discriminator_r_forward.8} parent=5 // pred_check_branch
      %127 = sbr.rel (%p125) target = $region24
    $region23: #{discriminator_r_forward.8} parent=5 // pred_region
      // Predicated region
      $region25: #{discriminator_r_forward.8} parent=23 // pred_check
        %p128 = pneg %p50
      $region26: #{discriminator_r_forward.8} parent=23 // pred_check_branch
        %130 = sbr.rel (%p128) target = $region28
      $region27: #{discriminator_r_forward.8} parent=23 // pred_region
        %s131 = smul.u32 3, %s9
        %p132 = scmp.lt.s32.totalorder %s131, 14
        %s133 = scalar_select %p132, %s131, 14
        %s134 = smul.addr %s133, 4
        %s135 = scalar_lea.vmem %s1, %s134
        %s136 = smul.u32 3, %s9
      $region28: #{discriminator_r_forward.8} parent=23 // pred_fallthru
        _
    $region24: #{discriminator_r_forward.8} parent=5 // pred_fallthru
      _
    %p137 = scmp.le.s32.totalorder 1, %s9
    %p138 = scmp.lt.s32.totalorder %s9, 6
    %p139 = pnand %p137, %p138
    %p140 = pneg %p139
    // Predicated region
    $region29: #{discriminator_r_forward.8} parent=5 // pred_check
      _
    $region30: #{discriminator_r_forward.8} parent=5 // pred_check_branch
      %142 = sbr.rel (%p139) target = $region32
    $region31: #{discriminator_r_forward.8} parent=5 // pred_region
      %s143 = ssub.s32 %s9, 1
      %p144 = pneg %p30
      %p145 = pneg %p27
      %s146 = smul.u32 3, %s14
      %p147 = scmp.lt.s32.totalorder %s146, 14
      %s148 = scalar_select %p147, %s146, 14
      %s149 = smul.addr %s148, 4
      %s150 = scalar_lea.vmem %s1, %s149
      %p151 = pneg %p56
      %p152 = pneg %p53
      %p153 = pneg %p77
      %p154 = pneg %p74
      %p155 = pneg %p103
      %p156 = pneg %p100
      %s157 = smul.u32 3, %s14
      %p158 = scmp.lt.s32.totalorder %s157, 14
      %s159 = scalar_select %p158, %s157, 14
      %s160 = smul.addr %s159, 8
      %s161 = scalar_lea.vmem %s3, %s160
      %s162 = smul.u32 3, %s14
      %p163 = scmp.lt.s32.totalorder %s162, 14
      %s164 = scalar_select %p163, %s162, 14
      %s165 = smul.addr %s164, 4
      %s166 = scalar_lea.vmem %s1, %s165
      %s167 = smul.u32 3, %s14
      %s168 = smul.u32 3, %s14
      %p169 = scmp.lt.s32.totalorder %s168, 14
      %s170 = scalar_select %p169, %s168, 14
      %s171 = smul.addr %s170, 8
      %s172 = scalar_lea.vmem %s3, %s171
      %s173 = smul.u32 3, %s14
      %v175 = vld [vmem:[%s0] sm:$0xf]
      %v176 = vld [vmem:[%s166] sm:$0xff]
      %v177 = vld [vmem:[%s166 + $0x8] sm:$0xf]
      %v180 = vunpack.c.l.b16 %v176
      %v181 = vunpack.c.h.b16 %v176
      %v182 = vunpack.c.l.b16 %v177
      %v183 = vpack.c.b16 %v180, %v180
      %v184 = vpack.c.b16 %v181, %v181
      %v185 = vpack.c.b16 %v182, %v182
      %vm186 = vcmask 64512
      %v188 = vsel %vm186, %v175, 0
      %vm190 = vcmask 1043456
      %v192 = vsel %vm190, %v183, 0
      %v195 = vsel %vm190, %v184, 0
      %v198 = vsel %vm190, %v185, 0
      %200 = vmatprep.subr.bf16.mxu0 %v195
      %201 = vmatpush1.bf16.msra.mxu0 %v192
      %202 = vmatprep.subr.bf16.mxu0 0
      %203 = vmatpush1.bf16.msra.mxu0 0
      %204 = vmatprep.subr.bf16.mxu0 0
      %205 = vmatpush1.bf16.msra.mxu0 0
      %206 = vmatprep.subr.bf16.mxu0 0
      %207 = vmatpush1.bf16.msra.mxu0 0
      %208 = vmatprep.subr.bf16.mxu0 0
      %209 = vmatpush1.bf16.msra.mxu0 0
      %210 = vmatprep.subr.bf16.mxu0 0
      %211 = vmatpush1.bf16.msra.mxu0 0
      %212 = vmatprep.subr.bf16.mxu0 0
      %213 = vmatpush1.bf16.msra.mxu0 0
      %214 = vmatprep.subr.bf16.mxu0 0
      %215 = vmatpush1.bf16.msra.mxu0 0
      %216 = vmatprep.subr.bf16.mxu0 0
      %217 = vmatpush1.bf16.msra.mxu0 0
      %218 = vmatprep.subr.bf16.mxu0 0
      %219 = vmatpush1.bf16.msra.mxu0 0
      %220 = vmatprep.subr.bf16.mxu0 0
      %221 = vmatpush1.bf16.msra.mxu0 0
      %222 = vmatprep.subr.bf16.mxu0 0
      %223 = vmatpush1.bf16.msra.mxu0 0
      %224 = vmatprep.subr.bf16.mxu0 0
      %225 = vmatpush1.bf16.msra.mxu0 0
      %226 = vmatprep.subr.bf16.mxu0 0
      %227 = vmatpush1.bf16.msra.mxu0 0
      %228 = vmatprep.subr.bf16.mxu0 0
      %229 = vmatpush1.bf16.msra.mxu0 0
      %230 = vmatprep.subr.bf16.mxu0 0
      %231 = vmatpush1.bf16.msra.mxu0 0
      %232 = vmatprep.mubr.bf16.mxu0 0
      %233 = vmatmul.mubr.bf16.gmra.mrb[0].mxu0 %v188
      %v234 = vpop.f32.mrb[0].mxu0
      %v235 = vadd.f32 0.0, %v234
      %v236 = vpop.f32.mrb[0].mxu0
      %v237 = vadd.f32 0.0, %v236
      %v238 = vpop.f32.mrb[0].mxu0
      %v239 = vpop.f32.mrb[0].mxu0
      %240 = vdwg.mxu0
      %241 = vmatprep.subr.bf16.mxu0 0
      %242 = vmatpush1.bf16.msra.mxu0 %v198
      %243 = vmatprep.subr.bf16.mxu0 0
      %244 = vmatpush1.bf16.msra.mxu0 0
      %245 = vmatprep.subr.bf16.mxu0 0
      %246 = vmatpush1.bf16.msra.mxu0 0
      %247 = vmatprep.subr.bf16.mxu0 0
      %248 = vmatpush1.bf16.msra.mxu0 0
      %249 = vmatprep.subr.bf16.mxu0 0
      %250 = vmatpush1.bf16.msra.mxu0 0
      %251 = vmatprep.subr.bf16.mxu0 0
      %252 = vmatpush1.bf16.msra.mxu0 0
      %253 = vmatprep.subr.bf16.mxu0 0
      %254 = vmatpush1.bf16.msra.mxu0 0
      %255 = vmatprep.subr.bf16.mxu0 0
      %256 = vmatpush1.bf16.msra.mxu0 0
      %257 = vmatprep.subr.bf16.mxu0 0
      %258 = vmatpush1.bf16.msra.mxu0 0
      %259 = vmatprep.subr.bf16.mxu0 0
      %260 = vmatpush1.bf16.msra.mxu0 0
      %261 = vmatprep.subr.bf16.mxu0 0
      %262 = vmatpush1.bf16.msra.mxu0 0
      %263 = vmatprep.subr.bf16.mxu0 0
      %264 = vmatpush1.bf16.msra.mxu0 0
      %265 = vmatprep.subr.bf16.mxu0 0
      %266 = vmatpush1.bf16.msra.mxu0 0
      %267 = vmatprep.subr.bf16.mxu0 0
      %268 = vmatpush1.bf16.msra.mxu0 0
      %269 = vmatprep.subr.bf16.mxu0 0
      %270 = vmatpush1.bf16.msra.mxu0 0
      %271 = vmatprep.subr.bf16.mxu0 0
      %272 = vmatpush1.bf16.msra.mxu0 0
      %273 = vmatprep.mubr.bf16.mxu0 0
      %274 = vmatmul.mubr.bf16.gmra.mrb[0].mxu0 %v188
      %v275 = vpop.f32.mrb[0].mxu0
      %v276 = vadd.f32 0.0, %v275
      %v277 = vpop.f32.mrb[0].mxu0
      %v278 = vpop.f32.mrb[0].mxu0
      %v279 = vpop.f32.mrb[0].mxu0
      %280 = vdwg.mxu0
      %281 = vst [vmem:[%s172] sm:$0xff] %v235
      %282 = vst [vmem:[%s172 + $0x8] sm:$0xff] %v237
      %283 = vst [vmem:[%s172 + $0x10] sm:$0xff] %v276
      %s284 = scalar_lea.vmem %s0, 4
      %v285 = vld [vmem:[%s284] sm:$0xf]
      %v286 = vld [vmem:[%s166] sm:$0xff]
      %v287 = vld [vmem:[%s166 + $0x8] sm:$0xf]
      %v290 = vunpack.c.l.b16 %v286
      %v291 = vunpack.c.h.b16 %v286
      %v292 = vunpack.c.l.b16 %v287
      %v293 = vpack.c.b16 %v290, %v290
      %v294 = vpack.c.b16 %v291, %v291
      %v295 = vpack.c.b16 %v292, %v292
      %v297 = vsel %vm186, %v285, 0
      %v300 = vsel %vm190, %v293, 0
      %v303 = vsel %vm190, %v294, 0
      %v306 = vsel %vm190, %v295, 0
      %308 = vmatprep.subr.bf16.mxu0 %v303
      %309 = vmatpush1.bf16.msra.mxu0 %v300
      %310 = vmatprep.subr.bf16.mxu0 0
      %311 = vmatpush1.bf16.msra.mxu0 0
      %312 = vmatprep.subr.bf16.mxu0 0
      %313 = vmatpush1.bf16.msra.mxu0 0
      %314 = vmatprep.subr.bf16.mxu0 0
      %315 = vmatpush1.bf16.msra.mxu0 0
      %316 = vmatprep.subr.bf16.mxu0 0
      %317 = vmatpush1.bf16.msra.mxu0 0
      %318 = vmatprep.subr.bf16.mxu0 0
      %319 = vmatpush1.bf16.msra.mxu0 0
      %320 = vmatprep.subr.bf16.mxu0 0
      %321 = vmatpush1.bf16.msra.mxu0 0
      %322 = vmatprep.subr.bf16.mxu0 0
      %323 = vmatpush1.bf16.msra.mxu0 0
      %324 = vmatprep.subr.bf16.mxu0 0
      %325 = vmatpush1.bf16.msra.mxu0 0
      %326 = vmatprep.subr.bf16.mxu0 0
      %327 = vmatpush1.bf16.msra.mxu0 0
      %328 = vmatprep.subr.bf16.mxu0 0
      %329 = vmatpush1.bf16.msra.mxu0 0
      %330 = vmatprep.subr.bf16.mxu0 0
      %331 = vmatpush1.bf16.msra.mxu0 0
      %332 = vmatprep.subr.bf16.mxu0 0
      %333 = vmatpush1.bf16.msra.mxu0 0
      %334 = vmatprep.subr.bf16.mxu0 0
      %335 = vmatpush1.bf16.msra.mxu0 0
      %336 = vmatprep.subr.bf16.mxu0 0
      %337 = vmatpush1.bf16.msra.mxu0 0
      %338 = vmatprep.subr.bf16.mxu0 0
      %339 = vmatpush1.bf16.msra.mxu0 0
      %340 = vmatprep.mubr.bf16.mxu0 0
      %341 = vmatmul.mubr.bf16.gmra.mrb[0].mxu0 %v297
      %v342 = vpop.f32.mrb[0].mxu0
      %v343 = vadd.f32 0.0, %v342
      %v344 = vpop.f32.mrb[0].mxu0
      %v345 = vadd.f32 0.0, %v344
      %v346 = vpop.f32.mrb[0].mxu0
      %v347 = vpop.f32.mrb[0].mxu0
      %348 = vdwg.mxu0
      %349 = vmatprep.subr.bf16.mxu0 0
      %350 = vmatpush1.bf16.msra.mxu0 %v306
      %351 = vmatprep.subr.bf16.mxu0 0
      %352 = vmatpush1.bf16.msra.mxu0 0
      %353 = vmatprep.subr.bf16.mxu0 0
      %354 = vmatpush1.bf16.msra.mxu0 0
      %355 = vmatprep.subr.bf16.mxu0 0
      %356 = vmatpush1.bf16.msra.mxu0 0
      %357 = vmatprep.subr.bf16.mxu0 0
      %358 = vmatpush1.bf16.msra.mxu0 0
      %359 = vmatprep.subr.bf16.mxu0 0
      %360 = vmatpush1.bf16.msra.mxu0 0
      %361 = vmatprep.subr.bf16.mxu0 0
      %362 = vmatpush1.bf16.msra.mxu0 0
      %363 = vmatprep.subr.bf16.mxu0 0
      %364 = vmatpush1.bf16.msra.mxu0 0
      %365 = vmatprep.subr.bf16.mxu0 0
      %366 = vmatpush1.bf16.msra.mxu0 0
      %367 = vmatprep.subr.bf16.mxu0 0
      %368 = vmatpush1.bf16.msra.mxu0 0
      %369 = vmatprep.subr.bf16.mxu0 0
      %370 = vmatpush1.bf16.msra.mxu0 0
      %371 = vmatprep.subr.bf16.mxu0 0
      %372 = vmatpush1.bf16.msra.mxu0 0
      %373 = vmatprep.subr.bf16.mxu0 0
      %374 = vmatpush1.bf16.msra.mxu0 0
      %375 = vmatprep.subr.bf16.mxu0 0
      %376 = vmatpush1.bf16.msra.mxu0 0
      %377 = vmatprep.subr.bf16.mxu0 0
      %378 = vmatpush1.bf16.msra.mxu0 0
      %379 = vmatprep.subr.bf16.mxu0 0
      %380 = vmatpush1.bf16.msra.mxu0 0
      %381 = vmatprep.mubr.bf16.mxu0 0
      %382 = vmatmul.mubr.bf16.gmra.mrb[0].mxu0 %v297
      %v383 = vpop.f32.mrb[0].mxu0
      %v384 = vadd.f32 0.0, %v383
      %v385 = vpop.f32.mrb[0].mxu0
      %v386 = vpop.f32.mrb[0].mxu0
      %v387 = vpop.f32.mrb[0].mxu0
      %388 = vdwg.mxu0
      %v389 = vld [vmem:[%s172] sm:$0xff]
      %v390 = vld [vmem:[%s172 + $0x8] sm:$0xff]
      %v391 = vld [vmem:[%s172 + $0x10] sm:$0xff]
      %392 = vrot.lane.b32.xlu0 %v343, 127
      %v393 = vpop.permute.xlu0 %392
      %394 = vrot.lane.b32.xlu0 %v345, 127
      %v395 = vpop.permute.xlu0 %394
      %396 = vrot.lane.b32.xlu0 %v384, 127
      %v397 = vpop.permute.xlu0 %396
      %v398 = vlaneseq
      %v399 = vand.u32 %v398, 127
      %vm400 = vcmp.lt.s32.totalorder %v399, 127
      %v401 = vsel %vm400, %v395, %v397
      %v402 = vsel %vm400, %v393, %v395
      %v403 = vsel %vm400, %v397, %v393
      %v404 = vadd.f32 %v389, %v402
      %v405 = vadd.f32 %v390, %v401
      %v406 = vadd.f32 %v391, %v403
      %407 = vst [vmem:[%s172] sm:$0xff] %v404
      %408 = vst [vmem:[%s172 + $0x8] sm:$0xff] %v405
      %409 = vst [vmem:[%s172 + $0x10] sm:$0xff] %v406
      %s410 = scalar_lea.vmem %s0, 8
      %v411 = vld [vmem:[%s410] sm:$0xf]
      %v412 = vld [vmem:[%s166] sm:$0xff]
      %v413 = vld [vmem:[%s166 + $0x8] sm:$0xf]
      %v416 = vunpack.c.l.b16 %v412
      %v417 = vunpack.c.h.b16 %v412
      %v418 = vunpack.c.l.b16 %v413
      %v419 = vpack.c.b16 %v416, %v416
      %v420 = vpack.c.b16 %v417, %v417
      %v421 = vpack.c.b16 %v418, %v418
      %v423 = vsel %vm186, %v411, 0
      %v426 = vsel %vm190, %v419, 0
      %v429 = vsel %vm190, %v420, 0
      %v432 = vsel %vm190, %v421, 0
      %434 = vmatprep.subr.bf16.mxu0 %v429
      %435 = vmatpush1.bf16.msra.mxu0 %v426
      %436 = vmatprep.subr.bf16.mxu0 0
      %437 = vmatpush1.bf16.msra.mxu0 0
      %438 = vmatprep.subr.bf16.mxu0 0
      %439 = vmatpush1.bf16.msra.mxu0 0
      %440 = vmatprep.subr.bf16.mxu0 0
      %441 = vmatpush1.bf16.msra.mxu0 0
      %442 = vmatprep.subr.bf16.mxu0 0
      %443 = vmatpush1.bf16.msra.mxu0 0
      %444 = vmatprep.subr.bf16.mxu0 0
      %445 = vmatpush1.bf16.msra.mxu0 0
      %446 = vmatprep.subr.bf16.mxu0 0
      %447 = vmatpush1.bf16.msra.mxu0 0
      %448 = vmatprep.subr.bf16.mxu0 0
      %449 = vmatpush1.bf16.msra.mxu0 0
      %450 = vmatprep.subr.bf16.mxu0 0
      %451 = vmatpush1.bf16.msra.mxu0 0
      %452 = vmatprep.subr.bf16.mxu0 0
      %453 = vmatpush1.bf16.msra.mxu0 0
      %454 = vmatprep.subr.bf16.mxu0 0
      %455 = vmatpush1.bf16.msra.mxu0 0
      %456 = vmatprep.subr.bf16.mxu0 0
      %457 = vmatpush1.bf16.msra.mxu0 0
      %458 = vmatprep.subr.bf16.mxu0 0
      %459 = vmatpush1.bf16.msra.mxu0 0
      %460 = vmatprep.subr.bf16.mxu0 0
      %461 = vmatpush1.bf16.msra.mxu0 0
      %462 = vmatprep.subr.bf16.mxu0 0
      %463 = vmatpush1.bf16.msra.mxu0 0
      %464 = vmatprep.subr.bf16.mxu0 0
      %465 = vmatpush1.bf16.msra.mxu0 0
      %466 = vmatprep.mubr.bf16.mxu0 0
      %467 = vmatmul.mubr.bf16.gmra.mrb[0].mxu0 %v423
      %v468 = vpop.f32.mrb[0].mxu0
      %v469 = vadd.f32 0.0, %v468
      %v470 = vpop.f32.mrb[0].mxu0
      %v471 = vadd.f32 0.0, %v470
      %v472 = vpop.f32.mrb[0].mxu0
      %v473 = vpop.f32.mrb[0].mxu0
      %474 = vdwg.mxu0
      %475 = vmatprep.subr.bf16.mxu0 0
      %476 = vmatpush1.bf16.msra.mxu0 %v432
      %477 = vmatprep.subr.bf16.mxu0 0
      %478 = vmatpush1.bf16.msra.mxu0 0
      %479 = vmatprep.subr.bf16.mxu0 0
      %480 = vmatpush1.bf16.msra.mxu0 0
      %481 = vmatprep.subr.bf16.mxu0 0
      %482 = vmatpush1.bf16.msra.mxu0 0
      %483 = vmatprep.subr.bf16.mxu0 0
      %484 = vmatpush1.bf16.msra.mxu0 0
      %485 = vmatprep.subr.bf16.mxu0 0
      %486 = vmatpush1.bf16.msra.mxu0 0
      %487 = vmatprep.subr.bf16.mxu0 0
      %488 = vmatpush1.bf16.msra.mxu0 0
      %489 = vmatprep.subr.bf16.mxu0 0
      %490 = vmatpush1.bf16.msra.mxu0 0
      %491 = vmatprep.subr.bf16.mxu0 0
      %492 = vmatpush1.bf16.msra.mxu0 0
      %493 = vmatprep.subr.bf16.mxu0 0
      %494 = vmatpush1.bf16.msra.mxu0 0
      %495 = vmatprep.subr.bf16.mxu0 0
      %496 = vmatpush1.bf16.msra.mxu0 0
      %497 = vmatprep.subr.bf16.mxu0 0
      %498 = vmatpush1.bf16.msra.mxu0 0
      %499 = vmatprep.subr.bf16.mxu0 0
      %500 = vmatpush1.bf16.msra.mxu0 0
      %501 = vmatprep.subr.bf16.mxu0 0
      %502 = vmatpush1.bf16.msra.mxu0 0
      %503 = vmatprep.subr.bf16.mxu0 0
      %504 = vmatpush1.bf16.msra.mxu0 0
      %505 = vmatprep.subr.bf16.mxu0 0
      %506 = vmatpush1.bf16.msra.mxu0 0
      %507 = vmatprep.mubr.bf16.mxu0 0
      %508 = vmatmul.mubr.bf16.gmra.mrb[0].mxu0 %v423
      %v509 = vpop.f32.mrb[0].mxu0
      %v510 = vadd.f32 0.0, %v509
      %v511 = vpop.f32.mrb[0].mxu0
      %v512 = vpop.f32.mrb[0].mxu0
      %v513 = vpop.f32.mrb[0].mxu0
      %514 = vdwg.mxu0
      %v515 = vld [vmem:[%s172] sm:$0xff]
      %v516 = vld [vmem:[%s172 + $0x8] sm:$0xff]
      %v517 = vld [vmem:[%s172 + $0x10] sm:$0xff]
      %518 = vrot.lane.b32.xlu0 %v469, 126
      %v519 = vpop.permute.xlu0 %518
      %520 = vrot.lane.b32.xlu0 %v471, 126
      %v521 = vpop.permute.xlu0 %520
      %522 = vrot.lane.b32.xlu0 %v510, 126
      %v523 = vpop.permute.xlu0 %522
      %vm524 = vcmp.lt.s32.totalorder %v399, 126
      %v525 = vsel %vm524, %v521, %v523
      %v526 = vsel %vm524, %v519, %v521
      %v527 = vsel %vm524, %v523, %v519
      %v528 = vadd.f32 %v515, %v526
      %v529 = vadd.f32 %v516, %v525
      %v530 = vadd.f32 %v517, %v527
      %531 = vst [vmem:[%s172] sm:$0xff] %v528
      %532 = vst [vmem:[%s172 + $0x8] sm:$0xff] %v529
      %533 = vst [vmem:[%s172 + $0x10] sm:$0xff] %v530
      %s534 = scalar_lea.vmem %s0, 12
      %v535 = vld [vmem:[%s534] sm:$0xf]
      %v536 = vld [vmem:[%s166] sm:$0xff]
      %v537 = vld [vmem:[%s166 + $0x8] sm:$0xf]
      %v540 = vunpack.c.l.b16 %v536
      %v541 = vunpack.c.h.b16 %v536
      %v542 = vunpack.c.l.b16 %v537
      %v543 = vpack.c.b16 %v540, %v540
      %v544 = vpack.c.b16 %v541, %v541
      %v545 = vpack.c.b16 %v542, %v542
      %v547 = vsel %vm186, %v535, 0
      %v550 = vsel %vm190, %v543, 0
      %v553 = vsel %vm190, %v544, 0
      %v556 = vsel %vm190, %v545, 0
      %558 = vmatprep.subr.bf16.mxu0 %v553
      %559 = vmatpush1.bf16.msra.mxu0 %v550
      %560 = vmatprep.subr.bf16.mxu0 0
      %561 = vmatpush1.bf16.msra.mxu0 0
      %562 = vmatprep.subr.bf16.mxu0 0
      %563 = vmatpush1.bf16.msra.mxu0 0
      %564 = vmatprep.subr.bf16.mxu0 0
      %565 = vmatpush1.bf16.msra.mxu0 0
      %566 = vmatprep.subr.bf16.mxu0 0
      %567 = vmatpush1.bf16.msra.mxu0 0
      %568 = vmatprep.subr.bf16.mxu0 0
      %569 = vmatpush1.bf16.msra.mxu0 0
      %570 = vmatprep.subr.bf16.mxu0 0
      %571 = vmatpush1.bf16.msra.mxu0 0
      %572 = vmatprep.subr.bf16.mxu0 0
      %573 = vmatpush1.bf16.msra.mxu0 0
      %574 = vmatprep.subr.bf16.mxu0 0
      %575 = vmatpush1.bf16.msra.mxu0 0
      %576 = vmatprep.subr.bf16.mxu0 0
      %577 = vmatpush1.bf16.msra.mxu0 0
      %578 = vmatprep.subr.bf16.mxu0 0
      %579 = vmatpush1.bf16.msra.mxu0 0
      %580 = vmatprep.subr.bf16.mxu0 0
      %581 = vmatpush1.bf16.msra.mxu0 0
      %582 = vmatprep.subr.bf16.mxu0 0
      %583 = vmatpush1.bf16.msra.mxu0 0
      %584 = vmatprep.subr.bf16.mxu0 0
      %585 = vmatpush1.bf16.msra.mxu0 0
      %586 = vmatprep.subr.bf16.mxu0 0
      %587 = vmatpush1.bf16.msra.mxu0 0
      %588 = vmatprep.subr.bf16.mxu0 0
      %589 = vmatpush1.bf16.msra.mxu0 0
      %590 = vmatprep.mubr.bf16.mxu0 0
      %591 = vmatmul.mubr.bf16.gmra.mrb[0].mxu0 %v547
      %v592 = vpop.f32.mrb[0].mxu0
      %v593 = vadd.f32 0.0, %v592
      %v594 = vpop.f32.mrb[0].mxu0
      %v595 = vadd.f32 0.0, %v594
      %v596 = vpop.f32.mrb[0].mxu0
      %v597 = vpop.f32.mrb[0].mxu0
      %598 = vdwg.mxu0
      %599 = vmatprep.subr.bf16.mxu0 0
      %600 = vmatpush1.bf16.msra.mxu0 %v556
      %601 = vmatprep.subr.bf16.mxu0 0
      %602 = vmatpush1.bf16.msra.mxu0 0
      %603 = vmatprep.subr.bf16.mxu0 0
      %604 = vmatpush1.bf16.msra.mxu0 0
      %605 = vmatprep.subr.bf16.mxu0 0
      %606 = vmatpush1.bf16.msra.mxu0 0
      %607 = vmatprep.subr.bf16.mxu0 0
      %608 = vmatpush1.bf16.msra.mxu0 0
      %609 = vmatprep.subr.bf16.mxu0 0
      %610 = vmatpush1.bf16.msra.mxu0 0
      %611 = vmatprep.subr.bf16.mxu0 0
      %612 = vmatpush1.bf16.msra.mxu0 0
      %613 = vmatprep.subr.bf16.mxu0 0
      %614 = vmatpush1.bf16.msra.mxu0 0
      %615 = vmatprep.subr.bf16.mxu0 0
      %616 = vmatpush1.bf16.msra.mxu0 0
      %617 = vmatprep.subr.bf16.mxu0 0
      %618 = vmatpush1.bf16.msra.mxu0 0
      %619 = vmatprep.subr.bf16.mxu0 0
      %620 = vmatpush1.bf16.msra.mxu0 0
      %621 = vmatprep.subr.bf16.mxu0 0
      %622 = vmatpush1.bf16.msra.mxu0 0
      %623 = vmatprep.subr.bf16.mxu0 0
      %624 = vmatpush1.bf16.msra.mxu0 0
      %625 = vmatprep.subr.bf16.mxu0 0
      %626 = vmatpush1.bf16.msra.mxu0 0
      %627 = vmatprep.subr.bf16.mxu0 0
      %628 = vmatpush1.bf16.msra.mxu0 0
      %629 = vmatprep.subr.bf16.mxu0 0
      %630 = vmatpush1.bf16.msra.mxu0 0
      %631 = vmatprep.mubr.bf16.mxu0 0
      %632 = vmatmul.mubr.bf16.gmra.mrb[0].mxu0 %v547
      %v633 = vpop.f32.mrb[0].mxu0
      %v634 = vadd.f32 0.0, %v633
      %v635 = vpop.f32.mrb[0].mxu0
      %v636 = vpop.f32.mrb[0].mxu0
      %v637 = vpop.f32.mrb[0].mxu0
      %638 = vdwg.mxu0
      %v639 = vld [vmem:[%s172] sm:$0xff]
      %v640 = vld [vmem:[%s172 + $0x8] sm:$0xff]
      %v641 = vld [vmem:[%s172 + $0x10] sm:$0xff]
      %642 = vrot.lane.b32.xlu0 %v593, 125
      %v643 = vpop.permute.xlu0 %642
      %644 = vrot.lane.b32.xlu0 %v595, 125
      %v645 = vpop.permute.xlu0 %644
      %646 = vrot.lane.b32.xlu0 %v634, 125
      %v647 = vpop.permute.xlu0 %646
      %vm648 = vcmp.lt.s32.totalorder %v399, 125
      %v649 = vsel %vm648, %v645, %v647
      %v650 = vsel %vm648, %v643, %v645
      %v651 = vsel %vm648, %v647, %v643
      %v652 = vadd.f32 %v639, %v650
      %v653 = vadd.f32 %v640, %v649
      %v654 = vadd.f32 %v641, %v651
      %655 = vst [vmem:[%s172] sm:$0xff] %v652
      %656 = vst [vmem:[%s172 + $0x8] sm:$0xff] %v653
      %657 = vst [vmem:[%s172 + $0x10] sm:$0xff] %v654
      %s658 = scalar_lea.vmem %s0, 16
      %v659 = vld [vmem:[%s658] sm:$0xf]
      %v660 = vld [vmem:[%s166] sm:$0xff]
      %v661 = vld [vmem:[%s166 + $0x8] sm:$0xf]
      %v664 = vunpack.c.l.b16 %v660
      %v665 = vunpack.c.h.b16 %v660
      %v666 = vunpack.c.l.b16 %v661
      %v667 = vpack.c.b16 %v664, %v664
      %v668 = vpack.c.b16 %v665, %v665
      %v669 = vpack.c.b16 %v666, %v666
      %v671 = vsel %vm186, %v659, 0
      %v674 = vsel %vm190, %v667, 0
      %v677 = vsel %vm190, %v668, 0
      %v680 = vsel %vm190, %v669, 0
      %682 = vmatprep.subr.bf16.mxu0 %v677
      %683 = vmatpush1.bf16.msra.mxu0 %v674
      %684 = vmatprep.subr.bf16.mxu0 0
      %685 = vmatpush1.bf16.msra.mxu0 0
      %686 = vmatprep.subr.bf16.mxu0 0
      %687 = vmatpush1.bf16.msra.mxu0 0
      %688 = vmatprep.subr.bf16.mxu0 0
      %689 = vmatpush1.bf16.msra.mxu0 0
      %690 = vmatprep.subr.bf16.mxu0 0
      %691 = vmatpush1.bf16.msra.mxu0 0
      %692 = vmatprep.subr.bf16.mxu0 0
      %693 = vmatpush1.bf16.msra.mxu0 0
      %694 = vmatprep.subr.bf16.mxu0 0
      %695 = vmatpush1.bf16.msra.mxu0 0
      %696 = vmatprep.subr.bf16.mxu0 0
      %697 = vmatpush1.bf16.msra.mxu0 0
      %698 = vmatprep.subr.bf16.mxu0 0
      %699 = vmatpush1.bf16.msra.mxu0 0
      %700 = vmatprep.subr.bf16.mxu0 0
      %701 = vmatpush1.bf16.msra.mxu0 0
      %702 = vmatprep.subr.bf16.mxu0 0
      %703 = vmatpush1.bf16.msra.mxu0 0
      %704 = vmatprep.subr.bf16.mxu0 0
      %705 = vmatpush1.bf16.msra.mxu0 0
      %706 = vmatprep.subr.bf16.mxu0 0
      %707 = vmatpush1.bf16.msra.mxu0 0
      %708 = vmatprep.subr.bf16.mxu0 0
      %709 = vmatpush1.bf16.msra.mxu0 0
      %710 = vmatprep.subr.bf16.mxu0 0
      %711 = vmatpush1.bf16.msra.mxu0 0
      %712 = vmatprep.subr.bf16.mxu0 0
      %713 = vmatpush1.bf16.msra.mxu0 0
      %714 = vmatprep.mubr.bf16.mxu0 0
      %715 = vmatmul.mubr.bf16.gmra.mrb[0].mxu0 %v671
      %v716 = vpop.f32.mrb[0].mxu0
      %v717 = vadd.f32 0.0, %v716
      %v718 = vpop.f32.mrb[0].mxu0
      %v719 = vadd.f32 0.0, %v718
      %v720 = vpop.f32.mrb[0].mxu0
      %v721 = vpop.f32.mrb[0].mxu0
      %722 = vdwg.mxu0
      %723 = vmatprep.subr.bf16.mxu0 0
      %724 = vmatpush1.bf16.msra.mxu0 %v680
      %725 = vmatprep.subr.bf16.mxu0 0
      %726 = vmatpush1.bf16.msra.mxu0 0
      %727 = vmatprep.subr.bf16.mxu0 0
      %728 = vmatpush1.bf16.msra.mxu0 0
      %729 = vmatprep.subr.bf16.mxu0 0
      %730 = vmatpush1.bf16.msra.mxu0 0
      %731 = vmatprep.subr.bf16.mxu0 0
      %732 = vmatpush1.bf16.msra.mxu0 0
      %733 = vmatprep.subr.bf16.mxu0 0
      %734 = vmatpush1.bf16.msra.mxu0 0
      %735 = vmatprep.subr.bf16.mxu0 0
      %736 = vmatpush1.bf16.msra.mxu0 0
      %737 = vmatprep.subr.bf16.mxu0 0
      %738 = vmatpush1.bf16.msra.mxu0 0
      %739 = vmatprep.subr.bf16.mxu0 0
      %740 = vmatpush1.bf16.msra.mxu0 0
      %741 = vmatprep.subr.bf16.mxu0 0
      %742 = vmatpush1.bf16.msra.mxu0 0
      %743 = vmatprep.subr.bf16.mxu0 0
      %744 = vmatpush1.bf16.msra.mxu0 0
      %745 = vmatprep.subr.bf16.mxu0 0
      %746 = vmatpush1.bf16.msra.mxu0 0
      %747 = vmatprep.subr.bf16.mxu0 0
      %748 = vmatpush1.bf16.msra.mxu0 0
      %749 = vmatprep.subr.bf16.mxu0 0
      %750 = vmatpush1.bf16.msra.mxu0 0
      %751 = vmatprep.subr.bf16.mxu0 0
      %752 = vmatpush1.bf16.msra.mxu0 0
      %753 = vmatprep.subr.bf16.mxu0 0
      %754 = vmatpush1.bf16.msra.mxu0 0
      %755 = vmatprep.mubr.bf16.mxu0 0
      %756 = vmatmul.mubr.bf16.gmra.mrb[0].mxu0 %v671
      %v757 = vpop.f32.mrb[0].mxu0
      %v758 = vadd.f32 0.0, %v757
      %v759 = vpop.f32.mrb[0].mxu0
      %v760 = vpop.f32.mrb[0].mxu0
      %v761 = vpop.f32.mrb[0].mxu0
      %762 = vdwg.mxu0
      %v763 = vld [vmem:[%s172] sm:$0xff]
      %v764 = vld [vmem:[%s172 + $0x8] sm:$0xff]
      %v765 = vld [vmem:[%s172 + $0x10] sm:$0xff]
      %766 = vrot.lane.b32.xlu0 %v717, 124
      %v767 = vpop.permute.xlu0 %766
      %768 = vrot.lane.b32.xlu0 %v719, 124
      %v769 = vpop.permute.xlu0 %768
      %770 = vrot.lane.b32.xlu0 %v758, 124
      %v771 = vpop.permute.xlu0 %770
      %vm772 = vcmp.lt.s32.totalorder %v399, 124
      %v773 = vsel %vm772, %v769, %v771
      %v774 = vsel %vm772, %v767, %v769
      %v775 = vsel %vm772, %v771, %v767
      %v776 = vadd.f32 %v763, %v774
      %v777 = vadd.f32 %v764, %v773
      %v778 = vadd.f32 %v765, %v775
      %779 = vst [vmem:[%s172] sm:$0xff] %v776
      %780 = vst [vmem:[%s172 + $0x8] sm:$0xff] %v777
      %781 = vst [vmem:[%s172 + $0x10] sm:$0xff] %v778
      %s782 = scalar_lea.vmem %s0, 20
      %v783 = vld [vmem:[%s782] sm:$0xf]
      %v784 = vld [vmem:[%s166] sm:$0xff]
      %v785 = vld [vmem:[%s166 + $0x8] sm:$0xf]
      %v788 = vunpack.c.l.b16 %v784
      %v789 = vunpack.c.h.b16 %v784
      %v790 = vunpack.c.l.b16 %v785
      %v791 = vpack.c.b16 %v788, %v788
      %v792 = vpack.c.b16 %v789, %v789
      %v793 = vpack.c.b16 %v790, %v790
      %v795 = vsel %vm186, %v783, 0
      %v798 = vsel %vm190, %v791, 0
      %v801 = vsel %vm190, %v792, 0
      %v804 = vsel %vm190, %v793, 0
      %806 = vmatprep.subr.bf16.mxu0 %v801
      %807 = vmatpush1.bf16.msra.mxu0 %v798
      %808 = vmatprep.subr.bf16.mxu0 0
      %809 = vmatpush1.bf16.msra.mxu0 0
      %810 = vmatprep.subr.bf16.mxu0 0
      %811 = vmatpush1.bf16.msra.mxu0 0
      %812 = vmatprep.subr.bf16.mxu0 0
      %813 = vmatpush1.bf16.msra.mxu0 0
      %814 = vmatprep.subr.bf16.mxu0 0
      %815 = vmatpush1.bf16.msra.mxu0 0
      %816 = vmatprep.subr.bf16.mxu0 0
      %817 = vmatpush1.bf16.msra.mxu0 0
      %818 = vmatprep.subr.bf16.mxu0 0
      %819 = vmatpush1.bf16.msra.mxu0 0
      %820 = vmatprep.subr.bf16.mxu0 0
      %821 = vmatpush1.bf16.msra.mxu0 0
      %822 = vmatprep.subr.bf16.mxu0 0
      %823 = vmatpush1.bf16.msra.mxu0 0
      %824 = vmatprep.subr.bf16.mxu0 0
      %825 = vmatpush1.bf16.msra.mxu0 0
      %826 = vmatprep.subr.bf16.mxu0 0
      %827 = vmatpush1.bf16.msra.mxu0 0
      %828 = vmatprep.subr.bf16.mxu0 0
      %829 = vmatpush1.bf16.msra.mxu0 0
      %830 = vmatprep.subr.bf16.mxu0 0
      %831 = vmatpush1.bf16.msra.mxu0 0
      %832 = vmatprep.subr.bf16.mxu0 0
      %833 = vmatpush1.bf16.msra.mxu0 0
      %834 = vmatprep.subr.bf16.mxu0 0
      %835 = vmatpush1.bf16.msra.mxu0 0
      %836 = vmatprep.subr.bf16.mxu0 0
      %837 = vmatpush1.bf16.msra.mxu0 0
      %838 = vmatprep.mubr.bf16.mxu0 0
      %839 = vmatmul.mubr.bf16.gmra.mrb[0].mxu0 %v795
      %v840 = vpop.f32.mrb[0].mxu0
      %v841 = vadd.f32 0.0, %v840
      %v842 = vpop.f32.mrb[0].mxu0
      %v843 = vadd.f32 0.0, %v842
      %v844 = vpop.f32.mrb[0].mxu0
      %v845 = vpop.f32.mrb[0].mxu0
      %846 = vdwg.mxu0
      %847 = vmatprep.subr.bf16.mxu0 0
      %848 = vmatpush1.bf16.msra.mxu0 %v804
      %849 = vmatprep.subr.bf16.mxu0 0
      %850 = vmatpush1.bf16.msra.mxu0 0
      %851 = vmatprep.subr.bf16.mxu0 0
      %852 = vmatpush1.bf16.msra.mxu0 0
      %853 = vmatprep.subr.bf16.mxu0 0
      %854 = vmatpush1.bf16.msra.mxu0 0
      %855 = vmatprep.subr.bf16.mxu0 0
      %856 = vmatpush1.bf16.msra.mxu0 0
      %857 = vmatprep.subr.bf16.mxu0 0
      %858 = vmatpush1.bf16.msra.mxu0 0
      %859 = vmatprep.subr.bf16.mxu0 0
      %860 = vmatpush1.bf16.msra.mxu0 0
      %861 = vmatprep.subr.bf16.mxu0 0
      %862 = vmatpush1.bf16.msra.mxu0 0
      %863 = vmatprep.subr.bf16.mxu0 0
      %864 = vmatpush1.bf16.msra.mxu0 0
      %865 = vmatprep.subr.bf16.mxu0 0
      %866 = vmatpush1.bf16.msra.mxu0 0
      %867 = vmatprep.subr.bf16.mxu0 0
      %868 = vmatpush1.bf16.msra.mxu0 0
      %869 = vmatprep.subr.bf16.mxu0 0
      %870 = vmatpush1.bf16.msra.mxu0 0
      %871 = vmatprep.subr.bf16.mxu0 0
      %872 = vmatpush1.bf16.msra.mxu0 0
      %873 = vmatprep.subr.bf16.mxu0 0
      %874 = vmatpush1.bf16.msra.mxu0 0
      %875 = vmatprep.subr.bf16.mxu0 0
      %876 = vmatpush1.bf16.msra.mxu0 0
      %877 = vmatprep.subr.bf16.mxu0 0
      %878 = vmatpush1.bf16.msra.mxu0 0
      %879 = vmatprep.mubr.bf16.mxu0 0
      %880 = vmatmul.mubr.bf16.gmra.mrb[0].mxu0 %v795
      %v881 = vpop.f32.mrb[0].mxu0
      %v882 = vadd.f32 0.0, %v881
      %v883 = vpop.f32.mrb[0].mxu0
      %v884 = vpop.f32.mrb[0].mxu0
      %v885 = vpop.f32.mrb[0].mxu0
      %886 = vdwg.mxu0
      %v887 = vld [vmem:[%s172] sm:$0xff]
      %v888 = vld [vmem:[%s172 + $0x8] sm:$0xff]
      %v889 = vld [vmem:[%s172 + $0x10] sm:$0xff]
      %890 = vrot.lane.b32.xlu0 %v841, 123
      %v891 = vpop.permute.xlu0 %890
      %892 = vrot.lane.b32.xlu0 %v843, 123
      %v893 = vpop.permute.xlu0 %892
      %894 = vrot.lane.b32.xlu0 %v882, 123
      %v895 = vpop.permute.xlu0 %894
      %vm896 = vcmp.lt.s32.totalorder %v399, 123
      %v897 = vsel %vm896, %v893, %v895
      %v898 = vsel %vm896, %v891, %v893
      %v899 = vsel %vm896, %v895, %v891
      %v900 = vadd.f32 %v887, %v898
      %v901 = vadd.f32 %v888, %v897
      %v902 = vadd.f32 %v889, %v899
      %903 = vst [vmem:[%s172] sm:$0xff] %v900
      %904 = vst [vmem:[%s172 + $0x8] sm:$0xff] %v901
      %905 = vst [vmem:[%s172 + $0x10] sm:$0xff] %v902
      %s906 = scalar_lea.vmem %s0, 24
      %v907 = vld [vmem:[%s906] sm:$0xf]
      %v908 = vld [vmem:[%s166] sm:$0xff]
      %v909 = vld [vmem:[%s166 + $0x8] sm:$0xf]
      %v912 = vunpack.c.l.b16 %v908
      %v913 = vunpack.c.h.b16 %v908
      %v914 = vunpack.c.l.b16 %v909
      %v915 = vpack.c.b16 %v912, %v912
      %v916 = vpack.c.b16 %v913, %v913
      %v917 = vpack.c.b16 %v914, %v914
      %v919 = vsel %vm186, %v907, 0
      %v922 = vsel %vm190, %v915, 0
      %v925 = vsel %vm190, %v916, 0
      %v928 = vsel %vm190, %v917, 0
      %930 = vmatprep.subr.bf16.mxu0 %v925
      %931 = vmatpush1.bf16.msra.mxu0 %v922
      %932 = vmatprep.subr.bf16.mxu0 0
      %933 = vmatpush1.bf16.msra.mxu0 0
      %934 = vmatprep.subr.bf16.mxu0 0
      %935 = vmatpush1.bf16.msra.mxu0 0
      %936 = vmatprep.subr.bf16.mxu0 0
      %937 = vmatpush1.bf16.msra.mxu0 0
      %938 = vmatprep.subr.bf16.mxu0 0
      %939 = vmatpush1.bf16.msra.mxu0 0
      %940 = vmatprep.subr.bf16.mxu0 0
      %941 = vmatpush1.bf16.msra.mxu0 0
      %942 = vmatprep.subr.bf16.mxu0 0
      %943 = vmatpush1.bf16.msra.mxu0 0
      %944 = vmatprep.subr.bf16.mxu0 0
      %945 = vmatpush1.bf16.msra.mxu0 0
      %946 = vmatprep.subr.bf16.mxu0 0
      %947 = vmatpush1.bf16.msra.mxu0 0
      %948 = vmatprep.subr.bf16.mxu0 0
      %949 = vmatpush1.bf16.msra.mxu0 0
      %950 = vmatprep.subr.bf16.mxu0 0
      %951 = vmatpush1.bf16.msra.mxu0 0
      %952 = vmatprep.subr.bf16.mxu0 0
      %953 = vmatpush1.bf16.msra.mxu0 0
      %954 = vmatprep.subr.bf16.mxu0 0
      %955 = vmatpush1.bf16.msra.mxu0 0
      %956 = vmatprep.subr.bf16.mxu0 0
      %957 = vmatpush1.bf16.msra.mxu0 0
      %958 = vmatprep.subr.bf16.mxu0 0
      %959 = vmatpush1.bf16.msra.mxu0 0
      %960 = vmatprep.subr.bf16.mxu0 0
      %961 = vmatpush1.bf16.msra.mxu0 0
      %962 = vmatprep.mubr.bf16.mxu0 0
      %963 = vmatmul.mubr.bf16.gmra.mrb[0].mxu0 %v919
      %v964 = vpop.f32.mrb[0].mxu0
      %v965 = vadd.f32 0.0, %v964
      %v966 = vpop.f32.mrb[0].mxu0
      %v967 = vadd.f32 0.0, %v966
      %v968 = vpop.f32.mrb[0].mxu0
      %v969 = vpop.f32.mrb[0].mxu0
      %970 = vdwg.mxu0
      %971 = vmatprep.subr.bf16.mxu0 0
      %972 = vmatpush1.bf16.msra.mxu0 %v928
      %973 = vmatprep.subr.bf16.mxu0 0
      %974 = vmatpush1.bf16.msra.mxu0 0
      %975 = vmatprep.subr.bf16.mxu0 0
      %976 = vmatpush1.bf16.msra.mxu0 0
      %977 = vmatprep.subr.bf16.mxu0 0
      %978 = vmatpush1.bf16.msra.mxu0 0
      %979 = vmatprep.subr.bf16.mxu0 0
      %980 = vmatpush1.bf16.msra.mxu0 0
      %981 = vmatprep.subr.bf16.mxu0 0
      %982 = vmatpush1.bf16.msra.mxu0 0
      %983 = vmatprep.subr.bf16.mxu0 0
      %984 = vmatpush1.bf16.msra.mxu0 0
      %985 = vmatprep.subr.bf16.mxu0 0
      %986 = vmatpush1.bf16.msra.mxu0 0
      %987 = vmatprep.subr.bf16.mxu0 0
      %988 = vmatpush1.bf16.msra.mxu0 0
      %989 = vmatprep.subr.bf16.mxu0 0
      %990 = vmatpush1.bf16.msra.mxu0 0
      %991 = vmatprep.subr.bf16.mxu0 0
      %992 = vmatpush1.bf16.msra.mxu0 0
      %993 = vmatprep.subr.bf16.mxu0 0
      %994 = vmatpush1.bf16.msra.mxu0 0
      %995 = vmatprep.subr.bf16.mxu0 0
      %996 = vmatpush1.bf16.msra.mxu0 0
      %997 = vmatprep.subr.bf16.mxu0 0
      %998 = vmatpush1.bf16.msra.mxu0 0
      %999 = vmatprep.subr.bf16.mxu0 0
      %1000 = vmatpush1.bf16.msra.mxu0 0
      %1001 = vmatprep.subr.bf16.mxu0 0
      %1002 = vmatpush1.bf16.msra.mxu0 0
      %1003 = vmatprep.mubr.bf16.mxu0 0
      %1004 = vmatmul.mubr.bf16.gmra.mrb[0].mxu0 %v919
      %v1005 = vpop.f32.mrb[0].mxu0
      %v1006 = vadd.f32 0.0, %v1005
      %v1007 = vpop.f32.mrb[0].mxu0
      %v1008 = vpop.f32.mrb[0].mxu0
      %v1009 = vpop.f32.mrb[0].mxu0
      %1010 = vdwg.mxu0
      %v1011 = vld [vmem:[%s172] sm:$0xff]
      %v1012 = vld [vmem:[%s172 + $0x8] sm:$0xff]
      %v1013 = vld [vmem:[%s172 + $0x10] sm:$0xff]
      %1014 = vrot.lane.b32.xlu0 %v965, 122
      %v1015 = vpop.permute.xlu0 %1014
      %1016 = vrot.lane.b32.xlu0 %v967, 122
      %v1017 = vpop.permute.xlu0 %1016
      %1018 = vrot.lane.b32.xlu0 %v1006, 122
      %v1019 = vpop.permute.xlu0 %1018
      %vm1020 = vcmp.lt.s32.totalorder %v399, 122
      %v1021 = vsel %vm1020, %v1017, %v1019
      %v1022 = vsel %vm1020, %v1015, %v1017
      %v1023 = vsel %vm1020, %v1019, %v1015
      %v1024 = vadd.f32 %v1011, %v1022
      %v1025 = vadd.f32 %v1012, %v1021
      %v1026 = vadd.f32 %v1013, %v1023
      %1027 = vst [vmem:[%s172] sm:$0xff] %v1024
      %1028 = vst [vmem:[%s172 + $0x8] sm:$0xff] %v1025
      %1029 = vst [vmem:[%s172 + $0x10] sm:$0xff] %v1026
      %s1030 = scalar_lea.vmem %s0, 28
      %v1031 = vld [vmem:[%s1030] sm:$0xf]
      %v1032 = vld [vmem:[%s166] sm:$0xff]
      %v1033 = vld [vmem:[%s166 + $0x8] sm:$0xf]
      %v1036 = vunpack.c.l.b16 %v1032
      %v1037 = vunpack.c.h.b16 %v1032
      %v1038 = vunpack.c.l.b16 %v1033
      %v1039 = vpack.c.b16 %v1036, %v1036
      %v1040 = vpack.c.b16 %v1037, %v1037
      %v1041 = vpack.c.b16 %v1038, %v1038
      %v1043 = vsel %vm186, %v1031, 0
      %v1046 = vsel %vm190, %v1039, 0
      %v1049 = vsel %vm190, %v1040, 0
      %v1052 = vsel %vm190, %v1041, 0
      %1054 = vmatprep.subr.bf16.mxu0 %v1049
      %1055 = vmatpush1.bf16.msra.mxu0 %v1046
      %1056 = vmatprep.subr.bf16.mxu0 0
      %1057 = vmatpush1.bf16.msra.mxu0 0
      %1058 = vmatprep.subr.bf16.mxu0 0
      %1059 = vmatpush1.bf16.msra.mxu0 0
      %1060 = vmatprep.subr.bf16.mxu0 0
      %1061 = vmatpush1.bf16.msra.mxu0 0
      %1062 = vmatprep.subr.bf16.mxu0 0
      %1063 = vmatpush1.bf16.msra.mxu0 0
      %1064 = vmatprep.subr.bf16.mxu0 0
      %1065 = vmatpush1.bf16.msra.mxu0 0
      %1066 = vmatprep.subr.bf16.mxu0 0
      %1067 = vmatpush1.bf16.msra.mxu0 0
      %1068 = vmatprep.subr.bf16.mxu0 0
      %1069 = vmatpush1.bf16.msra.mxu0 0
      %1070 = vmatprep.subr.bf16.mxu0 0
      %1071 = vmatpush1.bf16.msra.mxu0 0
      %1072 = vmatprep.subr.bf16.mxu0 0
      %1073 = vmatpush1.bf16.msra.mxu0 0
      %1074 = vmatprep.subr.bf16.mxu0 0
      %1075 = vmatpush1.bf16.msra.mxu0 0
      %1076 = vmatprep.subr.bf16.mxu0 0
      %1077 = vmatpush1.bf16.msra.mxu0 0
      %1078 = vmatprep.subr.bf16.mxu0 0
      %1079 = vmatpush1.bf16.msra.mxu0 0
      %1080 = vmatprep.subr.bf16.mxu0 0
      %1081 = vmatpush1.bf16.msra.mxu0 0
      %1082 = vmatprep.subr.bf16.mxu0 0
      %1083 = vmatpush1.bf16.msra.mxu0 0
      %1084 = vmatprep.subr.bf16.mxu0 0
      %1085 = vmatpush1.bf16.msra.mxu0 0
      %1086 = vmatprep.mubr.bf16.mxu0 0
      %1087 = vmatmul.mubr.bf16.gmra.mrb[0].mxu0 %v1043
      %v1088 = vpop.f32.mrb[0].mxu0
      %v1089 = vadd.f32 0.0, %v1088
      %v1090 = vpop.f32.mrb[0].mxu0
      %v1091 = vadd.f32 0.0, %v1090
      %v1092 = vpop.f32.mrb[0].mxu0
      %v1093 = vpop.f32.mrb[0].mxu0
      %1094 = vdwg.mxu0
      %1095 = vmatprep.subr.bf16.mxu0 0
      %1096 = vmatpush1.bf16.msra.mxu0 %v1052
      %1097 = vmatprep.subr.bf16.mxu0 0
      %1098 = vmatpush1.bf16.msra.mxu0 0
      %1099 = vmatprep.subr.bf16.mxu0 0
      %1100 = vmatpush1.bf16.msra.mxu0 0
      %1101 = vmatprep.subr.bf16.mxu0 0
      %1102 = vmatpush1.bf16.msra.mxu0 0
      %1103 = vmatprep.subr.bf16.mxu0 0
      %1104 = vmatpush1.bf16.msra.mxu0 0
      %1105 = vmatprep.subr.bf16.mxu0 0
      %1106 = vmatpush1.bf16.msra.mxu0 0
      %1107 = vmatprep.subr.bf16.mxu0 0
      %1108 = vmatpush1.bf16.msra.mxu0 0
      %1109 = vmatprep.subr.bf16.mxu0 0
      %1110 = vmatpush1.bf16.msra.mxu0 0
      %1111 = vmatprep.subr.bf16.mxu0 0
      %1112 = vmatpush1.bf16.msra.mxu0 0
      %1113 = vmatprep.subr.bf16.mxu0 0
      %1114 = vmatpush1.bf16.msra.mxu0 0
      %1115 = vmatprep.subr.bf16.mxu0 0
      %1116 = vmatpush1.bf16.msra.mxu0 0
      %1117 = vmatprep.subr.bf16.mxu0 0
      %1118 = vmatpush1.bf16.msra.mxu0 0
      %1119 = vmatprep.subr.bf16.mxu0 0
      %1120 = vmatpush1.bf16.msra.mxu0 0
      %1121 = vmatprep.subr.bf16.mxu0 0
      %1122 = vmatpush1.bf16.msra.mxu0 0
      %1123 = vmatprep.subr.bf16.mxu0 0
      %1124 = vmatpush1.bf16.msra.mxu0 0
      %1125 = vmatprep.subr.bf16.mxu0 0
      %1126 = vmatpush1.bf16.msra.mxu0 0
      %1127 = vmatprep.mubr.bf16.mxu0 0
      %1128 = vmatmul.mubr.bf16.gmra.mrb[0].mxu0 %v1043
      %v1129 = vpop.f32.mrb[0].mxu0
      %v1130 = vadd.f32 0.0, %v1129
      %v1131 = vpop.f32.mrb[0].mxu0
      %v1132 = vpop.f32.mrb[0].mxu0
      %v1133 = vpop.f32.mrb[0].mxu0
      %1134 = vdwg.mxu0
      %v1135 = vld [vmem:[%s172] sm:$0xff]
      %v1136 = vld [vmem:[%s172 + $0x8] sm:$0xff]
      %v1137 = vld [vmem:[%s172 + $0x10] sm:$0xff]
      %1138 = vrot.lane.b32.xlu0 %v1089, 121
      %v1139 = vpop.permute.xlu0 %1138
      %1140 = vrot.lane.b32.xlu0 %v1091, 121
      %v1141 = vpop.permute.xlu0 %1140
      %1142 = vrot.lane.b32.xlu0 %v1130, 121
      %v1143 = vpop.permute.xlu0 %1142
      %vm1144 = vcmp.lt.s32.totalorder %v399, 121
      %v1145 = vsel %vm1144, %v1141, %v1143
      %v1146 = vsel %vm1144, %v1139, %v1141
      %v1147 = vsel %vm1144, %v1143, %v1139
      %v1148 = vadd.f32 %v1135, %v1146
      %v1149 = vadd.f32 %v1136, %v1145
      %v1150 = vadd.f32 %v1137, %v1147
      %1151 = vst [vmem:[%s172] sm:$0xff] %v1148
      %1152 = vst [vmem:[%s172 + $0x8] sm:$0xff] %v1149
      %1153 = vst [vmem:[%s172 + $0x10] sm:$0xff] %v1150
      %s1154 = scalar_lea.vmem %s0, 32
      %v1155 = vld [vmem:[%s1154] sm:$0xf]
      %v1156 = vld [vmem:[%s166] sm:$0xff]
      %v1157 = vld [vmem:[%s166 + $0x8] sm:$0xf]
      %v1160 = vunpack.c.l.b16 %v1156
      %v1161 = vunpack.c.h.b16 %v1156
      %v1162 = vunpack.c.l.b16 %v1157
      %v1163 = vpack.c.b16 %v1160, %v1160
      %v1164 = vpack.c.b16 %v1161, %v1161
      %v1165 = vpack.c.b16 %v1162, %v1162
      %v1167 = vsel %vm186, %v1155, 0
      %v1170 = vsel %vm190, %v1163, 0
      %v1173 = vsel %vm190, %v1164, 0
      %v1176 = vsel %vm190, %v1165, 0
      %1178 = vmatprep.subr.bf16.mxu0 %v1173
      %1179 = vmatpush1.bf16.msra.mxu0 %v1170
      %1180 = vmatprep.subr.bf16.mxu0 0
      %1181 = vmatpush1.bf16.msra.mxu0 0
      %1182 = vmatprep.subr.bf16.mxu0 0
      %1183 = vmatpush1.bf16.msra.mxu0 0
      %1184 = vmatprep.subr.bf16.mxu0 0
      %1185 = vmatpush1.bf16.msra.mxu0 0
      %1186 = vmatprep.subr.bf16.mxu0 0
      %1187 = vmatpush1.bf16.msra.mxu0 0
      %1188 = vmatprep.subr.bf16.mxu0 0
      %1189 = vmatpush1.bf16.msra.mxu0 0
      %1190 = vmatprep.subr.bf16.mxu0 0
      %1191 = vmatpush1.bf16.msra.mxu0 0
      %1192 = vmatprep.subr.bf16.mxu0 0
      %1193 = vmatpush1.bf16.msra.mxu0 0
      %1194 = vmatprep.subr.bf16.mxu0 0
      %1195 = vmatpush1.bf16.msra.mxu0 0
      %1196 = vmatprep.subr.bf16.mxu0 0
      %1197 = vmatpush1.bf16.msra.mxu0 0
      %1198 = vmatprep.subr.bf16.mxu0 0
      %1199 = vmatpush1.bf16.msra.mxu0 0
      %1200 = vmatprep.subr.bf16.mxu0 0
      %1201 = vmatpush1.bf16.msra.mxu0 0
      %1202 = vmatprep.subr.bf16.mxu0 0
      %1203 = vmatpush1.bf16.msra.mxu0 0
      %1204 = vmatprep.subr.bf16.mxu0 0
      %1205 = vmatpush1.bf16.msra.mxu0 0
      %1206 = vmatprep.subr.bf16.mxu0 0
      %1207 = vmatpush1.bf16.msra.mxu0 0
      %1208 = vmatprep.subr.bf16.mxu0 0
      %1209 = vmatpush1.bf16.msra.mxu0 0
      %1210 = vmatprep.mubr.bf16.mxu0 0
      %1211 = vmatmul.mubr.bf16.gmra.mrb[0].mxu0 %v1167
      %v1212 = vpop.f32.mrb[0].mxu0
      %v1213 = vadd.f32 0.0, %v1212
      %v1214 = vpop.f32.mrb[0].mxu0
      %v1215 = vadd.f32 0.0, %v1214
      %v1216 = vpop.f32.mrb[0].mxu0
      %v1217 = vpop.f32.mrb[0].mxu0
      %1218 = vdwg.mxu0
      %1219 = vmatprep.subr.bf16.mxu0 0
      %1220 = vmatpush1.bf16.msra.mxu0 %v1176
      %1221 = vmatprep.subr.bf16.mxu0 0
      %1222 = vmatpush1.bf16.msra.mxu0 0
      %1223 = vmatprep.subr.bf16.mxu0 0
      %1224 = vmatpush1.bf16.msra.mxu0 0
      %1225 = vmatprep.subr.bf16.mxu0 0
      %1226 = vmatpush1.bf16.msra.mxu0 0
      %1227 = vmatprep.subr.bf16.mxu0 0
      %1228 = vmatpush1.bf16.msra.mxu0 0
      %1229 = vmatprep.subr.bf16.mxu0 0
      %1230 = vmatpush1.bf16.msra.mxu0 0
      %1231 = vmatprep.subr.bf16.mxu0 0
      %1232 = vmatpush1.bf16.msra.mxu0 0
      %1233 = vmatprep.subr.bf16.mxu0 0
      %1234 = vmatpush1.bf16.msra.mxu0 0
      %1235 = vmatprep.subr.bf16.mxu0 0
      %1236 = vmatpush1.bf16.msra.mxu0 0
      %1237 = vmatprep.subr.bf16.mxu0 0
      %1238 = vmatpush1.bf16.msra.mxu0 0
      %1239 = vmatprep.subr.bf16.mxu0 0
      %1240 = vmatpush1.bf16.msra.mxu0 0
      %1241 = vmatprep.subr.bf16.mxu0 0
      %1242 = vmatpush1.bf16.msra.mxu0 0
      %1243 = vmatprep.subr.bf16.mxu0 0
      %1244 = vmatpush1.bf16.msra.mxu0 0
      %1245 = vmatprep.subr.bf16.mxu0 0
      %1246 = vmatpush1.bf16.msra.mxu0 0
      %1247 = vmatprep.subr.bf16.mxu0 0
      %1248 = vmatpush1.bf16.msra.mxu0 0
      %1249 = vmatprep.subr.bf16.mxu0 0
      %1250 = vmatpush1.bf16.msra.mxu0 0
      %1251 = vmatprep.mubr.bf16.mxu0 0
      %1252 = vmatmul.mubr.bf16.gmra.mrb[0].mxu0 %v1167
      %v1253 = vpop.f32.mrb[0].mxu0
      %v1254 = vadd.f32 0.0, %v1253
      %v1255 = vpop.f32.mrb[0].mxu0
      %v1256 = vpop.f32.mrb[0].mxu0
      %v1257 = vpop.f32.mrb[0].mxu0
      %1258 = vdwg.mxu0
      %v1259 = vld [vmem:[%s172] sm:$0xff]
      %v1260 = vld [vmem:[%s172 + $0x8] sm:$0xff]
      %v1261 = vld [vmem:[%s172 + $0x10] sm:$0xff]
      %1262 = vrot.lane.b32.xlu0 %v1213, 120
      %v1263 = vpop.permute.xlu0 %1262
      %1264 = vrot.lane.b32.xlu0 %v1215, 120
      %v1265 = vpop.permute.xlu0 %1264
      %1266 = vrot.lane.b32.xlu0 %v1254, 120
      %v1267 = vpop.permute.xlu0 %1266
      %vm1268 = vcmp.lt.s32.totalorder %v399, 120
      %v1269 = vsel %vm1268, %v1265, %v1267
      %v1270 = vsel %vm1268, %v1263, %v1265
      %v1271 = vsel %vm1268, %v1267, %v1263
      %v1272 = vadd.f32 %v1259, %v1270
      %v1273 = vadd.f32 %v1260, %v1269
      %v1274 = vadd.f32 %v1261, %v1271
      %1275 = vst [vmem:[%s172] sm:$0xff] %v1272
      %1276 = vst [vmem:[%s172 + $0x8] sm:$0xff] %v1273
      %1277 = vst [vmem:[%s172 + $0x10] sm:$0xff] %v1274
      %v1278 = vld [vmem:[%s172] sm:$0xff]
      %v1279 = vld [vmem:[%s172 + $0x8] sm:$0xff]
      %v1280 = vld [vmem:[%s172 + $0x10] sm:$0xff]
      %v1281 = vld [vmem:[%s2] sm:$0xff]
      %1283 = vset.pattern.permute.xlu0 0
      %1284 = vperm.xlu0 %1283, %v1281
      %v1285 = vpop.permute.xlu0 %1284
      %v1287 = vadd.f32 %v1278, %v1285
      %v1288 = vadd.f32 %v1279, %v1285
      %v1289 = vadd.f32 %v1280, %v1285
      %vm1290 = vcmp.ge.f32.partialorder %v1287, 0.0
      %vm1291 = vcmp.ge.f32.partialorder %v1288, 0.0
      %vm1292 = vcmp.ge.f32.partialorder %v1289, 0.0
      %v1293 = vmul.f32 %v1287, 0.1
      %v1294 = vmul.f32 %v1288, 0.1
      %v1295 = vmul.f32 %v1289, 0.1
      %v1296 = vsel %vm1290, %v1287, %v1293
      %v1297 = vsel %vm1291, %v1288, %v1294
      %v1298 = vsel %vm1292, %v1289, %v1295
      %1299 = vst [vmem:[%s172] sm:$0xff] %v1296
      %1300 = vst [vmem:[%s172 + $0x8] sm:$0xff] %v1297
      %1301 = vst [vmem:[%s172 + $0x10] sm:$0xff] %v1298
      %s1302 = smul.u32 3, %s14
      %p1303 = scmp.lt.s32.totalorder %s1302, 14
      %s1304 = scalar_select %p1303, %s1302, 14
      %s1305 = smul.addr %s1304, 8
      %s1306 = scalar_lea.vmem %s3, %s1305
      // Predicated region
      $region33: #{discriminator_r_forward.8} parent=31 // pred_check
        %p1307 = pneg %p100
      $region34: #{discriminator_r_forward.8} parent=31 // pred_check_branch
        %1309 = sbr.rel (%p1307) target = $region36
      $region35: #{discriminator_r_forward.8} parent=31 // pred_region
        %s1310 = smul.u32 3, %s14
      $region36: #{discriminator_r_forward.8} parent=31 // pred_fallthru
        _
    $region32: #{discriminator_r_forward.8} parent=5 // pred_fallthru
      _
    %p1311 = scmp.le.s32.totalorder 2, %s9
    // Predicated region
    $region37: #{discriminator_r_forward.8} parent=5 // pred_check
      %p1312 = pneg %p1311
    $region38: #{discriminator_r_forward.8} parent=5 // pred_check_branch
      %1314 = sbr.rel (%p1312) target = $region40
    $region39: #{discriminator_r_forward.8} parent=5 // pred_region
      %s1315 = ssub.s32 %s9, 2
      // Predicated region
      $region41: #{discriminator_r_forward.8} parent=39 // pred_check
        %p1316 = pneg %p106
      $region42: #{discriminator_r_forward.8} parent=39 // pred_check_branch
        %1318 = sbr.rel (%p1316) target = $region44
      $region43: #{discriminator_r_forward.8} parent=39 // pred_region
        %s1319 = smul.u32 3, %s15
        %p1320 = scmp.lt.s32.totalorder %s1319, 14
        %s1321 = scalar_select %p1320, %s1319, 14
        %s1322 = smul.addr %s1321, 8
        %s1323 = scalar_lea.vmem %s3, %s1322
      $region44: #{discriminator_r_forward.8} parent=39 // pred_fallthru
        _
    $region40: #{discriminator_r_forward.8} parent=5 // pred_fallthru
      _
  $region6: #{discriminator_r_forward.8} parent=0 // loop_footer
    %s13 = sadd.s32 1, %s9
  $region7: #{discriminator_r_forward.8} parent=0 // loop_footer_branch
    %8 = sbr.rel target = $region3
  $region8: #{discriminator_r_forward.8} parent=0 // loop_exit
    _

// kernel: discriminator_r_forward.9
$region0: #{discriminator_r_forward.9}
  #allocation0 [shape = 'u32[]', space=smem, size = 0x4, offset = 0x4, fixed_abs, tag = 'smem constant byte address 0x4 - core index']
  #allocation1 [shape = 'u32[144,128]{1,0:T(1,128)}', space=vmem, size = 0x12000, scoped, tag = 'internal scratch']
  %s0 = inlined_call_operand.vmem [shape: bf16[9,8,24], index: 0, kind: input, shape index: {}]
  %s1 = inlined_call_operand.vmem [shape: bf16[24,1920], index: 1, kind: input, shape index: {}]
  %s2 = inlined_call_operand.vmem [shape: f32[8,1], index: 2, kind: input, shape index: {}]
  %s3 = inlined_call_operand.vmem [shape: f32[8,1920], index: 3, kind: output, shape index: {}]
  %s4 = sld [smem:[#allocation0]]
  $region71: #{discriminator_r_forward.9} parent=0
    _
  %s6 = ssub.s32 1, %s4
  %s7 = scalar_select 0, %s6, %s4
  $region1: #{discriminator_r_forward.9} parent=0
    #allocation2 [shape = 'u8[36864]{0}', space=vmem, size = 0x9000, scoped, tag = 'input window, operand 1']
    loop: start=0, step=1, limit=7
    $region2: #{discriminator_r_forward.9} parent=1 // loop_pre_header
      _
    $region3: #{discriminator_r_forward.9} parent=1 // loop_header
      %s9 = sphi 0, %s13
      %p10 = scmp.ge.s32.totalorder %s9, 7
      %s17 = sphi 0, %s17
      %s19 = sphi 0, %s17
      %s20 = sphi 0, %s19
      %s34 = sphi 0, %s20
      %s40 = sphi 0, %s42
      %s43 = sphi 0, %s40
      %s44 = sphi 0, %s43
      %s60 = sphi 0, %s44
      %s64 = sphi 0, %s64
      %s66 = sphi 0, %s64
      %s67 = sphi 0, %s66
      %s81 = sphi 0, %s67
      %s87 = sphi 0, %s89
      %s90 = sphi 0, %s87
      %s91 = sphi 0, %s90
      %s107 = sphi 0, %s91
    $region4: #{discriminator_r_forward.9} parent=1 // loop_header_branch
      %12 = sbr.rel (%p10) target = $region8
    $region5: #{discriminator_r_forward.9} parent=1 // loop_body
      %s14 = ssub.s32 %s9, 1
      %s15 = ssub.s32 %s9, 2
      %s16 = sadd.s32 %s9, 1
      %s18 = sadd.s32 %s17, 1
      %p21 = scmp.eq.s32.totalorder %s9, 4
      %p22 = scmp.ne.s32.totalorder %s17, %s19
      %p23 = scmp.eq.s32.totalorder %s9, 0
      %p24 = por %p22, %p23
      %p25 = scmp.ne.s32.totalorder %s17, %s19
      %p26 = scmp.eq.s32.totalorder %s14, 4
      %p27 = por %p25, %p26
      %p28 = scmp.ne.s32.totalorder %s19, %s20
      %p29 = scmp.eq.s32.totalorder %s14, 0
      %p30 = por %p28, %p29
      %p31 = scmp.ne.s32.totalorder %s19, %s20
      %p32 = scmp.eq.s32.totalorder %s15, 4
      %p33 = por %p31, %p32
      %p35 = scmp.ne.s32.totalorder %s20, %s34
      %p36 = scmp.eq.s32.totalorder %s15, 0
      %p37 = por %p35, %p36
      %s38 = ssub.s32 %s9, %s16
      %p39 = scmp.eq.s32.totalorder %s38, 0
      %s41 = sadd.s32 %s40, 1
      %s42 = scalar_select %p39, %s40, %s41
      %p45 = pneg %p39
      %p46 = scmp.eq.s32.totalorder %s9, 4
      %p47 = por %p45, %p46
      %p48 = scmp.ne.s32.totalorder %s40, %s43
      %p49 = scmp.eq.s32.totalorder %s9, 0
      %p50 = por %p48, %p49
      %p51 = scmp.ne.s32.totalorder %s40, %s43
      %p52 = scmp.eq.s32.totalorder %s14, 4
      %p53 = por %p51, %p52
      %p54 = scmp.ne.s32.totalorder %s43, %s44
      %p55 = scmp.eq.s32.totalorder %s14, 0
      %p56 = por %p54, %p55
      %p57 = scmp.ne.s32.totalorder %s43, %s44
      %p58 = scmp.eq.s32.totalorder %s15, 4
      %p59 = por %p57, %p58
      %p61 = scmp.ne.s32.totalorder %s44, %s60
      %p62 = scmp.eq.s32.totalorder %s15, 0
      %p63 = por %p61, %p62
      %s65 = sadd.s32 %s64, 1
      %p68 = scmp.eq.s32.totalorder %s9, 4
      %p69 = scmp.ne.s32.totalorder %s64, %s66
      %p70 = scmp.eq.s32.totalorder %s9, 0
      %p71 = por %p69, %p70
      %p72 = scmp.ne.s32.totalorder %s64, %s66
      %p73 = scmp.eq.s32.totalorder %s14, 4
      %p74 = por %p72, %p73
      %p75 = scmp.ne.s32.totalorder %s66, %s67
      %p76 = scmp.eq.s32.totalorder %s14, 0
      %p77 = por %p75, %p76
      %p78 = scmp.ne.s32.totalorder %s66, %s67
      %p79 = scmp.eq.s32.totalorder %s15, 4
      %p80 = por %p78, %p79
      %p82 = scmp.ne.s32.totalorder %s67, %s81
      %p83 = scmp.eq.s32.totalorder %s15, 0
      %p84 = por %p82, %p83
      %s85 = ssub.s32 %s9, %s16
      %p86 = scmp.eq.s32.totalorder %s85, 0
      %s88 = sadd.s32 %s87, 1
      %s89 = scalar_select %p86, %s87, %s88
      %p92 = pneg %p86
      %p93 = scmp.eq.s32.totalorder %s9, 4
      %p94 = por %p92, %p93
      %p95 = scmp.ne.s32.totalorder %s87, %s90
      %p96 = scmp.eq.s32.totalorder %s9, 0
      %p97 = por %p95, %p96
      %p98 = scmp.ne.s32.totalorder %s87, %s90
      %p99 = scmp.eq.s32.totalorder %s14, 4
      %p100 = por %p98, %p99
      %p101 = scmp.ne.s32.totalorder %s90, %s91
      %p102 = scmp.eq.s32.totalorder %s14, 0
      %p103 = por %p101, %p102
      %p104 = scmp.ne.s32.totalorder %s90, %s91
      %p105 = scmp.eq.s32.totalorder %s15, 4
      %p106 = por %p104, %p105
      %p108 = scmp.ne.s32.totalorder %s91, %s107
      %p109 = scmp.eq.s32.totalorder %s15, 0
      %p110 = por %p108, %p109
      %p111 = scmp.le.s32.totalorder 1, %s9
      %p112 = scmp.lt.s32.totalorder %s9, 6
      %p113 = pnand %p111, %p112
      %p114 = pneg %p113
      // Predicated region
      $region9: #{discriminator_r_forward.9} parent=5 // pred_check
        _
      $region10: #{discriminator_r_forward.9} parent=5 // pred_check_branch
        %116 = sbr.rel (%p113) target = $region12
      $region11: #{discriminator_r_forward.9} parent=5 // pred_region
        %s117 = ssub.s32 %s9, 1
        // Predicated region
        $region13: #{discriminator_r_forward.9} parent=11 // pred_check
          %p118 = pneg %p30
        $region14: #{discriminator_r_forward.9} parent=11 // pred_check_branch
          %120 = sbr.rel (%p118) target = $region16
        $region15: #{discriminator_r_forward.9} parent=11 // pred_region
          _
        $region16: #{discriminator_r_forward.9} parent=11 // pred_fallthru
          _
        // Predicated region
        $region17: #{discriminator_r_forward.9} parent=11 // pred_check
          %p121 = pneg %p77
        $region18: #{discriminator_r_forward.9} parent=11 // pred_check_branch
          %123 = sbr.rel (%p121) target = $region20
        $region19: #{discriminator_r_forward.9} parent=11 // pred_region
          _
        $region20: #{discriminator_r_forward.9} parent=11 // pred_fallthru
          _
      $region12: #{discriminator_r_forward.9} parent=5 // pred_fallthru
        _
      %p124 = scmp.lt.s32.totalorder %s9, 5
      // Predicated region
      $region21: #{discriminator_r_forward.9} parent=5 // pred_check
        %p125 = pneg %p124
      $region22: #{discriminator_r_forward.9} parent=5 // pred_check_branch
        %127 = sbr.rel (%p125) target = $region24
      $region23: #{discriminator_r_forward.9} parent=5 // pred_region
        // Predicated region
        $region25: #{discriminator_r_forward.9} parent=23 // pred_check
          %p128 = pneg %p50
        $region26: #{discriminator_r_forward.9} parent=23 // pred_check_branch
          %130 = sbr.rel (%p128) target = $region28
        $region27: #{discriminator_r_forward.9} parent=23 // pred_region
          %s131 = sand.u32 %s40, 1
          %s132 = sand.u32 %s40, 1
          %s133 = smul.addr %s132, 36
          %s134 = scalar_lea.vmem [#allocation2], %s133
          %s135 = smul.u32 3, %s9
          %s136 = smul.addr %s135, 4
          %s137 = scalar_lea.vmem %s1, %s136
          // Predicated region
          $region29: #{discriminator_r_forward.9} parent=27 // pred_check
            _
          $region30: #{discriminator_r_forward.9} parent=27 // pred_check_branch
            %139 = sbr.rel (0) target = $region32
          $region31: #{discriminator_r_forward.9} parent=27 // pred_region
            // Predicated region
            $region33: #{discriminator_r_forward.9} parent=31 // pred_check
              _
            $region34: #{discriminator_r_forward.9} parent=31 // pred_check_branch
              %141 = sbr.rel (0) target = $region36
            $region35: #{discriminator_r_forward.9} parent=31 // pred_region
              %s142 = scalar_lea.vmem %s137, 8
              %s143 = scalar_lea.vmem %s134, 8 [#allocation2]
              loop: start=0, step=1, limit=1
              $region37: #{discriminator_r_forward.9} parent=35 // loop_pre_header
                _
              $region38: #{discriminator_r_forward.9} parent=35 // loop_header
                %s145 = sphi 0, %s149
                %p146 = scmp.ge.s32.totalorder %s145, 1
                %s150 = sphi %s137, %s137
                %s151 = sphi %s134, %s134
              $region39: #{discriminator_r_forward.9} parent=35 // loop_header_branch
                %148 = sbr.rel (%p146) target = $region43
              $region40: #{discriminator_r_forward.9} parent=35 // loop_body
                %v152 = vld [vmem:[%s150] sm:$0xff]
                %153 = vst [vmem:[%s151] sm:$0xff] %v152
                %v154 = vld [vmem:[%s150 + $0x3c] sm:$0xff]
                %155 = vst [vmem:[%s151 + $0xc] sm:$0xff] %v154
                %v156 = vld [vmem:[%s150 + $0x78] sm:$0xff]
                %157 = vst [vmem:[%s151 + $0x18] sm:$0xff] %v156
              $region41: #{discriminator_r_forward.9} parent=35 // loop_footer
                %s149 = sadd.s32 1, %s145
              $region42: #{discriminator_r_forward.9} parent=35 // loop_footer_branch
                %144 = sbr.rel target = $region38
              $region43: #{discriminator_r_forward.9} parent=35 // loop_exit
                _
              loop: start=0, step=1, limit=1
              $region44: #{discriminator_r_forward.9} parent=35 // loop_pre_header
                _
              $region45: #{discriminator_r_forward.9} parent=35 // loop_header
                %s160 = sphi 0, %s164
                %p161 = scmp.ge.s32.totalorder %s160, 1
                %s165 = sphi %s142, %s142
                %s166 = sphi %s143, %s143
              $region46: #{discriminator_r_forward.9} parent=35 // loop_header_branch
                %163 = sbr.rel (%p161) target = $region50
              $region47: #{discriminator_r_forward.9} parent=35 // loop_body
                %v167 = vld [vmem:[%s165] sm:$0xf]
                %168 = vst [vmem:[%s166] sm:$0xf] %v167
                %v169 = vld [vmem:[%s165 + $0x3c] sm:$0xf]
                %170 = vst [vmem:[%s166 + $0xc] sm:$0xf] %v169
                %v171 = vld [vmem:[%s165 + $0x78] sm:$0xf]
                %172 = vst [vmem:[%s166 + $0x18] sm:$0xf] %v171
              $region48: #{discriminator_r_forward.9} parent=35 // loop_footer
                %s164 = sadd.s32 1, %s160
              $region49: #{discriminator_r_forward.9} parent=35 // loop_footer_branch
                %159 = sbr.rel target = $region45
              $region50: #{discriminator_r_forward.9} parent=35 // loop_exit
                _
            $region36: #{discriminator_r_forward.9} parent=31 // pred_fallthru
              _
          $region32: #{discriminator_r_forward.9} parent=27 // pred_fallthru
            _
          %173 = vnop
        $region28: #{discriminator_r_forward.9} parent=23 // pred_fallthru
          _
      $region24: #{discriminator_r_forward.9} parent=5 // pred_fallthru
        _
      %p174 = scmp.le.s32.totalorder 1, %s9
      %p175 = scmp.lt.s32.totalorder %s9, 6
      %p176 = pnand %p174, %p175
      %p177 = pneg %p176
      // Predicated region
      $region51: #{discriminator_r_forward.9} parent=5 // pred_check
        _
      $region52: #{discriminator_r_forward.9} parent=5 // pred_check_branch
        %179 = sbr.rel (%p176) target = $region54
      $region53: #{discriminator_r_forward.9} parent=5 // pred_region
        %s180 = ssub.s32 %s9, 1
        %s181 = sand.u32 %s43, 1
        %s182 = sand.u32 %s43, 1
        %s183 = smul.addr %s182, 36
        %s184 = scalar_lea.vmem [#allocation2], %s183
        // Predicated region
        $region55: #{discriminator_r_forward.9} parent=53 // pred_check
          %p185 = pneg %p56
        $region56: #{discriminator_r_forward.9} parent=53 // pred_check_branch
          %187 = sbr.rel (%p185) target = $region58
        $region57: #{discriminator_r_forward.9} parent=53 // pred_region
          _
        $region58: #{discriminator_r_forward.9} parent=53 // pred_fallthru
          _
        %p188 = pneg %p30
        %p189 = pneg %p27
        %s190 = sand.u32 %s43, 1
        %s191 = sand.u32 %s43, 1
        %s192 = smul.addr %s191, 36
        %s193 = scalar_lea.vmem [#allocation2], %s192
        %p194 = pneg %p56
        %p195 = pneg %p53
        %p196 = pneg %p77
        %p197 = pneg %p74
        %p198 = pneg %p103
        %p199 = pneg %p100
        %s200 = smul.u32 3, %s14
        %p201 = scmp.lt.s32.totalorder %s200, 14
        %s202 = scalar_select %p201, %s200, 14
        %s203 = smul.addr %s202, 8
        %s204 = scalar_lea.vmem %s3, %s203
        %s205 = smul.u32 3, %s14
        %s206 = smul.u32 3, %s14
        %p207 = scmp.lt.s32.totalorder %s206, 14
        %s208 = scalar_select %p207, %s206, 14
        %s209 = smul.addr %s208, 8
        %s210 = scalar_lea.vmem %s3, %s209
        %s211 = smul.u32 3, %s14
        %v213 = vld [vmem:[%s0] sm:$0xf]
        %v214 = vld [vmem:[%s184] sm:$0xff]
        %v215 = vld [vmem:[%s184 + $0x8] sm:$0xf]
        %v216 = vld [vmem:[%s184 + $0xc] sm:$0xff]
        %v217 = vld [vmem:[%s184 + $0x14] sm:$0xf]
        %v218 = vld [vmem:[%s184 + $0x18] sm:$0xff]
        %v219 = vld [vmem:[%s184 + $0x20] sm:$0xf]
        %v226 = vunpack.c.l.b16 %v214
        %v227 = vunpack.c.h.b16 %v214
        %v228 = vunpack.c.l.b16 %v215
        %v229 = vunpack.c.l.b16 %v216
        %v230 = vunpack.c.h.b16 %v216
        %v231 = vunpack.c.l.b16 %v217
        %v232 = vunpack.c.l.b16 %v218
        %v233 = vunpack.c.h.b16 %v218
        %v234 = vunpack.c.l.b16 %v219
        %v235 = vpack.c.b16 %v229, %v226
        %v236 = vpack.c.b16 %v230, %v227
        %v237 = vpack.c.b16 %v231, %v228
        %v238 = vpack.c.b16 %v232, %v232
        %v239 = vpack.c.b16 %v233, %v233
        %v240 = vpack.c.b16 %v234, %v234
        %vm244 = vcmask 195584
        %v246 = vsel %vm244, %v213, 0
        %vm248 = vcmask 1043456
        %v250 = vsel %vm248, %v238, 0
        %v253 = vsel %vm248, %v239, 0
        %v256 = vsel %vm248, %v240, 0
        %258 = vmatprep.subr.bf16.mxu0 %v236
        %259 = vmatpush1.bf16.msra.mxu0 %v235
        %260 = vmatprep.subr.bf16.mxu0 %v253
        %261 = vmatpush1.bf16.msra.mxu0 %v250
        %262 = vmatprep.subr.bf16.mxu0 0
        %263 = vmatpush1.bf16.msra.mxu0 0
        %264 = vmatprep.subr.bf16.mxu0 0
        %265 = vmatpush1.bf16.msra.mxu0 0
        %266 = vmatprep.subr.bf16.mxu0 0
        %267 = vmatpush1.bf16.msra.mxu0 0
        %268 = vmatprep.subr.bf16.mxu0 0
        %269 = vmatpush1.bf16.msra.mxu0 0
        %270 = vmatprep.subr.bf16.mxu0 0
        %271 = vmatpush1.bf16.msra.mxu0 0
        %272 = vmatprep.subr.bf16.mxu0 0
        %273 = vmatpush1.bf16.msra.mxu0 0
        %274 = vmatprep.subr.bf16.mxu0 0
        %275 = vmatpush1.bf16.msra.mxu0 0
        %276 = vmatprep.subr.bf16.mxu0 0
        %277 = vmatpush1.bf16.msra.mxu0 0
        %278 = vmatprep.subr.bf16.mxu0 0
        %279 = vmatpush1.bf16.msra.mxu0 0
        %280 = vmatprep.subr.bf16.mxu0 0
        %281 = vmatpush1.bf16.msra.mxu0 0
        %282 = vmatprep.subr.bf16.mxu0 0
        %283 = vmatpush1.bf16.msra.mxu0 0
        %284 = vmatprep.subr.bf16.mxu0 0
        %285 = vmatpush1.bf16.msra.mxu0 0
        %286 = vmatprep.subr.bf16.mxu0 0
        %287 = vmatpush1.bf16.msra.mxu0 0
        %288 = vmatprep.subr.bf16.mxu0 0
        %289 = vmatpush1.bf16.msra.mxu0 0
        %290 = vmatprep.mubr.bf16.mxu0 0
        %291 = vmatmul.mubr.bf16.gmra.mrb[0].mxu0 %v246
        %v292 = vpop.f32.mrb[0].mxu0
        %v293 = vadd.f32 0.0, %v292
        %v294 = vpop.f32.mrb[0].mxu0
        %v295 = vadd.f32 0.0, %v294
        %v296 = vpop.f32.mrb[0].mxu0
        %v297 = vpop.f32.mrb[0].mxu0
        %298 = vdwg.mxu0
        %299 = vmatprep.subr.bf16.mxu0 0
        %300 = vmatpush1.bf16.msra.mxu0 %v237
        %301 = vmatprep.subr.bf16.mxu0 0
        %302 = vmatpush1.bf16.msra.mxu0 %v256
        %303 = vmatprep.subr.bf16.mxu0 0
        %304 = vmatpush1.bf16.msra.mxu0 0
        %305 = vmatprep.subr.bf16.mxu0 0
        %306 = vmatpush1.bf16.msra.mxu0 0
        %307 = vmatprep.subr.bf16.mxu0 0
        %308 = vmatpush1.bf16.msra.mxu0 0
        %309 = vmatprep.subr.bf16.mxu0 0
        %310 = vmatpush1.bf16.msra.mxu0 0
        %311 = vmatprep.subr.bf16.mxu0 0
        %312 = vmatpush1.bf16.msra.mxu0 0
        %313 = vmatprep.subr.bf16.mxu0 0
        %314 = vmatpush1.bf16.msra.mxu0 0
        %315 = vmatprep.subr.bf16.mxu0 0
        %316 = vmatpush1.bf16.msra.mxu0 0
        %317 = vmatprep.subr.bf16.mxu0 0
        %318 = vmatpush1.bf16.msra.mxu0 0
        %319 = vmatprep.subr.bf16.mxu0 0
        %320 = vmatpush1.bf16.msra.mxu0 0
        %321 = vmatprep.subr.bf16.mxu0 0
        %322 = vmatpush1.bf16.msra.mxu0 0
        %323 = vmatprep.subr.bf16.mxu0 0
        %324 = vmatpush1.bf16.msra.mxu0 0
        %325 = vmatprep.subr.bf16.mxu0 0
        %326 = vmatpush1.bf16.msra.mxu0 0
        %327 = vmatprep.subr.bf16.mxu0 0
        %328 = vmatpush1.bf16.msra.mxu0 0
        %329 = vmatprep.subr.bf16.mxu0 0
        %330 = vmatpush1.bf16.msra.mxu0 0
        %331 = vmatprep.mubr.bf16.mxu0 0
        %332 = vmatmul.mubr.bf16.gmra.mrb[0].mxu0 %v246
        %v333 = vpop.f32.mrb[0].mxu0
        %v334 = vadd.f32 0.0, %v333
        %v335 = vpop.f32.mrb[0].mxu0
        %v336 = vpop.f32.mrb[0].mxu0
        %v337 = vpop.f32.mrb[0].mxu0
        %338 = vdwg.mxu0
        %339 = vst [vmem:[%s210] sm:$0xff] %v293
        %340 = vst [vmem:[%s210 + $0x8] sm:$0xff] %v295
        %341 = vst [vmem:[%s210 + $0x10] sm:$0xff] %v334
        %s342 = scalar_lea.vmem %s0, 4
        %v343 = vld [vmem:[%s342] sm:$0xf]
        %v344 = vld [vmem:[%s184] sm:$0xff]
        %v345 = vld [vmem:[%s184 + $0x8] sm:$0xf]
        %v346 = vld [vmem:[%s184 + $0xc] sm:$0xff]
        %v347 = vld [vmem:[%s184 + $0x14] sm:$0xf]
        %v348 = vld [vmem:[%s184 + $0x18] sm:$0xff]
        %v349 = vld [vmem:[%s184 + $0x20] sm:$0xf]
        %v356 = vunpack.c.l.b16 %v344
        %v357 = vunpack.c.h.b16 %v344
        %v358 = vunpack.c.l.b16 %v345
        %v359 = vunpack.c.l.b16 %v346
        %v360 = vunpack.c.h.b16 %v346
        %v361 = vunpack.c.l.b16 %v347
        %v362 = vunpack.c.l.b16 %v348
        %v363 = vunpack.c.h.b16 %v348
        %v364 = vunpack.c.l.b16 %v349
        %v365 = vpack.c.b16 %v359, %v356
        %v366 = vpack.c.b16 %v360, %v357
        %v367 = vpack.c.b16 %v361, %v358
        %v368 = vpack.c.b16 %v362, %v362
        %v369 = vpack.c.b16 %v363, %v363
        %v370 = vpack.c.b16 %v364, %v364
        %v375 = vsel %vm244, %v343, 0
        %v378 = vsel %vm248, %v368, 0
        %v381 = vsel %vm248, %v369, 0
        %v384 = vsel %vm248, %v370, 0
        %386 = vmatprep.subr.bf16.mxu0 %v366
        %387 = vmatpush1.bf16.msra.mxu0 %v365
        %388 = vmatprep.subr.bf16.mxu0 %v381
        %389 = vmatpush1.bf16.msra.mxu0 %v378
        %390 = vmatprep.subr.bf16.mxu0 0
        %391 = vmatpush1.bf16.msra.mxu0 0
        %392 = vmatprep.subr.bf16.mxu0 0
        %393 = vmatpush1.bf16.msra.mxu0 0
        %394 = vmatprep.subr.bf16.mxu0 0
        %395 = vmatpush1.bf16.msra.mxu0 0
        %396 = vmatprep.subr.bf16.mxu0 0
        %397 = vmatpush1.bf16.msra.mxu0 0
        %398 = vmatprep.subr.bf16.mxu0 0
        %399 = vmatpush1.bf16.msra.mxu0 0
        %400 = vmatprep.subr.bf16.mxu0 0
        %401 = vmatpush1.bf16.msra.mxu0 0
        %402 = vmatprep.subr.bf16.mxu0 0
        %403 = vmatpush1.bf16.msra.mxu0 0
        %404 = vmatprep.subr.bf16.mxu0 0
        %405 = vmatpush1.bf16.msra.mxu0 0
        %406 = vmatprep.subr.bf16.mxu0 0
        %407 = vmatpush1.bf16.msra.mxu0 0
        %408 = vmatprep.subr.bf16.mxu0 0
        %409 = vmatpush1.bf16.msra.mxu0 0
        %410 = vmatprep.subr.bf16.mxu0 0
        %411 = vmatpush1.bf16.msra.mxu0 0
        %412 = vmatprep.subr.bf16.mxu0 0
        %413 = vmatpush1.bf16.msra.mxu0 0
        %414 = vmatprep.subr.bf16.mxu0 0
        %415 = vmatpush1.bf16.msra.mxu0 0
        %416 = vmatprep.subr.bf16.mxu0 0
        %417 = vmatpush1.bf16.msra.mxu0 0
        %418 = vmatprep.mubr.bf16.mxu0 0
        %419 = vmatmul.mubr.bf16.gmra.mrb[0].mxu0 %v375
        %v420 = vpop.f32.mrb[0].mxu0
        %v421 = vadd.f32 0.0, %v420
        %v422 = vpop.f32.mrb[0].mxu0
        %v423 = vadd.f32 0.0, %v422
        %v424 = vpop.f32.mrb[0].mxu0
        %v425 = vpop.f32.mrb[0].mxu0
        %426 = vdwg.mxu0
        %427 = vmatprep.subr.bf16.mxu0 0
        %428 = vmatpush1.bf16.msra.mxu0 %v367
        %429 = vmatprep.subr.bf16.mxu0 0
        %430 = vmatpush1.bf16.msra.mxu0 %v384
        %431 = vmatprep.subr.bf16.mxu0 0
        %432 = vmatpush1.bf16.msra.mxu0 0
        %433 = vmatprep.subr.bf16.mxu0 0
        %434 = vmatpush1.bf16.msra.mxu0 0
        %435 = vmatprep.subr.bf16.mxu0 0
        %436 = vmatpush1.bf16.msra.mxu0 0
        %437 = vmatprep.subr.bf16.mxu0 0
        %438 = vmatpush1.bf16.msra.mxu0 0
        %439 = vmatprep.subr.bf16.mxu0 0
        %440 = vmatpush1.bf16.msra.mxu0 0
        %441 = vmatprep.subr.bf16.mxu0 0
        %442 = vmatpush1.bf16.msra.mxu0 0
        %443 = vmatprep.subr.bf16.mxu0 0
        %444 = vmatpush1.bf16.msra.mxu0 0
        %445 = vmatprep.subr.bf16.mxu0 0
        %446 = vmatpush1.bf16.msra.mxu0 0
        %447 = vmatprep.subr.bf16.mxu0 0
        %448 = vmatpush1.bf16.msra.mxu0 0
        %449 = vmatprep.subr.bf16.mxu0 0
        %450 = vmatpush1.bf16.msra.mxu0 0
        %451 = vmatprep.subr.bf16.mxu0 0
        %452 = vmatpush1.bf16.msra.mxu0 0
        %453 = vmatprep.subr.bf16.mxu0 0
        %454 = vmatpush1.bf16.msra.mxu0 0
        %455 = vmatprep.subr.bf16.mxu0 0
        %456 = vmatpush1.bf16.msra.mxu0 0
        %457 = vmatprep.subr.bf16.mxu0 0
        %458 = vmatpush1.bf16.msra.mxu0 0
        %459 = vmatprep.mubr.bf16.mxu0 0
        %460 = vmatmul.mubr.bf16.gmra.mrb[0].mxu0 %v375
        %v461 = vpop.f32.mrb[0].mxu0
        %v462 = vadd.f32 0.0, %v461
        %v463 = vpop.f32.mrb[0].mxu0
        %v464 = vpop.f32.mrb[0].mxu0
        %v465 = vpop.f32.mrb[0].mxu0
        %466 = vdwg.mxu0
        %v467 = vld [vmem:[%s210] sm:$0xff]
        %v468 = vld [vmem:[%s210 + $0x8] sm:$0xff]
        %v469 = vld [vmem:[%s210 + $0x10] sm:$0xff]
        %470 = vrot.lane.b32.xlu0 %v421, 127
        %v471 = vpop.permute.xlu0 %470
        %472 = vrot.lane.b32.xlu0 %v423, 127
        %v473 = vpop.permute.xlu0 %472
        %474 = vrot.lane.b32.xlu0 %v462, 127
        %v475 = vpop.permute.xlu0 %474
        %v476 = vlaneseq
        %v477 = vand.u32 %v476, 127
        %vm478 = vcmp.lt.s32.totalorder %v477, 127
        %v479 = vsel %vm478, %v473, %v475
        %v480 = vsel %vm478, %v471, %v473
        %v481 = vsel %vm478, %v475, %v471
        %v482 = vadd.f32 %v467, %v480
        %v483 = vadd.f32 %v468, %v479
        %v484 = vadd.f32 %v469, %v481
        %485 = vst [vmem:[%s210] sm:$0xff] %v482
        %486 = vst [vmem:[%s210 + $0x8] sm:$0xff] %v483
        %487 = vst [vmem:[%s210 + $0x10] sm:$0xff] %v484
        %s488 = scalar_lea.vmem %s0, 8
        %v489 = vld [vmem:[%s488] sm:$0xf]
        %v490 = vld [vmem:[%s184] sm:$0xff]
        %v491 = vld [vmem:[%s184 + $0x8] sm:$0xf]
        %v492 = vld [vmem:[%s184 + $0xc] sm:$0xff]
        %v493 = vld [vmem:[%s184 + $0x14] sm:$0xf]
        %v494 = vld [vmem:[%s184 + $0x18] sm:$0xff]
        %v495 = vld [vmem:[%s184 + $0x20] sm:$0xf]
        %v502 = vunpack.c.l.b16 %v490
        %v503 = vunpack.c.h.b16 %v490
        %v504 = vunpack.c.l.b16 %v491
        %v505 = vunpack.c.l.b16 %v492
        %v506 = vunpack.c.h.b16 %v492
        %v507 = vunpack.c.l.b16 %v493
        %v508 = vunpack.c.l.b16 %v494
        %v509 = vunpack.c.h.b16 %v494
        %v510 = vunpack.c.l.b16 %v495
        %v511 = vpack.c.b16 %v505, %v502
        %v512 = vpack.c.b16 %v506, %v503
        %v513 = vpack.c.b16 %v507, %v504
        %v514 = vpack.c.b16 %v508, %v508
        %v515 = vpack.c.b16 %v509, %v509
        %v516 = vpack.c.b16 %v510, %v510
        %v521 = vsel %vm244, %v489, 0
        %v524 = vsel %vm248, %v514, 0
        %v527 = vsel %vm248, %v515, 0
        %v530 = vsel %vm248, %v516, 0
        %532 = vmatprep.subr.bf16.mxu0 %v512
        %533 = vmatpush1.bf16.msra.mxu0 %v511
        %534 = vmatprep.subr.bf16.mxu0 %v527
        %535 = vmatpush1.bf16.msra.mxu0 %v524
        %536 = vmatprep.subr.bf16.mxu0 0
        %537 = vmatpush1.bf16.msra.mxu0 0
        %538 = vmatprep.subr.bf16.mxu0 0
        %539 = vmatpush1.bf16.msra.mxu0 0
        %540 = vmatprep.subr.bf16.mxu0 0
        %541 = vmatpush1.bf16.msra.mxu0 0
        %542 = vmatprep.subr.bf16.mxu0 0
        %543 = vmatpush1.bf16.msra.mxu0 0
        %544 = vmatprep.subr.bf16.mxu0 0
        %545 = vmatpush1.bf16.msra.mxu0 0
        %546 = vmatprep.subr.bf16.mxu0 0
        %547 = vmatpush1.bf16.msra.mxu0 0
        %548 = vmatprep.subr.bf16.mxu0 0
        %549 = vmatpush1.bf16.msra.mxu0 0
        %550 = vmatprep.subr.bf16.mxu0 0
        %551 = vmatpush1.bf16.msra.mxu0 0
        %552 = vmatprep.subr.bf16.mxu0 0
        %553 = vmatpush1.bf16.msra.mxu0 0
        %554 = vmatprep.subr.bf16.mxu0 0
        %555 = vmatpush1.bf16.msra.mxu0 0
        %556 = vmatprep.subr.bf16.mxu0 0
        %557 = vmatpush1.bf16.msra.mxu0 0
        %558 = vmatprep.subr.bf16.mxu0 0
        %559 = vmatpush1.bf16.msra.mxu0 0
        %560 = vmatprep.subr.bf16.mxu0 0
        %561 = vmatpush1.bf16.msra.mxu0 0
        %562 = vmatprep.subr.bf16.mxu0 0
        %563 = vmatpush1.bf16.msra.mxu0 0
        %564 = vmatprep.mubr.bf16.mxu0 0
        %565 = vmatmul.mubr.bf16.gmra.mrb[0].mxu0 %v521
        %v566 = vpop.f32.mrb[0].mxu0
        %v567 = vadd.f32 0.0, %v566
        %v568 = vpop.f32.mrb[0].mxu0
        %v569 = vadd.f32 0.0, %v568
        %v570 = vpop.f32.mrb[0].mxu0
        %v571 = vpop.f32.mrb[0].mxu0
        %572 = vdwg.mxu0
        %573 = vmatprep.subr.bf16.mxu0 0
        %574 = vmatpush1.bf16.msra.mxu0 %v513
        %575 = vmatprep.subr.bf16.mxu0 0
        %576 = vmatpush1.bf16.msra.mxu0 %v530
        %577 = vmatprep.subr.bf16.mxu0 0
        %578 = vmatpush1.bf16.msra.mxu0 0
        %579 = vmatprep.subr.bf16.mxu0 0
        %580 = vmatpush1.bf16.msra.mxu0 0
        %581 = vmatprep.subr.bf16.mxu0 0
        %582 = vmatpush1.bf16.msra.mxu0 0
        %583 = vmatprep.subr.bf16.mxu0 0
        %584 = vmatpush1.bf16.msra.mxu0 0
        %585 = vmatprep.subr.bf16.mxu0 0
        %586 = vmatpush1.bf16.msra.mxu0 0
        %587 = vmatprep.subr.bf16.mxu0 0
        %588 = vmatpush1.bf16.msra.mxu0 0
        %589 = vmatprep.subr.bf16.mxu0 0
        %590 = vmatpush1.bf16.msra.mxu0 0
        %591 = vmatprep.subr.bf16.mxu0 0
        %592 = vmatpush1.bf16.msra.mxu0 0
        %593 = vmatprep.subr.bf16.mxu0 0
        %594 = vmatpush1.bf16.msra.mxu0 0
        %595 = vmatprep.subr.bf16.mxu0 0
        %596 = vmatpush1.bf16.msra.mxu0 0
        %597 = vmatprep.subr.bf16.mxu0 0
        %598 = vmatpush1.bf16.msra.mxu0 0
        %599 = vmatprep.subr.bf16.mxu0 0
        %600 = vmatpush1.bf16.msra.mxu0 0
        %601 = vmatprep.subr.bf16.mxu0 0
        %602 = vmatpush1.bf16.msra.mxu0 0
        %603 = vmatprep.subr.bf16.mxu0 0
        %604 = vmatpush1.bf16.msra.mxu0 0
        %605 = vmatprep.mubr.bf16.mxu0 0
        %606 = vmatmul.mubr.bf16.gmra.mrb[0].mxu0 %v521
        %v607 = vpop.f32.mrb[0].mxu0
        %v608 = vadd.f32 0.0, %v607
        %v609 = vpop.f32.mrb[0].mxu0
        %v610 = vpop.f32.mrb[0].mxu0
        %v611 = vpop.f32.mrb[0].mxu0
        %612 = vdwg.mxu0
        %v613 = vld [vmem:[%s210] sm:$0xff]
        %v614 = vld [vmem:[%s210 + $0x8] sm:$0xff]
        %v615 = vld [vmem:[%s210 + $0x10] sm:$0xff]
        %616 = vrot.lane.b32.xlu0 %v567, 126
        %v617 = vpop.permute.xlu0 %616
        %618 = vrot.lane.b32.xlu0 %v569, 126
        %v619 = vpop.permute.xlu0 %618
        %620 = vrot.lane.b32.xlu0 %v608, 126
        %v621 = vpop.permute.xlu0 %620
        %vm622 = vcmp.lt.s32.totalorder %v477, 126
        %v623 = vsel %vm622, %v619, %v621
        %v624 = vsel %vm622, %v617, %v619
        %v625 = vsel %vm622, %v621, %v617
        %v626 = vadd.f32 %v613, %v624
        %v627 = vadd.f32 %v614, %v623
        %v628 = vadd.f32 %v615, %v625
        %629 = vst [vmem:[%s210] sm:$0xff] %v626
        %630 = vst [vmem:[%s210 + $0x8] sm:$0xff] %v627
        %631 = vst [vmem:[%s210 + $0x10] sm:$0xff] %v628
        %s632 = scalar_lea.vmem %s0, 12
        %v633 = vld [vmem:[%s632] sm:$0xf]
        %v634 = vld [vmem:[%s184] sm:$0xff]
        %v635 = vld [vmem:[%s184 + $0x8] sm:$0xf]
        %v636 = vld [vmem:[%s184 + $0xc] sm:$0xff]
        %v637 = vld [vmem:[%s184 + $0x14] sm:$0xf]
        %v638 = vld [vmem:[%s184 + $0x18] sm:$0xff]
        %v639 = vld [vmem:[%s184 + $0x20] sm:$0xf]
        %v646 = vunpack.c.l.b16 %v634
        %v647 = vunpack.c.h.b16 %v634
        %v648 = vunpack.c.l.b16 %v635
        %v649 = vunpack.c.l.b16 %v636
        %v650 = vunpack.c.h.b16 %v636
        %v651 = vunpack.c.l.b16 %v637
        %v652 = vunpack.c.l.b16 %v638
        %v653 = vunpack.c.h.b16 %v638
        %v654 = vunpack.c.l.b16 %v639
        %v655 = vpack.c.b16 %v649, %v646
        %v656 = vpack.c.b16 %v650, %v647
        %v657 = vpack.c.b16 %v651, %v648
        %v658 = vpack.c.b16 %v652, %v652
        %v659 = vpack.c.b16 %v653, %v653
        %v660 = vpack.c.b16 %v654, %v654
        %v665 = vsel %vm244, %v633, 0
        %v668 = vsel %vm248, %v658, 0
        %v671 = vsel %vm248, %v659, 0
        %v674 = vsel %vm248, %v660, 0
        %676 = vmatprep.subr.bf16.mxu0 %v656
        %677 = vmatpush1.bf16.msra.mxu0 %v655
        %678 = vmatprep.subr.bf16.mxu0 %v671
        %679 = vmatpush1.bf16.msra.mxu0 %v668
        %680 = vmatprep.subr.bf16.mxu0 0
        %681 = vmatpush1.bf16.msra.mxu0 0
        %682 = vmatprep.subr.bf16.mxu0 0
        %683 = vmatpush1.bf16.msra.mxu0 0
        %684 = vmatprep.subr.bf16.mxu0 0
        %685 = vmatpush1.bf16.msra.mxu0 0
        %686 = vmatprep.subr.bf16.mxu0 0
        %687 = vmatpush1.bf16.msra.mxu0 0
        %688 = vmatprep.subr.bf16.mxu0 0
        %689 = vmatpush1.bf16.msra.mxu0 0
        %690 = vmatprep.subr.bf16.mxu0 0
        %691 = vmatpush1.bf16.msra.mxu0 0
        %692 = vmatprep.subr.bf16.mxu0 0
        %693 = vmatpush1.bf16.msra.mxu0 0
        %694 = vmatprep.subr.bf16.mxu0 0
        %695 = vmatpush1.bf16.msra.mxu0 0
        %696 = vmatprep.subr.bf16.mxu0 0
        %697 = vmatpush1.bf16.msra.mxu0 0
        %698 = vmatprep.subr.bf16.mxu0 0
        %699 = vmatpush1.bf16.msra.mxu0 0
        %700 = vmatprep.subr.bf16.mxu0 0
        %701 = vmatpush1.bf16.msra.mxu0 0
        %702 = vmatprep.subr.bf16.mxu0 0
        %703 = vmatpush1.bf16.msra.mxu0 0
        %704 = vmatprep.subr.bf16.mxu0 0
        %705 = vmatpush1.bf16.msra.mxu0 0
        %706 = vmatprep.subr.bf16.mxu0 0
        %707 = vmatpush1.bf16.msra.mxu0 0
        %708 = vmatprep.mubr.bf16.mxu0 0
        %709 = vmatmul.mubr.bf16.gmra.mrb[0].mxu0 %v665
        %v710 = vpop.f32.mrb[0].mxu0
        %v711 = vadd.f32 0.0, %v710
        %v712 = vpop.f32.mrb[0].mxu0
        %v713 = vadd.f32 0.0, %v712
        %v714 = vpop.f32.mrb[0].mxu0
        %v715 = vpop.f32.mrb[0].mxu0
        %716 = vdwg.mxu0
        %717 = vmatprep.subr.bf16.mxu0 0
        %718 = vmatpush1.bf16.msra.mxu0 %v657
        %719 = vmatprep.subr.bf16.mxu0 0
        %720 = vmatpush1.bf16.msra.mxu0 %v674
        %721 = vmatprep.subr.bf16.mxu0 0
        %722 = vmatpush1.bf16.msra.mxu0 0
        %723 = vmatprep.subr.bf16.mxu0 0
        %724 = vmatpush1.bf16.msra.mxu0 0
        %725 = vmatprep.subr.bf16.mxu0 0
        %726 = vmatpush1.bf16.msra.mxu0 0
        %727 = vmatprep.subr.bf16.mxu0 0
        %728 = vmatpush1.bf16.msra.mxu0 0
        %729 = vmatprep.subr.bf16.mxu0 0
        %730 = vmatpush1.bf16.msra.mxu0 0
        %731 = vmatprep.subr.bf16.mxu0 0
        %732 = vmatpush1.bf16.msra.mxu0 0
        %733 = vmatprep.subr.bf16.mxu0 0
        %734 = vmatpush1.bf16.msra.mxu0 0
        %735 = vmatprep.subr.bf16.mxu0 0
        %736 = vmatpush1.bf16.msra.mxu0 0
        %737 = vmatprep.subr.bf16.mxu0 0
        %738 = vmatpush1.bf16.msra.mxu0 0
        %739 = vmatprep.subr.bf16.mxu0 0
        %740 = vmatpush1.bf16.msra.mxu0 0
        %741 = vmatprep.subr.bf16.mxu0 0
        %742 = vmatpush1.bf16.msra.mxu0 0
        %743 = vmatprep.subr.bf16.mxu0 0
        %744 = vmatpush1.bf16.msra.mxu0 0
        %745 = vmatprep.subr.bf16.mxu0 0
        %746 = vmatpush1.bf16.msra.mxu0 0
        %747 = vmatprep.subr.bf16.mxu0 0
        %748 = vmatpush1.bf16.msra.mxu0 0
        %749 = vmatprep.mubr.bf16.mxu0 0
        %750 = vmatmul.mubr.bf16.gmra.mrb[0].mxu0 %v665
        %v751 = vpop.f32.mrb[0].mxu0
        %v752 = vadd.f32 0.0, %v751
        %v753 = vpop.f32.mrb[0].mxu0
        %v754 = vpop.f32.mrb[0].mxu0
        %v755 = vpop.f32.mrb[0].mxu0
        %756 = vdwg.mxu0
        %v757 = vld [vmem:[%s210] sm:$0xff]
        %v758 = vld [vmem:[%s210 + $0x8] sm:$0xff]
        %v759 = vld [vmem:[%s210 + $0x10] sm:$0xff]
        %760 = vrot.lane.b32.xlu0 %v711, 125
        %v761 = vpop.permute.xlu0 %760
        %762 = vrot.lane.b32.xlu0 %v713, 125
        %v763 = vpop.permute.xlu0 %762
        %764 = vrot.lane.b32.xlu0 %v752, 125
        %v765 = vpop.permute.xlu0 %764
        %vm766 = vcmp.lt.s32.totalorder %v477, 125
        %v767 = vsel %vm766, %v763, %v765
        %v768 = vsel %vm766, %v761, %v763
        %v769 = vsel %vm766, %v765, %v761
        %v770 = vadd.f32 %v757, %v768
        %v771 = vadd.f32 %v758, %v767
        %v772 = vadd.f32 %v759, %v769
        %773 = vst [vmem:[%s210] sm:$0xff] %v770
        %774 = vst [vmem:[%s210 + $0x8] sm:$0xff] %v771
        %775 = vst [vmem:[%s210 + $0x10] sm:$0xff] %v772
        %s776 = scalar_lea.vmem %s0, 16
        %v777 = vld [vmem:[%s776] sm:$0xf]
        %v778 = vld [vmem:[%s184] sm:$0xff]
        %v779 = vld [vmem:[%s184 + $0x8] sm:$0xf]
        %v780 = vld [vmem:[%s184 + $0xc] sm:$0xff]
        %v781 = vld [vmem:[%s184 + $0x14] sm:$0xf]
        %v782 = vld [vmem:[%s184 + $0x18] sm:$0xff]
        %v783 = vld [vmem:[%s184 + $0x20] sm:$0xf]
        %v790 = vunpack.c.l.b16 %v778
        %v791 = vunpack.c.h.b16 %v778
        %v792 = vunpack.c.l.b16 %v779
        %v793 = vunpack.c.l.b16 %v780
        %v794 = vunpack.c.h.b16 %v780
        %v795 = vunpack.c.l.b16 %v781
        %v796 = vunpack.c.l.b16 %v782
        %v797 = vunpack.c.h.b16 %v782
        %v798 = vunpack.c.l.b16 %v783
        %v799 = vpack.c.b16 %v793, %v790
        %v800 = vpack.c.b16 %v794, %v791
        %v801 = vpack.c.b16 %v795, %v792
        %v802 = vpack.c.b16 %v796, %v796
        %v803 = vpack.c.b16 %v797, %v797
        %v804 = vpack.c.b16 %v798, %v798
        %v809 = vsel %vm244, %v777, 0
        %v812 = vsel %vm248, %v802, 0
        %v815 = vsel %vm248, %v803, 0
        %v818 = vsel %vm248, %v804, 0
        %820 = vmatprep.subr.bf16.mxu0 %v800
        %821 = vmatpush1.bf16.msra.mxu0 %v799
        %822 = vmatprep.subr.bf16.mxu0 %v815
        %823 = vmatpush1.bf16.msra.mxu0 %v812
        %824 = vmatprep.subr.bf16.mxu0 0
        %825 = vmatpush1.bf16.msra.mxu0 0
        %826 = vmatprep.subr.bf16.mxu0 0
        %827 = vmatpush1.bf16.msra.mxu0 0
        %828 = vmatprep.subr.bf16.mxu0 0
        %829 = vmatpush1.bf16.msra.mxu0 0
        %830 = vmatprep.subr.bf16.mxu0 0
        %831 = vmatpush1.bf16.msra.mxu0 0
        %832 = vmatprep.subr.bf16.mxu0 0
        %833 = vmatpush1.bf16.msra.mxu0 0
        %834 = vmatprep.subr.bf16.mxu0 0
        %835 = vmatpush1.bf16.msra.mxu0 0
        %836 = vmatprep.subr.bf16.mxu0 0
        %837 = vmatpush1.bf16.msra.mxu0 0
        %838 = vmatprep.subr.bf16.mxu0 0
        %839 = vmatpush1.bf16.msra.mxu0 0
        %840 = vmatprep.subr.bf16.mxu0 0
        %841 = vmatpush1.bf16.msra.mxu0 0
        %842 = vmatprep.subr.bf16.mxu0 0
        %843 = vmatpush1.bf16.msra.mxu0 0
        %844 = vmatprep.subr.bf16.mxu0 0
        %845 = vmatpush1.bf16.msra.mxu0 0
        %846 = vmatprep.subr.bf16.mxu0 0
        %847 = vmatpush1.bf16.msra.mxu0 0
        %848 = vmatprep.subr.bf16.mxu0 0
        %849 = vmatpush1.bf16.msra.mxu0 0
        %850 = vmatprep.subr.bf16.mxu0 0
        %851 = vmatpush1.bf16.msra.mxu0 0
        %852 = vmatprep.mubr.bf16.mxu0 0
        %853 = vmatmul.mubr.bf16.gmra.mrb[0].mxu0 %v809
        %v854 = vpop.f32.mrb[0].mxu0
        %v855 = vadd.f32 0.0, %v854
        %v856 = vpop.f32.mrb[0].mxu0
        %v857 = vadd.f32 0.0, %v856
        %v858 = vpop.f32.mrb[0].mxu0
        %v859 = vpop.f32.mrb[0].mxu0
        %860 = vdwg.mxu0
        %861 = vmatprep.subr.bf16.mxu0 0
        %862 = vmatpush1.bf16.msra.mxu0 %v801
        %863 = vmatprep.subr.bf16.mxu0 0
        %864 = vmatpush1.bf16.msra.mxu0 %v818
        %865 = vmatprep.subr.bf16.mxu0 0
        %866 = vmatpush1.bf16.msra.mxu0 0
        %867 = vmatprep.subr.bf16.mxu0 0
        %868 = vmatpush1.bf16.msra.mxu0 0
        %869 = vmatprep.subr.bf16.mxu0 0
        %870 = vmatpush1.bf16.msra.mxu0 0
        %871 = vmatprep.subr.bf16.mxu0 0
        %872 = vmatpush1.bf16.msra.mxu0 0
        %873 = vmatprep.subr.bf16.mxu0 0
        %874 = vmatpush1.bf16.msra.mxu0 0
        %875 = vmatprep.subr.bf16.mxu0 0
        %876 = vmatpush1.bf16.msra.mxu0 0
        %877 = vmatprep.subr.bf16.mxu0 0
        %878 = vmatpush1.bf16.msra.mxu0 0
        %879 = vmatprep.subr.bf16.mxu0 0
        %880 = vmatpush1.bf16.msra.mxu0 0
        %881 = vmatprep.subr.bf16.mxu0 0
        %882 = vmatpush1.bf16.msra.mxu0 0
        %883 = vmatprep.subr.bf16.mxu0 0
        %884 = vmatpush1.bf16.msra.mxu0 0
        %885 = vmatprep.subr.bf16.mxu0 0
        %886 = vmatpush1.bf16.msra.mxu0 0
        %887 = vmatprep.subr.bf16.mxu0 0
        %888 = vmatpush1.bf16.msra.mxu0 0
        %889 = vmatprep.subr.bf16.mxu0 0
        %890 = vmatpush1.bf16.msra.mxu0 0
        %891 = vmatprep.subr.bf16.mxu0 0
        %892 = vmatpush1.bf16.msra.mxu0 0
        %893 = vmatprep.mubr.bf16.mxu0 0
        %894 = vmatmul.mubr.bf16.gmra.mrb[0].mxu0 %v809
        %v895 = vpop.f32.mrb[0].mxu0
        %v896 = vadd.f32 0.0, %v895
        %v897 = vpop.f32.mrb[0].mxu0
        %v898 = vpop.f32.mrb[0].mxu0
        %v899 = vpop.f32.mrb[0].mxu0
        %900 = vdwg.mxu0
        %v901 = vld [vmem:[%s210] sm:$0xff]
        %v902 = vld [vmem:[%s210 + $0x8] sm:$0xff]
        %v903 = vld [vmem:[%s210 + $0x10] sm:$0xff]
        %904 = vrot.lane.b32.xlu0 %v855, 124
        %v905 = vpop.permute.xlu0 %904
        %906 = vrot.lane.b32.xlu0 %v857, 124
        %v907 = vpop.permute.xlu0 %906
        %908 = vrot.lane.b32.xlu0 %v896, 124
        %v909 = vpop.permute.xlu0 %908
        %vm910 = vcmp.lt.s32.totalorder %v477, 124
        %v911 = vsel %vm910, %v907, %v909
        %v912 = vsel %vm910, %v905, %v907
        %v913 = vsel %vm910, %v909, %v905
        %v914 = vadd.f32 %v901, %v912
        %v915 = vadd.f32 %v902, %v911
        %v916 = vadd.f32 %v903, %v913
        %917 = vst [vmem:[%s210] sm:$0xff] %v914
        %918 = vst [vmem:[%s210 + $0x8] sm:$0xff] %v915
        %919 = vst [vmem:[%s210 + $0x10] sm:$0xff] %v916
        %s920 = scalar_lea.vmem %s0, 20
        %v921 = vld [vmem:[%s920] sm:$0xf]
        %v922 = vld [vmem:[%s184] sm:$0xff]
        %v923 = vld [vmem:[%s184 + $0x8] sm:$0xf]
        %v924 = vld [vmem:[%s184 + $0xc] sm:$0xff]
        %v925 = vld [vmem:[%s184 + $0x14] sm:$0xf]
        %v926 = vld [vmem:[%s184 + $0x18] sm:$0xff]
        %v927 = vld [vmem:[%s184 + $0x20] sm:$0xf]
        %v934 = vunpack.c.l.b16 %v922
        %v935 = vunpack.c.h.b16 %v922
        %v936 = vunpack.c.l.b16 %v923
        %v937 = vunpack.c.l.b16 %v924
        %v938 = vunpack.c.h.b16 %v924
        %v939 = vunpack.c.l.b16 %v925
        %v940 = vunpack.c.l.b16 %v926
        %v941 = vunpack.c.h.b16 %v926
        %v942 = vunpack.c.l.b16 %v927
        %v943 = vpack.c.b16 %v937, %v934
        %v944 = vpack.c.b16 %v938, %v935
        %v945 = vpack.c.b16 %v939, %v936
        %v946 = vpack.c.b16 %v940, %v940
        %v947 = vpack.c.b16 %v941, %v941
        %v948 = vpack.c.b16 %v942, %v942
        %v953 = vsel %vm244, %v921, 0
        %v956 = vsel %vm248, %v946, 0
        %v959 = vsel %vm248, %v947, 0
        %v962 = vsel %vm248, %v948, 0
        %964 = vmatprep.subr.bf16.mxu0 %v944
        %965 = vmatpush1.bf16.msra.mxu0 %v943
        %966 = vmatprep.subr.bf16.mxu0 %v959
        %967 = vmatpush1.bf16.msra.mxu0 %v956
        %968 = vmatprep.subr.bf16.mxu0 0
        %969 = vmatpush1.bf16.msra.mxu0 0
        %970 = vmatprep.subr.bf16.mxu0 0
        %971 = vmatpush1.bf16.msra.mxu0 0
        %972 = vmatprep.subr.bf16.mxu0 0
        %973 = vmatpush1.bf16.msra.mxu0 0
        %974 = vmatprep.subr.bf16.mxu0 0
        %975 = vmatpush1.bf16.msra.mxu0 0
        %976 = vmatprep.subr.bf16.mxu0 0
        %977 = vmatpush1.bf16.msra.mxu0 0
        %978 = vmatprep.subr.bf16.mxu0 0
        %979 = vmatpush1.bf16.msra.mxu0 0
        %980 = vmatprep.subr.bf16.mxu0 0
        %981 = vmatpush1.bf16.msra.mxu0 0
        %982 = vmatprep.subr.bf16.mxu0 0
        %983 = vmatpush1.bf16.msra.mxu0 0
        %984 = vmatprep.subr.bf16.mxu0 0
        %985 = vmatpush1.bf16.msra.mxu0 0
        %986 = vmatprep.subr.bf16.mxu0 0
        %987 = vmatpush1.bf16.msra.mxu0 0
        %988 = vmatprep.subr.bf16.mxu0 0
        %989 = vmatpush1.bf16.msra.mxu0 0
        %990 = vmatprep.subr.bf16.mxu0 0
        %991 = vmatpush1.bf16.msra.mxu0 0
        %992 = vmatprep.subr.bf16.mxu0 0
        %993 = vmatpush1.bf16.msra.mxu0 0
        %994 = vmatprep.subr.bf16.mxu0 0
        %995 = vmatpush1.bf16.msra.mxu0 0
        %996 = vmatprep.mubr.bf16.mxu0 0
        %997 = vmatmul.mubr.bf16.gmra.mrb[0].mxu0 %v953
        %v998 = vpop.f32.mrb[0].mxu0
        %v999 = vadd.f32 0.0, %v998
        %v1000 = vpop.f32.mrb[0].mxu0
        %v1001 = vadd.f32 0.0, %v1000
        %v1002 = vpop.f32.mrb[0].mxu0
        %v1003 = vpop.f32.mrb[0].mxu0
        %1004 = vdwg.mxu0
        %1005 = vmatprep.subr.bf16.mxu0 0
        %1006 = vmatpush1.bf16.msra.mxu0 %v945
        %1007 = vmatprep.subr.bf16.mxu0 0
        %1008 = vmatpush1.bf16.msra.mxu0 %v962
        %1009 = vmatprep.subr.bf16.mxu0 0
        %1010 = vmatpush1.bf16.msra.mxu0 0
        %1011 = vmatprep.subr.bf16.mxu0 0
        %1012 = vmatpush1.bf16.msra.mxu0 0
        %1013 = vmatprep.subr.bf16.mxu0 0
        %1014 = vmatpush1.bf16.msra.mxu0 0
        %1015 = vmatprep.subr.bf16.mxu0 0
        %1016 = vmatpush1.bf16.msra.mxu0 0
        %1017 = vmatprep.subr.bf16.mxu0 0
        %1018 = vmatpush1.bf16.msra.mxu0 0
        %1019 = vmatprep.subr.bf16.mxu0 0
        %1020 = vmatpush1.bf16.msra.mxu0 0
        %1021 = vmatprep.subr.bf16.mxu0 0
        %1022 = vmatpush1.bf16.msra.mxu0 0
        %1023 = vmatprep.subr.bf16.mxu0 0
        %1024 = vmatpush1.bf16.msra.mxu0 0
        %1025 = vmatprep.subr.bf16.mxu0 0
        %1026 = vmatpush1.bf16.msra.mxu0 0
        %1027 = vmatprep.subr.bf16.mxu0 0
        %1028 = vmatpush1.bf16.msra.mxu0 0
        %1029 = vmatprep.subr.bf16.mxu0 0
        %1030 = vmatpush1.bf16.msra.mxu0 0
        %1031 = vmatprep.subr.bf16.mxu0 0
        %1032 = vmatpush1.bf16.msra.mxu0 0
        %1033 = vmatprep.subr.bf16.mxu0 0
        %1034 = vmatpush1.bf16.msra.mxu0 0
        %1035 = vmatprep.subr.bf16.mxu0 0
        %1036 = vmatpush1.bf16.msra.mxu0 0
        %1037 = vmatprep.mubr.bf16.mxu0 0
        %1038 = vmatmul.mubr.bf16.gmra.mrb[0].mxu0 %v953
        %v1039 = vpop.f32.mrb[0].mxu0
        %v1040 = vadd.f32 0.0, %v1039
        %v1041 = vpop.f32.mrb[0].mxu0
        %v1042 = vpop.f32.mrb[0].mxu0
        %v1043 = vpop.f32.mrb[0].mxu0
        %1044 = vdwg.mxu0
        %v1045 = vld [vmem:[%s210] sm:$0xff]
        %v1046 = vld [vmem:[%s210 + $0x8] sm:$0xff]
        %v1047 = vld [vmem:[%s210 + $0x10] sm:$0xff]
        %1048 = vrot.lane.b32.xlu0 %v999, 123
        %v1049 = vpop.permute.xlu0 %1048
        %1050 = vrot.lane.b32.xlu0 %v1001, 123
        %v1051 = vpop.permute.xlu0 %1050
        %1052 = vrot.lane.b32.xlu0 %v1040, 123
        %v1053 = vpop.permute.xlu0 %1052
        %vm1054 = vcmp.lt.s32.totalorder %v477, 123
        %v1055 = vsel %vm1054, %v1051, %v1053
        %v1056 = vsel %vm1054, %v1049, %v1051
        %v1057 = vsel %vm1054, %v1053, %v1049
        %v1058 = vadd.f32 %v1045, %v1056
        %v1059 = vadd.f32 %v1046, %v1055
        %v1060 = vadd.f32 %v1047, %v1057
        %1061 = vst [vmem:[%s210] sm:$0xff] %v1058
        %1062 = vst [vmem:[%s210 + $0x8] sm:$0xff] %v1059
        %1063 = vst [vmem:[%s210 + $0x10] sm:$0xff] %v1060
        %s1064 = scalar_lea.vmem %s0, 24
        %v1065 = vld [vmem:[%s1064] sm:$0xf]
        %v1066 = vld [vmem:[%s184] sm:$0xff]
        %v1067 = vld [vmem:[%s184 + $0x8] sm:$0xf]
        %v1068 = vld [vmem:[%s184 + $0xc] sm:$0xff]
        %v1069 = vld [vmem:[%s184 + $0x14] sm:$0xf]
        %v1070 = vld [vmem:[%s184 + $0x18] sm:$0xff]
        %v1071 = vld [vmem:[%s184 + $0x20] sm:$0xf]
        %v1078 = vunpack.c.l.b16 %v1066
        %v1079 = vunpack.c.h.b16 %v1066
        %v1080 = vunpack.c.l.b16 %v1067
        %v1081 = vunpack.c.l.b16 %v1068
        %v1082 = vunpack.c.h.b16 %v1068
        %v1083 = vunpack.c.l.b16 %v1069
        %v1084 = vunpack.c.l.b16 %v1070
        %v1085 = vunpack.c.h.b16 %v1070
        %v1086 = vunpack.c.l.b16 %v1071
        %v1087 = vpack.c.b16 %v1081, %v1078
        %v1088 = vpack.c.b16 %v1082, %v1079
        %v1089 = vpack.c.b16 %v1083, %v1080
        %v1090 = vpack.c.b16 %v1084, %v1084
        %v1091 = vpack.c.b16 %v1085, %v1085
        %v1092 = vpack.c.b16 %v1086, %v1086
        %v1097 = vsel %vm244, %v1065, 0
        %v1100 = vsel %vm248, %v1090, 0
        %v1103 = vsel %vm248, %v1091, 0
        %v1106 = vsel %vm248, %v1092, 0
        %1108 = vmatprep.subr.bf16.mxu0 %v1088
        %1109 = vmatpush1.bf16.msra.mxu0 %v1087
        %1110 = vmatprep.subr.bf16.mxu0 %v1103
        %1111 = vmatpush1.bf16.msra.mxu0 %v1100
        %1112 = vmatprep.subr.bf16.mxu0 0
        %1113 = vmatpush1.bf16.msra.mxu0 0
        %1114 = vmatprep.subr.bf16.mxu0 0
        %1115 = vmatpush1.bf16.msra.mxu0 0
        %1116 = vmatprep.subr.bf16.mxu0 0
        %1117 = vmatpush1.bf16.msra.mxu0 0
        %1118 = vmatprep.subr.bf16.mxu0 0
        %1119 = vmatpush1.bf16.msra.mxu0 0
        %1120 = vmatprep.subr.bf16.mxu0 0
        %1121 = vmatpush1.bf16.msra.mxu0 0
        %1122 = vmatprep.subr.bf16.mxu0 0
        %1123 = vmatpush1.bf16.msra.mxu0 0
        %1124 = vmatprep.subr.bf16.mxu0 0
        %1125 = vmatpush1.bf16.msra.mxu0 0
        %1126 = vmatprep.subr.bf16.mxu0 0
        %1127 = vmatpush1.bf16.msra.mxu0 0
        %1128 = vmatprep.subr.bf16.mxu0 0
        %1129 = vmatpush1.bf16.msra.mxu0 0
        %1130 = vmatprep.subr.bf16.mxu0 0
        %1131 = vmatpush1.bf16.msra.mxu0 0
        %1132 = vmatprep.subr.bf16.mxu0 0
        %1133 = vmatpush1.bf16.msra.mxu0 0
        %1134 = vmatprep.subr.bf16.mxu0 0
        %1135 = vmatpush1.bf16.msra.mxu0 0
        %1136 = vmatprep.subr.bf16.mxu0 0
        %1137 = vmatpush1.bf16.msra.mxu0 0
        %1138 = vmatprep.subr.bf16.mxu0 0
        %1139 = vmatpush1.bf16.msra.mxu0 0
        %1140 = vmatprep.mubr.bf16.mxu0 0
        %1141 = vmatmul.mubr.bf16.gmra.mrb[0].mxu0 %v1097
        %v1142 = vpop.f32.mrb[0].mxu0
        %v1143 = vadd.f32 0.0, %v1142
        %v1144 = vpop.f32.mrb[0].mxu0
        %v1145 = vadd.f32 0.0, %v1144
        %v1146 = vpop.f32.mrb[0].mxu0
        %v1147 = vpop.f32.mrb[0].mxu0
        %1148 = vdwg.mxu0
        %1149 = vmatprep.subr.bf16.mxu0 0
        %1150 = vmatpush1.bf16.msra.mxu0 %v1089
        %1151 = vmatprep.subr.bf16.mxu0 0
        %1152 = vmatpush1.bf16.msra.mxu0 %v1106
        %1153 = vmatprep.subr.bf16.mxu0 0
        %1154 = vmatpush1.bf16.msra.mxu0 0
        %1155 = vmatprep.subr.bf16.mxu0 0
        %1156 = vmatpush1.bf16.msra.mxu0 0
        %1157 = vmatprep.subr.bf16.mxu0 0
        %1158 = vmatpush1.bf16.msra.mxu0 0
        %1159 = vmatprep.subr.bf16.mxu0 0
        %1160 = vmatpush1.bf16.msra.mxu0 0
        %1161 = vmatprep.subr.bf16.mxu0 0
        %1162 = vmatpush1.bf16.msra.mxu0 0
        %1163 = vmatprep.subr.bf16.mxu0 0
        %1164 = vmatpush1.bf16.msra.mxu0 0
        %1165 = vmatprep.subr.bf16.mxu0 0
        %1166 = vmatpush1.bf16.msra.mxu0 0
        %1167 = vmatprep.subr.bf16.mxu0 0
        %1168 = vmatpush1.bf16.msra.mxu0 0
        %1169 = vmatprep.subr.bf16.mxu0 0
        %1170 = vmatpush1.bf16.msra.mxu0 0
        %1171 = vmatprep.subr.bf16.mxu0 0
        %1172 = vmatpush1.bf16.msra.mxu0 0
        %1173 = vmatprep.subr.bf16.mxu0 0
        %1174 = vmatpush1.bf16.msra.mxu0 0
        %1175 = vmatprep.subr.bf16.mxu0 0
        %1176 = vmatpush1.bf16.msra.mxu0 0
        %1177 = vmatprep.subr.bf16.mxu0 0
        %1178 = vmatpush1.bf16.msra.mxu0 0
        %1179 = vmatprep.subr.bf16.mxu0 0
        %1180 = vmatpush1.bf16.msra.mxu0 0
        %1181 = vmatprep.mubr.bf16.mxu0 0
        %1182 = vmatmul.mubr.bf16.gmra.mrb[0].mxu0 %v1097
        %v1183 = vpop.f32.mrb[0].mxu0
        %v1184 = vadd.f32 0.0, %v1183
        %v1185 = vpop.f32.mrb[0].mxu0
        %v1186 = vpop.f32.mrb[0].mxu0
        %v1187 = vpop.f32.mrb[0].mxu0
        %1188 = vdwg.mxu0
        %v1189 = vld [vmem:[%s210] sm:$0xff]
        %v1190 = vld [vmem:[%s210 + $0x8] sm:$0xff]
        %v1191 = vld [vmem:[%s210 + $0x10] sm:$0xff]
        %1192 = vrot.lane.b32.xlu0 %v1143, 122
        %v1193 = vpop.permute.xlu0 %1192
        %1194 = vrot.lane.b32.xlu0 %v1145, 122
        %v1195 = vpop.permute.xlu0 %1194
        %1196 = vrot.lane.b32.xlu0 %v1184, 122
        %v1197 = vpop.permute.xlu0 %1196
        %vm1198 = vcmp.lt.s32.totalorder %v477, 122
        %v1199 = vsel %vm1198, %v1195, %v1197
        %v1200 = vsel %vm1198, %v1193, %v1195
        %v1201 = vsel %vm1198, %v1197, %v1193
        %v1202 = vadd.f32 %v1189, %v1200
        %v1203 = vadd.f32 %v1190, %v1199
        %v1204 = vadd.f32 %v1191, %v1201
        %1205 = vst [vmem:[%s210] sm:$0xff] %v1202
        %1206 = vst [vmem:[%s210 + $0x8] sm:$0xff] %v1203
        %1207 = vst [vmem:[%s210 + $0x10] sm:$0xff] %v1204
        %s1208 = scalar_lea.vmem %s0, 28
        %v1209 = vld [vmem:[%s1208] sm:$0xf]
        %v1210 = vld [vmem:[%s184] sm:$0xff]
        %v1211 = vld [vmem:[%s184 + $0x8] sm:$0xf]
        %v1212 = vld [vmem:[%s184 + $0xc] sm:$0xff]
        %v1213 = vld [vmem:[%s184 + $0x14] sm:$0xf]
        %v1214 = vld [vmem:[%s184 + $0x18] sm:$0xff]
        %v1215 = vld [vmem:[%s184 + $0x20] sm:$0xf]
        %v1222 = vunpack.c.l.b16 %v1210
        %v1223 = vunpack.c.h.b16 %v1210
        %v1224 = vunpack.c.l.b16 %v1211
        %v1225 = vunpack.c.l.b16 %v1212
        %v1226 = vunpack.c.h.b16 %v1212
        %v1227 = vunpack.c.l.b16 %v1213
        %v1228 = vunpack.c.l.b16 %v1214
        %v1229 = vunpack.c.h.b16 %v1214
        %v1230 = vunpack.c.l.b16 %v1215
        %v1231 = vpack.c.b16 %v1225, %v1222
        %v1232 = vpack.c.b16 %v1226, %v1223
        %v1233 = vpack.c.b16 %v1227, %v1224
        %v1234 = vpack.c.b16 %v1228, %v1228
        %v1235 = vpack.c.b16 %v1229, %v1229
        %v1236 = vpack.c.b16 %v1230, %v1230
        %v1241 = vsel %vm244, %v1209, 0
        %v1244 = vsel %vm248, %v1234, 0
        %v1247 = vsel %vm248, %v1235, 0
        %v1250 = vsel %vm248, %v1236, 0
        %1252 = vmatprep.subr.bf16.mxu0 %v1232
        %1253 = vmatpush1.bf16.msra.mxu0 %v1231
        %1254 = vmatprep.subr.bf16.mxu0 %v1247
        %1255 = vmatpush1.bf16.msra.mxu0 %v1244
        %1256 = vmatprep.subr.bf16.mxu0 0
        %1257 = vmatpush1.bf16.msra.mxu0 0
        %1258 = vmatprep.subr.bf16.mxu0 0
        %1259 = vmatpush1.bf16.msra.mxu0 0
        %1260 = vmatprep.subr.bf16.mxu0 0
        %1261 = vmatpush1.bf16.msra.mxu0 0
        %1262 = vmatprep.subr.bf16.mxu0 0
        %1263 = vmatpush1.bf16.msra.mxu0 0
        %1264 = vmatprep.subr.bf16.mxu0 0
        %1265 = vmatpush1.bf16.msra.mxu0 0
        %1266 = vmatprep.subr.bf16.mxu0 0
        %1267 = vmatpush1.bf16.msra.mxu0 0
        %1268 = vmatprep.subr.bf16.mxu0 0
        %1269 = vmatpush1.bf16.msra.mxu0 0
        %1270 = vmatprep.subr.bf16.mxu0 0
        %1271 = vmatpush1.bf16.msra.mxu0 0
        %1272 = vmatprep.subr.bf16.mxu0 0
        %1273 = vmatpush1.bf16.msra.mxu0 0
        %1274 = vmatprep.subr.bf16.mxu0 0
        %1275 = vmatpush1.bf16.msra.mxu0 0
        %1276 = vmatprep.subr.bf16.mxu0 0
        %1277 = vmatpush1.bf16.msra.mxu0 0
        %1278 = vmatprep.subr.bf16.mxu0 0
        %1279 = vmatpush1.bf16.msra.mxu0 0
        %1280 = vmatprep.subr.bf16.mxu0 0
        %1281 = vmatpush1.bf16.msra.mxu0 0
        %1282 = vmatprep.subr.bf16.mxu0 0
        %1283 = vmatpush1.bf16.msra.mxu0 0
        %1284 = vmatprep.mubr.bf16.mxu0 0
        %1285 = vmatmul.mubr.bf16.gmra.mrb[0].mxu0 %v1241
        %v1286 = vpop.f32.mrb[0].mxu0
        %v1287 = vadd.f32 0.0, %v1286
        %v1288 = vpop.f32.mrb[0].mxu0
        %v1289 = vadd.f32 0.0, %v1288
        %v1290 = vpop.f32.mrb[0].mxu0
        %v1291 = vpop.f32.mrb[0].mxu0
        %1292 = vdwg.mxu0
        %1293 = vmatprep.subr.bf16.mxu0 0
        %1294 = vmatpush1.bf16.msra.mxu0 %v1233
        %1295 = vmatprep.subr.bf16.mxu0 0
        %1296 = vmatpush1.bf16.msra.mxu0 %v1250
        %1297 = vmatprep.subr.bf16.mxu0 0
        %1298 = vmatpush1.bf16.msra.mxu0 0
        %1299 = vmatprep.subr.bf16.mxu0 0
        %1300 = vmatpush1.bf16.msra.mxu0 0
        %1301 = vmatprep.subr.bf16.mxu0 0
        %1302 = vmatpush1.bf16.msra.mxu0 0
        %1303 = vmatprep.subr.bf16.mxu0 0
        %1304 = vmatpush1.bf16.msra.mxu0 0
        %1305 = vmatprep.subr.bf16.mxu0 0
        %1306 = vmatpush1.bf16.msra.mxu0 0
        %1307 = vmatprep.subr.bf16.mxu0 0
        %1308 = vmatpush1.bf16.msra.mxu0 0
        %1309 = vmatprep.subr.bf16.mxu0 0
        %1310 = vmatpush1.bf16.msra.mxu0 0
        %1311 = vmatprep.subr.bf16.mxu0 0
        %1312 = vmatpush1.bf16.msra.mxu0 0
        %1313 = vmatprep.subr.bf16.mxu0 0
        %1314 = vmatpush1.bf16.msra.mxu0 0
        %1315 = vmatprep.subr.bf16.mxu0 0
        %1316 = vmatpush1.bf16.msra.mxu0 0
        %1317 = vmatprep.subr.bf16.mxu0 0
        %1318 = vmatpush1.bf16.msra.mxu0 0
        %1319 = vmatprep.subr.bf16.mxu0 0
        %1320 = vmatpush1.bf16.msra.mxu0 0
        %1321 = vmatprep.subr.bf16.mxu0 0
        %1322 = vmatpush1.bf16.msra.mxu0 0
        %1323 = vmatprep.subr.bf16.mxu0 0
        %1324 = vmatpush1.bf16.msra.mxu0 0
        %1325 = vmatprep.mubr.bf16.mxu0 0
        %1326 = vmatmul.mubr.bf16.gmra.mrb[0].mxu0 %v1241
        %v1327 = vpop.f32.mrb[0].mxu0
        %v1328 = vadd.f32 0.0, %v1327
        %v1329 = vpop.f32.mrb[0].mxu0
        %v1330 = vpop.f32.mrb[0].mxu0
        %v1331 = vpop.f32.mrb[0].mxu0
        %1332 = vdwg.mxu0
        %v1333 = vld [vmem:[%s210] sm:$0xff]
        %v1334 = vld [vmem:[%s210 + $0x8] sm:$0xff]
        %v1335 = vld [vmem:[%s210 + $0x10] sm:$0xff]
        %1336 = vrot.lane.b32.xlu0 %v1287, 121
        %v1337 = vpop.permute.xlu0 %1336
        %1338 = vrot.lane.b32.xlu0 %v1289, 121
        %v1339 = vpop.permute.xlu0 %1338
        %1340 = vrot.lane.b32.xlu0 %v1328, 121
        %v1341 = vpop.permute.xlu0 %1340
        %vm1342 = vcmp.lt.s32.totalorder %v477, 121
        %v1343 = vsel %vm1342, %v1339, %v1341
        %v1344 = vsel %vm1342, %v1337, %v1339
        %v1345 = vsel %vm1342, %v1341, %v1337
        %v1346 = vadd.f32 %v1333, %v1344
        %v1347 = vadd.f32 %v1334, %v1343
        %v1348 = vadd.f32 %v1335, %v1345
        %1349 = vst [vmem:[%s210] sm:$0xff] %v1346
        %1350 = vst [vmem:[%s210 + $0x8] sm:$0xff] %v1347
        %1351 = vst [vmem:[%s210 + $0x10] sm:$0xff] %v1348
        %s1352 = scalar_lea.vmem %s0, 32
        %v1353 = vld [vmem:[%s1352] sm:$0xf]
        %v1354 = vld [vmem:[%s184] sm:$0xff]
        %v1355 = vld [vmem:[%s184 + $0x8] sm:$0xf]
        %v1356 = vld [vmem:[%s184 + $0xc] sm:$0xff]
        %v1357 = vld [vmem:[%s184 + $0x14] sm:$0xf]
        %v1358 = vld [vmem:[%s184 + $0x18] sm:$0xff]
        %v1359 = vld [vmem:[%s184 + $0x20] sm:$0xf]
        %v1366 = vunpack.c.l.b16 %v1354
        %v1367 = vunpack.c.h.b16 %v1354
        %v1368 = vunpack.c.l.b16 %v1355
        %v1369 = vunpack.c.l.b16 %v1356
        %v1370 = vunpack.c.h.b16 %v1356
        %v1371 = vunpack.c.l.b16 %v1357
        %v1372 = vunpack.c.l.b16 %v1358
        %v1373 = vunpack.c.h.b16 %v1358
        %v1374 = vunpack.c.l.b16 %v1359
        %v1375 = vpack.c.b16 %v1369, %v1366
        %v1376 = vpack.c.b16 %v1370, %v1367
        %v1377 = vpack.c.b16 %v1371, %v1368
        %v1378 = vpack.c.b16 %v1372, %v1372
        %v1379 = vpack.c.b16 %v1373, %v1373
        %v1380 = vpack.c.b16 %v1374, %v1374
        %v1385 = vsel %vm244, %v1353, 0
        %v1388 = vsel %vm248, %v1378, 0
        %v1391 = vsel %vm248, %v1379, 0
        %v1394 = vsel %vm248, %v1380, 0
        %1396 = vmatprep.subr.bf16.mxu0 %v1376
        %1397 = vmatpush1.bf16.msra.mxu0 %v1375
        %1398 = vmatprep.subr.bf16.mxu0 %v1391
        %1399 = vmatpush1.bf16.msra.mxu0 %v1388
        %1400 = vmatprep.subr.bf16.mxu0 0
        %1401 = vmatpush1.bf16.msra.mxu0 0
        %1402 = vmatprep.subr.bf16.mxu0 0
        %1403 = vmatpush1.bf16.msra.mxu0 0
        %1404 = vmatprep.subr.bf16.mxu0 0
        %1405 = vmatpush1.bf16.msra.mxu0 0
        %1406 = vmatprep.subr.bf16.mxu0 0
        %1407 = vmatpush1.bf16.msra.mxu0 0
        %1408 = vmatprep.subr.bf16.mxu0 0
        %1409 = vmatpush1.bf16.msra.mxu0 0
        %1410 = vmatprep.subr.bf16.mxu0 0
        %1411 = vmatpush1.bf16.msra.mxu0 0
        %1412 = vmatprep.subr.bf16.mxu0 0
        %1413 = vmatpush1.bf16.msra.mxu0 0
        %1414 = vmatprep.subr.bf16.mxu0 0
        %1415 = vmatpush1.bf16.msra.mxu0 0
        %1416 = vmatprep.subr.bf16.mxu0 0
        %1417 = vmatpush1.bf16.msra.mxu0 0
        %1418 = vmatprep.subr.bf16.mxu0 0
        %1419 = vmatpush1.bf16.msra.mxu0 0
        %1420 = vmatprep.subr.bf16.mxu0 0
        %1421 = vmatpush1.bf16.msra.mxu0 0
        %1422 = vmatprep.subr.bf16.mxu0 0
        %1423 = vmatpush1.bf16.msra.mxu0 0
        %1424 = vmatprep.subr.bf16.mxu0 0
        %1425 = vmatpush1.bf16.msra.mxu0 0
        %1426 = vmatprep.subr.bf16.mxu0 0
        %1427 = vmatpush1.bf16.msra.mxu0 0
        %1428 = vmatprep.mubr.bf16.mxu0 0
        %1429 = vmatmul.mubr.bf16.gmra.mrb[0].mxu0 %v1385
        %v1430 = vpop.f32.mrb[0].mxu0
        %v1431 = vadd.f32 0.0, %v1430
        %v1432 = vpop.f32.mrb[0].mxu0
        %v1433 = vadd.f32 0.0, %v1432
        %v1434 = vpop.f32.mrb[0].mxu0
        %v1435 = vpop.f32.mrb[0].mxu0
        %1436 = vdwg.mxu0
        %1437 = vmatprep.subr.bf16.mxu0 0
        %1438 = vmatpush1.bf16.msra.mxu0 %v1377
        %1439 = vmatprep.subr.bf16.mxu0 0
        %1440 = vmatpush1.bf16.msra.mxu0 %v1394
        %1441 = vmatprep.subr.bf16.mxu0 0
        %1442 = vmatpush1.bf16.msra.mxu0 0
        %1443 = vmatprep.subr.bf16.mxu0 0
        %1444 = vmatpush1.bf16.msra.mxu0 0
        %1445 = vmatprep.subr.bf16.mxu0 0
        %1446 = vmatpush1.bf16.msra.mxu0 0
        %1447 = vmatprep.subr.bf16.mxu0 0
        %1448 = vmatpush1.bf16.msra.mxu0 0
        %1449 = vmatprep.subr.bf16.mxu0 0
        %1450 = vmatpush1.bf16.msra.mxu0 0
        %1451 = vmatprep.subr.bf16.mxu0 0
        %1452 = vmatpush1.bf16.msra.mxu0 0
        %1453 = vmatprep.subr.bf16.mxu0 0
        %1454 = vmatpush1.bf16.msra.mxu0 0
        %1455 = vmatprep.subr.bf16.mxu0 0
        %1456 = vmatpush1.bf16.msra.mxu0 0
        %1457 = vmatprep.subr.bf16.mxu0 0
        %1458 = vmatpush1.bf16.msra.mxu0 0
        %1459 = vmatprep.subr.bf16.mxu0 0
        %1460 = vmatpush1.bf16.msra.mxu0 0
        %1461 = vmatprep.subr.bf16.mxu0 0
        %1462 = vmatpush1.bf16.msra.mxu0 0
        %1463 = vmatprep.subr.bf16.mxu0 0
        %1464 = vmatpush1.bf16.msra.mxu0 0
        %1465 = vmatprep.subr.bf16.mxu0 0
        %1466 = vmatpush1.bf16.msra.mxu0 0
        %1467 = vmatprep.subr.bf16.mxu0 0
        %1468 = vmatpush1.bf16.msra.mxu0 0
        %1469 = vmatprep.mubr.bf16.mxu0 0
        %1470 = vmatmul.mubr.bf16.gmra.mrb[0].mxu0 %v1385
        %v1471 = vpop.f32.mrb[0].mxu0
        %v1472 = vadd.f32 0.0, %v1471
        %v1473 = vpop.f32.mrb[0].mxu0
        %v1474 = vpop.f32.mrb[0].mxu0
        %v1475 = vpop.f32.mrb[0].mxu0
        %1476 = vdwg.mxu0
        %v1477 = vld [vmem:[%s210] sm:$0xff]
        %v1478 = vld [vmem:[%s210 + $0x8] sm:$0xff]
        %v1479 = vld [vmem:[%s210 + $0x10] sm:$0xff]
        %1480 = vrot.lane.b32.xlu0 %v1431, 120
        %v1481 = vpop.permute.xlu0 %1480
        %1482 = vrot.lane.b32.xlu0 %v1433, 120
        %v1483 = vpop.permute.xlu0 %1482
        %1484 = vrot.lane.b32.xlu0 %v1472, 120
        %v1485 = vpop.permute.xlu0 %1484
        %vm1486 = vcmp.lt.s32.totalorder %v477, 120
        %v1487 = vsel %vm1486, %v1483, %v1485
        %v1488 = vsel %vm1486, %v1481, %v1483
        %v1489 = vsel %vm1486, %v1485, %v1481
        %v1490 = vadd.f32 %v1477, %v1488
        %v1491 = vadd.f32 %v1478, %v1487
        %v1492 = vadd.f32 %v1479, %v1489
        %1493 = vst [vmem:[%s210] sm:$0xff] %v1490
        %1494 = vst [vmem:[%s210 + $0x8] sm:$0xff] %v1491
        %1495 = vst [vmem:[%s210 + $0x10] sm:$0xff] %v1492
        %v1496 = vld [vmem:[%s210] sm:$0xff]
        %v1497 = vld [vmem:[%s210 + $0x8] sm:$0xff]
        %v1498 = vld [vmem:[%s210 + $0x10] sm:$0xff]
        %v1499 = vld [vmem:[%s2] sm:$0xff]
        %1501 = vset.pattern.permute.xlu0 0
        %1502 = vperm.xlu0 %1501, %v1499
        %v1503 = vpop.permute.xlu0 %1502
        %v1505 = vadd.f32 %v1496, %v1503
        %v1506 = vadd.f32 %v1497, %v1503
        %v1507 = vadd.f32 %v1498, %v1503
        %vm1508 = vcmp.ge.f32.partialorder %v1505, 0.0
        %vm1509 = vcmp.ge.f32.partialorder %v1506, 0.0
        %vm1510 = vcmp.ge.f32.partialorder %v1507, 0.0
        %v1511 = vmul.f32 %v1505, 0.1
        %v1512 = vmul.f32 %v1506, 0.1
        %v1513 = vmul.f32 %v1507, 0.1
        %v1514 = vsel %vm1508, %v1505, %v1511
        %v1515 = vsel %vm1509, %v1506, %v1512
        %v1516 = vsel %vm1510, %v1507, %v1513
        %1517 = vst [vmem:[%s210] sm:$0xff] %v1514
        %1518 = vst [vmem:[%s210 + $0x8] sm:$0xff] %v1515
        %1519 = vst [vmem:[%s210 + $0x10] sm:$0xff] %v1516
        %s1520 = smul.u32 3, %s14
        %p1521 = scmp.lt.s32.totalorder %s1520, 14
        %s1522 = scalar_select %p1521, %s1520, 14
        %s1523 = smul.addr %s1522, 8
        %s1524 = scalar_lea.vmem %s3, %s1523
        // Predicated region
        $region59: #{discriminator_r_forward.9} parent=53 // pred_check
          %p1525 = pneg %p100
        $region60: #{discriminator_r_forward.9} parent=53 // pred_check_branch
          %1527 = sbr.rel (%p1525) target = $region62
        $region61: #{discriminator_r_forward.9} parent=53 // pred_region
          %s1528 = smul.u32 3, %s14
        $region62: #{discriminator_r_forward.9} parent=53 // pred_fallthru
          _
      $region54: #{discriminator_r_forward.9} parent=5 // pred_fallthru
        _
      %p1529 = scmp.le.s32.totalorder 2, %s9
      // Predicated region
      $region63: #{discriminator_r_forward.9} parent=5 // pred_check
        %p1530 = pneg %p1529
      $region64: #{discriminator_r_forward.9} parent=5 // pred_check_branch
        %1532 = sbr.rel (%p1530) target = $region66
      $region65: #{discriminator_r_forward.9} parent=5 // pred_region
        %s1533 = ssub.s32 %s9, 2
        // Predicated region
        $region67: #{discriminator_r_forward.9} parent=65 // pred_check
          %p1534 = pneg %p106
        $region68: #{discriminator_r_forward.9} parent=65 // pred_check_branch
          %1536 = sbr.rel (%p1534) target = $region70
        $region69: #{discriminator_r_forward.9} parent=65 // pred_region
          %s1537 = smul.u32 3, %s15
          %p1538 = scmp.lt.s32.totalorder %s1537, 14
          %s1539 = scalar_select %p1538, %s1537, 14
          %s1540 = smul.addr %s1539, 8
          %s1541 = scalar_lea.vmem %s3, %s1540
        $region70: #{discriminator_r_forward.9} parent=65 // pred_fallthru
          _
      $region66: #{discriminator_r_forward.9} parent=5 // pred_fallthru
        _
    $region6: #{discriminator_r_forward.9} parent=1 // loop_footer
      %s13 = sadd.s32 1, %s9
    $region7: #{discriminator_r_forward.9} parent=1 // loop_footer_branch
      %8 = sbr.rel target = $region3
    $region8: #{discriminator_r_forward.9} parent=1 // loop_exit
      _

// kernel: discriminator_r_forward.10
$region0: #{discriminator_r_forward.10}
  #allocation0 [shape = 'u32[]', space=smem, size = 0x4, offset = 0x4, fixed_abs, tag = 'smem constant byte address 0x4 - core index']
  #allocation1 [shape = 'u32[144,128]{1,0:T(1,128)}', space=vmem, size = 0x12000, scoped, tag = 'internal scratch']
  %s0 = inlined_call_operand.vmem [shape: bf16[9,8,24], index: 0, kind: input, shape index: {}]
  %s1 = inlined_call_operand.vmem [shape: bf16[24,1280], index: 1, kind: input, shape index: {}]
  %s2 = inlined_call_operand.vmem [shape: f32[8,1], index: 2, kind: input, shape index: {}]
  %s3 = inlined_call_operand.vmem [shape: f32[8,1280], index: 3, kind: output, shape index: {}]
  %s4 = sld [smem:[#allocation0]]
  $region83: #{discriminator_r_forward.10} parent=0
    _
  %s6 = ssub.s32 1, %s4
  %s7 = scalar_select 0, %s6, %s4
  $region1: #{discriminator_r_forward.10} parent=0
    #allocation2 [shape = 'u8[24576]{0}', space=vmem, size = 0x6000, scoped, tag = 'input window, operand 1']
    loop: start=0, step=1, limit=7
    $region2: #{discriminator_r_forward.10} parent=1 // loop_pre_header
      _
    $region3: #{discriminator_r_forward.10} parent=1 // loop_header
      %s9 = sphi 0, %s13
      %p10 = scmp.ge.s32.totalorder %s9, 7
      %s17 = sphi 0, %s17
      %s19 = sphi 0, %s17
      %s20 = sphi 0, %s19
      %s34 = sphi 0, %s20
      %s40 = sphi 0, %s42
      %s43 = sphi 0, %s40
      %s44 = sphi 0, %s43
      %s60 = sphi 0, %s44
      %s64 = sphi 0, %s64
      %s66 = sphi 0, %s64
      %s67 = sphi 0, %s66
      %s81 = sphi 0, %s67
      %s87 = sphi 0, %s89
      %s90 = sphi 0, %s87
      %s91 = sphi 0, %s90
      %s107 = sphi 0, %s91
    $region4: #{discriminator_r_forward.10} parent=1 // loop_header_branch
      %12 = sbr.rel (%p10) target = $region8
    $region5: #{discriminator_r_forward.10} parent=1 // loop_body
      %s14 = ssub.s32 %s9, 1
      %s15 = ssub.s32 %s9, 2
      %s16 = sadd.s32 %s9, 1
      %s18 = sadd.s32 %s17, 1
      %p21 = scmp.eq.s32.totalorder %s9, 4
      %p22 = scmp.ne.s32.totalorder %s17, %s19
      %p23 = scmp.eq.s32.totalorder %s9, 0
      %p24 = por %p22, %p23
      %p25 = scmp.ne.s32.totalorder %s17, %s19
      %p26 = scmp.eq.s32.totalorder %s14, 4
      %p27 = por %p25, %p26
      %p28 = scmp.ne.s32.totalorder %s19, %s20
      %p29 = scmp.eq.s32.totalorder %s14, 0
      %p30 = por %p28, %p29
      %p31 = scmp.ne.s32.totalorder %s19, %s20
      %p32 = scmp.eq.s32.totalorder %s15, 4
      %p33 = por %p31, %p32
      %p35 = scmp.ne.s32.totalorder %s20, %s34
      %p36 = scmp.eq.s32.totalorder %s15, 0
      %p37 = por %p35, %p36
      %s38 = ssub.s32 %s9, %s16
      %p39 = scmp.eq.s32.totalorder %s38, 0
      %s41 = sadd.s32 %s40, 1
      %s42 = scalar_select %p39, %s40, %s41
      %p45 = pneg %p39
      %p46 = scmp.eq.s32.totalorder %s9, 4
      %p47 = por %p45, %p46
      %p48 = scmp.ne.s32.totalorder %s40, %s43
      %p49 = scmp.eq.s32.totalorder %s9, 0
      %p50 = por %p48, %p49
      %p51 = scmp.ne.s32.totalorder %s40, %s43
      %p52 = scmp.eq.s32.totalorder %s14, 4
      %p53 = por %p51, %p52
      %p54 = scmp.ne.s32.totalorder %s43, %s44
      %p55 = scmp.eq.s32.totalorder %s14, 0
      %p56 = por %p54, %p55
      %p57 = scmp.ne.s32.totalorder %s43, %s44
      %p58 = scmp.eq.s32.totalorder %s15, 4
      %p59 = por %p57, %p58
      %p61 = scmp.ne.s32.totalorder %s44, %s60
      %p62 = scmp.eq.s32.totalorder %s15, 0
      %p63 = por %p61, %p62
      %s65 = sadd.s32 %s64, 1
      %p68 = scmp.eq.s32.totalorder %s9, 4
      %p69 = scmp.ne.s32.totalorder %s64, %s66
      %p70 = scmp.eq.s32.totalorder %s9, 0
      %p71 = por %p69, %p70
      %p72 = scmp.ne.s32.totalorder %s64, %s66
      %p73 = scmp.eq.s32.totalorder %s14, 4
      %p74 = por %p72, %p73
      %p75 = scmp.ne.s32.totalorder %s66, %s67
      %p76 = scmp.eq.s32.totalorder %s14, 0
      %p77 = por %p75, %p76
      %p78 = scmp.ne.s32.totalorder %s66, %s67
      %p79 = scmp.eq.s32.totalorder %s15, 4
      %p80 = por %p78, %p79
      %p82 = scmp.ne.s32.totalorder %s67, %s81
      %p83 = scmp.eq.s32.totalorder %s15, 0
      %p84 = por %p82, %p83
      %s85 = ssub.s32 %s9, %s16
      %p86 = scmp.eq.s32.totalorder %s85, 0
      %s88 = sadd.s32 %s87, 1
      %s89 = scalar_select %p86, %s87, %s88
      %p92 = pneg %p86
      %p93 = scmp.eq.s32.totalorder %s9, 4
      %p94 = por %p92, %p93
      %p95 = scmp.ne.s32.totalorder %s87, %s90
      %p96 = scmp.eq.s32.totalorder %s9, 0
      %p97 = por %p95, %p96
      %p98 = scmp.ne.s32.totalorder %s87, %s90
      %p99 = scmp.eq.s32.totalorder %s14, 4
      %p100 = por %p98, %p99
      %p101 = scmp.ne.s32.totalorder %s90, %s91
      %p102 = scmp.eq.s32.totalorder %s14, 0
      %p103 = por %p101, %p102
      %p104 = scmp.ne.s32.totalorder %s90, %s91
      %p105 = scmp.eq.s32.totalorder %s15, 4
      %p106 = por %p104, %p105
      %p108 = scmp.ne.s32.totalorder %s91, %s107
      %p109 = scmp.eq.s32.totalorder %s15, 0
      %p110 = por %p108, %p109
      %p111 = scmp.le.s32.totalorder 1, %s9
      %p112 = scmp.lt.s32.totalorder %s9, 6
      %p113 = pnand %p111, %p112
      %p114 = pneg %p113
      // Predicated region
      $region9: #{discriminator_r_forward.10} parent=5 // pred_check
        _
      $region10: #{discriminator_r_forward.10} parent=5 // pred_check_branch
        %116 = sbr.rel (%p113) target = $region12
      $region11: #{discriminator_r_forward.10} parent=5 // pred_region
        %s117 = ssub.s32 %s9, 1
        // Predicated region
        $region13: #{discriminator_r_forward.10} parent=11 // pred_check
          %p118 = pneg %p30
        $region14: #{discriminator_r_forward.10} parent=11 // pred_check_branch
          %120 = sbr.rel (%p118) target = $region16
        $region15: #{discriminator_r_forward.10} parent=11 // pred_region
          _
        $region16: #{discriminator_r_forward.10} parent=11 // pred_fallthru
          _
        // Predicated region
        $region17: #{discriminator_r_forward.10} parent=11 // pred_check
          %p121 = pneg %p77
        $region18: #{discriminator_r_forward.10} parent=11 // pred_check_branch
          %123 = sbr.rel (%p121) target = $region20
        $region19: #{discriminator_r_forward.10} parent=11 // pred_region
          _
        $region20: #{discriminator_r_forward.10} parent=11 // pred_fallthru
          _
      $region12: #{discriminator_r_forward.10} parent=5 // pred_fallthru
        _
      %p124 = scmp.lt.s32.totalorder %s9, 5
      // Predicated region
      $region21: #{discriminator_r_forward.10} parent=5 // pred_check
        %p125 = pneg %p124
      $region22: #{discriminator_r_forward.10} parent=5 // pred_check_branch
        %127 = sbr.rel (%p125) target = $region24
      $region23: #{discriminator_r_forward.10} parent=5 // pred_region
        // Predicated region
        $region25: #{discriminator_r_forward.10} parent=23 // pred_check
          %p128 = pneg %p50
        $region26: #{discriminator_r_forward.10} parent=23 // pred_check_branch
          %130 = sbr.rel (%p128) target = $region28
        $region27: #{discriminator_r_forward.10} parent=23 // pred_region
          %s131 = sand.u32 %s40, 1
          %s132 = sand.u32 %s40, 1
          %s133 = smul.addr %s132, 24
          %s134 = scalar_lea.vmem [#allocation2], %s133
          %s135 = smul.u32 2, %s9
          %s136 = smul.addr %s135, 4
          %s137 = scalar_lea.vmem %s1, %s136
          // Predicated region
          $region29: #{discriminator_r_forward.10} parent=27 // pred_check
            _
          $region30: #{discriminator_r_forward.10} parent=27 // pred_check_branch
            %139 = sbr.rel (0) target = $region32
          $region31: #{discriminator_r_forward.10} parent=27 // pred_region
            // Predicated region
            $region33: #{discriminator_r_forward.10} parent=31 // pred_check
              _
            $region34: #{discriminator_r_forward.10} parent=31 // pred_check_branch
              %141 = sbr.rel (0) target = $region36
            $region35: #{discriminator_r_forward.10} parent=31 // pred_region
              // Predicated region
              $region48: #{discriminator_r_forward.10} parent=35 // pred_check
                _
              $region49: #{discriminator_r_forward.10} parent=35 // pred_check_branch
                %160 = sbr.rel (0) target = $region51
              $region50: #{discriminator_r_forward.10} parent=35 // pred_region
                loop: start=0, step=1, limit=1
                $region52: #{discriminator_r_forward.10} parent=50 // loop_pre_header
                  _
                $region53: #{discriminator_r_forward.10} parent=50 // loop_header
                  %s162 = sphi 0, %s166
                  %p163 = scmp.ge.s32.totalorder %s162, 1
                  %s167 = sphi %s137, %s137
                  %s168 = sphi %s134, %s134
                $region54: #{discriminator_r_forward.10} parent=50 // loop_header_branch
                  %165 = sbr.rel (%p163) target = $region58
                $region55: #{discriminator_r_forward.10} parent=50 // loop_body
                  %v169 = vld [vmem:[%s167] sm:$0xff]
                  %170 = vst [vmem:[%s168] sm:$0xff] %v169
                  %v171 = vld [vmem:[%s167 + $0x28] sm:$0xff]
                  %172 = vst [vmem:[%s168 + $0x8] sm:$0xff] %v171
                  %v173 = vld [vmem:[%s167 + $0x50] sm:$0xff]
                  %174 = vst [vmem:[%s168 + $0x10] sm:$0xff] %v173
                $region56: #{discriminator_r_forward.10} parent=50 // loop_footer
                  %s166 = sadd.s32 1, %s162
                $region57: #{discriminator_r_forward.10} parent=50 // loop_footer_branch
                  %161 = sbr.rel target = $region53
                $region58: #{discriminator_r_forward.10} parent=50 // loop_exit
                  _
              $region51: #{discriminator_r_forward.10} parent=35 // pred_fallthru
                _
              // Predicated region
              $region59: #{discriminator_r_forward.10} parent=35 // pred_check
                _
              $region60: #{discriminator_r_forward.10} parent=35 // pred_check_branch
                %176 = sbr.rel target = $region62
              $region61: #{discriminator_r_forward.10} parent=35 // pred_region
                _
              $region62: #{discriminator_r_forward.10} parent=35 // pred_fallthru
                _
            $region36: #{discriminator_r_forward.10} parent=31 // pred_fallthru
              _
            // Predicated region
            $region37: #{discriminator_r_forward.10} parent=31 // pred_check
              _
            $region38: #{discriminator_r_forward.10} parent=31 // pred_check_branch
              %143 = sbr.rel target = $region40
            $region39: #{discriminator_r_forward.10} parent=31 // pred_region
              loop: start=0, step=1, limit=1
              $region41: #{discriminator_r_forward.10} parent=39 // loop_pre_header
                _
              $region42: #{discriminator_r_forward.10} parent=39 // loop_header
                %s146 = sphi 0, %s150
                %p147 = scmp.ge.s32.totalorder %s146, 1
                %s151 = sphi %s137, %s137
                %s152 = sphi %s134, %s134
              $region43: #{discriminator_r_forward.10} parent=39 // loop_header_branch
                %149 = sbr.rel (%p147) target = $region47
              $region44: #{discriminator_r_forward.10} parent=39 // loop_body
                %v153 = vld [vmem:[%s151] sm:$0xff]
                %154 = vst [vmem:[%s152] sm:$0xff] %v153
                %v155 = vld [vmem:[%s151 + $0x28] sm:$0xff]
                %156 = vst [vmem:[%s152 + $0x8] sm:$0xff] %v155
                %v157 = vld [vmem:[%s151 + $0x50] sm:$0xff]
                %158 = vst [vmem:[%s152 + $0x10] sm:$0xff] %v157
              $region45: #{discriminator_r_forward.10} parent=39 // loop_footer
                %s150 = sadd.s32 1, %s146
              $region46: #{discriminator_r_forward.10} parent=39 // loop_footer_branch
                %145 = sbr.rel target = $region42
              $region47: #{discriminator_r_forward.10} parent=39 // loop_exit
                _
            $region40: #{discriminator_r_forward.10} parent=31 // pred_fallthru
              _
          $region32: #{discriminator_r_forward.10} parent=27 // pred_fallthru
            _
          %177 = vnop
        $region28: #{discriminator_r_forward.10} parent=23 // pred_fallthru
          _
      $region24: #{discriminator_r_forward.10} parent=5 // pred_fallthru
        _
      %p178 = scmp.le.s32.totalorder 1, %s9
      %p179 = scmp.lt.s32.totalorder %s9, 6
      %p180 = pnand %p178, %p179
      %p181 = pneg %p180
      // Predicated region
      $region63: #{discriminator_r_forward.10} parent=5 // pred_check
        _
      $region64: #{discriminator_r_forward.10} parent=5 // pred_check_branch
        %183 = sbr.rel (%p180) target = $region66
      $region65: #{discriminator_r_forward.10} parent=5 // pred_region
        %s184 = ssub.s32 %s9, 1
        %s185 = sand.u32 %s43, 1
        %s186 = sand.u32 %s43, 1
        %s187 = smul.addr %s186, 24
        %s188 = scalar_lea.vmem [#allocation2], %s187
        // Predicated region
        $region67: #{discriminator_r_forward.10} parent=65 // pred_check
          %p189 = pneg %p56
        $region68: #{discriminator_r_forward.10} parent=65 // pred_check_branch
          %191 = sbr.rel (%p189) target = $region70
        $region69: #{discriminator_r_forward.10} parent=65 // pred_region
          _
        $region70: #{discriminator_r_forward.10} parent=65 // pred_fallthru
          _
        %p192 = pneg %p30
        %p193 = pneg %p27
        %s194 = sand.u32 %s43, 1
        %s195 = sand.u32 %s43, 1
        %s196 = smul.addr %s195, 24
        %s197 = scalar_lea.vmem [#allocation2], %s196
        %p198 = pneg %p56
        %p199 = pneg %p53
        %p200 = pneg %p77
        %p201 = pneg %p74
        %p202 = pneg %p103
        %p203 = pneg %p100
        %s204 = smul.u32 2, %s14
        %p205 = scmp.lt.s32.totalorder %s204, 9
        %s206 = scalar_select %p205, %s204, 9
        %s207 = smul.addr %s206, 8
        %s208 = scalar_lea.vmem %s3, %s207
        %s209 = smul.u32 2, %s14
        %s210 = smul.u32 2, %s14
        %p211 = scmp.lt.s32.totalorder %s210, 9
        %s212 = scalar_select %p211, %s210, 9
        %s213 = smul.addr %s212, 8
        %s214 = scalar_lea.vmem %s3, %s213
        %s215 = smul.u32 2, %s14
        %v217 = vld [vmem:[%s0] sm:$0xf]
        %v218 = vld [vmem:[%s188] sm:$0xff]
        %v219 = vld [vmem:[%s188 + $0x8] sm:$0xff]
        %v220 = vld [vmem:[%s188 + $0x10] sm:$0xff]
        %v224 = vunpack.c.l.b16 %v218
        %v225 = vunpack.c.h.b16 %v218
        %v226 = vunpack.c.l.b16 %v219
        %v227 = vunpack.c.h.b16 %v219
        %v228 = vunpack.c.l.b16 %v220
        %v229 = vunpack.c.h.b16 %v220
        %v230 = vpack.c.b16 %v226, %v224
        %v231 = vpack.c.b16 %v227, %v225
        %v232 = vpack.c.b16 %v228, %v228
        %v233 = vpack.c.b16 %v229, %v229
        %vm236 = vcmask 195584
        %v238 = vsel %vm236, %v217, 0
        %vm240 = vcmask 1043456
        %v242 = vsel %vm240, %v232, 0
        %v245 = vsel %vm240, %v233, 0
        %247 = vmatprep.subr.bf16.mxu0 %v231
        %248 = vmatpush1.bf16.msra.mxu0 %v230
        %249 = vmatprep.subr.bf16.mxu0 %v245
        %250 = vmatpush1.bf16.msra.mxu0 %v242
        %251 = vmatprep.subr.bf16.mxu0 0
        %252 = vmatpush1.bf16.msra.mxu0 0
        %253 = vmatprep.subr.bf16.mxu0 0
        %254 = vmatpush1.bf16.msra.mxu0 0
        %255 = vmatprep.subr.bf16.mxu0 0
        %256 = vmatpush1.bf16.msra.mxu0 0
        %257 = vmatprep.subr.bf16.mxu0 0
        %258 = vmatpush1.bf16.msra.mxu0 0
        %259 = vmatprep.subr.bf16.mxu0 0
        %260 = vmatpush1.bf16.msra.mxu0 0
        %261 = vmatprep.subr.bf16.mxu0 0
        %262 = vmatpush1.bf16.msra.mxu0 0
        %263 = vmatprep.subr.bf16.mxu0 0
        %264 = vmatpush1.bf16.msra.mxu0 0
        %265 = vmatprep.subr.bf16.mxu0 0
        %266 = vmatpush1.bf16.msra.mxu0 0
        %267 = vmatprep.subr.bf16.mxu0 0
        %268 = vmatpush1.bf16.msra.mxu0 0
        %269 = vmatprep.subr.bf16.mxu0 0
        %270 = vmatpush1.bf16.msra.mxu0 0
        %271 = vmatprep.subr.bf16.mxu0 0
        %272 = vmatpush1.bf16.msra.mxu0 0
        %273 = vmatprep.subr.bf16.mxu0 0
        %274 = vmatpush1.bf16.msra.mxu0 0
        %275 = vmatprep.subr.bf16.mxu0 0
        %276 = vmatpush1.bf16.msra.mxu0 0
        %277 = vmatprep.subr.bf16.mxu0 0
        %278 = vmatpush1.bf16.msra.mxu0 0
        %279 = vmatprep.mubr.bf16.mxu0 0
        %280 = vmatmul.mubr.bf16.gmra.mrb[0].mxu0 %v238
        %v281 = vpop.f32.mrb[0].mxu0
        %v282 = vadd.f32 0.0, %v281
        %v283 = vpop.f32.mrb[0].mxu0
        %v284 = vadd.f32 0.0, %v283
        %v285 = vpop.f32.mrb[0].mxu0
        %v286 = vpop.f32.mrb[0].mxu0
        %287 = vdwg.mxu0
        %288 = vst [vmem:[%s214] sm:$0xff] %v282
        %289 = vst [vmem:[%s214 + $0x8] sm:$0xff] %v284
        %s290 = scalar_lea.vmem %s0, 4
        %v291 = vld [vmem:[%s290] sm:$0xf]
        %v292 = vld [vmem:[%s188] sm:$0xff]
        %v293 = vld [vmem:[%s188 + $0x8] sm:$0xff]
        %v294 = vld [vmem:[%s188 + $0x10] sm:$0xff]
        %v298 = vunpack.c.l.b16 %v292
        %v299 = vunpack.c.h.b16 %v292
        %v300 = vunpack.c.l.b16 %v293
        %v301 = vunpack.c.h.b16 %v293
        %v302 = vunpack.c.l.b16 %v294
        %v303 = vunpack.c.h.b16 %v294
        %v304 = vpack.c.b16 %v300, %v298
        %v305 = vpack.c.b16 %v301, %v299
        %v306 = vpack.c.b16 %v302, %v302
        %v307 = vpack.c.b16 %v303, %v303
        %v311 = vsel %vm236, %v291, 0
        %v314 = vsel %vm240, %v306, 0
        %v317 = vsel %vm240, %v307, 0
        %319 = vmatprep.subr.bf16.mxu0 %v305
        %320 = vmatpush1.bf16.msra.mxu0 %v304
        %321 = vmatprep.subr.bf16.mxu0 %v317
        %322 = vmatpush1.bf16.msra.mxu0 %v314
        %323 = vmatprep.subr.bf16.mxu0 0
        %324 = vmatpush1.bf16.msra.mxu0 0
        %325 = vmatprep.subr.bf16.mxu0 0
        %326 = vmatpush1.bf16.msra.mxu0 0
        %327 = vmatprep.subr.bf16.mxu0 0
        %328 = vmatpush1.bf16.msra.mxu0 0
        %329 = vmatprep.subr.bf16.mxu0 0
        %330 = vmatpush1.bf16.msra.mxu0 0
        %331 = vmatprep.subr.bf16.mxu0 0
        %332 = vmatpush1.bf16.msra.mxu0 0
        %333 = vmatprep.subr.bf16.mxu0 0
        %334 = vmatpush1.bf16.msra.mxu0 0
        %335 = vmatprep.subr.bf16.mxu0 0
        %336 = vmatpush1.bf16.msra.mxu0 0
        %337 = vmatprep.subr.bf16.mxu0 0
        %338 = vmatpush1.bf16.msra.mxu0 0
        %339 = vmatprep.subr.bf16.mxu0 0
        %340 = vmatpush1.bf16.msra.mxu0 0
        %341 = vmatprep.subr.bf16.mxu0 0
        %342 = vmatpush1.bf16.msra.mxu0 0
        %343 = vmatprep.subr.bf16.mxu0 0
        %344 = vmatpush1.bf16.msra.mxu0 0
        %345 = vmatprep.subr.bf16.mxu0 0
        %346 = vmatpush1.bf16.msra.mxu0 0
        %347 = vmatprep.subr.bf16.mxu0 0
        %348 = vmatpush1.bf16.msra.mxu0 0
        %349 = vmatprep.subr.bf16.mxu0 0
        %350 = vmatpush1.bf16.msra.mxu0 0
        %351 = vmatprep.mubr.bf16.mxu0 0
        %352 = vmatmul.mubr.bf16.gmra.mrb[0].mxu0 %v311
        %v353 = vpop.f32.mrb[0].mxu0
        %v354 = vadd.f32 0.0, %v353
        %v355 = vpop.f32.mrb[0].mxu0
        %v356 = vadd.f32 0.0, %v355
        %v357 = vpop.f32.mrb[0].mxu0
        %v358 = vpop.f32.mrb[0].mxu0
        %359 = vdwg.mxu0
        %v360 = vld [vmem:[%s214] sm:$0xff]
        %v361 = vld [vmem:[%s214 + $0x8] sm:$0xff]
        %362 = vrot.lane.b32.xlu0 %v354, 127
        %v363 = vpop.permute.xlu0 %362
        %364 = vrot.lane.b32.xlu0 %v356, 127
        %v365 = vpop.permute.xlu0 %364
        %v366 = vlaneseq
        %v367 = vand.u32 %v366, 127
        %vm368 = vcmp.lt.s32.totalorder %v367, 127
        %v369 = vsel %vm368, %v363, %v365
        %v370 = vsel %vm368, %v365, %v363
        %v371 = vadd.f32 %v360, %v369
        %v372 = vadd.f32 %v361, %v370
        %373 = vst [vmem:[%s214] sm:$0xff] %v371
        %374 = vst [vmem:[%s214 + $0x8] sm:$0xff] %v372
        %s375 = scalar_lea.vmem %s0, 8
        %v376 = vld [vmem:[%s375] sm:$0xf]
        %v377 = vld [vmem:[%s188] sm:$0xff]
        %v378 = vld [vmem:[%s188 + $0x8] sm:$0xff]
        %v379 = vld [vmem:[%s188 + $0x10] sm:$0xff]
        %v383 = vunpack.c.l.b16 %v377
        %v384 = vunpack.c.h.b16 %v377
        %v385 = vunpack.c.l.b16 %v378
        %v386 = vunpack.c.h.b16 %v378
        %v387 = vunpack.c.l.b16 %v379
        %v388 = vunpack.c.h.b16 %v379
        %v389 = vpack.c.b16 %v385, %v383
        %v390 = vpack.c.b16 %v386, %v384
        %v391 = vpack.c.b16 %v387, %v387
        %v392 = vpack.c.b16 %v388, %v388
        %v396 = vsel %vm236, %v376, 0
        %v399 = vsel %vm240, %v391, 0
        %v402 = vsel %vm240, %v392, 0
        %404 = vmatprep.subr.bf16.mxu0 %v390
        %405 = vmatpush1.bf16.msra.mxu0 %v389
        %406 = vmatprep.subr.bf16.mxu0 %v402
        %407 = vmatpush1.bf16.msra.mxu0 %v399
        %408 = vmatprep.subr.bf16.mxu0 0
        %409 = vmatpush1.bf16.msra.mxu0 0
        %410 = vmatprep.subr.bf16.mxu0 0
        %411 = vmatpush1.bf16.msra.mxu0 0
        %412 = vmatprep.subr.bf16.mxu0 0
        %413 = vmatpush1.bf16.msra.mxu0 0
        %414 = vmatprep.subr.bf16.mxu0 0
        %415 = vmatpush1.bf16.msra.mxu0 0
        %416 = vmatprep.subr.bf16.mxu0 0
        %417 = vmatpush1.bf16.msra.mxu0 0
        %418 = vmatprep.subr.bf16.mxu0 0
        %419 = vmatpush1.bf16.msra.mxu0 0
        %420 = vmatprep.subr.bf16.mxu0 0
        %421 = vmatpush1.bf16.msra.mxu0 0
        %422 = vmatprep.subr.bf16.mxu0 0
        %423 = vmatpush1.bf16.msra.mxu0 0
        %424 = vmatprep.subr.bf16.mxu0 0
        %425 = vmatpush1.bf16.msra.mxu0 0
        %426 = vmatprep.subr.bf16.mxu0 0
        %427 = vmatpush1.bf16.msra.mxu0 0
        %428 = vmatprep.subr.bf16.mxu0 0
        %429 = vmatpush1.bf16.msra.mxu0 0
        %430 = vmatprep.subr.bf16.mxu0 0
        %431 = vmatpush1.bf16.msra.mxu0 0
        %432 = vmatprep.subr.bf16.mxu0 0
        %433 = vmatpush1.bf16.msra.mxu0 0
        %434 = vmatprep.subr.bf16.mxu0 0
        %435 = vmatpush1.bf16.msra.mxu0 0
        %436 = vmatprep.mubr.bf16.mxu0 0
        %437 = vmatmul.mubr.bf16.gmra.mrb[0].mxu0 %v396
        %v438 = vpop.f32.mrb[0].mxu0
        %v439 = vadd.f32 0.0, %v438
        %v440 = vpop.f32.mrb[0].mxu0
        %v441 = vadd.f32 0.0, %v440
        %v442 = vpop.f32.mrb[0].mxu0
        %v443 = vpop.f32.mrb[0].mxu0
        %444 = vdwg.mxu0
        %v445 = vld [vmem:[%s214] sm:$0xff]
        %v446 = vld [vmem:[%s214 + $0x8] sm:$0xff]
        %447 = vrot.lane.b32.xlu0 %v439, 126
        %v448 = vpop.permute.xlu0 %447
        %449 = vrot.lane.b32.xlu0 %v441, 126
        %v450 = vpop.permute.xlu0 %449
        %vm451 = vcmp.lt.s32.totalorder %v367, 126
        %v452 = vsel %vm451, %v448, %v450
        %v453 = vsel %vm451, %v450, %v448
        %v454 = vadd.f32 %v445, %v452
        %v455 = vadd.f32 %v446, %v453
        %456 = vst [vmem:[%s214] sm:$0xff] %v454
        %457 = vst [vmem:[%s214 + $0x8] sm:$0xff] %v455
        %s458 = scalar_lea.vmem %s0, 12
        %v459 = vld [vmem:[%s458] sm:$0xf]
        %v460 = vld [vmem:[%s188] sm:$0xff]
        %v461 = vld [vmem:[%s188 + $0x8] sm:$0xff]
        %v462 = vld [vmem:[%s188 + $0x10] sm:$0xff]
        %v466 = vunpack.c.l.b16 %v460
        %v467 = vunpack.c.h.b16 %v460
        %v468 = vunpack.c.l.b16 %v461
        %v469 = vunpack.c.h.b16 %v461
        %v470 = vunpack.c.l.b16 %v462
        %v471 = vunpack.c.h.b16 %v462
        %v472 = vpack.c.b16 %v468, %v466
        %v473 = vpack.c.b16 %v469, %v467
        %v474 = vpack.c.b16 %v470, %v470
        %v475 = vpack.c.b16 %v471, %v471
        %v479 = vsel %vm236, %v459, 0
        %v482 = vsel %vm240, %v474, 0
        %v485 = vsel %vm240, %v475, 0
        %487 = vmatprep.subr.bf16.mxu0 %v473
        %488 = vmatpush1.bf16.msra.mxu0 %v472
        %489 = vmatprep.subr.bf16.mxu0 %v485
        %490 = vmatpush1.bf16.msra.mxu0 %v482
        %491 = vmatprep.subr.bf16.mxu0 0
        %492 = vmatpush1.bf16.msra.mxu0 0
        %493 = vmatprep.subr.bf16.mxu0 0
        %494 = vmatpush1.bf16.msra.mxu0 0
        %495 = vmatprep.subr.bf16.mxu0 0
        %496 = vmatpush1.bf16.msra.mxu0 0
        %497 = vmatprep.subr.bf16.mxu0 0
        %498 = vmatpush1.bf16.msra.mxu0 0
        %499 = vmatprep.subr.bf16.mxu0 0
        %500 = vmatpush1.bf16.msra.mxu0 0
        %501 = vmatprep.subr.bf16.mxu0 0
        %502 = vmatpush1.bf16.msra.mxu0 0
        %503 = vmatprep.subr.bf16.mxu0 0
        %504 = vmatpush1.bf16.msra.mxu0 0
        %505 = vmatprep.subr.bf16.mxu0 0
        %506 = vmatpush1.bf16.msra.mxu0 0
        %507 = vmatprep.subr.bf16.mxu0 0
        %508 = vmatpush1.bf16.msra.mxu0 0
        %509 = vmatprep.subr.bf16.mxu0 0
        %510 = vmatpush1.bf16.msra.mxu0 0
        %511 = vmatprep.subr.bf16.mxu0 0
        %512 = vmatpush1.bf16.msra.mxu0 0
        %513 = vmatprep.subr.bf16.mxu0 0
        %514 = vmatpush1.bf16.msra.mxu0 0
        %515 = vmatprep.subr.bf16.mxu0 0
        %516 = vmatpush1.bf16.msra.mxu0 0
        %517 = vmatprep.subr.bf16.mxu0 0
        %518 = vmatpush1.bf16.msra.mxu0 0
        %519 = vmatprep.mubr.bf16.mxu0 0
        %520 = vmatmul.mubr.bf16.gmra.mrb[0].mxu0 %v479
        %v521 = vpop.f32.mrb[0].mxu0
        %v522 = vadd.f32 0.0, %v521
        %v523 = vpop.f32.mrb[0].mxu0
        %v524 = vadd.f32 0.0, %v523
        %v525 = vpop.f32.mrb[0].mxu0
        %v526 = vpop.f32.mrb[0].mxu0
        %527 = vdwg.mxu0
        %v528 = vld [vmem:[%s214] sm:$0xff]
        %v529 = vld [vmem:[%s214 + $0x8] sm:$0xff]
        %530 = vrot.lane.b32.xlu0 %v522, 125
        %v531 = vpop.permute.xlu0 %530
        %532 = vrot.lane.b32.xlu0 %v524, 125
        %v533 = vpop.permute.xlu0 %532
        %vm534 = vcmp.lt.s32.totalorder %v367, 125
        %v535 = vsel %vm534, %v531, %v533
        %v536 = vsel %vm534, %v533, %v531
        %v537 = vadd.f32 %v528, %v535
        %v538 = vadd.f32 %v529, %v536
        %539 = vst [vmem:[%s214] sm:$0xff] %v537
        %540 = vst [vmem:[%s214 + $0x8] sm:$0xff] %v538
        %s541 = scalar_lea.vmem %s0, 16
        %v542 = vld [vmem:[%s541] sm:$0xf]
        %v543 = vld [vmem:[%s188] sm:$0xff]
        %v544 = vld [vmem:[%s188 + $0x8] sm:$0xff]
        %v545 = vld [vmem:[%s188 + $0x10] sm:$0xff]
        %v549 = vunpack.c.l.b16 %v543
        %v550 = vunpack.c.h.b16 %v543
        %v551 = vunpack.c.l.b16 %v544
        %v552 = vunpack.c.h.b16 %v544
        %v553 = vunpack.c.l.b16 %v545
        %v554 = vunpack.c.h.b16 %v545
        %v555 = vpack.c.b16 %v551, %v549
        %v556 = vpack.c.b16 %v552, %v550
        %v557 = vpack.c.b16 %v553, %v553
        %v558 = vpack.c.b16 %v554, %v554
        %v562 = vsel %vm236, %v542, 0
        %v565 = vsel %vm240, %v557, 0
        %v568 = vsel %vm240, %v558, 0
        %570 = vmatprep.subr.bf16.mxu0 %v556
        %571 = vmatpush1.bf16.msra.mxu0 %v555
        %572 = vmatprep.subr.bf16.mxu0 %v568
        %573 = vmatpush1.bf16.msra.mxu0 %v565
        %574 = vmatprep.subr.bf16.mxu0 0
        %575 = vmatpush1.bf16.msra.mxu0 0
        %576 = vmatprep.subr.bf16.mxu0 0
        %577 = vmatpush1.bf16.msra.mxu0 0
        %578 = vmatprep.subr.bf16.mxu0 0
        %579 = vmatpush1.bf16.msra.mxu0 0
        %580 = vmatprep.subr.bf16.mxu0 0
        %581 = vmatpush1.bf16.msra.mxu0 0
        %582 = vmatprep.subr.bf16.mxu0 0
        %583 = vmatpush1.bf16.msra.mxu0 0
        %584 = vmatprep.subr.bf16.mxu0 0
        %585 = vmatpush1.bf16.msra.mxu0 0
        %586 = vmatprep.subr.bf16.mxu0 0
        %587 = vmatpush1.bf16.msra.mxu0 0
        %588 = vmatprep.subr.bf16.mxu0 0
        %589 = vmatpush1.bf16.msra.mxu0 0
        %590 = vmatprep.subr.bf16.mxu0 0
        %591 = vmatpush1.bf16.msra.mxu0 0
        %592 = vmatprep.subr.bf16.mxu0 0
        %593 = vmatpush1.bf16.msra.mxu0 0
        %594 = vmatprep.subr.bf16.mxu0 0
        %595 = vmatpush1.bf16.msra.mxu0 0
        %596 = vmatprep.subr.bf16.mxu0 0
        %597 = vmatpush1.bf16.msra.mxu0 0
        %598 = vmatprep.subr.bf16.mxu0 0
        %599 = vmatpush1.bf16.msra.mxu0 0
        %600 = vmatprep.subr.bf16.mxu0 0
        %601 = vmatpush1.bf16.msra.mxu0 0
        %602 = vmatprep.mubr.bf16.mxu0 0
        %603 = vmatmul.mubr.bf16.gmra.mrb[0].mxu0 %v562
        %v604 = vpop.f32.mrb[0].mxu0
        %v605 = vadd.f32 0.0, %v604
        %v606 = vpop.f32.mrb[0].mxu0
        %v607 = vadd.f32 0.0, %v606
        %v608 = vpop.f32.mrb[0].mxu0
        %v609 = vpop.f32.mrb[0].mxu0
        %610 = vdwg.mxu0
        %v611 = vld [vmem:[%s214] sm:$0xff]
        %v612 = vld [vmem:[%s214 + $0x8] sm:$0xff]
        %613 = vrot.lane.b32.xlu0 %v605, 124
        %v614 = vpop.permute.xlu0 %613
        %615 = vrot.lane.b32.xlu0 %v607, 124
        %v616 = vpop.permute.xlu0 %615
        %vm617 = vcmp.lt.s32.totalorder %v367, 124
        %v618 = vsel %vm617, %v614, %v616
        %v619 = vsel %vm617, %v616, %v614
        %v620 = vadd.f32 %v611, %v618
        %v621 = vadd.f32 %v612, %v619
        %622 = vst [vmem:[%s214] sm:$0xff] %v620
        %623 = vst [vmem:[%s214 + $0x8] sm:$0xff] %v621
        %s624 = scalar_lea.vmem %s0, 20
        %v625 = vld [vmem:[%s624] sm:$0xf]
        %v626 = vld [vmem:[%s188] sm:$0xff]
        %v627 = vld [vmem:[%s188 + $0x8] sm:$0xff]
        %v628 = vld [vmem:[%s188 + $0x10] sm:$0xff]
        %v632 = vunpack.c.l.b16 %v626
        %v633 = vunpack.c.h.b16 %v626
        %v634 = vunpack.c.l.b16 %v627
        %v635 = vunpack.c.h.b16 %v627
        %v636 = vunpack.c.l.b16 %v628
        %v637 = vunpack.c.h.b16 %v628
        %v638 = vpack.c.b16 %v634, %v632
        %v639 = vpack.c.b16 %v635, %v633
        %v640 = vpack.c.b16 %v636, %v636
        %v641 = vpack.c.b16 %v637, %v637
        %v645 = vsel %vm236, %v625, 0
        %v648 = vsel %vm240, %v640, 0
        %v651 = vsel %vm240, %v641, 0
        %653 = vmatprep.subr.bf16.mxu0 %v639
        %654 = vmatpush1.bf16.msra.mxu0 %v638
        %655 = vmatprep.subr.bf16.mxu0 %v651
        %656 = vmatpush1.bf16.msra.mxu0 %v648
        %657 = vmatprep.subr.bf16.mxu0 0
        %658 = vmatpush1.bf16.msra.mxu0 0
        %659 = vmatprep.subr.bf16.mxu0 0
        %660 = vmatpush1.bf16.msra.mxu0 0
        %661 = vmatprep.subr.bf16.mxu0 0
        %662 = vmatpush1.bf16.msra.mxu0 0
        %663 = vmatprep.subr.bf16.mxu0 0
        %664 = vmatpush1.bf16.msra.mxu0 0
        %665 = vmatprep.subr.bf16.mxu0 0
        %666 = vmatpush1.bf16.msra.mxu0 0
        %667 = vmatprep.subr.bf16.mxu0 0
        %668 = vmatpush1.bf16.msra.mxu0 0
        %669 = vmatprep.subr.bf16.mxu0 0
        %670 = vmatpush1.bf16.msra.mxu0 0
        %671 = vmatprep.subr.bf16.mxu0 0
        %672 = vmatpush1.bf16.msra.mxu0 0
        %673 = vmatprep.subr.bf16.mxu0 0
        %674 = vmatpush1.bf16.msra.mxu0 0
        %675 = vmatprep.subr.bf16.mxu0 0
        %676 = vmatpush1.bf16.msra.mxu0 0
        %677 = vmatprep.subr.bf16.mxu0 0
        %678 = vmatpush1.bf16.msra.mxu0 0
        %679 = vmatprep.subr.bf16.mxu0 0
        %680 = vmatpush1.bf16.msra.mxu0 0
        %681 = vmatprep.subr.bf16.mxu0 0
        %682 = vmatpush1.bf16.msra.mxu0 0
        %683 = vmatprep.subr.bf16.mxu0 0
        %684 = vmatpush1.bf16.msra.mxu0 0
        %685 = vmatprep.mubr.bf16.mxu0 0
        %686 = vmatmul.mubr.bf16.gmra.mrb[0].mxu0 %v645
        %v687 = vpop.f32.mrb[0].mxu0
        %v688 = vadd.f32 0.0, %v687
        %v689 = vpop.f32.mrb[0].mxu0
        %v690 = vadd.f32 0.0, %v689
        %v691 = vpop.f32.mrb[0].mxu0
        %v692 = vpop.f32.mrb[0].mxu0
        %693 = vdwg.mxu0
        %v694 = vld [vmem:[%s214] sm:$0xff]
        %v695 = vld [vmem:[%s214 + $0x8] sm:$0xff]
        %696 = vrot.lane.b32.xlu0 %v688, 123
        %v697 = vpop.permute.xlu0 %696
        %698 = vrot.lane.b32.xlu0 %v690, 123
        %v699 = vpop.permute.xlu0 %698
        %vm700 = vcmp.lt.s32.totalorder %v367, 123
        %v701 = vsel %vm700, %v697, %v699
        %v702 = vsel %vm700, %v699, %v697
        %v703 = vadd.f32 %v694, %v701
        %v704 = vadd.f32 %v695, %v702
        %705 = vst [vmem:[%s214] sm:$0xff] %v703
        %706 = vst [vmem:[%s214 + $0x8] sm:$0xff] %v704
        %s707 = scalar_lea.vmem %s0, 24
        %v708 = vld [vmem:[%s707] sm:$0xf]
        %v709 = vld [vmem:[%s188] sm:$0xff]
        %v710 = vld [vmem:[%s188 + $0x8] sm:$0xff]
        %v711 = vld [vmem:[%s188 + $0x10] sm:$0xff]
        %v715 = vunpack.c.l.b16 %v709
        %v716 = vunpack.c.h.b16 %v709
        %v717 = vunpack.c.l.b16 %v710
        %v718 = vunpack.c.h.b16 %v710
        %v719 = vunpack.c.l.b16 %v711
        %v720 = vunpack.c.h.b16 %v711
        %v721 = vpack.c.b16 %v717, %v715
        %v722 = vpack.c.b16 %v718, %v716
        %v723 = vpack.c.b16 %v719, %v719
        %v724 = vpack.c.b16 %v720, %v720
        %v728 = vsel %vm236, %v708, 0
        %v731 = vsel %vm240, %v723, 0
        %v734 = vsel %vm240, %v724, 0
        %736 = vmatprep.subr.bf16.mxu0 %v722
        %737 = vmatpush1.bf16.msra.mxu0 %v721
        %738 = vmatprep.subr.bf16.mxu0 %v734
        %739 = vmatpush1.bf16.msra.mxu0 %v731
        %740 = vmatprep.subr.bf16.mxu0 0
        %741 = vmatpush1.bf16.msra.mxu0 0
        %742 = vmatprep.subr.bf16.mxu0 0
        %743 = vmatpush1.bf16.msra.mxu0 0
        %744 = vmatprep.subr.bf16.mxu0 0
        %745 = vmatpush1.bf16.msra.mxu0 0
        %746 = vmatprep.subr.bf16.mxu0 0
        %747 = vmatpush1.bf16.msra.mxu0 0
        %748 = vmatprep.subr.bf16.mxu0 0
        %749 = vmatpush1.bf16.msra.mxu0 0
        %750 = vmatprep.subr.bf16.mxu0 0
        %751 = vmatpush1.bf16.msra.mxu0 0
        %752 = vmatprep.subr.bf16.mxu0 0
        %753 = vmatpush1.bf16.msra.mxu0 0
        %754 = vmatprep.subr.bf16.mxu0 0
        %755 = vmatpush1.bf16.msra.mxu0 0
        %756 = vmatprep.subr.bf16.mxu0 0
        %757 = vmatpush1.bf16.msra.mxu0 0
        %758 = vmatprep.subr.bf16.mxu0 0
        %759 = vmatpush1.bf16.msra.mxu0 0
        %760 = vmatprep.subr.bf16.mxu0 0
        %761 = vmatpush1.bf16.msra.mxu0 0
        %762 = vmatprep.subr.bf16.mxu0 0
        %763 = vmatpush1.bf16.msra.mxu0 0
        %764 = vmatprep.subr.bf16.mxu0 0
        %765 = vmatpush1.bf16.msra.mxu0 0
        %766 = vmatprep.subr.bf16.mxu0 0
        %767 = vmatpush1.bf16.msra.mxu0 0
        %768 = vmatprep.mubr.bf16.mxu0 0
        %769 = vmatmul.mubr.bf16.gmra.mrb[0].mxu0 %v728
        %v770 = vpop.f32.mrb[0].mxu0
        %v771 = vadd.f32 0.0, %v770
        %v772 = vpop.f32.mrb[0].mxu0
        %v773 = vadd.f32 0.0, %v772
        %v774 = vpop.f32.mrb[0].mxu0
        %v775 = vpop.f32.mrb[0].mxu0
        %776 = vdwg.mxu0
        %v777 = vld [vmem:[%s214] sm:$0xff]
        %v778 = vld [vmem:[%s214 + $0x8] sm:$0xff]
        %779 = vrot.lane.b32.xlu0 %v771, 122
        %v780 = vpop.permute.xlu0 %779
        %781 = vrot.lane.b32.xlu0 %v773, 122
        %v782 = vpop.permute.xlu0 %781
        %vm783 = vcmp.lt.s32.totalorder %v367, 122
        %v784 = vsel %vm783, %v780, %v782
        %v785 = vsel %vm783, %v782, %v780
        %v786 = vadd.f32 %v777, %v784
        %v787 = vadd.f32 %v778, %v785
        %788 = vst [vmem:[%s214] sm:$0xff] %v786
        %789 = vst [vmem:[%s214 + $0x8] sm:$0xff] %v787
        %s790 = scalar_lea.vmem %s0, 28
        %v791 = vld [vmem:[%s790] sm:$0xf]
        %v792 = vld [vmem:[%s188] sm:$0xff]
        %v793 = vld [vmem:[%s188 + $0x8] sm:$0xff]
        %v794 = vld [vmem:[%s188 + $0x10] sm:$0xff]
        %v798 = vunpack.c.l.b16 %v792
        %v799 = vunpack.c.h.b16 %v792
        %v800 = vunpack.c.l.b16 %v793
        %v801 = vunpack.c.h.b16 %v793
        %v802 = vunpack.c.l.b16 %v794
        %v803 = vunpack.c.h.b16 %v794
        %v804 = vpack.c.b16 %v800, %v798
        %v805 = vpack.c.b16 %v801, %v799
        %v806 = vpack.c.b16 %v802, %v802
        %v807 = vpack.c.b16 %v803, %v803
        %v811 = vsel %vm236, %v791, 0
        %v814 = vsel %vm240, %v806, 0
        %v817 = vsel %vm240, %v807, 0
        %819 = vmatprep.subr.bf16.mxu0 %v805
        %820 = vmatpush1.bf16.msra.mxu0 %v804
        %821 = vmatprep.subr.bf16.mxu0 %v817
        %822 = vmatpush1.bf16.msra.mxu0 %v814
        %823 = vmatprep.subr.bf16.mxu0 0
        %824 = vmatpush1.bf16.msra.mxu0 0
        %825 = vmatprep.subr.bf16.mxu0 0
        %826 = vmatpush1.bf16.msra.mxu0 0
        %827 = vmatprep.subr.bf16.mxu0 0
        %828 = vmatpush1.bf16.msra.mxu0 0
        %829 = vmatprep.subr.bf16.mxu0 0
        %830 = vmatpush1.bf16.msra.mxu0 0
        %831 = vmatprep.subr.bf16.mxu0 0
        %832 = vmatpush1.bf16.msra.mxu0 0
        %833 = vmatprep.subr.bf16.mxu0 0
        %834 = vmatpush1.bf16.msra.mxu0 0
        %835 = vmatprep.subr.bf16.mxu0 0
        %836 = vmatpush1.bf16.msra.mxu0 0
        %837 = vmatprep.subr.bf16.mxu0 0
        %838 = vmatpush1.bf16.msra.mxu0 0
        %839 = vmatprep.subr.bf16.mxu0 0
        %840 = vmatpush1.bf16.msra.mxu0 0
        %841 = vmatprep.subr.bf16.mxu0 0
        %842 = vmatpush1.bf16.msra.mxu0 0
        %843 = vmatprep.subr.bf16.mxu0 0
        %844 = vmatpush1.bf16.msra.mxu0 0
        %845 = vmatprep.subr.bf16.mxu0 0
        %846 = vmatpush1.bf16.msra.mxu0 0
        %847 = vmatprep.subr.bf16.mxu0 0
        %848 = vmatpush1.bf16.msra.mxu0 0
        %849 = vmatprep.subr.bf16.mxu0 0
        %850 = vmatpush1.bf16.msra.mxu0 0
        %851 = vmatprep.mubr.bf16.mxu0 0
        %852 = vmatmul.mubr.bf16.gmra.mrb[0].mxu0 %v811
        %v853 = vpop.f32.mrb[0].mxu0
        %v854 = vadd.f32 0.0, %v853
        %v855 = vpop.f32.mrb[0].mxu0
        %v856 = vadd.f32 0.0, %v855
        %v857 = vpop.f32.mrb[0].mxu0
        %v858 = vpop.f32.mrb[0].mxu0
        %859 = vdwg.mxu0
        %v860 = vld [vmem:[%s214] sm:$0xff]
        %v861 = vld [vmem:[%s214 + $0x8] sm:$0xff]
        %862 = vrot.lane.b32.xlu0 %v854, 121
        %v863 = vpop.permute.xlu0 %862
        %864 = vrot.lane.b32.xlu0 %v856, 121
        %v865 = vpop.permute.xlu0 %864
        %vm866 = vcmp.lt.s32.totalorder %v367, 121
        %v867 = vsel %vm866, %v863, %v865
        %v868 = vsel %vm866, %v865, %v863
        %v869 = vadd.f32 %v860, %v867
        %v870 = vadd.f32 %v861, %v868
        %871 = vst [vmem:[%s214] sm:$0xff] %v869
        %872 = vst [vmem:[%s214 + $0x8] sm:$0xff] %v870
        %s873 = scalar_lea.vmem %s0, 32
        %v874 = vld [vmem:[%s873] sm:$0xf]
        %v875 = vld [vmem:[%s188] sm:$0xff]
        %v876 = vld [vmem:[%s188 + $0x8] sm:$0xff]
        %v877 = vld [vmem:[%s188 + $0x10] sm:$0xff]
        %v881 = vunpack.c.l.b16 %v875
        %v882 = vunpack.c.h.b16 %v875
        %v883 = vunpack.c.l.b16 %v876
        %v884 = vunpack.c.h.b16 %v876
        %v885 = vunpack.c.l.b16 %v877
        %v886 = vunpack.c.h.b16 %v877
        %v887 = vpack.c.b16 %v883, %v881
        %v888 = vpack.c.b16 %v884, %v882
        %v889 = vpack.c.b16 %v885, %v885
        %v890 = vpack.c.b16 %v886, %v886
        %v894 = vsel %vm236, %v874, 0
        %v897 = vsel %vm240, %v889, 0
        %v900 = vsel %vm240, %v890, 0
        %902 = vmatprep.subr.bf16.mxu0 %v888
        %903 = vmatpush1.bf16.msra.mxu0 %v887
        %904 = vmatprep.subr.bf16.mxu0 %v900
        %905 = vmatpush1.bf16.msra.mxu0 %v897
        %906 = vmatprep.subr.bf16.mxu0 0
        %907 = vmatpush1.bf16.msra.mxu0 0
        %908 = vmatprep.subr.bf16.mxu0 0
        %909 = vmatpush1.bf16.msra.mxu0 0
        %910 = vmatprep.subr.bf16.mxu0 0
        %911 = vmatpush1.bf16.msra.mxu0 0
        %912 = vmatprep.subr.bf16.mxu0 0
        %913 = vmatpush1.bf16.msra.mxu0 0
        %914 = vmatprep.subr.bf16.mxu0 0
        %915 = vmatpush1.bf16.msra.mxu0 0
        %916 = vmatprep.subr.bf16.mxu0 0
        %917 = vmatpush1.bf16.msra.mxu0 0
        %918 = vmatprep.subr.bf16.mxu0 0
        %919 = vmatpush1.bf16.msra.mxu0 0
        %920 = vmatprep.subr.bf16.mxu0 0
        %921 = vmatpush1.bf16.msra.mxu0 0
        %922 = vmatprep.subr.bf16.mxu0 0
        %923 = vmatpush1.bf16.msra.mxu0 0
        %924 = vmatprep.subr.bf16.mxu0 0
        %925 = vmatpush1.bf16.msra.mxu0 0
        %926 = vmatprep.subr.bf16.mxu0 0
        %927 = vmatpush1.bf16.msra.mxu0 0
        %928 = vmatprep.subr.bf16.mxu0 0
        %929 = vmatpush1.bf16.msra.mxu0 0
        %930 = vmatprep.subr.bf16.mxu0 0
        %931 = vmatpush1.bf16.msra.mxu0 0
        %932 = vmatprep.subr.bf16.mxu0 0
        %933 = vmatpush1.bf16.msra.mxu0 0
        %934 = vmatprep.mubr.bf16.mxu0 0
        %935 = vmatmul.mubr.bf16.gmra.mrb[0].mxu0 %v894
        %v936 = vpop.f32.mrb[0].mxu0
        %v937 = vadd.f32 0.0, %v936
        %v938 = vpop.f32.mrb[0].mxu0
        %v939 = vadd.f32 0.0, %v938
        %v940 = vpop.f32.mrb[0].mxu0
        %v941 = vpop.f32.mrb[0].mxu0
        %942 = vdwg.mxu0
        %v943 = vld [vmem:[%s214] sm:$0xff]
        %v944 = vld [vmem:[%s214 + $0x8] sm:$0xff]
        %945 = vrot.lane.b32.xlu0 %v937, 120
        %v946 = vpop.permute.xlu0 %945
        %947 = vrot.lane.b32.xlu0 %v939, 120
        %v948 = vpop.permute.xlu0 %947
        %vm949 = vcmp.lt.s32.totalorder %v367, 120
        %v950 = vsel %vm949, %v946, %v948
        %v951 = vsel %vm949, %v948, %v946
        %v952 = vadd.f32 %v943, %v950
        %v953 = vadd.f32 %v944, %v951
        %954 = vst [vmem:[%s214] sm:$0xff] %v952
        %955 = vst [vmem:[%s214 + $0x8] sm:$0xff] %v953
        %v956 = vld [vmem:[%s214] sm:$0xff]
        %v957 = vld [vmem:[%s214 + $0x8] sm:$0xff]
        %v958 = vld [vmem:[%s2] sm:$0xff]
        %960 = vset.pattern.permute.xlu0 0
        %961 = vperm.xlu0 %960, %v958
        %v962 = vpop.permute.xlu0 %961
        %v964 = vadd.f32 %v956, %v962
        %v965 = vadd.f32 %v957, %v962
        %vm966 = vcmp.ge.f32.partialorder %v964, 0.0
        %vm967 = vcmp.ge.f32.partialorder %v965, 0.0
        %v968 = vmul.f32 %v964, 0.1
        %v969 = vmul.f32 %v965, 0.1
        %v970 = vsel %vm966, %v964, %v968
        %v971 = vsel %vm967, %v965, %v969
        %972 = vst [vmem:[%s214] sm:$0xff] %v970
        %973 = vst [vmem:[%s214 + $0x8] sm:$0xff] %v971
        %s974 = smul.u32 2, %s14
        %p975 = scmp.lt.s32.totalorder %s974, 9
        %s976 = scalar_select %p975, %s974, 9
        %s977 = smul.addr %s976, 8
        %s978 = scalar_lea.vmem %s3, %s977
        // Predicated region
        $region71: #{discriminator_r_forward.10} parent=65 // pred_check
          %p979 = pneg %p100
        $region72: #{discriminator_r_forward.10} parent=65 // pred_check_branch
          %981 = sbr.rel (%p979) target = $region74
        $region73: #{discriminator_r_forward.10} parent=65 // pred_region
          %s982 = smul.u32 2, %s14
        $region74: #{discriminator_r_forward.10} parent=65 // pred_fallthru
          _
      $region66: #{discriminator_r_forward.10} parent=5 // pred_fallthru
        _
      %p983 = scmp.le.s32.totalorder 2, %s9
      // Predicated region
      $region75: #{discriminator_r_forward.10} parent=5 // pred_check
        %p984 = pneg %p983
      $region76: #{discriminator_r_forward.10} parent=5 // pred_check_branch
        %986 = sbr.rel (%p984) target = $region78
      $region77: #{discriminator_r_forward.10} parent=5 // pred_region
        %s987 = ssub.s32 %s9, 2
        // Predicated region
        $region79: #{discriminator_r_forward.10} parent=77 // pred_check
          %p988 = pneg %p106
        $region80: #{discriminator_r_forward.10} parent=77 // pred_check_branch
          %990 = sbr.rel (%p988) target = $region82
        $region81: #{discriminator_r_forward.10} parent=77 // pred_region
          %s991 = smul.u32 2, %s15
          %p992 = scmp.lt.s32.totalorder %s991, 9
          %s993 = scalar_select %p992, %s991, 9
          %s994 = smul.addr %s993, 8
          %s995 = scalar_lea.vmem %s3, %s994
        $region82: #{discriminator_r_forward.10} parent=77 // pred_fallthru
          _
      $region78: #{discriminator_r_forward.10} parent=5 // pred_fallthru
        _
    $region6: #{discriminator_r_forward.10} parent=1 // loop_footer
      %s13 = sadd.s32 1, %s9
    $region7: #{discriminator_r_forward.10} parent=1 // loop_footer_branch
      %8 = sbr.rel target = $region3
    $region8: #{discriminator_r_forward.10} parent=1 // loop_exit
      _

// kernel: discriminator_r_forward.12
$region0: #{discriminator_r_forward.12}
  #allocation0 [shape = 'u32[]', space=smem, size = 0x4, offset = 0x4, fixed_abs, tag = 'smem constant byte address 0x4 - core index']
  #allocation1 [shape = 'u32[144,128]{1,0:T(1,128)}', space=vmem, size = 0x12000, scoped, tag = 'internal scratch']
  %s0 = inlined_call_operand.vmem [shape: bf16[3,8,24], index: 0, kind: input, shape index: {}]
  %s1 = inlined_call_operand.vmem [shape: bf16[24,640], index: 1, kind: input, shape index: {}]
  %s2 = inlined_call_operand.vmem [shape: f32[8,1], index: 2, kind: input, shape index: {}]
  %s3 = inlined_call_operand.vmem [shape: f32[8,640], index: 3, kind: output, shape index: {}]
  %s4 = sld [smem:[#allocation0]]
  $region86: #{discriminator_r_forward.12} parent=0
    _
  %s6 = ssub.s32 1, %s4
  %s7 = scalar_select 0, %s6, %s4
  $region1: #{discriminator_r_forward.12} parent=0
    #allocation2 [shape = 'u8[12288]{0}', space=vmem, size = 0x3000, scoped, tag = 'input window, operand 1']
    loop: start=0, step=1, limit=7
    $region2: #{discriminator_r_forward.12} parent=1 // loop_pre_header
      _
    $region3: #{discriminator_r_forward.12} parent=1 // loop_header
      %s9 = sphi 0, %s13
      %p10 = scmp.ge.s32.totalorder %s9, 7
      %s17 = sphi 0, %s17
      %s19 = sphi 0, %s17
      %s20 = sphi 0, %s19
      %s34 = sphi 0, %s20
      %s40 = sphi 0, %s42
      %s43 = sphi 0, %s40
      %s44 = sphi 0, %s43
      %s60 = sphi 0, %s44
      %s64 = sphi 0, %s64
      %s66 = sphi 0, %s64
      %s67 = sphi 0, %s66
      %s81 = sphi 0, %s67
      %s87 = sphi 0, %s89
      %s90 = sphi 0, %s87
      %s91 = sphi 0, %s90
      %s107 = sphi 0, %s91
    $region4: #{discriminator_r_forward.12} parent=1 // loop_header_branch
      %12 = sbr.rel (%p10) target = $region8
    $region5: #{discriminator_r_forward.12} parent=1 // loop_body
      %s14 = ssub.s32 %s9, 1
      %s15 = ssub.s32 %s9, 2
      %s16 = sadd.s32 %s9, 1
      %s18 = sadd.s32 %s17, 1
      %p21 = scmp.eq.s32.totalorder %s9, 4
      %p22 = scmp.ne.s32.totalorder %s17, %s19
      %p23 = scmp.eq.s32.totalorder %s9, 0
      %p24 = por %p22, %p23
      %p25 = scmp.ne.s32.totalorder %s17, %s19
      %p26 = scmp.eq.s32.totalorder %s14, 4
      %p27 = por %p25, %p26
      %p28 = scmp.ne.s32.totalorder %s19, %s20
      %p29 = scmp.eq.s32.totalorder %s14, 0
      %p30 = por %p28, %p29
      %p31 = scmp.ne.s32.totalorder %s19, %s20
      %p32 = scmp.eq.s32.totalorder %s15, 4
      %p33 = por %p31, %p32
      %p35 = scmp.ne.s32.totalorder %s20, %s34
      %p36 = scmp.eq.s32.totalorder %s15, 0
      %p37 = por %p35, %p36
      %s38 = ssub.s32 %s9, %s16
      %p39 = scmp.eq.s32.totalorder %s38, 0
      %s41 = sadd.s32 %s40, 1
      %s42 = scalar_select %p39, %s40, %s41
      %p45 = pneg %p39
      %p46 = scmp.eq.s32.totalorder %s9, 4
      %p47 = por %p45, %p46
      %p48 = scmp.ne.s32.totalorder %s40, %s43
      %p49 = scmp.eq.s32.totalorder %s9, 0
      %p50 = por %p48, %p49
      %p51 = scmp.ne.s32.totalorder %s40, %s43
      %p52 = scmp.eq.s32.totalorder %s14, 4
      %p53 = por %p51, %p52
      %p54 = scmp.ne.s32.totalorder %s43, %s44
      %p55 = scmp.eq.s32.totalorder %s14, 0
      %p56 = por %p54, %p55
      %p57 = scmp.ne.s32.totalorder %s43, %s44
      %p58 = scmp.eq.s32.totalorder %s15, 4
      %p59 = por %p57, %p58
      %p61 = scmp.ne.s32.totalorder %s44, %s60
      %p62 = scmp.eq.s32.totalorder %s15, 0
      %p63 = por %p61, %p62
      %s65 = sadd.s32 %s64, 1
      %p68 = scmp.eq.s32.totalorder %s9, 4
      %p69 = scmp.ne.s32.totalorder %s64, %s66
      %p70 = scmp.eq.s32.totalorder %s9, 0
      %p71 = por %p69, %p70
      %p72 = scmp.ne.s32.totalorder %s64, %s66
      %p73 = scmp.eq.s32.totalorder %s14, 4
      %p74 = por %p72, %p73
      %p75 = scmp.ne.s32.totalorder %s66, %s67
      %p76 = scmp.eq.s32.totalorder %s14, 0
      %p77 = por %p75, %p76
      %p78 = scmp.ne.s32.totalorder %s66, %s67
      %p79 = scmp.eq.s32.totalorder %s15, 4
      %p80 = por %p78, %p79
      %p82 = scmp.ne.s32.totalorder %s67, %s81
      %p83 = scmp.eq.s32.totalorder %s15, 0
      %p84 = por %p82, %p83
      %s85 = ssub.s32 %s9, %s16
      %p86 = scmp.eq.s32.totalorder %s85, 0
      %s88 = sadd.s32 %s87, 1
      %s89 = scalar_select %p86, %s87, %s88
      %p92 = pneg %p86
      %p93 = scmp.eq.s32.totalorder %s9, 4
      %p94 = por %p92, %p93
      %p95 = scmp.ne.s32.totalorder %s87, %s90
      %p96 = scmp.eq.s32.totalorder %s9, 0
      %p97 = por %p95, %p96
      %p98 = scmp.ne.s32.totalorder %s87, %s90
      %p99 = scmp.eq.s32.totalorder %s14, 4
      %p100 = por %p98, %p99
      %p101 = scmp.ne.s32.totalorder %s90, %s91
      %p102 = scmp.eq.s32.totalorder %s14, 0
      %p103 = por %p101, %p102
      %p104 = scmp.ne.s32.totalorder %s90, %s91
      %p105 = scmp.eq.s32.totalorder %s15, 4
      %p106 = por %p104, %p105
      %p108 = scmp.ne.s32.totalorder %s91, %s107
      %p109 = scmp.eq.s32.totalorder %s15, 0
      %p110 = por %p108, %p109
      %p111 = scmp.le.s32.totalorder 1, %s9
      %p112 = scmp.lt.s32.totalorder %s9, 6
      %p113 = pnand %p111, %p112
      %p114 = pneg %p113
      // Predicated region
      $region9: #{discriminator_r_forward.12} parent=5 // pred_check
        _
      $region10: #{discriminator_r_forward.12} parent=5 // pred_check_branch
        %116 = sbr.rel (%p113) target = $region12
      $region11: #{discriminator_r_forward.12} parent=5 // pred_region
        %s117 = ssub.s32 %s9, 1
        // Predicated region
        $region13: #{discriminator_r_forward.12} parent=11 // pred_check
          %p118 = pneg %p30
        $region14: #{discriminator_r_forward.12} parent=11 // pred_check_branch
          %120 = sbr.rel (%p118) target = $region16
        $region15: #{discriminator_r_forward.12} parent=11 // pred_region
          _
        $region16: #{discriminator_r_forward.12} parent=11 // pred_fallthru
          _
        // Predicated region
        $region17: #{discriminator_r_forward.12} parent=11 // pred_check
          %p121 = pneg %p77
        $region18: #{discriminator_r_forward.12} parent=11 // pred_check_branch
          %123 = sbr.rel (%p121) target = $region20
        $region19: #{discriminator_r_forward.12} parent=11 // pred_region
          _
        $region20: #{discriminator_r_forward.12} parent=11 // pred_fallthru
          _
      $region12: #{discriminator_r_forward.12} parent=5 // pred_fallthru
        _
      %p124 = scmp.lt.s32.totalorder %s9, 5
      // Predicated region
      $region21: #{discriminator_r_forward.12} parent=5 // pred_check
        %p125 = pneg %p124
      $region22: #{discriminator_r_forward.12} parent=5 // pred_check_branch
        %127 = sbr.rel (%p125) target = $region24
      $region23: #{discriminator_r_forward.12} parent=5 // pred_region
        // Predicated region
        $region25: #{discriminator_r_forward.12} parent=23 // pred_check
          %p128 = pneg %p50
        $region26: #{discriminator_r_forward.12} parent=23 // pred_check_branch
          %130 = sbr.rel (%p128) target = $region28
        $region27: #{discriminator_r_forward.12} parent=23 // pred_region
          %s131 = sand.u32 %s40, 1
          %s132 = sand.u32 %s40, 1
          %s133 = smul.addr %s132, 12
          %s134 = scalar_lea.vmem [#allocation2], %s133
          %s135 = smul.addr %s9, 4
          %s136 = scalar_lea.vmem %s1, %s135
          // Predicated region
          $region29: #{discriminator_r_forward.12} parent=27 // pred_check
            _
          $region30: #{discriminator_r_forward.12} parent=27 // pred_check_branch
            %138 = sbr.rel (0) target = $region32
          $region31: #{discriminator_r_forward.12} parent=27 // pred_region
            // Predicated region
            $region33: #{discriminator_r_forward.12} parent=31 // pred_check
              _
            $region34: #{discriminator_r_forward.12} parent=31 // pred_check_branch
              %140 = sbr.rel target = $region36
            $region35: #{discriminator_r_forward.12} parent=31 // pred_region
              // Predicated region
              $region48: #{discriminator_r_forward.12} parent=35 // pred_check
                _
              $region49: #{discriminator_r_forward.12} parent=35 // pred_check_branch
                %159 = sbr.rel (0) target = $region51
              $region50: #{discriminator_r_forward.12} parent=35 // pred_region
                loop: start=0, step=1, limit=1
                $region52: #{discriminator_r_forward.12} parent=50 // loop_pre_header
                  _
                $region53: #{discriminator_r_forward.12} parent=50 // loop_header
                  %s161 = sphi 0, %s165
                  %p162 = scmp.ge.s32.totalorder %s161, 1
                  %s166 = sphi %s136, %s136
                  %s167 = sphi %s134, %s134
                $region54: #{discriminator_r_forward.12} parent=50 // loop_header_branch
                  %164 = sbr.rel (%p162) target = $region58
                $region55: #{discriminator_r_forward.12} parent=50 // loop_body
                  _
                $region56: #{discriminator_r_forward.12} parent=50 // loop_footer
                  %s165 = sadd.s32 1, %s161
                $region57: #{discriminator_r_forward.12} parent=50 // loop_footer_branch
                  %160 = sbr.rel target = $region53
                $region58: #{discriminator_r_forward.12} parent=50 // loop_exit
                  _
                loop: start=0, step=1, limit=1
                $region59: #{discriminator_r_forward.12} parent=50 // loop_pre_header
                  _
                $region60: #{discriminator_r_forward.12} parent=50 // loop_header
                  %s170 = sphi 0, %s174
                  %p171 = scmp.ge.s32.totalorder %s170, 1
                  %s175 = sphi %s136, %s136
                  %s176 = sphi %s134, %s134
                $region61: #{discriminator_r_forward.12} parent=50 // loop_header_branch
                  %173 = sbr.rel (%p171) target = $region65
                $region62: #{discriminator_r_forward.12} parent=50 // loop_body
                  %v177 = vld [vmem:[%s175] sm:$0xf]
                  %178 = vst [vmem:[%s176] sm:$0xf] %v177
                  %v179 = vld [vmem:[%s175 + $0x14] sm:$0xf]
                  %180 = vst [vmem:[%s176 + $0x4] sm:$0xf] %v179
                  %v181 = vld [vmem:[%s175 + $0x28] sm:$0xf]
                  %182 = vst [vmem:[%s176 + $0x8] sm:$0xf] %v181
                $region63: #{discriminator_r_forward.12} parent=50 // loop_footer
                  %s174 = sadd.s32 1, %s170
                $region64: #{discriminator_r_forward.12} parent=50 // loop_footer_branch
                  %169 = sbr.rel target = $region60
                $region65: #{discriminator_r_forward.12} parent=50 // loop_exit
                  _
              $region51: #{discriminator_r_forward.12} parent=35 // pred_fallthru
                _
            $region36: #{discriminator_r_forward.12} parent=31 // pred_fallthru
              _
            // Predicated region
            $region37: #{discriminator_r_forward.12} parent=31 // pred_check
              _
            $region38: #{discriminator_r_forward.12} parent=31 // pred_check_branch
              %142 = sbr.rel (0) target = $region40
            $region39: #{discriminator_r_forward.12} parent=31 // pred_region
              loop: start=0, step=1, limit=1
              $region41: #{discriminator_r_forward.12} parent=39 // loop_pre_header
                _
              $region42: #{discriminator_r_forward.12} parent=39 // loop_header
                %s145 = sphi 0, %s149
                %p146 = scmp.ge.s32.totalorder %s145, 1
                %s150 = sphi %s136, %s136
                %s151 = sphi %s134, %s134
              $region43: #{discriminator_r_forward.12} parent=39 // loop_header_branch
                %148 = sbr.rel (%p146) target = $region47
              $region44: #{discriminator_r_forward.12} parent=39 // loop_body
                %v152 = vld [vmem:[%s150] sm:$0xf]
                %153 = vst [vmem:[%s151] sm:$0xf] %v152
                %v154 = vld [vmem:[%s150 + $0x14] sm:$0xf]
                %155 = vst [vmem:[%s151 + $0x4] sm:$0xf] %v154
                %v156 = vld [vmem:[%s150 + $0x28] sm:$0xf]
                %157 = vst [vmem:[%s151 + $0x8] sm:$0xf] %v156
              $region45: #{discriminator_r_forward.12} parent=39 // loop_footer
                %s149 = sadd.s32 1, %s145
              $region46: #{discriminator_r_forward.12} parent=39 // loop_footer_branch
                %144 = sbr.rel target = $region42
              $region47: #{discriminator_r_forward.12} parent=39 // loop_exit
                _
            $region40: #{discriminator_r_forward.12} parent=31 // pred_fallthru
              _
          $region32: #{discriminator_r_forward.12} parent=27 // pred_fallthru
            _
          %183 = vnop
        $region28: #{discriminator_r_forward.12} parent=23 // pred_fallthru
          _
      $region24: #{discriminator_r_forward.12} parent=5 // pred_fallthru
        _
      %p184 = scmp.le.s32.totalorder 1, %s9
      %p185 = scmp.lt.s32.totalorder %s9, 6
      %p186 = pnand %p184, %p185
      %p187 = pneg %p186
      // Predicated region
      $region66: #{discriminator_r_forward.12} parent=5 // pred_check
        _
      $region67: #{discriminator_r_forward.12} parent=5 // pred_check_branch
        %189 = sbr.rel (%p186) target = $region69
      $region68: #{discriminator_r_forward.12} parent=5 // pred_region
        %s190 = ssub.s32 %s9, 1
        %s191 = sand.u32 %s43, 1
        %s192 = sand.u32 %s43, 1
        %s193 = smul.addr %s192, 12
        %s194 = scalar_lea.vmem [#allocation2], %s193
        // Predicated region
        $region70: #{discriminator_r_forward.12} parent=68 // pred_check
          %p195 = pneg %p56
        $region71: #{discriminator_r_forward.12} parent=68 // pred_check_branch
          %197 = sbr.rel (%p195) target = $region73
        $region72: #{discriminator_r_forward.12} parent=68 // pred_region
          _
        $region73: #{discriminator_r_forward.12} parent=68 // pred_fallthru
          _
        %p198 = pneg %p30
        %p199 = pneg %p27
        %s200 = sand.u32 %s43, 1
        %s201 = sand.u32 %s43, 1
        %s202 = smul.addr %s201, 12
        %s203 = scalar_lea.vmem [#allocation2], %s202
        %p204 = pneg %p56
        %p205 = pneg %p53
        %p206 = pneg %p77
        %p207 = pneg %p74
        %p208 = pneg %p103
        %p209 = pneg %p100
        %p210 = scmp.lt.s32.totalorder %s14, 4
        %s211 = scalar_select %p210, %s14, 4
        %s212 = smul.addr %s211, 8
        %s213 = scalar_lea.vmem %s3, %s212
        %p214 = scmp.lt.s32.totalorder %s14, 4
        %s215 = scalar_select %p214, %s14, 4
        %s216 = smul.addr %s215, 8
        %s217 = scalar_lea.vmem %s3, %s216
        %v219 = vld [vmem:[%s0] sm:$0xf]
        %v220 = vld [vmem:[%s194] sm:$0xf]
        %v221 = vld [vmem:[%s194 + $0x4] sm:$0xf]
        %v222 = vld [vmem:[%s194 + $0x8] sm:$0xf]
        %v226 = vunpack.c.l.b16 %v220
        %v227 = vunpack.c.l.b16 %v221
        %v228 = vunpack.c.l.b16 %v222
        %v229 = vpack.c.b16 %v227, %v226
        %v230 = vpack.c.b16 %v228, %v228
        %vm232 = vcmask 195584
        %v234 = vsel %vm232, %v219, 0
        %vm236 = vcmask 1043456
        %v238 = vsel %vm236, %v230, 0
        %240 = vmatprep.subr.bf16.mxu0 0
        %241 = vmatpush1.bf16.msra.mxu0 %v229
        %242 = vmatprep.subr.bf16.mxu0 0
        %243 = vmatpush1.bf16.msra.mxu0 %v238
        %244 = vmatprep.subr.bf16.mxu0 0
        %245 = vmatpush1.bf16.msra.mxu0 0
        %246 = vmatprep.subr.bf16.mxu0 0
        %247 = vmatpush1.bf16.msra.mxu0 0
        %248 = vmatprep.subr.bf16.mxu0 0
        %249 = vmatpush1.bf16.msra.mxu0 0
        %250 = vmatprep.subr.bf16.mxu0 0
        %251 = vmatpush1.bf16.msra.mxu0 0
        %252 = vmatprep.subr.bf16.mxu0 0
        %253 = vmatpush1.bf16.msra.mxu0 0
        %254 = vmatprep.subr.bf16.mxu0 0
        %255 = vmatpush1.bf16.msra.mxu0 0
        %256 = vmatprep.subr.bf16.mxu0 0
        %257 = vmatpush1.bf16.msra.mxu0 0
        %258 = vmatprep.subr.bf16.mxu0 0
        %259 = vmatpush1.bf16.msra.mxu0 0
        %260 = vmatprep.subr.bf16.mxu0 0
        %261 = vmatpush1.bf16.msra.mxu0 0
        %262 = vmatprep.subr.bf16.mxu0 0
        %263 = vmatpush1.bf16.msra.mxu0 0
        %264 = vmatprep.subr.bf16.mxu0 0
        %265 = vmatpush1.bf16.msra.mxu0 0
        %266 = vmatprep.subr.bf16.mxu0 0
        %267 = vmatpush1.bf16.msra.mxu0 0
        %268 = vmatprep.subr.bf16.mxu0 0
        %269 = vmatpush1.bf16.msra.mxu0 0
        %270 = vmatprep.subr.bf16.mxu0 0
        %271 = vmatpush1.bf16.msra.mxu0 0
        %272 = vmatprep.mubr.bf16.mxu0 0
        %273 = vmatmul.mubr.bf16.gmra.mrb[0].mxu0 %v234
        %v274 = vpop.f32.mrb[0].mxu0
        %v275 = vadd.f32 0.0, %v274
        %v276 = vpop.f32.mrb[0].mxu0
        %v277 = vpop.f32.mrb[0].mxu0
        %v278 = vpop.f32.mrb[0].mxu0
        %279 = vdwg.mxu0
        %280 = vst [vmem:[%s217] sm:$0xff] %v275
        %s281 = scalar_lea.vmem %s0, 4
        %v282 = vld [vmem:[%s281] sm:$0xf]
        %v283 = vld [vmem:[%s194] sm:$0xf]
        %v284 = vld [vmem:[%s194 + $0x4] sm:$0xf]
        %v285 = vld [vmem:[%s194 + $0x8] sm:$0xf]
        %v289 = vunpack.c.l.b16 %v283
        %v290 = vunpack.c.l.b16 %v284
        %v291 = vunpack.c.l.b16 %v285
        %v292 = vpack.c.b16 %v290, %v289
        %v293 = vpack.c.b16 %v291, %v291
        %v296 = vsel %vm232, %v282, 0
        %v299 = vsel %vm236, %v293, 0
        %301 = vmatprep.subr.bf16.mxu0 0
        %302 = vmatpush1.bf16.msra.mxu0 %v292
        %303 = vmatprep.subr.bf16.mxu0 0
        %304 = vmatpush1.bf16.msra.mxu0 %v299
        %305 = vmatprep.subr.bf16.mxu0 0
        %306 = vmatpush1.bf16.msra.mxu0 0
        %307 = vmatprep.subr.bf16.mxu0 0
        %308 = vmatpush1.bf16.msra.mxu0 0
        %309 = vmatprep.subr.bf16.mxu0 0
        %310 = vmatpush1.bf16.msra.mxu0 0
        %311 = vmatprep.subr.bf16.mxu0 0
        %312 = vmatpush1.bf16.msra.mxu0 0
        %313 = vmatprep.subr.bf16.mxu0 0
        %314 = vmatpush1.bf16.msra.mxu0 0
        %315 = vmatprep.subr.bf16.mxu0 0
        %316 = vmatpush1.bf16.msra.mxu0 0
        %317 = vmatprep.subr.bf16.mxu0 0
        %318 = vmatpush1.bf16.msra.mxu0 0
        %319 = vmatprep.subr.bf16.mxu0 0
        %320 = vmatpush1.bf16.msra.mxu0 0
        %321 = vmatprep.subr.bf16.mxu0 0
        %322 = vmatpush1.bf16.msra.mxu0 0
        %323 = vmatprep.subr.bf16.mxu0 0
        %324 = vmatpush1.bf16.msra.mxu0 0
        %325 = vmatprep.subr.bf16.mxu0 0
        %326 = vmatpush1.bf16.msra.mxu0 0
        %327 = vmatprep.subr.bf16.mxu0 0
        %328 = vmatpush1.bf16.msra.mxu0 0
        %329 = vmatprep.subr.bf16.mxu0 0
        %330 = vmatpush1.bf16.msra.mxu0 0
        %331 = vmatprep.subr.bf16.mxu0 0
        %332 = vmatpush1.bf16.msra.mxu0 0
        %333 = vmatprep.mubr.bf16.mxu0 0
        %334 = vmatmul.mubr.bf16.gmra.mrb[0].mxu0 %v296
        %v335 = vpop.f32.mrb[0].mxu0
        %v336 = vadd.f32 0.0, %v335
        %v337 = vpop.f32.mrb[0].mxu0
        %v338 = vpop.f32.mrb[0].mxu0
        %v339 = vpop.f32.mrb[0].mxu0
        %340 = vdwg.mxu0
        %v341 = vld [vmem:[%s217] sm:$0xff]
        %342 = vrot.lane.b32.xlu0 %v336, 127
        %v343 = vpop.permute.xlu0 %342
        %v344 = vadd.f32 %v341, %v343
        %345 = vst [vmem:[%s217] sm:$0xff] %v344
        %s346 = scalar_lea.vmem %s0, 8
        %v347 = vld [vmem:[%s346] sm:$0xf]
        %v348 = vld [vmem:[%s194] sm:$0xf]
        %v349 = vld [vmem:[%s194 + $0x4] sm:$0xf]
        %v350 = vld [vmem:[%s194 + $0x8] sm:$0xf]
        %v354 = vunpack.c.l.b16 %v348
        %v355 = vunpack.c.l.b16 %v349
        %v356 = vunpack.c.l.b16 %v350
        %v357 = vpack.c.b16 %v355, %v354
        %v358 = vpack.c.b16 %v356, %v356
        %v361 = vsel %vm232, %v347, 0
        %v364 = vsel %vm236, %v358, 0
        %366 = vmatprep.subr.bf16.mxu0 0
        %367 = vmatpush1.bf16.msra.mxu0 %v357
        %368 = vmatprep.subr.bf16.mxu0 0
        %369 = vmatpush1.bf16.msra.mxu0 %v364
        %370 = vmatprep.subr.bf16.mxu0 0
        %371 = vmatpush1.bf16.msra.mxu0 0
        %372 = vmatprep.subr.bf16.mxu0 0
        %373 = vmatpush1.bf16.msra.mxu0 0
        %374 = vmatprep.subr.bf16.mxu0 0
        %375 = vmatpush1.bf16.msra.mxu0 0
        %376 = vmatprep.subr.bf16.mxu0 0
        %377 = vmatpush1.bf16.msra.mxu0 0
        %378 = vmatprep.subr.bf16.mxu0 0
        %379 = vmatpush1.bf16.msra.mxu0 0
        %380 = vmatprep.subr.bf16.mxu0 0
        %381 = vmatpush1.bf16.msra.mxu0 0
        %382 = vmatprep.subr.bf16.mxu0 0
        %383 = vmatpush1.bf16.msra.mxu0 0
        %384 = vmatprep.subr.bf16.mxu0 0
        %385 = vmatpush1.bf16.msra.mxu0 0
        %386 = vmatprep.subr.bf16.mxu0 0
        %387 = vmatpush1.bf16.msra.mxu0 0
        %388 = vmatprep.subr.bf16.mxu0 0
        %389 = vmatpush1.bf16.msra.mxu0 0
        %390 = vmatprep.subr.bf16.mxu0 0
        %391 = vmatpush1.bf16.msra.mxu0 0
        %392 = vmatprep.subr.bf16.mxu0 0
        %393 = vmatpush1.bf16.msra.mxu0 0
        %394 = vmatprep.subr.bf16.mxu0 0
        %395 = vmatpush1.bf16.msra.mxu0 0
        %396 = vmatprep.subr.bf16.mxu0 0
        %397 = vmatpush1.bf16.msra.mxu0 0
        %398 = vmatprep.mubr.bf16.mxu0 0
        %399 = vmatmul.mubr.bf16.gmra.mrb[0].mxu0 %v361
        %v400 = vpop.f32.mrb[0].mxu0
        %v401 = vadd.f32 0.0, %v400
        %v402 = vpop.f32.mrb[0].mxu0
        %v403 = vpop.f32.mrb[0].mxu0
        %v404 = vpop.f32.mrb[0].mxu0
        %405 = vdwg.mxu0
        %v406 = vld [vmem:[%s217] sm:$0xff]
        %407 = vrot.lane.b32.xlu0 %v401, 126
        %v408 = vpop.permute.xlu0 %407
        %v409 = vadd.f32 %v406, %v408
        %410 = vst [vmem:[%s217] sm:$0xff] %v409
        %v411 = vld [vmem:[%s217] sm:$0xff]
        %v412 = vld [vmem:[%s2] sm:$0xff]
        %414 = vset.pattern.permute.xlu0 0
        %415 = vperm.xlu0 %414, %v412
        %v416 = vpop.permute.xlu0 %415
        %v418 = vadd.f32 %v411, %v416
        %vm419 = vcmp.ge.f32.partialorder %v418, 0.0
        %v420 = vmul.f32 %v418, 0.1
        %v421 = vsel %vm419, %v418, %v420
        %422 = vst [vmem:[%s217] sm:$0xff] %v421
        %p423 = scmp.lt.s32.totalorder %s14, 4
        %s424 = scalar_select %p423, %s14, 4
        %s425 = smul.addr %s424, 8
        %s426 = scalar_lea.vmem %s3, %s425
        // Predicated region
        $region74: #{discriminator_r_forward.12} parent=68 // pred_check
          %p427 = pneg %p100
        $region75: #{discriminator_r_forward.12} parent=68 // pred_check_branch
          %429 = sbr.rel (%p427) target = $region77
        $region76: #{discriminator_r_forward.12} parent=68 // pred_region
          _
        $region77: #{discriminator_r_forward.12} parent=68 // pred_fallthru
          _
      $region69: #{discriminator_r_forward.12} parent=5 // pred_fallthru
        _
      %p430 = scmp.le.s32.totalorder 2, %s9
      // Predicated region
      $region78: #{discriminator_r_forward.12} parent=5 // pred_check
        %p431 = pneg %p430
      $region79: #{discriminator_r_forward.12} parent=5 // pred_check_branch
        %433 = sbr.rel (%p431) target = $region81
      $region80: #{discriminator_r_forward.12} parent=5 // pred_region
        %s434 = ssub.s32 %s9, 2
        // Predicated region
        $region82: #{discriminator_r_forward.12} parent=80 // pred_check
          %p435 = pneg %p106
        $region83: #{discriminator_r_forward.12} parent=80 // pred_check_branch
          %437 = sbr.rel (%p435) target = $region85
        $region84: #{discriminator_r_forward.12} parent=80 // pred_region
          %p438 = scmp.lt.s32.totalorder %s15, 4
          %s439 = scalar_select %p438, %s15, 4
          %s440 = smul.addr %s439, 8
          %s441 = scalar_lea.vmem %s3, %s440
        $region85: #{discriminator_r_forward.12} parent=80 // pred_fallthru
          _
      $region81: #{discriminator_r_forward.12} parent=5 // pred_fallthru
        _
    $region6: #{discriminator_r_forward.12} parent=1 // loop_footer
      %s13 = sadd.s32 1, %s9
    $region7: #{discriminator_r_forward.12} parent=1 // loop_footer_branch
      %8 = sbr.rel target = $region3
    $region8: #{discriminator_r_forward.12} parent=1 // loop_exit
      _

// kernel: discriminator_r_forward.13
$region0: #{discriminator_r_forward.13}
  #allocation0 [shape = 'u32[]', space=smem, size = 0x4, offset = 0x4, fixed_abs, tag = 'smem constant byte address 0x4 - core index']
  #allocation1 [shape = 'u32[144,128]{1,0:T(1,128)}', space=vmem, size = 0x12000, scoped, tag = 'internal scratch']
  #allocation2 [shape = 'f32[1,1]{1,0:T(1,128)S(1)}', space=vmem, size = 0x200, scoped, tag = 'scoped memory for discriminator_r_forward.13']
  %s0 = inlined_call_operand.vmem [shape: bf16[3,1,24], index: 0, kind: input, shape index: {}]
  %s1 = inlined_call_operand.vmem [shape: bf16[24,640], index: 1, kind: input, shape index: {}]
  %s2 = inlined_call_operand.<no memory space> [shape: f32[1,1], index: 2, kind: input, shape index: {}]
  %s3 = inlined_call_operand.vmem [shape: f32[1,640], index: 3, kind: output, shape index: {}]
  %s4 = sld [smem:[#allocation0]]
  $region86: #{discriminator_r_forward.13} parent=0
    _
  %s6 = ssub.s32 1, %s4
  %s7 = scalar_select 0, %s6, %s4
  %v8 = vstv %s2
  %9 = vst [vmem:[#allocation2] sm:$0x1] %v8
  $region1: #{discriminator_r_forward.13} parent=0
    #allocation3 [shape = 'u8[12288]{0}', space=vmem, size = 0x3000, scoped, tag = 'input window, operand 1']
    loop: start=0, step=1, limit=7
    $region2: #{discriminator_r_forward.13} parent=1 // loop_pre_header
      _
    $region3: #{discriminator_r_forward.13} parent=1 // loop_header
      %s11 = sphi 0, %s15
      %p12 = scmp.ge.s32.totalorder %s11, 7
      %s19 = sphi 0, %s19
      %s21 = sphi 0, %s19
      %s22 = sphi 0, %s21
      %s36 = sphi 0, %s22
      %s42 = sphi 0, %s44
      %s45 = sphi 0, %s42
      %s46 = sphi 0, %s45
      %s62 = sphi 0, %s46
      %s66 = sphi 0, %s66
      %s68 = sphi 0, %s66
      %s69 = sphi 0, %s68
      %s83 = sphi 0, %s69
      %s89 = sphi 0, %s91
      %s92 = sphi 0, %s89
      %s93 = sphi 0, %s92
      %s109 = sphi 0, %s93
    $region4: #{discriminator_r_forward.13} parent=1 // loop_header_branch
      %14 = sbr.rel (%p12) target = $region8
    $region5: #{discriminator_r_forward.13} parent=1 // loop_body
      %s16 = ssub.s32 %s11, 1
      %s17 = ssub.s32 %s11, 2
      %s18 = sadd.s32 %s11, 1
      %s20 = sadd.s32 %s19, 1
      %p23 = scmp.eq.s32.totalorder %s11, 4
      %p24 = scmp.ne.s32.totalorder %s19, %s21
      %p25 = scmp.eq.s32.totalorder %s11, 0
      %p26 = por %p24, %p25
      %p27 = scmp.ne.s32.totalorder %s19, %s21
      %p28 = scmp.eq.s32.totalorder %s16, 4
      %p29 = por %p27, %p28
      %p30 = scmp.ne.s32.totalorder %s21, %s22
      %p31 = scmp.eq.s32.totalorder %s16, 0
      %p32 = por %p30, %p31
      %p33 = scmp.ne.s32.totalorder %s21, %s22
      %p34 = scmp.eq.s32.totalorder %s17, 4
      %p35 = por %p33, %p34
      %p37 = scmp.ne.s32.totalorder %s22, %s36
      %p38 = scmp.eq.s32.totalorder %s17, 0
      %p39 = por %p37, %p38
      %s40 = ssub.s32 %s11, %s18
      %p41 = scmp.eq.s32.totalorder %s40, 0
      %s43 = sadd.s32 %s42, 1
      %s44 = scalar_select %p41, %s42, %s43
      %p47 = pneg %p41
      %p48 = scmp.eq.s32.totalorder %s11, 4
      %p49 = por %p47, %p48
      %p50 = scmp.ne.s32.totalorder %s42, %s45
      %p51 = scmp.eq.s32.totalorder %s11, 0
      %p52 = por %p50, %p51
      %p53 = scmp.ne.s32.totalorder %s42, %s45
      %p54 = scmp.eq.s32.totalorder %s16, 4
      %p55 = por %p53, %p54
      %p56 = scmp.ne.s32.totalorder %s45, %s46
      %p57 = scmp.eq.s32.totalorder %s16, 0
      %p58 = por %p56, %p57
      %p59 = scmp.ne.s32.totalorder %s45, %s46
      %p60 = scmp.eq.s32.totalorder %s17, 4
      %p61 = por %p59, %p60
      %p63 = scmp.ne.s32.totalorder %s46, %s62
      %p64 = scmp.eq.s32.totalorder %s17, 0
      %p65 = por %p63, %p64
      %s67 = sadd.s32 %s66, 1
      %p70 = scmp.eq.s32.totalorder %s11, 4
      %p71 = scmp.ne.s32.totalorder %s66, %s68
      %p72 = scmp.eq.s32.totalorder %s11, 0
      %p73 = por %p71, %p72
      %p74 = scmp.ne.s32.totalorder %s66, %s68
      %p75 = scmp.eq.s32.totalorder %s16, 4
      %p76 = por %p74, %p75
      %p77 = scmp.ne.s32.totalorder %s68, %s69
      %p78 = scmp.eq.s32.totalorder %s16, 0
      %p79 = por %p77, %p78
      %p80 = scmp.ne.s32.totalorder %s68, %s69
      %p81 = scmp.eq.s32.totalorder %s17, 4
      %p82 = por %p80, %p81
      %p84 = scmp.ne.s32.totalorder %s69, %s83
      %p85 = scmp.eq.s32.totalorder %s17, 0
      %p86 = por %p84, %p85
      %s87 = ssub.s32 %s11, %s18
      %p88 = scmp.eq.s32.totalorder %s87, 0
      %s90 = sadd.s32 %s89, 1
      %s91 = scalar_select %p88, %s89, %s90
      %p94 = pneg %p88
      %p95 = scmp.eq.s32.totalorder %s11, 4
      %p96 = por %p94, %p95
      %p97 = scmp.ne.s32.totalorder %s89, %s92
      %p98 = scmp.eq.s32.totalorder %s11, 0
      %p99 = por %p97, %p98
      %p100 = scmp.ne.s32.totalorder %s89, %s92
      %p101 = scmp.eq.s32.totalorder %s16, 4
      %p102 = por %p100, %p101
      %p103 = scmp.ne.s32.totalorder %s92, %s93
      %p104 = scmp.eq.s32.totalorder %s16, 0
      %p105 = por %p103, %p104
      %p106 = scmp.ne.s32.totalorder %s92, %s93
      %p107 = scmp.eq.s32.totalorder %s17, 4
      %p108 = por %p106, %p107
      %p110 = scmp.ne.s32.totalorder %s93, %s109
      %p111 = scmp.eq.s32.totalorder %s17, 0
      %p112 = por %p110, %p111
      %p113 = scmp.le.s32.totalorder 1, %s11
      %p114 = scmp.lt.s32.totalorder %s11, 6
      %p115 = pnand %p113, %p114
      %p116 = pneg %p115
      // Predicated region
      $region9: #{discriminator_r_forward.13} parent=5 // pred_check
        _
      $region10: #{discriminator_r_forward.13} parent=5 // pred_check_branch
        %118 = sbr.rel (%p115) target = $region12
      $region11: #{discriminator_r_forward.13} parent=5 // pred_region
        %s119 = ssub.s32 %s11, 1
        // Predicated region
        $region13: #{discriminator_r_forward.13} parent=11 // pred_check
          %p120 = pneg %p32
        $region14: #{discriminator_r_forward.13} parent=11 // pred_check_branch
          %122 = sbr.rel (%p120) target = $region16
        $region15: #{discriminator_r_forward.13} parent=11 // pred_region
          _
        $region16: #{discriminator_r_forward.13} parent=11 // pred_fallthru
          _
        // Predicated region
        $region17: #{discriminator_r_forward.13} parent=11 // pred_check
          %p123 = pneg %p79
        $region18: #{discriminator_r_forward.13} parent=11 // pred_check_branch
          %125 = sbr.rel (%p123) target = $region20
        $region19: #{discriminator_r_forward.13} parent=11 // pred_region
          _
        $region20: #{discriminator_r_forward.13} parent=11 // pred_fallthru
          _
      $region12: #{discriminator_r_forward.13} parent=5 // pred_fallthru
        _
      %p126 = scmp.lt.s32.totalorder %s11, 5
      // Predicated region
      $region21: #{discriminator_r_forward.13} parent=5 // pred_check
        %p127 = pneg %p126
      $region22: #{discriminator_r_forward.13} parent=5 // pred_check_branch
        %129 = sbr.rel (%p127) target = $region24
      $region23: #{discriminator_r_forward.13} parent=5 // pred_region
        // Predicated region
        $region25: #{discriminator_r_forward.13} parent=23 // pred_check
          %p130 = pneg %p52
        $region26: #{discriminator_r_forward.13} parent=23 // pred_check_branch
          %132 = sbr.rel (%p130) target = $region28
        $region27: #{discriminator_r_forward.13} parent=23 // pred_region
          %s133 = sand.u32 %s42, 1
          %s134 = sand.u32 %s42, 1
          %s135 = smul.addr %s134, 12
          %s136 = scalar_lea.vmem [#allocation3], %s135
          %s137 = smul.addr %s11, 4
          %s138 = scalar_lea.vmem %s1, %s137
          // Predicated region
          $region29: #{discriminator_r_forward.13} parent=27 // pred_check
            _
          $region30: #{discriminator_r_forward.13} parent=27 // pred_check_branch
            %140 = sbr.rel (0) target = $region32
          $region31: #{discriminator_r_forward.13} parent=27 // pred_region
            // Predicated region
            $region33: #{discriminator_r_forward.13} parent=31 // pred_check
              _
            $region34: #{discriminator_r_forward.13} parent=31 // pred_check_branch
              %142 = sbr.rel target = $region36
            $region35: #{discriminator_r_forward.13} parent=31 // pred_region
              // Predicated region
              $region48: #{discriminator_r_forward.13} parent=35 // pred_check
                _
              $region49: #{discriminator_r_forward.13} parent=35 // pred_check_branch
                %161 = sbr.rel (0) target = $region51
              $region50: #{discriminator_r_forward.13} parent=35 // pred_region
                loop: start=0, step=1, limit=1
                $region52: #{discriminator_r_forward.13} parent=50 // loop_pre_header
                  _
                $region53: #{discriminator_r_forward.13} parent=50 // loop_header
                  %s163 = sphi 0, %s167
                  %p164 = scmp.ge.s32.totalorder %s163, 1
                  %s168 = sphi %s138, %s138
                  %s169 = sphi %s136, %s136
                $region54: #{discriminator_r_forward.13} parent=50 // loop_header_branch
                  %166 = sbr.rel (%p164) target = $region58
                $region55: #{discriminator_r_forward.13} parent=50 // loop_body
                  _
                $region56: #{discriminator_r_forward.13} parent=50 // loop_footer
                  %s167 = sadd.s32 1, %s163
                $region57: #{discriminator_r_forward.13} parent=50 // loop_footer_branch
                  %162 = sbr.rel target = $region53
                $region58: #{discriminator_r_forward.13} parent=50 // loop_exit
                  _
                loop: start=0, step=1, limit=1
                $region59: #{discriminator_r_forward.13} parent=50 // loop_pre_header
                  _
                $region60: #{discriminator_r_forward.13} parent=50 // loop_header
                  %s172 = sphi 0, %s176
                  %p173 = scmp.ge.s32.totalorder %s172, 1
                  %s177 = sphi %s138, %s138
                  %s178 = sphi %s136, %s136
                $region61: #{discriminator_r_forward.13} parent=50 // loop_header_branch
                  %175 = sbr.rel (%p173) target = $region65
                $region62: #{discriminator_r_forward.13} parent=50 // loop_body
                  %v179 = vld [vmem:[%s177] sm:$0xf]
                  %180 = vst [vmem:[%s178] sm:$0xf] %v179
                  %v181 = vld [vmem:[%s177 + $0x14] sm:$0xf]
                  %182 = vst [vmem:[%s178 + $0x4] sm:$0xf] %v181
                  %v183 = vld [vmem:[%s177 + $0x28] sm:$0xf]
                  %184 = vst [vmem:[%s178 + $0x8] sm:$0xf] %v183
                $region63: #{discriminator_r_forward.13} parent=50 // loop_footer
                  %s176 = sadd.s32 1, %s172
                $region64: #{discriminator_r_forward.13} parent=50 // loop_footer_branch
                  %171 = sbr.rel target = $region60
                $region65: #{discriminator_r_forward.13} parent=50 // loop_exit
                  _
              $region51: #{discriminator_r_forward.13} parent=35 // pred_fallthru
                _
            $region36: #{discriminator_r_forward.13} parent=31 // pred_fallthru
              _
            // Predicated region
            $region37: #{discriminator_r_forward.13} parent=31 // pred_check
              _
            $region38: #{discriminator_r_forward.13} parent=31 // pred_check_branch
              %144 = sbr.rel (0) target = $region40
            $region39: #{discriminator_r_forward.13} parent=31 // pred_region
              loop: start=0, step=1, limit=1
              $region41: #{discriminator_r_forward.13} parent=39 // loop_pre_header
                _
              $region42: #{discriminator_r_forward.13} parent=39 // loop_header
                %s147 = sphi 0, %s151
                %p148 = scmp.ge.s32.totalorder %s147, 1
                %s152 = sphi %s138, %s138
                %s153 = sphi %s136, %s136
              $region43: #{discriminator_r_forward.13} parent=39 // loop_header_branch
                %150 = sbr.rel (%p148) target = $region47
              $region44: #{discriminator_r_forward.13} parent=39 // loop_body
                %v154 = vld [vmem:[%s152] sm:$0xf]
                %155 = vst [vmem:[%s153] sm:$0xf] %v154
                %v156 = vld [vmem:[%s152 + $0x14] sm:$0xf]
                %157 = vst [vmem:[%s153 + $0x4] sm:$0xf] %v156
                %v158 = vld [vmem:[%s152 + $0x28] sm:$0xf]
                %159 = vst [vmem:[%s153 + $0x8] sm:$0xf] %v158
              $region45: #{discriminator_r_forward.13} parent=39 // loop_footer
                %s151 = sadd.s32 1, %s147
              $region46: #{discriminator_r_forward.13} parent=39 // loop_footer_branch
                %146 = sbr.rel target = $region42
              $region47: #{discriminator_r_forward.13} parent=39 // loop_exit
                _
            $region40: #{discriminator_r_forward.13} parent=31 // pred_fallthru
              _
          $region32: #{discriminator_r_forward.13} parent=27 // pred_fallthru
            _
          %185 = vnop
        $region28: #{discriminator_r_forward.13} parent=23 // pred_fallthru
          _
      $region24: #{discriminator_r_forward.13} parent=5 // pred_fallthru
        _
      %p186 = scmp.le.s32.totalorder 1, %s11
      %p187 = scmp.lt.s32.totalorder %s11, 6
      %p188 = pnand %p186, %p187
      %p189 = pneg %p188
      // Predicated region
      $region66: #{discriminator_r_forward.13} parent=5 // pred_check
        _
      $region67: #{discriminator_r_forward.13} parent=5 // pred_check_branch
        %191 = sbr.rel (%p188) target = $region69
      $region68: #{discriminator_r_forward.13} parent=5 // pred_region
        %s192 = ssub.s32 %s11, 1
        %s193 = sand.u32 %s45, 1
        %s194 = sand.u32 %s45, 1
        %s195 = smul.addr %s194, 12
        %s196 = scalar_lea.vmem [#allocation3], %s195
        // Predicated region
        $region70: #{discriminator_r_forward.13} parent=68 // pred_check
          %p197 = pneg %p58
        $region71: #{discriminator_r_forward.13} parent=68 // pred_check_branch
          %199 = sbr.rel (%p197) target = $region73
        $region72: #{discriminator_r_forward.13} parent=68 // pred_region
          _
        $region73: #{discriminator_r_forward.13} parent=68 // pred_fallthru
          _
        %p200 = pneg %p32
        %p201 = pneg %p29
        %s202 = sand.u32 %s45, 1
        %s203 = sand.u32 %s45, 1
        %s204 = smul.addr %s203, 12
        %s205 = scalar_lea.vmem [#allocation3], %s204
        %p206 = pneg %p58
        %p207 = pneg %p55
        %p208 = pneg %p79
        %p209 = pneg %p76
        %p210 = pneg %p105
        %p211 = pneg %p102
        %p212 = scmp.lt.s32.totalorder %s16, 4
        %s213 = scalar_select %p212, %s16, 4
        %s214 = scalar_lea.vmem %s3, %s213
        %p215 = scmp.lt.s32.totalorder %s16, 4
        %s216 = scalar_select %p215, %s16, 4
        %s217 = scalar_lea.vmem %s3, %s216
        %v219 = vld [vmem:[%s0] sm:$0x1]
        %v220 = vld [vmem:[%s196] sm:$0xf]
        %v221 = vld [vmem:[%s196 + $0x4] sm:$0xf]
        %v222 = vld [vmem:[%s196 + $0x8] sm:$0xf]
        %v226 = vunpack.c.l.b16 %v220
        %v227 = vunpack.c.l.b16 %v221
        %v228 = vunpack.c.l.b16 %v222
        %v229 = vpack.c.b16 %v227, %v226
        %v230 = vpack.c.b16 %v228, %v228
        %vm232 = vcmask 195584
        %v234 = vsel %vm232, %v219, 0
        %vm236 = vcmask 1043456
        %v238 = vsel %vm236, %v230, 0
        %240 = vmatprep.subr.bf16.mxu0 0
        %241 = vmatpush1.bf16.msra.mxu0 %v229
        %242 = vmatprep.subr.bf16.mxu0 0
        %243 = vmatpush1.bf16.msra.mxu0 %v238
        %244 = vmatprep.subr.bf16.mxu0 0
        %245 = vmatpush1.bf16.msra.mxu0 0
        %246 = vmatprep.subr.bf16.mxu0 0
        %247 = vmatpush1.bf16.msra.mxu0 0
        %248 = vmatprep.subr.bf16.mxu0 0
        %249 = vmatpush1.bf16.msra.mxu0 0
        %250 = vmatprep.subr.bf16.mxu0 0
        %251 = vmatpush1.bf16.msra.mxu0 0
        %252 = vmatprep.subr.bf16.mxu0 0
        %253 = vmatpush1.bf16.msra.mxu0 0
        %254 = vmatprep.subr.bf16.mxu0 0
        %255 = vmatpush1.bf16.msra.mxu0 0
        %256 = vmatprep.subr.bf16.mxu0 0
        %257 = vmatpush1.bf16.msra.mxu0 0
        %258 = vmatprep.subr.bf16.mxu0 0
        %259 = vmatpush1.bf16.msra.mxu0 0
        %260 = vmatprep.subr.bf16.mxu0 0
        %261 = vmatpush1.bf16.msra.mxu0 0
        %262 = vmatprep.subr.bf16.mxu0 0
        %263 = vmatpush1.bf16.msra.mxu0 0
        %264 = vmatprep.subr.bf16.mxu0 0
        %265 = vmatpush1.bf16.msra.mxu0 0
        %266 = vmatprep.subr.bf16.mxu0 0
        %267 = vmatpush1.bf16.msra.mxu0 0
        %268 = vmatprep.subr.bf16.mxu0 0
        %269 = vmatpush1.bf16.msra.mxu0 0
        %270 = vmatprep.subr.bf16.mxu0 0
        %271 = vmatpush1.bf16.msra.mxu0 0
        %272 = vmatprep.mubr.bf16.mxu0 0
        %273 = vmatmul.mubr.bf16.gmra.mrb[0].mxu0 %v234
        %v274 = vpop.f32.mrb[0].mxu0
        %v275 = vadd.f32 0.0, %v274
        %v276 = vpop.f32.mrb[0].mxu0
        %v277 = vpop.f32.mrb[0].mxu0
        %v278 = vpop.f32.mrb[0].mxu0
        %279 = vdwg.mxu0
        %280 = vst [vmem:[%s217] sm:$0x1] %v275
        %s281 = scalar_lea.vmem %s0, 1
        %v282 = vld [vmem:[%s281] sm:$0x1]
        %v283 = vld [vmem:[%s196] sm:$0xf]
        %v284 = vld [vmem:[%s196 + $0x4] sm:$0xf]
        %v285 = vld [vmem:[%s196 + $0x8] sm:$0xf]
        %v289 = vunpack.c.l.b16 %v283
        %v290 = vunpack.c.l.b16 %v284
        %v291 = vunpack.c.l.b16 %v285
        %v292 = vpack.c.b16 %v290, %v289
        %v293 = vpack.c.b16 %v291, %v291
        %v296 = vsel %vm232, %v282, 0
        %v299 = vsel %vm236, %v293, 0
        %301 = vmatprep.subr.bf16.mxu0 0
        %302 = vmatpush1.bf16.msra.mxu0 %v292
        %303 = vmatprep.subr.bf16.mxu0 0
        %304 = vmatpush1.bf16.msra.mxu0 %v299
        %305 = vmatprep.subr.bf16.mxu0 0
        %306 = vmatpush1.bf16.msra.mxu0 0
        %307 = vmatprep.subr.bf16.mxu0 0
        %308 = vmatpush1.bf16.msra.mxu0 0
        %309 = vmatprep.subr.bf16.mxu0 0
        %310 = vmatpush1.bf16.msra.mxu0 0
        %311 = vmatprep.subr.bf16.mxu0 0
        %312 = vmatpush1.bf16.msra.mxu0 0
        %313 = vmatprep.subr.bf16.mxu0 0
        %314 = vmatpush1.bf16.msra.mxu0 0
        %315 = vmatprep.subr.bf16.mxu0 0
        %316 = vmatpush1.bf16.msra.mxu0 0
        %317 = vmatprep.subr.bf16.mxu0 0
        %318 = vmatpush1.bf16.msra.mxu0 0
        %319 = vmatprep.subr.bf16.mxu0 0
        %320 = vmatpush1.bf16.msra.mxu0 0
        %321 = vmatprep.subr.bf16.mxu0 0
        %322 = vmatpush1.bf16.msra.mxu0 0
        %323 = vmatprep.subr.bf16.mxu0 0
        %324 = vmatpush1.bf16.msra.mxu0 0
        %325 = vmatprep.subr.bf16.mxu0 0
        %326 = vmatpush1.bf16.msra.mxu0 0
        %327 = vmatprep.subr.bf16.mxu0 0
        %328 = vmatpush1.bf16.msra.mxu0 0
        %329 = vmatprep.subr.bf16.mxu0 0
        %330 = vmatpush1.bf16.msra.mxu0 0
        %331 = vmatprep.subr.bf16.mxu0 0
        %332 = vmatpush1.bf16.msra.mxu0 0
        %333 = vmatprep.mubr.bf16.mxu0 0
        %334 = vmatmul.mubr.bf16.gmra.mrb[0].mxu0 %v296
        %v335 = vpop.f32.mrb[0].mxu0
        %v336 = vadd.f32 0.0, %v335
        %v337 = vpop.f32.mrb[0].mxu0
        %v338 = vpop.f32.mrb[0].mxu0
        %v339 = vpop.f32.mrb[0].mxu0
        %340 = vdwg.mxu0
        %v341 = vld [vmem:[%s217] sm:$0x1]
        %342 = vrot.lane.b32.xlu0 %v336, 127
        %v343 = vpop.permute.xlu0 %342
        %v344 = vadd.f32 %v341, %v343
        %345 = vst [vmem:[%s217] sm:$0x1] %v344
        %s346 = scalar_lea.vmem %s0, 2
        %v347 = vld [vmem:[%s346] sm:$0x1]
        %v348 = vld [vmem:[%s196] sm:$0xf]
        %v349 = vld [vmem:[%s196 + $0x4] sm:$0xf]
        %v350 = vld [vmem:[%s196 + $0x8] sm:$0xf]
        %v354 = vunpack.c.l.b16 %v348
        %v355 = vunpack.c.l.b16 %v349
        %v356 = vunpack.c.l.b16 %v350
        %v357 = vpack.c.b16 %v355, %v354
        %v358 = vpack.c.b16 %v356, %v356
        %v361 = vsel %vm232, %v347, 0
        %v364 = vsel %vm236, %v358, 0
        %366 = vmatprep.subr.bf16.mxu0 0
        %367 = vmatpush1.bf16.msra.mxu0 %v357
        %368 = vmatprep.subr.bf16.mxu0 0
        %369 = vmatpush1.bf16.msra.mxu0 %v364
        %370 = vmatprep.subr.bf16.mxu0 0
        %371 = vmatpush1.bf16.msra.mxu0 0
        %372 = vmatprep.subr.bf16.mxu0 0
        %373 = vmatpush1.bf16.msra.mxu0 0
        %374 = vmatprep.subr.bf16.mxu0 0
        %375 = vmatpush1.bf16.msra.mxu0 0
        %376 = vmatprep.subr.bf16.mxu0 0
        %377 = vmatpush1.bf16.msra.mxu0 0
        %378 = vmatprep.subr.bf16.mxu0 0
        %379 = vmatpush1.bf16.msra.mxu0 0
        %380 = vmatprep.subr.bf16.mxu0 0
        %381 = vmatpush1.bf16.msra.mxu0 0
        %382 = vmatprep.subr.bf16.mxu0 0
        %383 = vmatpush1.bf16.msra.mxu0 0
        %384 = vmatprep.subr.bf16.mxu0 0
        %385 = vmatpush1.bf16.msra.mxu0 0
        %386 = vmatprep.subr.bf16.mxu0 0
        %387 = vmatpush1.bf16.msra.mxu0 0
        %388 = vmatprep.subr.bf16.mxu0 0
        %389 = vmatpush1.bf16.msra.mxu0 0
        %390 = vmatprep.subr.bf16.mxu0 0
        %391 = vmatpush1.bf16.msra.mxu0 0
        %392 = vmatprep.subr.bf16.mxu0 0
        %393 = vmatpush1.bf16.msra.mxu0 0
        %394 = vmatprep.subr.bf16.mxu0 0
        %395 = vmatpush1.bf16.msra.mxu0 0
        %396 = vmatprep.subr.bf16.mxu0 0
        %397 = vmatpush1.bf16.msra.mxu0 0
        %398 = vmatprep.mubr.bf16.mxu0 0
        %399 = vmatmul.mubr.bf16.gmra.mrb[0].mxu0 %v361
        %v400 = vpop.f32.mrb[0].mxu0
        %v401 = vadd.f32 0.0, %v400
        %v402 = vpop.f32.mrb[0].mxu0
        %v403 = vpop.f32.mrb[0].mxu0
        %v404 = vpop.f32.mrb[0].mxu0
        %405 = vdwg.mxu0
        %v406 = vld [vmem:[%s217] sm:$0x1]
        %407 = vrot.lane.b32.xlu0 %v401, 126
        %v408 = vpop.permute.xlu0 %407
        %v409 = vadd.f32 %v406, %v408
        %410 = vst [vmem:[%s217] sm:$0x1] %v409
        %v411 = vld [vmem:[%s217] sm:$0x1]
        %v412 = vld [vmem:[#allocation2] sm:$0x1]
        %414 = vset.pattern.permute.xlu0 0
        %415 = vperm.xlu0 %414, %v412
        %v416 = vpop.permute.xlu0 %415
        %v418 = vlaneseq
        %v419 = vshrl.u32 %v418, 7
        %v420 = vsub.s32 0, %v419
        %v421 = vrot.slane %v416, %v420
        %v422 = vadd.f32 %v411, %v421
        %423 = vst [vmem:[%s217] sm:$0x1] %v422
        %p424 = scmp.lt.s32.totalorder %s16, 4
        %s425 = scalar_select %p424, %s16, 4
        %s426 = scalar_lea.vmem %s3, %s425
        // Predicated region
        $region74: #{discriminator_r_forward.13} parent=68 // pred_check
          %p427 = pneg %p102
        $region75: #{discriminator_r_forward.13} parent=68 // pred_check_branch
          %429 = sbr.rel (%p427) target = $region77
        $region76: #{discriminator_r_forward.13} parent=68 // pred_region
          _
        $region77: #{discriminator_r_forward.13} parent=68 // pred_fallthru
          _
      $region69: #{discriminator_r_forward.13} parent=5 // pred_fallthru
        _
      %p430 = scmp.le.s32.totalorder 2, %s11
      // Predicated region
      $region78: #{discriminator_r_forward.13} parent=5 // pred_check
        %p431 = pneg %p430
      $region79: #{discriminator_r_forward.13} parent=5 // pred_check_branch
        %433 = sbr.rel (%p431) target = $region81
      $region80: #{discriminator_r_forward.13} parent=5 // pred_region
        %s434 = ssub.s32 %s11, 2
        // Predicated region
        $region82: #{discriminator_r_forward.13} parent=80 // pred_check
          %p435 = pneg %p108
        $region83: #{discriminator_r_forward.13} parent=80 // pred_check_branch
          %437 = sbr.rel (%p435) target = $region85
        $region84: #{discriminator_r_forward.13} parent=80 // pred_region
          %p438 = scmp.lt.s32.totalorder %s17, 4
          %s439 = scalar_select %p438, %s17, 4
          %s440 = scalar_lea.vmem %s3, %s439
        $region85: #{discriminator_r_forward.13} parent=80 // pred_fallthru
          _
      $region81: #{discriminator_r_forward.13} parent=5 // pred_fallthru
        _
    $region6: #{discriminator_r_forward.13} parent=1 // loop_footer
      %s15 = sadd.s32 1, %s11
    $region7: #{discriminator_r_forward.13} parent=1 // loop_footer_branch
      %10 = sbr.rel target = $region3
    $region8: #{discriminator_r_forward.13} parent=1 // loop_exit
      _

</llo_original>
